<compile_context>
chip_gen: v5e
topology: v5e:2x2
jax: 0.10.0
libtpu: 0.0.40
codegen_flags: <defaults>
</compile_context>

<pallas_src>
import jax
import jax.numpy as jnp
from jax.experimental import pallas as pl
from jax.experimental.pallas import tpu as pltpu

HALF_WIDTH = 256     # Half_width in the PyTorch module
LAYER_WIDTH = 512    # layer_width in the PyTorch module


def _round_up(n, m):
    return ((n + m - 1) // m) * m


def _device_kind():
    try:
        return jax.devices()[0].device_kind.lower()
    except Exception:
        return ""


def _default_tb():
    kind = _device_kind()
    if "v5" in kind:
        # v5e: MXU ~197 TF/s -> a 256-row step already dwarfs per-step overhead; keep VMEM modest.
        return 256
    # v6e / v7x: amortize ~0.35 us/step overhead with a bigger tile.
    return 1024


def _num_tensorcores():
    # v7x has 2 TensorCores per chip; keep >=2 grid steps so "parallel" can shard across them.
    return 2 if "7" in _device_kind() else 1


def _choose_tile(B, tb_max):
    candidates = [c for c in (1024, 512, 256, 128, 64, 32, 16) if c <= max(tb_max, 16)]
    if not candidates:
        candidates = [16]
    for c in candidates:
        waste = _round_up(B, c) - B
        if waste <= 0.10 * B:          # padding overhead <= ~10%
            return c
    return candidates[-1]


def _vmem_limit_bytes(tb, npad, single_buffer_weights):
    # bf16 weights: 4x[256,512] + 3x[512,512] + 4x[512,npad]
    w_elems = (4 * HALF_WIDTH * LAYER_WIDTH
               + 3 * LAYER_WIDTH * LAYER_WIDTH
               + 4 * LAYER_WIDTH * npad)
    wbytes = 2 * w_elems + 4 * (4 * LAYER_WIDTH + npad)
    if not single_buffer_weights:
        wbytes *= 2
    x_tiles = 2 * tb * (2 * HALF_WIDTH) * 2          # double-buffered bf16 input tile
    o_tiles = 2 * tb * npad * 4                      # double-buffered f32 output tile
    # in-kernel live intermediates: f32 h, a couple of bf16 activations, f32 logits accumulator
    interm = tb * LAYER_WIDTH * (4 + 2 + 2) + tb * npad * 4 + tb * (2 * HALF_WIDTH) * 2
    total = wbytes + x_tiles + o_tiles + interm
    return min(int(total * 1.5) + (8 << 20), 48 << 20)


def spinal_head_kernel(x_ref,
                       w1_ref, b1_ref,
                       w2a_ref, w2b_ref, b2_ref,
                       w3a_ref, w3b_ref, b3_ref,
                       w4a_ref, w4b_ref, b4_ref,
                       wo1_ref, wo2_ref, wo3_ref, wo4_ref, bo_ref,
                       o_ref):
    f32 = jnp.float32
    bf16 = jnp.bfloat16

    x = x_ref[...]                          # bf16 [tb, 512]
    xa = x[:, :HALF_WIDTH]                  # x[:, 0:256]
    xb = x[:, HALF_WIDTH:]                  # x[:, 256:512]

    # spinal layer 1: relu(Linear(256 -> 512)(xa))
    h1 = jnp.dot(xa, w1_ref[...], preferred_element_type=f32) + b1_ref[...]
    x1b = jnp.maximum(h1, 0.0).astype(bf16)
    # fc_out contribution of x1, accumulated immediately (f32 accumulator).
    logits = bo_ref[...] + jnp.dot(x1b, wo1_ref[...], preferred_element_type=f32)

    # spinal layer 2: relu(Linear(768 -> 512)(cat([xb, x1])))   (cat folded into two matmuls)
    h2 = (jnp.dot(xb, w2a_ref[...], preferred_element_type=f32)
          + jnp.dot(x1b, w2b_ref[...], preferred_element_type=f32)
          + b2_ref[...])
    x2b = jnp.maximum(h2, 0.0).astype(bf16)
    logits = logits + jnp.dot(x2b, wo2_ref[...], preferred_element_type=f32)

    # spinal layer 3: relu(Linear(768 -> 512)(cat([xa, x2])))
    h3 = (jnp.dot(xa, w3a_ref[...], preferred_element_type=f32)
          + jnp.dot(x2b, w3b_ref[...], preferred_element_type=f32)
          + b3_ref[...])
    x3b = jnp.maximum(h3, 0.0).astype(bf16)
    logits = logits + jnp.dot(x3b, wo3_ref[...], preferred_element_type=f32)

    # spinal layer 4: relu(Linear(768 -> 512)(cat([xb, x3])))
    h4 = (jnp.dot(xb, w4a_ref[...], preferred_element_type=f32)
          + jnp.dot(x3b, w4b_ref[...], preferred_element_type=f32)
          + b4_ref[...])
    x4b = jnp.maximum(h4, 0.0).astype(bf16)
    logits = logits + jnp.dot(x4b, wo4_ref[...], preferred_element_type=f32)

    o_ref[...] = logits.astype(o_ref.dtype)


def spinal_vgg_head_forward(feat, params, *, num_class=10, tb=None):
    """feat: output of the conv `features` backbone, [B, 512, 1, 1] (or any [B, >=512] flat).
    Returns logits [B, num_class] (float32)."""
    w1, b1, w2, b2, w3, b3, w4, b4, wo, bo = params

    B = feat.shape[0]
    feat2d = feat.reshape(B, -1)                    # output.view(output.size()[0], -1)
    assert feat2d.shape[1] >= 2 * HALF_WIDTH
    feat2d = feat2d[:, : 2 * HALF_WIDTH]            # forward only consumes the first 512 features

    if tb is None:
        tb = _default_tb()

    # Adaptive batch tile: multiple of 16 (bf16 sublane packing), <= requested tb,
    # chosen so batch-padding waste is small; pad batch to a multiple of it.
    tb_eff = _choose_tile(B, tb)
    Bp = _round_up(B, tb_eff)
    if _num_tensorcores() >= 2:
        # v7x: make sure there are >=2 grid steps when the batch permits, so both TCs get work.
        while Bp // tb_eff < 2 and tb_eff > 16:
            tb_eff //= 2
            Bp = _round_up(B, tb_eff)
    if Bp != B:
        feat2d = jnp.pad(feat2d, ((0, Bp - B), (0, 0)))

    bf16 = jnp.bfloat16
    f32 = jnp.float32
    NPAD = max(128, _round_up(num_class, 128))      # lane-dense output width

    xin = feat2d.astype(bf16)

    # PyTorch Linear weights are [out, in]; transpose to [in, out], split off the concat halves.
    w1t = w1.T.astype(bf16)                                           # [256, 512]
    w2a = w2[:, :HALF_WIDTH].T.astype(bf16)                           # [256, 512] (for xb)
    w2b = w2[:, HALF_WIDTH:].T.astype(bf16)                           # [512, 512] (for x1)
    w3a = w3[:, :HALF_WIDTH].T.astype(bf16)
    w3b = w3[:, HALF_WIDTH:].T.astype(bf16)
    w4a = w4[:, :HALF_WIDTH].T.astype(bf16)
    w4b = w4[:, HALF_WIDTH:].T.astype(bf16)

    def out_piece(k):
        piece = wo[:, k * LAYER_WIDTH:(k + 1) * LAYER_WIDTH].T        # [512, num_class]
        return jnp.pad(piece, ((0, 0), (0, NPAD - num_class))).astype(bf16)

    wo1, wo2, wo3, wo4 = (out_piece(k) for k in range(4))

    b1r = b1[None, :].astype(f32)
    b2r = b2[None, :].astype(f32)
    b3r = b3[None, :].astype(f32)
    b4r = b4[None, :].astype(f32)
    bor = jnp.pad(bo, (0, NPAD - num_class))[None, :].astype(f32)

    grid = (Bp // tb_eff,)

    flops = 2 * Bp * (HALF_WIDTH * LAYER_WIDTH
                      + 3 * (HALF_WIDTH + LAYER_WIDTH) * LAYER_WIDTH
                      + 4 * LAYER_WIDTH * NPAD)
    weight_bytes = 2 * (HALF_WIDTH * LAYER_WIDTH
                        + 3 * (HALF_WIDTH + LAYER_WIDTH) * LAYER_WIDTH
                        + 4 * LAYER_WIDTH * NPAD) + 4 * (4 * LAYER_WIDTH + NPAD)
    bytes_accessed = Bp * 2 * HALF_WIDTH * 2 + weight_bytes + Bp * NPAD * 4

    args = (xin, w1t, b1r, w2a, w2b, b2r, w3a, w3b, b3r, w4a, w4b, b4r,
            wo1, wo2, wo3, wo4, bor)

    def make_call(single_buffer_weights):
        if single_buffer_weights:
            # Grid-invariant operands: index_map is constant, so they are only DMA'd once;
            # single-buffer them to halve their VMEM residency.
            def full(shape):
                return pl.BlockSpec(shape, lambda i: (0, 0), pipeline_mode=pl.Buffered(1))
        else:
            def full(shape):
                return pl.BlockSpec(shape, lambda i: (0, 0))

        return pl.pallas_call(
            spinal_head_kernel,
            out_shape=jax.ShapeDtypeStruct((Bp, NPAD), jnp.float32),
            grid_spec=pltpu.PrefetchScalarGridSpec(
                num_scalar_prefetch=0,
                grid=grid,
                in_specs=[
                    pl.BlockSpec((tb_eff, 2 * HALF_WIDTH), lambda i: (i, 0)),   # x tile
                    full((HALF_WIDTH, LAYER_WIDTH)), full((1, LAYER_WIDTH)),    # spinal 1
                    full((HALF_WIDTH, LAYER_WIDTH)), full((LAYER_WIDTH, LAYER_WIDTH)),
                    full((1, LAYER_WIDTH)),                                     # spinal 2
                    full((HALF_WIDTH, LAYER_WIDTH)), full((LAYER_WIDTH, LAYER_WIDTH)),
                    full((1, LAYER_WIDTH)),                                     # spinal 3
                    full((HALF_WIDTH, LAYER_WIDTH)), full((LAYER_WIDTH, LAYER_WIDTH)),
                    full((1, LAYER_WIDTH)),                                     # spinal 4
                    full((LAYER_WIDTH, NPAD)), full((LAYER_WIDTH, NPAD)),
                    full((LAYER_WIDTH, NPAD)), full((LAYER_WIDTH, NPAD)),
                    full((1, NPAD)),                                            # fc_out
                ],
                out_specs=pl.BlockSpec((tb_eff, NPAD), lambda i: (i, 0)),
            ),
            compiler_params=pltpu.CompilerParams(
                dimension_semantics=("parallel",),
                vmem_limit_bytes=_vmem_limit_bytes(tb_eff, NPAD, single_buffer_weights),
            ),
            cost_estimate=pl.CostEstimate(
                flops=flops, transcendentals=0, bytes_accessed=bytes_accessed),
        )

    try:
        out = make_call(True)(*args)
    except Exception:
        # TODO(synk): pl.Buffered(1) single-buffering unsupported on this JAX/Mosaic version;
        #             fall back to default double-buffered weight specs (correctness identical).
        out = make_call(False)(*args)

    return out[:B, :num_class]


def init_params(key, num_class=10):
    """Deterministic init matching nn.Linear shapes (W: [out, in], b: [out])."""
    ks = jax.random.split(key, 10)

    def lin(kw, kb, out_f, in_f):
        bound = 1.0 / jnp.sqrt(in_f)
        w = jax.random.uniform(kw, (out_f, in_f), jnp.float32, -bound, bound)
        b = jax.random.uniform(kb, (out_f,), jnp.float32, -bound, bound)
        return w, b

    w1, b1 = lin(ks[0], ks[1], LAYER_WIDTH, HALF_WIDTH)
    w2, b2 = lin(ks[2], ks[3], LAYER_WIDTH, HALF_WIDTH + LAYER_WIDTH)
    w3, b3 = lin(ks[4], ks[5], LAYER_WIDTH, HALF_WIDTH + LAYER_WIDTH)
    w4, b4 = lin(ks[6], ks[7], LAYER_WIDTH, HALF_WIDTH + LAYER_WIDTH)
    wo, bo = lin(ks[8], ks[9], num_class, 4 * LAYER_WIDTH)
    return (w1, b1, w2, b2, w3, b3, w4, b4, wo, bo)


def reference_forward(feat, params):
    """Pure-JAX reference of the SpinalVGG head (eval mode), with weights/activations
    quantized to bf16 exactly as the kernel does (accumulation in f32)."""
    w1, b1, w2, b2, w3, b3, w4, b4, wo, bo = params
    q = lambda a: a.astype(jnp.bfloat16).astype(jnp.float32)

    x = feat.reshape(feat.shape[0], -1)[:, : 2 * HALF_WIDTH]
    x = q(x)
    xa, xb = x[:, :HALF_WIDTH], x[:, HALF_WIDTH:]
    x1 = jax.nn.relu(xa @ q(w1).T + b1)
    x2 = jax.nn.relu(jnp.concatenate([xb, q(x1)], axis=1) @ q(w2).T + b2)
    x3 = jax.nn.relu(jnp.concatenate([xa, q(x2)], axis=1) @ q(w3).T + b3)
    x4 = jax.nn.relu(jnp.concatenate([xb, q(x3)], axis=1) @ q(w4).T + b4)
    cat = jnp.concatenate([q(x1), q(x2), q(x3), q(x4)], axis=1)
    return cat @ q(wo).T + bo


if __name__ == "__main__":
    key = jax.random.PRNGKey(0)
    kx, kp = jax.random.split(key)
    params = init_params(kp)

    # Small example: features as produced by the (external) VGG conv backbone: [B, 512, 1, 1].
    B = 4
    feat = jax.random.normal(kx, (B, 2 * HALF_WIDTH, 1, 1), jnp.float32)

    out = spinal_vgg_head_forward(feat, params)
    out = jax.block_until_ready(out)

    ref = reference_forward(feat, params)
    assert out.shape == (B, 10)
    assert jnp.allclose(out, ref, atol=2e-3, rtol=2e-3), "mismatch vs JAX reference"
    print("KERNEL_OK")
</pallas_src>

<mosaic_0001>
module attributes {stable_mosaic.version = 11 : i64} {
  func.func @spinal_head_kernel(%arg0: i32, %arg1: memref<16x512xbf16, #tpu.memory_space<vmem>>, %arg2: memref<256x512xbf16, #tpu.memory_space<vmem>>, %arg3: memref<1x512xf32, #tpu.memory_space<vmem>>, %arg4: memref<256x512xbf16, #tpu.memory_space<vmem>>, %arg5: memref<512x512xbf16, #tpu.memory_space<vmem>>, %arg6: memref<1x512xf32, #tpu.memory_space<vmem>>, %arg7: memref<256x512xbf16, #tpu.memory_space<vmem>>, %arg8: memref<512x512xbf16, #tpu.memory_space<vmem>>, %arg9: memref<1x512xf32, #tpu.memory_space<vmem>>, %arg10: memref<256x512xbf16, #tpu.memory_space<vmem>>, %arg11: memref<512x512xbf16, #tpu.memory_space<vmem>>, %arg12: memref<1x512xf32, #tpu.memory_space<vmem>>, %arg13: memref<512x128xbf16, #tpu.memory_space<vmem>>, %arg14: memref<512x128xbf16, #tpu.memory_space<vmem>>, %arg15: memref<512x128xbf16, #tpu.memory_space<vmem>>, %arg16: memref<512x128xbf16, #tpu.memory_space<vmem>>, %arg17: memref<1x128xf32, #tpu.memory_space<vmem>>, %arg18: memref<16x128xf32, #tpu.memory_space<vmem>>) attributes {dimension_semantics = [#tpu.dimension_semantics<parallel>], iteration_bounds = array<i64: 1>, scalar_prefetch = 0 : i64, scratch_operands = 0 : i64, tpu.core_type = #tpu.core_type<tc>, window_params = [{transform_indices = @transform_0, window_bounds = array<i64: 16, 512>}, {pipeline_mode = #tpu.pipeline_mode<synchronous>, transform_indices = @transform_1, window_bounds = array<i64: 256, 512>}, {pipeline_mode = #tpu.pipeline_mode<synchronous>, transform_indices = @transform_2, window_bounds = array<i64: 1, 512>}, {pipeline_mode = #tpu.pipeline_mode<synchronous>, transform_indices = @transform_3, window_bounds = array<i64: 256, 512>}, {pipeline_mode = #tpu.pipeline_mode<synchronous>, transform_indices = @transform_4, window_bounds = array<i64: 512, 512>}, {pipeline_mode = #tpu.pipeline_mode<synchronous>, transform_indices = @transform_5, window_bounds = array<i64: 1, 512>}, {pipeline_mode = #tpu.pipeline_mode<synchronous>, transform_indices = @transform_6, window_bounds = array<i64: 256, 512>}, {pipeline_mode = #tpu.pipeline_mode<synchronous>, transform_indices = @transform_7, window_bounds = array<i64: 512, 512>}, {pipeline_mode = #tpu.pipeline_mode<synchronous>, transform_indices = @transform_8, window_bounds = array<i64: 1, 512>}, {pipeline_mode = #tpu.pipeline_mode<synchronous>, transform_indices = @transform_9, window_bounds = array<i64: 256, 512>}, {pipeline_mode = #tpu.pipeline_mode<synchronous>, transform_indices = @transform_10, window_bounds = array<i64: 512, 512>}, {pipeline_mode = #tpu.pipeline_mode<synchronous>, transform_indices = @transform_11, window_bounds = array<i64: 1, 512>}, {pipeline_mode = #tpu.pipeline_mode<synchronous>, transform_indices = @transform_12, window_bounds = array<i64: 512, 128>}, {pipeline_mode = #tpu.pipeline_mode<synchronous>, transform_indices = @transform_13, window_bounds = array<i64: 512, 128>}, {pipeline_mode = #tpu.pipeline_mode<synchronous>, transform_indices = @transform_14, window_bounds = array<i64: 512, 128>}, {pipeline_mode = #tpu.pipeline_mode<synchronous>, transform_indices = @transform_15, window_bounds = array<i64: 512, 128>}, {pipeline_mode = #tpu.pipeline_mode<synchronous>, transform_indices = @transform_16, window_bounds = array<i64: 1, 128>}, {transform_indices = @transform_17, window_bounds = array<i64: 16, 128>}]} {
    %c0 = arith.constant 0 : index
    %c0_0 = arith.constant 0 : index
    %0 = vector.load %arg1[%c0, %c0_0] : memref<16x512xbf16, #tpu.memory_space<vmem>>, vector<16x512xbf16>
    %1 = vector.extract_strided_slice %0 {offsets = [0, 0], sizes = [16, 256], strides = [1, 1]} : vector<16x512xbf16> to vector<16x256xbf16>
    %2 = vector.extract_strided_slice %0 {offsets = [0, 256], sizes = [16, 256], strides = [1, 1]} : vector<16x512xbf16> to vector<16x256xbf16>
    %c0_1 = arith.constant 0 : index
    %c0_2 = arith.constant 0 : index
    %3 = vector.load %arg2[%c0_1, %c0_2] : memref<256x512xbf16, #tpu.memory_space<vmem>>, vector<256x512xbf16>
    %cst = arith.constant dense<0.000000e+00> : vector<16x512xf32>
    %4 = tpu.matmul %1, %3, %cst {dimension_numbers = #tpu.dot_dimension_numbers<[1], [0], [0], [1], [0, 0, 1, 1], [], []>} : vector<16x256xbf16>, vector<256x512xbf16>, vector<16x512xf32> -> vector<16x512xf32>
    %c0_3 = arith.constant 0 : index
    %c0_4 = arith.constant 0 : index
    %5 = vector.load %arg3[%c0_3, %c0_4] : memref<1x512xf32, #tpu.memory_space<vmem>>, vector<1x512xf32>
    %6 = vector.broadcast %5 : vector<1x512xf32> to vector<16x512xf32>
    %7 = arith.addf %4, %6 : vector<16x512xf32>
    %cst_5 = arith.constant 0.000000e+00 : f32
    %8 = vector.broadcast %cst_5 : f32 to vector<16x512xf32>
    %9 = arith.maximumf %7, %8 : vector<16x512xf32>
    %10 = arith.truncf %9 : vector<16x512xf32> to vector<16x512xbf16>
    %c0_6 = arith.constant 0 : index
    %c0_7 = arith.constant 0 : index
    %11 = vector.load %arg17[%c0_6, %c0_7] : memref<1x128xf32, #tpu.memory_space<vmem>>, vector<1x128xf32>
    %c0_8 = arith.constant 0 : index
    %c0_9 = arith.constant 0 : index
    %12 = vector.load %arg13[%c0_8, %c0_9] : memref<512x128xbf16, #tpu.memory_space<vmem>>, vector<512x128xbf16>
    %cst_10 = arith.constant dense<0.000000e+00> : vector<16x128xf32>
    %13 = tpu.matmul %10, %12, %cst_10 {dimension_numbers = #tpu.dot_dimension_numbers<[1], [0], [0], [1], [0, 0, 1, 1], [], []>} : vector<16x512xbf16>, vector<512x128xbf16>, vector<16x128xf32> -> vector<16x128xf32>
    %14 = vector.broadcast %11 : vector<1x128xf32> to vector<16x128xf32>
    %15 = arith.addf %14, %13 : vector<16x128xf32>
    %c0_11 = arith.constant 0 : index
    %c0_12 = arith.constant 0 : index
    %16 = vector.load %arg4[%c0_11, %c0_12] : memref<256x512xbf16, #tpu.memory_space<vmem>>, vector<256x512xbf16>
    %cst_13 = arith.constant dense<0.000000e+00> : vector<16x512xf32>
    %17 = tpu.matmul %2, %16, %cst_13 {dimension_numbers = #tpu.dot_dimension_numbers<[1], [0], [0], [1], [0, 0, 1, 1], [], []>} : vector<16x256xbf16>, vector<256x512xbf16>, vector<16x512xf32> -> vector<16x512xf32>
    %c0_14 = arith.constant 0 : index
    %c0_15 = arith.constant 0 : index
    %18 = vector.load %arg5[%c0_14, %c0_15] : memref<512x512xbf16, #tpu.memory_space<vmem>>, vector<512x512xbf16>
    %cst_16 = arith.constant dense<0.000000e+00> : vector<16x512xf32>
    %19 = tpu.matmul %10, %18, %cst_16 {dimension_numbers = #tpu.dot_dimension_numbers<[1], [0], [0], [1], [0, 0, 1, 1], [], []>} : vector<16x512xbf16>, vector<512x512xbf16>, vector<16x512xf32> -> vector<16x512xf32>
    %20 = arith.addf %17, %19 : vector<16x512xf32>
    %c0_17 = arith.constant 0 : index
    %c0_18 = arith.constant 0 : index
    %21 = vector.load %arg6[%c0_17, %c0_18] : memref<1x512xf32, #tpu.memory_space<vmem>>, vector<1x512xf32>
    %22 = vector.broadcast %21 : vector<1x512xf32> to vector<16x512xf32>
    %23 = arith.addf %20, %22 : vector<16x512xf32>
    %cst_19 = arith.constant 0.000000e+00 : f32
    %24 = vector.broadcast %cst_19 : f32 to vector<16x512xf32>
    %25 = arith.maximumf %23, %24 : vector<16x512xf32>
    %26 = arith.truncf %25 : vector<16x512xf32> to vector<16x512xbf16>
    %c0_20 = arith.constant 0 : index
    %c0_21 = arith.constant 0 : index
    %27 = vector.load %arg14[%c0_20, %c0_21] : memref<512x128xbf16, #tpu.memory_space<vmem>>, vector<512x128xbf16>
    %cst_22 = arith.constant dense<0.000000e+00> : vector<16x128xf32>
    %28 = tpu.matmul %26, %27, %cst_22 {dimension_numbers = #tpu.dot_dimension_numbers<[1], [0], [0], [1], [0, 0, 1, 1], [], []>} : vector<16x512xbf16>, vector<512x128xbf16>, vector<16x128xf32> -> vector<16x128xf32>
    %29 = arith.addf %15, %28 : vector<16x128xf32>
    %c0_23 = arith.constant 0 : index
    %c0_24 = arith.constant 0 : index
    %30 = vector.load %arg7[%c0_23, %c0_24] : memref<256x512xbf16, #tpu.memory_space<vmem>>, vector<256x512xbf16>
    %cst_25 = arith.constant dense<0.000000e+00> : vector<16x512xf32>
    %31 = tpu.matmul %1, %30, %cst_25 {dimension_numbers = #tpu.dot_dimension_numbers<[1], [0], [0], [1], [0, 0, 1, 1], [], []>} : vector<16x256xbf16>, vector<256x512xbf16>, vector<16x512xf32> -> vector<16x512xf32>
    %c0_26 = arith.constant 0 : index
    %c0_27 = arith.constant 0 : index
    %32 = vector.load %arg8[%c0_26, %c0_27] : memref<512x512xbf16, #tpu.memory_space<vmem>>, vector<512x512xbf16>
    %cst_28 = arith.constant dense<0.000000e+00> : vector<16x512xf32>
    %33 = tpu.matmul %26, %32, %cst_28 {dimension_numbers = #tpu.dot_dimension_numbers<[1], [0], [0], [1], [0, 0, 1, 1], [], []>} : vector<16x512xbf16>, vector<512x512xbf16>, vector<16x512xf32> -> vector<16x512xf32>
    %34 = arith.addf %31, %33 : vector<16x512xf32>
    %c0_29 = arith.constant 0 : index
    %c0_30 = arith.constant 0 : index
    %35 = vector.load %arg9[%c0_29, %c0_30] : memref<1x512xf32, #tpu.memory_space<vmem>>, vector<1x512xf32>
    %36 = vector.broadcast %35 : vector<1x512xf32> to vector<16x512xf32>
    %37 = arith.addf %34, %36 : vector<16x512xf32>
    %cst_31 = arith.constant 0.000000e+00 : f32
    %38 = vector.broadcast %cst_31 : f32 to vector<16x512xf32>
    %39 = arith.maximumf %37, %38 : vector<16x512xf32>
    %40 = arith.truncf %39 : vector<16x512xf32> to vector<16x512xbf16>
    %c0_32 = arith.constant 0 : index
    %c0_33 = arith.constant 0 : index
    %41 = vector.load %arg15[%c0_32, %c0_33] : memref<512x128xbf16, #tpu.memory_space<vmem>>, vector<512x128xbf16>
    %cst_34 = arith.constant dense<0.000000e+00> : vector<16x128xf32>
    %42 = tpu.matmul %40, %41, %cst_34 {dimension_numbers = #tpu.dot_dimension_numbers<[1], [0], [0], [1], [0, 0, 1, 1], [], []>} : vector<16x512xbf16>, vector<512x128xbf16>, vector<16x128xf32> -> vector<16x128xf32>
    %43 = arith.addf %29, %42 : vector<16x128xf32>
    %c0_35 = arith.constant 0 : index
    %c0_36 = arith.constant 0 : index
    %44 = vector.load %arg10[%c0_35, %c0_36] : memref<256x512xbf16, #tpu.memory_space<vmem>>, vector<256x512xbf16>
    %cst_37 = arith.constant dense<0.000000e+00> : vector<16x512xf32>
    %45 = tpu.matmul %2, %44, %cst_37 {dimension_numbers = #tpu.dot_dimension_numbers<[1], [0], [0], [1], [0, 0, 1, 1], [], []>} : vector<16x256xbf16>, vector<256x512xbf16>, vector<16x512xf32> -> vector<16x512xf32>
    %c0_38 = arith.constant 0 : index
    %c0_39 = arith.constant 0 : index
    %46 = vector.load %arg11[%c0_38, %c0_39] : memref<512x512xbf16, #tpu.memory_space<vmem>>, vector<512x512xbf16>
    %cst_40 = arith.constant dense<0.000000e+00> : vector<16x512xf32>
    %47 = tpu.matmul %40, %46, %cst_40 {dimension_numbers = #tpu.dot_dimension_numbers<[1], [0], [0], [1], [0, 0, 1, 1], [], []>} : vector<16x512xbf16>, vector<512x512xbf16>, vector<16x512xf32> -> vector<16x512xf32>
    %48 = arith.addf %45, %47 : vector<16x512xf32>
    %c0_41 = arith.constant 0 : index
    %c0_42 = arith.constant 0 : index
    %49 = vector.load %arg12[%c0_41, %c0_42] : memref<1x512xf32, #tpu.memory_space<vmem>>, vector<1x512xf32>
    %50 = vector.broadcast %49 : vector<1x512xf32> to vector<16x512xf32>
    %51 = arith.addf %48, %50 : vector<16x512xf32>
    %cst_43 = arith.constant 0.000000e+00 : f32
    %52 = vector.broadcast %cst_43 : f32 to vector<16x512xf32>
    %53 = arith.maximumf %51, %52 : vector<16x512xf32>
    %54 = arith.truncf %53 : vector<16x512xf32> to vector<16x512xbf16>
    %c0_44 = arith.constant 0 : index
    %c0_45 = arith.constant 0 : index
    %55 = vector.load %arg16[%c0_44, %c0_45] : memref<512x128xbf16, #tpu.memory_space<vmem>>, vector<512x128xbf16>
    %cst_46 = arith.constant dense<0.000000e+00> : vector<16x128xf32>
    %56 = tpu.matmul %54, %55, %cst_46 {dimension_numbers = #tpu.dot_dimension_numbers<[1], [0], [0], [1], [0, 0, 1, 1], [], []>} : vector<16x512xbf16>, vector<512x128xbf16>, vector<16x128xf32> -> vector<16x128xf32>
    %57 = arith.addf %43, %56 : vector<16x128xf32>
    %c0_47 = arith.constant 0 : index
    %c0_48 = arith.constant 0 : index
    %58 = vector.load %arg18[%c0_47, %c0_48] : memref<16x128xf32, #tpu.memory_space<vmem>>, vector<16x128xf32>
    tpu.vector_store %arg18[%c0_47, %c0_48], %57 {strides = array<i32>} : memref<16x128xf32, #tpu.memory_space<vmem>>, vector<16x128xf32>,
    return
  }
  func.func @transform_0(%arg0: i32) -> (i32, i32) {
    %c0_i32 = arith.constant 0 : i32
    %c0_i32_0 = arith.constant 0 : i32
    return %arg0, %c0_i32 : i32, i32
  }
  func.func @transform_1(%arg0: i32) -> (i32, i32) {
    %c0_i32 = arith.constant 0 : i32
    %c0_i32_0 = arith.constant 0 : i32
    %c0_i32_1 = arith.constant 0 : i32
    return %c0_i32, %c0_i32_0 : i32, i32
  }
  func.func @transform_2(%arg0: i32) -> (i32, i32) {
    %c0_i32 = arith.constant 0 : i32
    %c0_i32_0 = arith.constant 0 : i32
    %c0_i32_1 = arith.constant 0 : i32
    return %c0_i32, %c0_i32_0 : i32, i32
  }
  func.func @transform_3(%arg0: i32) -> (i32, i32) {
    %c0_i32 = arith.constant 0 : i32
    %c0_i32_0 = arith.constant 0 : i32
    %c0_i32_1 = arith.constant 0 : i32
    return %c0_i32, %c0_i32_0 : i32, i32
  }
  func.func @transform_4(%arg0: i32) -> (i32, i32) {
    %c0_i32 = arith.constant 0 : i32
    %c0_i32_0 = arith.constant 0 : i32
    %c0_i32_1 = arith.constant 0 : i32
    return %c0_i32, %c0_i32_0 : i32, i32
  }
  func.func @transform_5(%arg0: i32) -> (i32, i32) {
    %c0_i32 = arith.constant 0 : i32
    %c0_i32_0 = arith.constant 0 : i32
    %c0_i32_1 = arith.constant 0 : i32
    return %c0_i32, %c0_i32_0 : i32, i32
  }
  func.func @transform_6(%arg0: i32) -> (i32, i32) {
    %c0_i32 = arith.constant 0 : i32
    %c0_i32_0 = arith.constant 0 : i32
    %c0_i32_1 = arith.constant 0 : i32
    return %c0_i32, %c0_i32_0 : i32, i32
  }
  func.func @transform_7(%arg0: i32) -> (i32, i32) {
    %c0_i32 = arith.constant 0 : i32
    %c0_i32_0 = arith.constant 0 : i32
    %c0_i32_1 = arith.constant 0 : i32
    return %c0_i32, %c0_i32_0 : i32, i32
  }
  func.func @transform_8(%arg0: i32) -> (i32, i32) {
    %c0_i32 = arith.constant 0 : i32
    %c0_i32_0 = arith.constant 0 : i32
    %c0_i32_1 = arith.constant 0 : i32
    return %c0_i32, %c0_i32_0 : i32, i32
  }
  func.func @transform_9(%arg0: i32) -> (i32, i32) {
    %c0_i32 = arith.constant 0 : i32
    %c0_i32_0 = arith.constant 0 : i32
    %c0_i32_1 = arith.constant 0 : i32
    return %c0_i32, %c0_i32_0 : i32, i32
  }
  func.func @transform_10(%arg0: i32) -> (i32, i32) {
    %c0_i32 = arith.constant 0 : i32
    %c0_i32_0 = arith.constant 0 : i32
    %c0_i32_1 = arith.constant 0 : i32
    return %c0_i32, %c0_i32_0 : i32, i32
  }
  func.func @transform_11(%arg0: i32) -> (i32, i32) {
    %c0_i32 = arith.constant 0 : i32
    %c0_i32_0 = arith.constant 0 : i32
    %c0_i32_1 = arith.constant 0 : i32
    return %c0_i32, %c0_i32_0 : i32, i32
  }
  func.func @transform_12(%arg0: i32) -> (i32, i32) {
    %c0_i32 = arith.constant 0 : i32
    %c0_i32_0 = arith.constant 0 : i32
    %c0_i32_1 = arith.constant 0 : i32
    return %c0_i32, %c0_i32_0 : i32, i32
  }
  func.func @transform_13(%arg0: i32) -> (i32, i32) {
    %c0_i32 = arith.constant 0 : i32
    %c0_i32_0 = arith.constant 0 : i32
    %c0_i32_1 = arith.constant 0 : i32
    return %c0_i32, %c0_i32_0 : i32, i32
  }
  func.func @transform_14(%arg0: i32) -> (i32, i32) {
    %c0_i32 = arith.constant 0 : i32
    %c0_i32_0 = arith.constant 0 : i32
    %c0_i32_1 = arith.constant 0 : i32
    return %c0_i32, %c0_i32_0 : i32, i32
  }
  func.func @transform_15(%arg0: i32) -> (i32, i32) {
    %c0_i32 = arith.constant 0 : i32
    %c0_i32_0 = arith.constant 0 : i32
    %c0_i32_1 = arith.constant 0 : i32
    return %c0_i32, %c0_i32_0 : i32, i32
  }
  func.func @transform_16(%arg0: i32) -> (i32, i32) {
    %c0_i32 = arith.constant 0 : i32
    %c0_i32_0 = arith.constant 0 : i32
    %c0_i32_1 = arith.constant 0 : i32
    return %c0_i32, %c0_i32_0 : i32, i32
  }
  func.func @transform_17(%arg0: i32) -> (i32, i32) {
    %c0_i32 = arith.constant 0 : i32
    %c0_i32_0 = arith.constant 0 : i32
    return %arg0, %c0_i32 : i32, i32
  }
}

module attributes {stable_mosaic.version = 11 : i64} {
  func.func @spinal_head_kernel(%arg0: i32, %arg1: memref<16x512xbf16, #tpu.memory_space<vmem>>, %arg2: memref<256x512xbf16, #tpu.memory_space<vmem>>, %arg3: memref<1x512xf32, #tpu.memory_space<vmem>>, %arg4: memref<256x512xbf16, #tpu.memory_space<vmem>>, %arg5: memref<512x512xbf16, #tpu.memory_space<vmem>>, %arg6: memref<1x512xf32, #tpu.memory_space<vmem>>, %arg7: memref<256x512xbf16, #tpu.memory_space<vmem>>, %arg8: memref<512x512xbf16, #tpu.memory_space<vmem>>, %arg9: memref<1x512xf32, #tpu.memory_space<vmem>>, %arg10: memref<256x512xbf16, #tpu.memory_space<vmem>>, %arg11: memref<512x512xbf16, #tpu.memory_space<vmem>>, %arg12: memref<1x512xf32, #tpu.memory_space<vmem>>, %arg13: memref<512x128xbf16, #tpu.memory_space<vmem>>, %arg14: memref<512x128xbf16, #tpu.memory_space<vmem>>, %arg15: memref<512x128xbf16, #tpu.memory_space<vmem>>, %arg16: memref<512x128xbf16, #tpu.memory_space<vmem>>, %arg17: memref<1x128xf32, #tpu.memory_space<vmem>>, %arg18: memref<16x128xf32, #tpu.memory_space<vmem>>) attributes {dimension_semantics = [#tpu.dimension_semantics<parallel>], iteration_bounds = array<i64: 1>, scalar_prefetch = 0 : i64, scratch_operands = 0 : i64, tpu.core_type = #tpu.core_type<tc>, window_params = [{transform_indices = @transform_0, window_bounds = array<i64: 16, 512>}, {pipeline_mode = #tpu.pipeline_mode<synchronous>, transform_indices = @transform_1, window_bounds = array<i64: 256, 512>}, {pipeline_mode = #tpu.pipeline_mode<synchronous>, transform_indices = @transform_2, window_bounds = array<i64: 1, 512>}, {pipeline_mode = #tpu.pipeline_mode<synchronous>, transform_indices = @transform_3, window_bounds = array<i64: 256, 512>}, {pipeline_mode = #tpu.pipeline_mode<synchronous>, transform_indices = @transform_4, window_bounds = array<i64: 512, 512>}, {pipeline_mode = #tpu.pipeline_mode<synchronous>, transform_indices = @transform_5, window_bounds = array<i64: 1, 512>}, {pipeline_mode = #tpu.pipeline_mode<synchronous>, transform_indices = @transform_6, window_bounds = array<i64: 256, 512>}, {pipeline_mode = #tpu.pipeline_mode<synchronous>, transform_indices = @transform_7, window_bounds = array<i64: 512, 512>}, {pipeline_mode = #tpu.pipeline_mode<synchronous>, transform_indices = @transform_8, window_bounds = array<i64: 1, 512>}, {pipeline_mode = #tpu.pipeline_mode<synchronous>, transform_indices = @transform_9, window_bounds = array<i64: 256, 512>}, {pipeline_mode = #tpu.pipeline_mode<synchronous>, transform_indices = @transform_10, window_bounds = array<i64: 512, 512>}, {pipeline_mode = #tpu.pipeline_mode<synchronous>, transform_indices = @transform_11, window_bounds = array<i64: 1, 512>}, {pipeline_mode = #tpu.pipeline_mode<synchronous>, transform_indices = @transform_12, window_bounds = array<i64: 512, 128>}, {pipeline_mode = #tpu.pipeline_mode<synchronous>, transform_indices = @transform_13, window_bounds = array<i64: 512, 128>}, {pipeline_mode = #tpu.pipeline_mode<synchronous>, transform_indices = @transform_14, window_bounds = array<i64: 512, 128>}, {pipeline_mode = #tpu.pipeline_mode<synchronous>, transform_indices = @transform_15, window_bounds = array<i64: 512, 128>}, {pipeline_mode = #tpu.pipeline_mode<synchronous>, transform_indices = @transform_16, window_bounds = array<i64: 1, 128>}, {transform_indices = @transform_17, window_bounds = array<i64: 16, 128>}]} {
    %c0 = arith.constant 0 : index
    %c0_0 = arith.constant 0 : index
    %0 = vector.load %arg1[%c0, %c0_0] : memref<16x512xbf16, #tpu.memory_space<vmem>>, vector<16x512xbf16>
    %1 = vector.extract_strided_slice %0 {offsets = [0, 0], sizes = [16, 256], strides = [1, 1]} : vector<16x512xbf16> to vector<16x256xbf16>
    %2 = vector.extract_strided_slice %0 {offsets = [0, 256], sizes = [16, 256], strides = [1, 1]} : vector<16x512xbf16> to vector<16x256xbf16>
    %c0_1 = arith.constant 0 : index
    %c0_2 = arith.constant 0 : index
    %3 = vector.load %arg2[%c0_1, %c0_2] : memref<256x512xbf16, #tpu.memory_space<vmem>>, vector<256x512xbf16>
    %cst = arith.constant dense<0.000000e+00> : vector<16x512xf32>
    %4 = tpu.matmul %1, %3, %cst {dimension_numbers = #tpu.dot_dimension_numbers<[1], [0], [0], [1], [0, 0, 1, 1], [], []>} : vector<16x256xbf16>, vector<256x512xbf16>, vector<16x512xf32> -> vector<16x512xf32>
    %c0_3 = arith.constant 0 : index
    %c0_4 = arith.constant 0 : index
    %5 = vector.load %arg3[%c0_3, %c0_4] : memref<1x512xf32, #tpu.memory_space<vmem>>, vector<1x512xf32>
    %6 = vector.broadcast %5 : vector<1x512xf32> to vector<16x512xf32>
    %7 = arith.addf %4, %6 : vector<16x512xf32>
    %cst_5 = arith.constant 0.000000e+00 : f32
    %8 = vector.broadcast %cst_5 : f32 to vector<16x512xf32>
    %9 = arith.maximumf %7, %8 : vector<16x512xf32>
    %10 = arith.truncf %9 : vector<16x512xf32> to vector<16x512xbf16>
    %c0_6 = arith.constant 0 : index
    %c0_7 = arith.constant 0 : index
    %11 = vector.load %arg17[%c0_6, %c0_7] : memref<1x128xf32, #tpu.memory_space<vmem>>, vector<1x128xf32>
    %c0_8 = arith.constant 0 : index
    %c0_9 = arith.constant 0 : index
    %12 = vector.load %arg13[%c0_8, %c0_9] : memref<512x128xbf16, #tpu.memory_space<vmem>>, vector<512x128xbf16>
    %cst_10 = arith.constant dense<0.000000e+00> : vector<16x128xf32>
    %13 = tpu.matmul %10, %12, %cst_10 {dimension_numbers = #tpu.dot_dimension_numbers<[1], [0], [0], [1], [0, 0, 1, 1], [], []>} : vector<16x512xbf16>, vector<512x128xbf16>, vector<16x128xf32> -> vector<16x128xf32>
    %14 = vector.broadcast %11 : vector<1x128xf32> to vector<16x128xf32>
    %15 = arith.addf %14, %13 : vector<16x128xf32>
    %c0_11 = arith.constant 0 : index
    %c0_12 = arith.constant 0 : index
    %16 = vector.load %arg4[%c0_11, %c0_12] : memref<256x512xbf16, #tpu.memory_space<vmem>>, vector<256x512xbf16>
    %cst_13 = arith.constant dense<0.000000e+00> : vector<16x512xf32>
    %17 = tpu.matmul %2, %16, %cst_13 {dimension_numbers = #tpu.dot_dimension_numbers<[1], [0], [0], [1], [0, 0, 1, 1], [], []>} : vector<16x256xbf16>, vector<256x512xbf16>, vector<16x512xf32> -> vector<16x512xf32>
    %c0_14 = arith.constant 0 : index
    %c0_15 = arith.constant 0 : index
    %18 = vector.load %arg5[%c0_14, %c0_15] : memref<512x512xbf16, #tpu.memory_space<vmem>>, vector<512x512xbf16>
    %cst_16 = arith.constant dense<0.000000e+00> : vector<16x512xf32>
    %19 = tpu.matmul %10, %18, %cst_16 {dimension_numbers = #tpu.dot_dimension_numbers<[1], [0], [0], [1], [0, 0, 1, 1], [], []>} : vector<16x512xbf16>, vector<512x512xbf16>, vector<16x512xf32> -> vector<16x512xf32>
    %20 = arith.addf %17, %19 : vector<16x512xf32>
    %c0_17 = arith.constant 0 : index
    %c0_18 = arith.constant 0 : index
    %21 = vector.load %arg6[%c0_17, %c0_18] : memref<1x512xf32, #tpu.memory_space<vmem>>, vector<1x512xf32>
    %22 = vector.broadcast %21 : vector<1x512xf32> to vector<16x512xf32>
    %23 = arith.addf %20, %22 : vector<16x512xf32>
    %cst_19 = arith.constant 0.000000e+00 : f32
    %24 = vector.broadcast %cst_19 : f32 to vector<16x512xf32>
    %25 = arith.maximumf %23, %24 : vector<16x512xf32>
    %26 = arith.truncf %25 : vector<16x512xf32> to vector<16x512xbf16>
    %c0_20 = arith.constant 0 : index
    %c0_21 = arith.constant 0 : index
    %27 = vector.load %arg14[%c0_20, %c0_21] : memref<512x128xbf16, #tpu.memory_space<vmem>>, vector<512x128xbf16>
    %cst_22 = arith.constant dense<0.000000e+00> : vector<16x128xf32>
    %28 = tpu.matmul %26, %27, %cst_22 {dimension_numbers = #tpu.dot_dimension_numbers<[1], [0], [0], [1], [0, 0, 1, 1], [], []>} : vector<16x512xbf16>, vector<512x128xbf16>, vector<16x128xf32> -> vector<16x128xf32>
    %29 = arith.addf %15, %28 : vector<16x128xf32>
    %c0_23 = arith.constant 0 : index
    %c0_24 = arith.constant 0 : index
    %30 = vector.load %arg7[%c0_23, %c0_24] : memref<256x512xbf16, #tpu.memory_space<vmem>>, vector<256x512xbf16>
    %cst_25 = arith.constant dense<0.000000e+00> : vector<16x512xf32>
    %31 = tpu.matmul %1, %30, %cst_25 {dimension_numbers = #tpu.dot_dimension_numbers<[1], [0], [0], [1], [0, 0, 1, 1], [], []>} : vector<16x256xbf16>, vector<256x512xbf16>, vector<16x512xf32> -> vector<16x512xf32>
    %c0_26 = arith.constant 0 : index
    %c0_27 = arith.constant 0 : index
    %32 = vector.load %arg8[%c0_26, %c0_27] : memref<512x512xbf16, #tpu.memory_space<vmem>>, vector<512x512xbf16>
    %cst_28 = arith.constant dense<0.000000e+00> : vector<16x512xf32>
    %33 = tpu.matmul %26, %32, %cst_28 {dimension_numbers = #tpu.dot_dimension_numbers<[1], [0], [0], [1], [0, 0, 1, 1], [], []>} : vector<16x512xbf16>, vector<512x512xbf16>, vector<16x512xf32> -> vector<16x512xf32>
    %34 = arith.addf %31, %33 : vector<16x512xf32>
    %c0_29 = arith.constant 0 : index
    %c0_30 = arith.constant 0 : index
    %35 = vector.load %arg9[%c0_29, %c0_30] : memref<1x512xf32, #tpu.memory_space<vmem>>, vector<1x512xf32>
    %36 = vector.broadcast %35 : vector<1x512xf32> to vector<16x512xf32>
    %37 = arith.addf %34, %36 : vector<16x512xf32>
    %cst_31 = arith.constant 0.000000e+00 : f32
    %38 = vector.broadcast %cst_31 : f32 to vector<16x512xf32>
    %39 = arith.maximumf %37, %38 : vector<16x512xf32>
    %40 = arith.truncf %39 : vector<16x512xf32> to vector<16x512xbf16>
    %c0_32 = arith.constant 0 : index
    %c0_33 = arith.constant 0 : index
    %41 = vector.load %arg15[%c0_32, %c0_33] : memref<512x128xbf16, #tpu.memory_space<vmem>>, vector<512x128xbf16>
    %cst_34 = arith.constant dense<0.000000e+00> : vector<16x128xf32>
    %42 = tpu.matmul %40, %41, %cst_34 {dimension_numbers = #tpu.dot_dimension_numbers<[1], [0], [0], [1], [0, 0, 1, 1], [], []>} : vector<16x512xbf16>, vector<512x128xbf16>, vector<16x128xf32> -> vector<16x128xf32>
    %43 = arith.addf %29, %42 : vector<16x128xf32>
    %c0_35 = arith.constant 0 : index
    %c0_36 = arith.constant 0 : index
    %44 = vector.load %arg10[%c0_35, %c0_36] : memref<256x512xbf16, #tpu.memory_space<vmem>>, vector<256x512xbf16>
    %cst_37 = arith.constant dense<0.000000e+00> : vector<16x512xf32>
    %45 = tpu.matmul %2, %44, %cst_37 {dimension_numbers = #tpu.dot_dimension_numbers<[1], [0], [0], [1], [0, 0, 1, 1], [], []>} : vector<16x256xbf16>, vector<256x512xbf16>, vector<16x512xf32> -> vector<16x512xf32>
    %c0_38 = arith.constant 0 : index
    %c0_39 = arith.constant 0 : index
    %46 = vector.load %arg11[%c0_38, %c0_39] : memref<512x512xbf16, #tpu.memory_space<vmem>>, vector<512x512xbf16>
    %cst_40 = arith.constant dense<0.000000e+00> : vector<16x512xf32>
    %47 = tpu.matmul %40, %46, %cst_40 {dimension_numbers = #tpu.dot_dimension_numbers<[1], [0], [0], [1], [0, 0, 1, 1], [], []>} : vector<16x512xbf16>, vector<512x512xbf16>, vector<16x512xf32> -> vector<16x512xf32>
    %48 = arith.addf %45, %47 : vector<16x512xf32>
    %c0_41 = arith.constant 0 : index
    %c0_42 = arith.constant 0 : index
    %49 = vector.load %arg12[%c0_41, %c0_42] : memref<1x512xf32, #tpu.memory_space<vmem>>, vector<1x512xf32>
    %50 = vector.broadcast %49 : vector<1x512xf32> to vector<16x512xf32>
    %51 = arith.addf %48, %50 : vector<16x512xf32>
    %cst_43 = arith.constant 0.000000e+00 : f32
    %52 = vector.broadcast %cst_43 : f32 to vector<16x512xf32>
    %53 = arith.maximumf %51, %52 : vector<16x512xf32>
    %54 = arith.truncf %53 : vector<16x512xf32> to vector<16x512xbf16>
    %c0_44 = arith.constant 0 : index
    %c0_45 = arith.constant 0 : index
    %55 = vector.load %arg16[%c0_44, %c0_45] : memref<512x128xbf16, #tpu.memory_space<vmem>>, vector<512x128xbf16>
    %cst_46 = arith.constant dense<0.000000e+00> : vector<16x128xf32>
    %56 = tpu.matmul %54, %55, %cst_46 {dimension_numbers = #tpu.dot_dimension_numbers<[1], [0], [0], [1], [0, 0, 1, 1], [], []>} : vector<16x512xbf16>, vector<512x128xbf16>, vector<16x128xf32> -> vector<16x128xf32>
    %57 = arith.addf %43, %56 : vector<16x128xf32>
    %c0_47 = arith.constant 0 : index
    %c0_48 = arith.constant 0 : index
    %58 = vector.load %arg18[%c0_47, %c0_48] : memref<16x128xf32, #tpu.memory_space<vmem>>, vector<16x128xf32>
    tpu.vector_store %arg18[%c0_47, %c0_48], %57 {strides = array<i32>} : memref<16x128xf32, #tpu.memory_space<vmem>>, vector<16x128xf32>,
    return
  }
  func.func @transform_0(%arg0: i32) -> (i32, i32) {
    %c0_i32 = arith.constant 0 : i32
    %c0_i32_0 = arith.constant 0 : i32
    return %arg0, %c0_i32 : i32, i32
  }
  func.func @transform_1(%arg0: i32) -> (i32, i32) {
    %c0_i32 = arith.constant 0 : i32
    %c0_i32_0 = arith.constant 0 : i32
    %c0_i32_1 = arith.constant 0 : i32
    return %c0_i32, %c0_i32_0 : i32, i32
  }
  func.func @transform_2(%arg0: i32) -> (i32, i32) {
    %c0_i32 = arith.constant 0 : i32
    %c0_i32_0 = arith.constant 0 : i32
    %c0_i32_1 = arith.constant 0 : i32
    return %c0_i32, %c0_i32_0 : i32, i32
  }
  func.func @transform_3(%arg0: i32) -> (i32, i32) {
    %c0_i32 = arith.constant 0 : i32
    %c0_i32_0 = arith.constant 0 : i32
    %c0_i32_1 = arith.constant 0 : i32
    return %c0_i32, %c0_i32_0 : i32, i32
  }
  func.func @transform_4(%arg0: i32) -> (i32, i32) {
    %c0_i32 = arith.constant 0 : i32
    %c0_i32_0 = arith.constant 0 : i32
    %c0_i32_1 = arith.constant 0 : i32
    return %c0_i32, %c0_i32_0 : i32, i32
  }
  func.func @transform_5(%arg0: i32) -> (i32, i32) {
    %c0_i32 = arith.constant 0 : i32
    %c0_i32_0 = arith.constant 0 : i32
    %c0_i32_1 = arith.constant 0 : i32
    return %c0_i32, %c0_i32_0 : i32, i32
  }
  func.func @transform_6(%arg0: i32) -> (i32, i32) {
    %c0_i32 = arith.constant 0 : i32
    %c0_i32_0 = arith.constant 0 : i32
    %c0_i32_1 = arith.constant 0 : i32
    return %c0_i32, %c0_i32_0 : i32, i32
  }
  func.func @transform_7(%arg0: i32) -> (i32, i32) {
    %c0_i32 = arith.constant 0 : i32
    %c0_i32_0 = arith.constant 0 : i32
    %c0_i32_1 = arith.constant 0 : i32
    return %c0_i32, %c0_i32_0 : i32, i32
  }
  func.func @transform_8(%arg0: i32) -> (i32, i32) {
    %c0_i32 = arith.constant 0 : i32
    %c0_i32_0 = arith.constant 0 : i32
    %c0_i32_1 = arith.constant 0 : i32
    return %c0_i32, %c0_i32_0 : i32, i32
  }
  func.func @transform_9(%arg0: i32) -> (i32, i32) {
    %c0_i32 = arith.constant 0 : i32
    %c0_i32_0 = arith.constant 0 : i32
    %c0_i32_1 = arith.constant 0 : i32
    return %c0_i32, %c0_i32_0 : i32, i32
  }
  func.func @transform_10(%arg0: i32) -> (i32, i32) {
    %c0_i32 = arith.constant 0 : i32
    %c0_i32_0 = arith.constant 0 : i32
    %c0_i32_1 = arith.constant 0 : i32
    return %c0_i32, %c0_i32_0 : i32, i32
  }
  func.func @transform_11(%arg0: i32) -> (i32, i32) {
    %c0_i32 = arith.constant 0 : i32
    %c0_i32_0 = arith.constant 0 : i32
    %c0_i32_1 = arith.constant 0 : i32
    return %c0_i32, %c0_i32_0 : i32, i32
  }
  func.func @transform_12(%arg0: i32) -> (i32, i32) {
    %c0_i32 = arith.constant 0 : i32
    %c0_i32_0 = arith.constant 0 : i32
    %c0_i32_1 = arith.constant 0 : i32
    return %c0_i32, %c0_i32_0 : i32, i32
  }
  func.func @transform_13(%arg0: i32) -> (i32, i32) {
    %c0_i32 = arith.constant 0 : i32
    %c0_i32_0 = arith.constant 0 : i32
    %c0_i32_1 = arith.constant 0 : i32
    return %c0_i32, %c0_i32_0 : i32, i32
  }
  func.func @transform_14(%arg0: i32) -> (i32, i32) {
    %c0_i32 = arith.constant 0 : i32
    %c0_i32_0 = arith.constant 0 : i32
    %c0_i32_1 = arith.constant 0 : i32
    return %c0_i32, %c0_i32_0 : i32, i32
  }
  func.func @transform_15(%arg0: i32) -> (i32, i32) {
    %c0_i32 = arith.constant 0 : i32
    %c0_i32_0 = arith.constant 0 : i32
    %c0_i32_1 = arith.constant 0 : i32
    return %c0_i32, %c0_i32_0 : i32, i32
  }
  func.func @transform_16(%arg0: i32) -> (i32, i32) {
    %c0_i32 = arith.constant 0 : i32
    %c0_i32_0 = arith.constant 0 : i32
    %c0_i32_1 = arith.constant 0 : i32
    return %c0_i32, %c0_i32_0 : i32, i32
  }
  func.func @transform_17(%arg0: i32) -> (i32, i32) {
    %c0_i32 = arith.constant 0 : i32
    %c0_i32_0 = arith.constant 0 : i32
    return %arg0, %c0_i32 : i32, i32
  }
}

</mosaic_0001>

<llo_original>
// kernel: tpu_custom_call.1
$region0: #{tpu_custom_call.1}
  #allocation0 [shape = 'u32[]', space=smem, size = 0x4, offset = 0x4, fixed_abs, tag = 'smem constant byte address 0x4 - core index']
  #allocation1 [shape = 'u32[72,128]{1,0:T(1,128)}', space=vmem, size = 0x9000, scoped, tag = 'internal scratch']
  %s0 = inlined_call_operand.hbm [shape: bf16[16,512], index: 0, kind: input, shape index: {}]
  %s1 = inlined_call_operand.hbm [shape: bf16[256,512], index: 1, kind: input, shape index: {}]
  %s2 = inlined_call_operand.hbm [shape: f32[1,512], index: 2, kind: input, shape index: {}]
  %s3 = inlined_call_operand.hbm [shape: bf16[256,512], index: 3, kind: input, shape index: {}]
  %s4 = inlined_call_operand.hbm [shape: bf16[512,512], index: 4, kind: input, shape index: {}]
  %s5 = inlined_call_operand.vmem [shape: f32[1,512], index: 5, kind: input, shape index: {}]
  %s6 = inlined_call_operand.hbm [shape: bf16[256,512], index: 6, kind: input, shape index: {}]
  %s7 = inlined_call_operand.hbm [shape: bf16[512,512], index: 7, kind: input, shape index: {}]
  %s8 = inlined_call_operand.hbm [shape: f32[1,512], index: 8, kind: input, shape index: {}]
  %s9 = inlined_call_operand.hbm [shape: bf16[256,512], index: 9, kind: input, shape index: {}]
  %s10 = inlined_call_operand.hbm [shape: bf16[512,512], index: 10, kind: input, shape index: {}]
  %s11 = inlined_call_operand.vmem [shape: f32[1,512], index: 11, kind: input, shape index: {}]
  %s12 = inlined_call_operand.hbm [shape: bf16[512,128], index: 12, kind: input, shape index: {}]
  %s13 = inlined_call_operand.hbm [shape: bf16[512,128], index: 13, kind: input, shape index: {}]
  %s14 = inlined_call_operand.hbm [shape: bf16[512,128], index: 14, kind: input, shape index: {}]
  %s15 = inlined_call_operand.hbm [shape: bf16[512,128], index: 15, kind: input, shape index: {}]
  %s16 = inlined_call_operand.vmem [shape: f32[1,128], index: 16, kind: input, shape index: {}]
  %s17 = inlined_call_operand.hbm [shape: f32[16,128], index: 17, kind: output, shape index: {}]
  %s18 = sld [smem:[#allocation0]]
  $region134: #{tpu_custom_call.1} parent=0
    _
  %s20 = ssub.s32 1, %s18
  %s21 = scalar_select 0, %s20, %s18
  $region1: #{tpu_custom_call.1} parent=0
    #allocation2 [shape = 'u8[16384]{0}', space=vmem, size = 0x4000, scoped, tag = 'input window, operand 0, single buffered']
    #allocation3 [shape = 's32[1]{0}', space=sflag, size = 0x4, scoped, tag = 'scoped memory for tpu_custom_call.1']
    #allocation4 [shape = 's32[1]{0}', space=sflag, size = 0x4, scoped, tag = 'scoped memory for tpu_custom_call.1']
    #allocation5 [shape = 'u8[262144]{0}', space=vmem, size = 0x40000, scoped, tag = 'input window, operand 1, single buffered']
    #allocation6 [shape = 's32[1]{0}', space=sflag, size = 0x4, scoped, tag = 'scoped memory for tpu_custom_call.1']
    #allocation7 [shape = 'u8[2048]{0}', space=vmem, size = 0x800, scoped, tag = 'input window, operand 2, single buffered']
    #allocation8 [shape = 'u8[262144]{0}', space=vmem, size = 0x40000, scoped, tag = 'input window, operand 3, single buffered']
    #allocation9 [shape = 's32[1]{0}', space=sflag, size = 0x4, scoped, tag = 'scoped memory for tpu_custom_call.1']
    #allocation10 [shape = 'u8[524288]{0}', space=vmem, size = 0x80000, scoped, tag = 'input window, operand 4, single buffered']
    #allocation11 [shape = 'u8[262144]{0}', space=vmem, size = 0x40000, scoped, tag = 'input window, operand 6, single buffered']
    #allocation12 [shape = 's32[1]{0}', space=sflag, size = 0x4, scoped, tag = 'scoped memory for tpu_custom_call.1']
    #allocation13 [shape = 'u8[524288]{0}', space=vmem, size = 0x80000, scoped, tag = 'input window, operand 7, single buffered']
    #allocation14 [shape = 'u8[2048]{0}', space=vmem, size = 0x800, scoped, tag = 'input window, operand 8, single buffered']
    #allocation15 [shape = 's32[1]{0}', space=sflag, size = 0x4, scoped, tag = 'scoped memory for tpu_custom_call.1']
    #allocation16 [shape = 'u8[262144]{0}', space=vmem, size = 0x40000, scoped, tag = 'input window, operand 9, single buffered']
    #allocation17 [shape = 'u8[524288]{0}', space=vmem, size = 0x80000, scoped, tag = 'input window, operand 10, single buffered']
    #allocation18 [shape = 's32[1]{0}', space=sflag, size = 0x4, scoped, tag = 'scoped memory for tpu_custom_call.1']
    #allocation19 [shape = 'u8[131072]{0}', space=vmem, size = 0x20000, scoped, tag = 'input window, operand 12, single buffered']
    #allocation20 [shape = 'u8[131072]{0}', space=vmem, size = 0x20000, scoped, tag = 'input window, operand 13, single buffered']
    #allocation21 [shape = 's32[1]{0}', space=sflag, size = 0x4, scoped, tag = 'scoped memory for tpu_custom_call.1']
    #allocation22 [shape = 'u8[131072]{0}', space=vmem, size = 0x20000, scoped, tag = 'input window, operand 14, single buffered']
    #allocation23 [shape = 'u8[131072]{0}', space=vmem, size = 0x20000, scoped, tag = 'input window, operand 15, single buffered']
    #allocation24 [shape = 's32[1]{0}', space=sflag, size = 0x4, scoped, tag = 'scoped memory for tpu_custom_call.1']
    #allocation25 [shape = 'u8[8192]{0}', space=vmem, size = 0x2000, scoped, tag = 'output window, operand 0, single buffered']
    %22 = vsyncpa [#allocation3], 0
    %23 = vsyncpa [#allocation6], 0
    %24 = vsyncpa [#allocation9], 0
    %25 = vsyncpa [#allocation12], 0
    %26 = vsyncpa [#allocation15], 0
    %27 = vsyncpa [#allocation18], 0
    %28 = vsyncpa [#allocation21], 0
    %29 = vsyncpa [#allocation24], 0
    %30 = vsyncpa [#allocation4], 0
    // Predicated region
    $region2: #{tpu_custom_call.1} parent=1 // pred_check
      _
    $region3: #{tpu_custom_call.1} parent=1 // pred_check_branch
      %32 = sbr.rel (0) target = $region5
    $region4: #{tpu_custom_call.1} parent=1 // pred_region
      %34 = vsyncadd [#allocation3], 0
      %s35 = sshll.u32 %s0, 4
      %s36 = int_to_ptr.hbm [resolvable:$true] %s35
      %s37 = sshll.u32 [#allocation2], 4
      %s38 = int_to_ptr.vmem [resolvable:$true] %s37
      %43 = dma.hbm_to_vmem [thread:$0]  %s36, 512, %s38, [#allocation3], 256, 256, 16
    $region5: #{tpu_custom_call.1} parent=1 // pred_fallthru
      _
    // Predicated region
    $region6: #{tpu_custom_call.1} parent=1 // pred_check
      _
    $region7: #{tpu_custom_call.1} parent=1 // pred_check_branch
      %45 = sbr.rel (0) target = $region9
    $region8: #{tpu_custom_call.1} parent=1 // pred_region
      %47 = vsyncadd [#allocation6], 0
      %s48 = sshll.u32 %s1, 4
      %s49 = int_to_ptr.hbm [resolvable:$true] %s48
      %s50 = sshll.u32 [#allocation5], 4
      %s51 = int_to_ptr.vmem [resolvable:$true] %s50
      %56 = dma.hbm_to_vmem [thread:$0]  %s49, 8192, %s51, [#allocation6], 256, 256, 16
    $region9: #{tpu_custom_call.1} parent=1 // pred_fallthru
      _
    // Predicated region
    $region10: #{tpu_custom_call.1} parent=1 // pred_check
      _
    $region11: #{tpu_custom_call.1} parent=1 // pred_check_branch
      %58 = sbr.rel (0) target = $region13
    $region12: #{tpu_custom_call.1} parent=1 // pred_region
      %60 = vsyncadd [#allocation6], 0
      %s62 = sshll.u32 %s2, 4
      %s63 = int_to_ptr.hbm [resolvable:$true] %s62
      %s64 = sshll.u32 [#allocation7], 4
      %s65 = int_to_ptr.vmem [resolvable:$true] %s64
      %67 = dma.hbm_to_vmem [thread:$0]  %s63, 64, %s65, [#allocation6]
    $region13: #{tpu_custom_call.1} parent=1 // pred_fallthru
      _
    // Predicated region
    $region14: #{tpu_custom_call.1} parent=1 // pred_check
      _
    $region15: #{tpu_custom_call.1} parent=1 // pred_check_branch
      %69 = sbr.rel (0) target = $region17
    $region16: #{tpu_custom_call.1} parent=1 // pred_region
      %71 = vsyncadd [#allocation9], 0
      %s72 = sshll.u32 %s3, 4
      %s73 = int_to_ptr.hbm [resolvable:$true] %s72
      %s74 = sshll.u32 [#allocation8], 4
      %s75 = int_to_ptr.vmem [resolvable:$true] %s74
      %80 = dma.hbm_to_vmem [thread:$0]  %s73, 8192, %s75, [#allocation9], 256, 256, 16
    $region17: #{tpu_custom_call.1} parent=1 // pred_fallthru
      _
    // Predicated region
    $region18: #{tpu_custom_call.1} parent=1 // pred_check
      _
    $region19: #{tpu_custom_call.1} parent=1 // pred_check_branch
      %82 = sbr.rel (0) target = $region21
    $region20: #{tpu_custom_call.1} parent=1 // pred_region
      %84 = vsyncadd [#allocation9], 0
      %s85 = sshll.u32 %s4, 4
      %s86 = int_to_ptr.hbm [resolvable:$true] %s85
      %s87 = sshll.u32 [#allocation10], 4
      %s88 = int_to_ptr.vmem [resolvable:$true] %s87
      %93 = dma.hbm_to_vmem [thread:$0]  %s86, 16384, %s88, [#allocation9], 256, 256, 16
    $region21: #{tpu_custom_call.1} parent=1 // pred_fallthru
      _
    // Predicated region
    $region22: #{tpu_custom_call.1} parent=1 // pred_check
      _
    $region23: #{tpu_custom_call.1} parent=1 // pred_check_branch
      %95 = sbr.rel (0) target = $region25
    $region24: #{tpu_custom_call.1} parent=1 // pred_region
      _
    $region25: #{tpu_custom_call.1} parent=1 // pred_fallthru
      _
    // Predicated region
    $region26: #{tpu_custom_call.1} parent=1 // pred_check
      _
    $region27: #{tpu_custom_call.1} parent=1 // pred_check_branch
      %97 = sbr.rel (0) target = $region29
    $region28: #{tpu_custom_call.1} parent=1 // pred_region
      %99 = vsyncadd [#allocation12], 0
      %s100 = sshll.u32 %s6, 4
      %s101 = int_to_ptr.hbm [resolvable:$true] %s100
      %s102 = sshll.u32 [#allocation11], 4
      %s103 = int_to_ptr.vmem [resolvable:$true] %s102
      %108 = dma.hbm_to_vmem [thread:$0]  %s101, 8192, %s103, [#allocation12], 256, 256, 16
    $region29: #{tpu_custom_call.1} parent=1 // pred_fallthru
      _
    // Predicated region
    $region30: #{tpu_custom_call.1} parent=1 // pred_check
      _
    $region31: #{tpu_custom_call.1} parent=1 // pred_check_branch
      %110 = sbr.rel (0) target = $region33
    $region32: #{tpu_custom_call.1} parent=1 // pred_region
      %112 = vsyncadd [#allocation12], 0
      %s113 = sshll.u32 %s7, 4
      %s114 = int_to_ptr.hbm [resolvable:$true] %s113
      %s115 = sshll.u32 [#allocation13], 4
      %s116 = int_to_ptr.vmem [resolvable:$true] %s115
      %121 = dma.hbm_to_vmem [thread:$0]  %s114, 16384, %s116, [#allocation12], 256, 256, 16
    $region33: #{tpu_custom_call.1} parent=1 // pred_fallthru
      _
    // Predicated region
    $region34: #{tpu_custom_call.1} parent=1 // pred_check
      _
    $region35: #{tpu_custom_call.1} parent=1 // pred_check_branch
      %123 = sbr.rel (0) target = $region37
    $region36: #{tpu_custom_call.1} parent=1 // pred_region
      %125 = vsyncadd [#allocation15], 0
      %s127 = sshll.u32 %s8, 4
      %s128 = int_to_ptr.hbm [resolvable:$true] %s127
      %s129 = sshll.u32 [#allocation14], 4
      %s130 = int_to_ptr.vmem [resolvable:$true] %s129
      %132 = dma.hbm_to_vmem [thread:$0]  %s128, 64, %s130, [#allocation15]
    $region37: #{tpu_custom_call.1} parent=1 // pred_fallthru
      _
    // Predicated region
    $region38: #{tpu_custom_call.1} parent=1 // pred_check
      _
    $region39: #{tpu_custom_call.1} parent=1 // pred_check_branch
      %134 = sbr.rel (0) target = $region41
    $region40: #{tpu_custom_call.1} parent=1 // pred_region
      %136 = vsyncadd [#allocation15], 0
      %s137 = sshll.u32 %s9, 4
      %s138 = int_to_ptr.hbm [resolvable:$true] %s137
      %s139 = sshll.u32 [#allocation16], 4
      %s140 = int_to_ptr.vmem [resolvable:$true] %s139
      %145 = dma.hbm_to_vmem [thread:$0]  %s138, 8192, %s140, [#allocation15], 256, 256, 16
    $region41: #{tpu_custom_call.1} parent=1 // pred_fallthru
      _
    // Predicated region
    $region42: #{tpu_custom_call.1} parent=1 // pred_check
      _
    $region43: #{tpu_custom_call.1} parent=1 // pred_check_branch
      %147 = sbr.rel (0) target = $region45
    $region44: #{tpu_custom_call.1} parent=1 // pred_region
      %149 = vsyncadd [#allocation18], 0
      %s150 = sshll.u32 %s10, 4
      %s151 = int_to_ptr.hbm [resolvable:$true] %s150
      %s152 = sshll.u32 [#allocation17], 4
      %s153 = int_to_ptr.vmem [resolvable:$true] %s152
      %158 = dma.hbm_to_vmem [thread:$0]  %s151, 16384, %s153, [#allocation18], 256, 256, 16
    $region45: #{tpu_custom_call.1} parent=1 // pred_fallthru
      _
    // Predicated region
    $region46: #{tpu_custom_call.1} parent=1 // pred_check
      _
    $region47: #{tpu_custom_call.1} parent=1 // pred_check_branch
      %160 = sbr.rel (0) target = $region49
    $region48: #{tpu_custom_call.1} parent=1 // pred_region
      _
    $region49: #{tpu_custom_call.1} parent=1 // pred_fallthru
      _
    // Predicated region
    $region50: #{tpu_custom_call.1} parent=1 // pred_check
      _
    $region51: #{tpu_custom_call.1} parent=1 // pred_check_branch
      %162 = sbr.rel (0) target = $region53
    $region52: #{tpu_custom_call.1} parent=1 // pred_region
      %164 = vsyncadd [#allocation18], 0
      %s165 = sshll.u32 %s12, 4
      %s166 = int_to_ptr.hbm [resolvable:$true] %s165
      %s167 = sshll.u32 [#allocation19], 4
      %s168 = int_to_ptr.vmem [resolvable:$true] %s167
      %173 = dma.hbm_to_vmem [thread:$0]  %s166, 4096, %s168, [#allocation18], 64, 64, 4
    $region53: #{tpu_custom_call.1} parent=1 // pred_fallthru
      _
    // Predicated region
    $region54: #{tpu_custom_call.1} parent=1 // pred_check
      _
    $region55: #{tpu_custom_call.1} parent=1 // pred_check_branch
      %175 = sbr.rel (0) target = $region57
    $region56: #{tpu_custom_call.1} parent=1 // pred_region
      %177 = vsyncadd [#allocation21], 0
      %s178 = sshll.u32 %s13, 4
      %s179 = int_to_ptr.hbm [resolvable:$true] %s178
      %s180 = sshll.u32 [#allocation20], 4
      %s181 = int_to_ptr.vmem [resolvable:$true] %s180
      %186 = dma.hbm_to_vmem [thread:$0]  %s179, 4096, %s181, [#allocation21], 64, 64, 4
    $region57: #{tpu_custom_call.1} parent=1 // pred_fallthru
      _
    // Predicated region
    $region58: #{tpu_custom_call.1} parent=1 // pred_check
      _
    $region59: #{tpu_custom_call.1} parent=1 // pred_check_branch
      %188 = sbr.rel (0) target = $region61
    $region60: #{tpu_custom_call.1} parent=1 // pred_region
      %190 = vsyncadd [#allocation21], 0
      %s191 = sshll.u32 %s14, 4
      %s192 = int_to_ptr.hbm [resolvable:$true] %s191
      %s193 = sshll.u32 [#allocation22], 4
      %s194 = int_to_ptr.vmem [resolvable:$true] %s193
      %199 = dma.hbm_to_vmem [thread:$0]  %s192, 4096, %s194, [#allocation21], 64, 64, 4
    $region61: #{tpu_custom_call.1} parent=1 // pred_fallthru
      _
    // Predicated region
    $region62: #{tpu_custom_call.1} parent=1 // pred_check
      _
    $region63: #{tpu_custom_call.1} parent=1 // pred_check_branch
      %201 = sbr.rel (0) target = $region65
    $region64: #{tpu_custom_call.1} parent=1 // pred_region
      %203 = vsyncadd [#allocation24], 0
      %s204 = sshll.u32 %s15, 4
      %s205 = int_to_ptr.hbm [resolvable:$true] %s204
      %s206 = sshll.u32 [#allocation23], 4
      %s207 = int_to_ptr.vmem [resolvable:$true] %s206
      %212 = dma.hbm_to_vmem [thread:$0]  %s205, 4096, %s207, [#allocation24], 64, 64, 4
    $region65: #{tpu_custom_call.1} parent=1 // pred_fallthru
      _
    // Predicated region
    $region66: #{tpu_custom_call.1} parent=1 // pred_check
      _
    $region67: #{tpu_custom_call.1} parent=1 // pred_check_branch
      %214 = sbr.rel (0) target = $region69
    $region68: #{tpu_custom_call.1} parent=1 // pred_region
      _
    $region69: #{tpu_custom_call.1} parent=1 // pred_fallthru
      _
    // Predicated region
    $region70: #{tpu_custom_call.1} parent=1 // pred_check
      _
    $region71: #{tpu_custom_call.1} parent=1 // pred_check_branch
      %216 = sbr.rel (0) target = $region73
    $region72: #{tpu_custom_call.1} parent=1 // pred_region
      %218 = dma.done [#allocation3], 512
    $region73: #{tpu_custom_call.1} parent=1 // pred_fallthru
      _
    // Predicated region
    $region74: #{tpu_custom_call.1} parent=1 // pred_check
      _
    $region75: #{tpu_custom_call.1} parent=1 // pred_check_branch
      %220 = sbr.rel (0) target = $region77
    $region76: #{tpu_custom_call.1} parent=1 // pred_region
      %222 = dma.done [#allocation6], 8192
    $region77: #{tpu_custom_call.1} parent=1 // pred_fallthru
      _
    // Predicated region
    $region78: #{tpu_custom_call.1} parent=1 // pred_check
      _
    $region79: #{tpu_custom_call.1} parent=1 // pred_check_branch
      %224 = sbr.rel (0) target = $region81
    $region80: #{tpu_custom_call.1} parent=1 // pred_region
      %226 = dma.done [#allocation6], 64
    $region81: #{tpu_custom_call.1} parent=1 // pred_fallthru
      _
    // Predicated region
    $region82: #{tpu_custom_call.1} parent=1 // pred_check
      _
    $region83: #{tpu_custom_call.1} parent=1 // pred_check_branch
      %228 = sbr.rel (0) target = $region85
    $region84: #{tpu_custom_call.1} parent=1 // pred_region
      %230 = dma.done [#allocation9], 8192
    $region85: #{tpu_custom_call.1} parent=1 // pred_fallthru
      _
    // Predicated region
    $region86: #{tpu_custom_call.1} parent=1 // pred_check
      _
    $region87: #{tpu_custom_call.1} parent=1 // pred_check_branch
      %232 = sbr.rel (0) target = $region89
    $region88: #{tpu_custom_call.1} parent=1 // pred_region
      %234 = dma.done [#allocation9], 16384
    $region89: #{tpu_custom_call.1} parent=1 // pred_fallthru
      _
    // Predicated region
    $region90: #{tpu_custom_call.1} parent=1 // pred_check
      _
    $region91: #{tpu_custom_call.1} parent=1 // pred_check_branch
      %236 = sbr.rel (0) target = $region93
    $region92: #{tpu_custom_call.1} parent=1 // pred_region
      %238 = dma.done [#allocation12], 8192
    $region93: #{tpu_custom_call.1} parent=1 // pred_fallthru
      _
    // Predicated region
    $region94: #{tpu_custom_call.1} parent=1 // pred_check
      _
    $region95: #{tpu_custom_call.1} parent=1 // pred_check_branch
      %240 = sbr.rel (0) target = $region97
    $region96: #{tpu_custom_call.1} parent=1 // pred_region
      %242 = dma.done [#allocation12], 16384
    $region97: #{tpu_custom_call.1} parent=1 // pred_fallthru
      _
    // Predicated region
    $region98: #{tpu_custom_call.1} parent=1 // pred_check
      _
    $region99: #{tpu_custom_call.1} parent=1 // pred_check_branch
      %244 = sbr.rel (0) target = $region101
    $region100: #{tpu_custom_call.1} parent=1 // pred_region
      %246 = dma.done [#allocation15], 64
    $region101: #{tpu_custom_call.1} parent=1 // pred_fallthru
      _
    // Predicated region
    $region102: #{tpu_custom_call.1} parent=1 // pred_check
      _
    $region103: #{tpu_custom_call.1} parent=1 // pred_check_branch
      %248 = sbr.rel (0) target = $region105
    $region104: #{tpu_custom_call.1} parent=1 // pred_region
      %250 = dma.done [#allocation15], 8192
    $region105: #{tpu_custom_call.1} parent=1 // pred_fallthru
      _
    // Predicated region
    $region106: #{tpu_custom_call.1} parent=1 // pred_check
      _
    $region107: #{tpu_custom_call.1} parent=1 // pred_check_branch
      %252 = sbr.rel (0) target = $region109
    $region108: #{tpu_custom_call.1} parent=1 // pred_region
      %254 = dma.done [#allocation18], 16384
    $region109: #{tpu_custom_call.1} parent=1 // pred_fallthru
      _
    // Predicated region
    $region110: #{tpu_custom_call.1} parent=1 // pred_check
      _
    $region111: #{tpu_custom_call.1} parent=1 // pred_check_branch
      %256 = sbr.rel (0) target = $region113
    $region112: #{tpu_custom_call.1} parent=1 // pred_region
      %258 = dma.done [#allocation18], 4096
    $region113: #{tpu_custom_call.1} parent=1 // pred_fallthru
      _
    // Predicated region
    $region114: #{tpu_custom_call.1} parent=1 // pred_check
      _
    $region115: #{tpu_custom_call.1} parent=1 // pred_check_branch
      %260 = sbr.rel (0) target = $region117
    $region116: #{tpu_custom_call.1} parent=1 // pred_region
      %262 = dma.done [#allocation21], 4096
    $region117: #{tpu_custom_call.1} parent=1 // pred_fallthru
      _
    // Predicated region
    $region118: #{tpu_custom_call.1} parent=1 // pred_check
      _
    $region119: #{tpu_custom_call.1} parent=1 // pred_check_branch
      %264 = sbr.rel (0) target = $region121
    $region120: #{tpu_custom_call.1} parent=1 // pred_region
      %266 = dma.done [#allocation21], 4096
    $region121: #{tpu_custom_call.1} parent=1 // pred_fallthru
      _
    // Predicated region
    $region122: #{tpu_custom_call.1} parent=1 // pred_check
      _
    $region123: #{tpu_custom_call.1} parent=1 // pred_check_branch
      %268 = sbr.rel (0) target = $region125
    $region124: #{tpu_custom_call.1} parent=1 // pred_region
      %270 = dma.done [#allocation24], 4096
    $region125: #{tpu_custom_call.1} parent=1 // pred_fallthru
      _
    %v271 = vld [vmem:[#allocation2] sm:$0xff]
    %v272 = vld [vmem:[#allocation2 + $0x8] sm:$0xff]
    %v273 = vld [vmem:[#allocation2 + $0x10] sm:$0xff]
    %v274 = vld [vmem:[#allocation2 + $0x18] sm:$0xff]
    %v275 = vld [vmem:[#allocation5] sm:$0xff]
    %v276 = vld [vmem:[#allocation5 + $0x8] sm:$0xff]
    %v277 = vld [vmem:[#allocation5 + $0x10] sm:$0xff]
    %v278 = vld [vmem:[#allocation5 + $0x18] sm:$0xff]
    %v279 = vld [vmem:[#allocation5 + $0x20] sm:$0xff]
    %v280 = vld [vmem:[#allocation5 + $0x28] sm:$0xff]
    %v281 = vld [vmem:[#allocation5 + $0x30] sm:$0xff]
    %v282 = vld [vmem:[#allocation5 + $0x38] sm:$0xff]
    %v283 = vld [vmem:[#allocation5 + $0x40] sm:$0xff]
    %v284 = vld [vmem:[#allocation5 + $0x48] sm:$0xff]
    %v285 = vld [vmem:[#allocation5 + $0x50] sm:$0xff]
    %v286 = vld [vmem:[#allocation5 + $0x58] sm:$0xff]
    %v287 = vld [vmem:[#allocation5 + $0x60] sm:$0xff]
    %v288 = vld [vmem:[#allocation5 + $0x68] sm:$0xff]
    %v289 = vld [vmem:[#allocation5 + $0x70] sm:$0xff]
    %v290 = vld [vmem:[#allocation5 + $0x78] sm:$0xff]
    %v291 = vld [vmem:[#allocation5 + $0x80] sm:$0xff]
    %v292 = vld [vmem:[#allocation5 + $0x88] sm:$0xff]
    %v293 = vld [vmem:[#allocation5 + $0x90] sm:$0xff]
    %v294 = vld [vmem:[#allocation5 + $0x98] sm:$0xff]
    %v295 = vld [vmem:[#allocation5 + $0xa0] sm:$0xff]
    %v296 = vld [vmem:[#allocation5 + $0xa8] sm:$0xff]
    %v297 = vld [vmem:[#allocation5 + $0xb0] sm:$0xff]
    %v298 = vld [vmem:[#allocation5 + $0xb8] sm:$0xff]
    %v299 = vld [vmem:[#allocation5 + $0xc0] sm:$0xff]
    %v300 = vld [vmem:[#allocation5 + $0xc8] sm:$0xff]
    %v301 = vld [vmem:[#allocation5 + $0xd0] sm:$0xff]
    %v302 = vld [vmem:[#allocation5 + $0xd8] sm:$0xff]
    %v303 = vld [vmem:[#allocation5 + $0xe0] sm:$0xff]
    %v304 = vld [vmem:[#allocation5 + $0xe8] sm:$0xff]
    %v305 = vld [vmem:[#allocation5 + $0xf0] sm:$0xff]
    %v306 = vld [vmem:[#allocation5 + $0xf8] sm:$0xff]
    %v307 = vld [vmem:[#allocation5 + $0x100] sm:$0xff]
    %v308 = vld [vmem:[#allocation5 + $0x108] sm:$0xff]
    %v309 = vld [vmem:[#allocation5 + $0x110] sm:$0xff]
    %v310 = vld [vmem:[#allocation5 + $0x118] sm:$0xff]
    %v311 = vld [vmem:[#allocation5 + $0x120] sm:$0xff]
    %v312 = vld [vmem:[#allocation5 + $0x128] sm:$0xff]
    %v313 = vld [vmem:[#allocation5 + $0x130] sm:$0xff]
    %v314 = vld [vmem:[#allocation5 + $0x138] sm:$0xff]
    %v315 = vld [vmem:[#allocation5 + $0x140] sm:$0xff]
    %v316 = vld [vmem:[#allocation5 + $0x148] sm:$0xff]
    %v317 = vld [vmem:[#allocation5 + $0x150] sm:$0xff]
    %v318 = vld [vmem:[#allocation5 + $0x158] sm:$0xff]
    %v319 = vld [vmem:[#allocation5 + $0x160] sm:$0xff]
    %v320 = vld [vmem:[#allocation5 + $0x168] sm:$0xff]
    %v321 = vld [vmem:[#allocation5 + $0x170] sm:$0xff]
    %v322 = vld [vmem:[#allocation5 + $0x178] sm:$0xff]
    %v323 = vld [vmem:[#allocation5 + $0x180] sm:$0xff]
    %v324 = vld [vmem:[#allocation5 + $0x188] sm:$0xff]
    %v325 = vld [vmem:[#allocation5 + $0x190] sm:$0xff]
    %v326 = vld [vmem:[#allocation5 + $0x198] sm:$0xff]
    %v327 = vld [vmem:[#allocation5 + $0x1a0] sm:$0xff]
    %v328 = vld [vmem:[#allocation5 + $0x1a8] sm:$0xff]
    %v329 = vld [vmem:[#allocation5 + $0x1b0] sm:$0xff]
    %v330 = vld [vmem:[#allocation5 + $0x1b8] sm:$0xff]
    %v331 = vld [vmem:[#allocation5 + $0x1c0] sm:$0xff]
    %v332 = vld [vmem:[#allocation5 + $0x1c8] sm:$0xff]
    %v333 = vld [vmem:[#allocation5 + $0x1d0] sm:$0xff]
    %v334 = vld [vmem:[#allocation5 + $0x1d8] sm:$0xff]
    %v335 = vld [vmem:[#allocation5 + $0x1e0] sm:$0xff]
    %v336 = vld [vmem:[#allocation5 + $0x1e8] sm:$0xff]
    %v337 = vld [vmem:[#allocation5 + $0x1f0] sm:$0xff]
    %v338 = vld [vmem:[#allocation5 + $0x1f8] sm:$0xff]
    %v339 = vld [vmem:[#allocation7] sm:$0xf]
    %v341 = vperm.slane %v339, 0
    %v342 = vperm.slane %v339, 1
    %v343 = vperm.slane %v339, 2
    %v344 = vperm.slane %v339, 3
    %v351 = vunpack.c.l.b16 %v271
    %v352 = vunpack.c.h.b16 %v271
    %v353 = vunpack.c.l.b16 %v273
    %v354 = vunpack.c.h.b16 %v273
    %v355 = vpack.c.b16 %v353, %v351
    %v356 = vpack.c.b16 %v354, %v352
    %v423 = vunpack.c.l.b16 %v275
    %v424 = vunpack.c.h.b16 %v275
    %v425 = vunpack.c.l.b16 %v276
    %v426 = vunpack.c.h.b16 %v276
    %v427 = vunpack.c.l.b16 %v277
    %v428 = vunpack.c.h.b16 %v277
    %v429 = vunpack.c.l.b16 %v278
    %v430 = vunpack.c.h.b16 %v278
    %v431 = vunpack.c.l.b16 %v279
    %v432 = vunpack.c.h.b16 %v279
    %v433 = vunpack.c.l.b16 %v280
    %v434 = vunpack.c.h.b16 %v280
    %v435 = vunpack.c.l.b16 %v281
    %v436 = vunpack.c.h.b16 %v281
    %v437 = vunpack.c.l.b16 %v282
    %v438 = vunpack.c.h.b16 %v282
    %v439 = vunpack.c.l.b16 %v283
    %v440 = vunpack.c.h.b16 %v283
    %v441 = vunpack.c.l.b16 %v284
    %v442 = vunpack.c.h.b16 %v284
    %v443 = vunpack.c.l.b16 %v285
    %v444 = vunpack.c.h.b16 %v285
    %v445 = vunpack.c.l.b16 %v286
    %v446 = vunpack.c.h.b16 %v286
    %v447 = vunpack.c.l.b16 %v287
    %v448 = vunpack.c.h.b16 %v287
    %v449 = vunpack.c.l.b16 %v288
    %v450 = vunpack.c.h.b16 %v288
    %v451 = vunpack.c.l.b16 %v289
    %v452 = vunpack.c.h.b16 %v289
    %v453 = vunpack.c.l.b16 %v290
    %v454 = vunpack.c.h.b16 %v290
    %v455 = vunpack.c.l.b16 %v291
    %v456 = vunpack.c.h.b16 %v291
    %v457 = vunpack.c.l.b16 %v292
    %v458 = vunpack.c.h.b16 %v292
    %v459 = vunpack.c.l.b16 %v293
    %v460 = vunpack.c.h.b16 %v293
    %v461 = vunpack.c.l.b16 %v294
    %v462 = vunpack.c.h.b16 %v294
    %v463 = vunpack.c.l.b16 %v295
    %v464 = vunpack.c.h.b16 %v295
    %v465 = vunpack.c.l.b16 %v296
    %v466 = vunpack.c.h.b16 %v296
    %v467 = vunpack.c.l.b16 %v297
    %v468 = vunpack.c.h.b16 %v297
    %v469 = vunpack.c.l.b16 %v298
    %v470 = vunpack.c.h.b16 %v298
    %v471 = vunpack.c.l.b16 %v299
    %v472 = vunpack.c.h.b16 %v299
    %v473 = vunpack.c.l.b16 %v300
    %v474 = vunpack.c.h.b16 %v300
    %v475 = vunpack.c.l.b16 %v301
    %v476 = vunpack.c.h.b16 %v301
    %v477 = vunpack.c.l.b16 %v302
    %v478 = vunpack.c.h.b16 %v302
    %v479 = vunpack.c.l.b16 %v303
    %v480 = vunpack.c.h.b16 %v303
    %v481 = vunpack.c.l.b16 %v304
    %v482 = vunpack.c.h.b16 %v304
    %v483 = vunpack.c.l.b16 %v305
    %v484 = vunpack.c.h.b16 %v305
    %v485 = vunpack.c.l.b16 %v306
    %v486 = vunpack.c.h.b16 %v306
    %v487 = vunpack.c.l.b16 %v307
    %v488 = vunpack.c.h.b16 %v307
    %v489 = vunpack.c.l.b16 %v308
    %v490 = vunpack.c.h.b16 %v308
    %v491 = vunpack.c.l.b16 %v309
    %v492 = vunpack.c.h.b16 %v309
    %v493 = vunpack.c.l.b16 %v310
    %v494 = vunpack.c.h.b16 %v310
    %v495 = vunpack.c.l.b16 %v311
    %v496 = vunpack.c.h.b16 %v311
    %v497 = vunpack.c.l.b16 %v312
    %v498 = vunpack.c.h.b16 %v312
    %v499 = vunpack.c.l.b16 %v313
    %v500 = vunpack.c.h.b16 %v313
    %v501 = vunpack.c.l.b16 %v314
    %v502 = vunpack.c.h.b16 %v314
    %v503 = vunpack.c.l.b16 %v315
    %v504 = vunpack.c.h.b16 %v315
    %v505 = vunpack.c.l.b16 %v316
    %v506 = vunpack.c.h.b16 %v316
    %v507 = vunpack.c.l.b16 %v317
    %v508 = vunpack.c.h.b16 %v317
    %v509 = vunpack.c.l.b16 %v318
    %v510 = vunpack.c.h.b16 %v318
    %v511 = vunpack.c.l.b16 %v319
    %v512 = vunpack.c.h.b16 %v319
    %v513 = vunpack.c.l.b16 %v320
    %v514 = vunpack.c.h.b16 %v320
    %v515 = vunpack.c.l.b16 %v321
    %v516 = vunpack.c.h.b16 %v321
    %v517 = vunpack.c.l.b16 %v322
    %v518 = vunpack.c.h.b16 %v322
    %v519 = vunpack.c.l.b16 %v323
    %v520 = vunpack.c.h.b16 %v323
    %v521 = vunpack.c.l.b16 %v324
    %v522 = vunpack.c.h.b16 %v324
    %v523 = vunpack.c.l.b16 %v325
    %v524 = vunpack.c.h.b16 %v325
    %v525 = vunpack.c.l.b16 %v326
    %v526 = vunpack.c.h.b16 %v326
    %v527 = vunpack.c.l.b16 %v327
    %v528 = vunpack.c.h.b16 %v327
    %v529 = vunpack.c.l.b16 %v328
    %v530 = vunpack.c.h.b16 %v328
    %v531 = vunpack.c.l.b16 %v329
    %v532 = vunpack.c.h.b16 %v329
    %v533 = vunpack.c.l.b16 %v330
    %v534 = vunpack.c.h.b16 %v330
    %v535 = vunpack.c.l.b16 %v331
    %v536 = vunpack.c.h.b16 %v331
    %v537 = vunpack.c.l.b16 %v332
    %v538 = vunpack.c.h.b16 %v332
    %v539 = vunpack.c.l.b16 %v333
    %v540 = vunpack.c.h.b16 %v333
    %v541 = vunpack.c.l.b16 %v334
    %v542 = vunpack.c.h.b16 %v334
    %v543 = vunpack.c.l.b16 %v335
    %v544 = vunpack.c.h.b16 %v335
    %v545 = vunpack.c.l.b16 %v336
    %v546 = vunpack.c.h.b16 %v336
    %v547 = vunpack.c.l.b16 %v337
    %v548 = vunpack.c.h.b16 %v337
    %v549 = vunpack.c.l.b16 %v338
    %v550 = vunpack.c.h.b16 %v338
    %v551 = vpack.c.b16 %v427, %v423
    %v552 = vpack.c.b16 %v428, %v424
    %v553 = vpack.c.b16 %v429, %v425
    %v554 = vpack.c.b16 %v430, %v426
    %v555 = vpack.c.b16 %v435, %v431
    %v556 = vpack.c.b16 %v436, %v432
    %v557 = vpack.c.b16 %v437, %v433
    %v558 = vpack.c.b16 %v438, %v434
    %v559 = vpack.c.b16 %v443, %v439
    %v560 = vpack.c.b16 %v444, %v440
    %v561 = vpack.c.b16 %v445, %v441
    %v562 = vpack.c.b16 %v446, %v442
    %v563 = vpack.c.b16 %v451, %v447
    %v564 = vpack.c.b16 %v452, %v448
    %v565 = vpack.c.b16 %v453, %v449
    %v566 = vpack.c.b16 %v454, %v450
    %v567 = vpack.c.b16 %v459, %v455
    %v568 = vpack.c.b16 %v460, %v456
    %v569 = vpack.c.b16 %v461, %v457
    %v570 = vpack.c.b16 %v462, %v458
    %v571 = vpack.c.b16 %v467, %v463
    %v572 = vpack.c.b16 %v468, %v464
    %v573 = vpack.c.b16 %v469, %v465
    %v574 = vpack.c.b16 %v470, %v466
    %v575 = vpack.c.b16 %v475, %v471
    %v576 = vpack.c.b16 %v476, %v472
    %v577 = vpack.c.b16 %v477, %v473
    %v578 = vpack.c.b16 %v478, %v474
    %v579 = vpack.c.b16 %v483, %v479
    %v580 = vpack.c.b16 %v484, %v480
    %v581 = vpack.c.b16 %v485, %v481
    %v582 = vpack.c.b16 %v486, %v482
    %v583 = vpack.c.b16 %v491, %v487
    %v584 = vpack.c.b16 %v492, %v488
    %v585 = vpack.c.b16 %v493, %v489
    %v586 = vpack.c.b16 %v494, %v490
    %v587 = vpack.c.b16 %v499, %v495
    %v588 = vpack.c.b16 %v500, %v496
    %v589 = vpack.c.b16 %v501, %v497
    %v590 = vpack.c.b16 %v502, %v498
    %v591 = vpack.c.b16 %v507, %v503
    %v592 = vpack.c.b16 %v508, %v504
    %v593 = vpack.c.b16 %v509, %v505
    %v594 = vpack.c.b16 %v510, %v506
    %v595 = vpack.c.b16 %v515, %v511
    %v596 = vpack.c.b16 %v516, %v512
    %v597 = vpack.c.b16 %v517, %v513
    %v598 = vpack.c.b16 %v518, %v514
    %v599 = vpack.c.b16 %v523, %v519
    %v600 = vpack.c.b16 %v524, %v520
    %v601 = vpack.c.b16 %v525, %v521
    %v602 = vpack.c.b16 %v526, %v522
    %v603 = vpack.c.b16 %v531, %v527
    %v604 = vpack.c.b16 %v532, %v528
    %v605 = vpack.c.b16 %v533, %v529
    %v606 = vpack.c.b16 %v534, %v530
    %v607 = vpack.c.b16 %v539, %v535
    %v608 = vpack.c.b16 %v540, %v536
    %v609 = vpack.c.b16 %v541, %v537
    %v610 = vpack.c.b16 %v542, %v538
    %v611 = vpack.c.b16 %v547, %v543
    %v612 = vpack.c.b16 %v548, %v544
    %v613 = vpack.c.b16 %v549, %v545
    %v614 = vpack.c.b16 %v550, %v546
    %679 = vmatpush.bf16.msra.mxu0 %v579
    %680 = vmatpush.bf16.msra.mxu0 %v575
    %681 = vmatpush.bf16.msra.mxu0 %v571
    %682 = vmatpush.bf16.msra.mxu0 %v567
    %683 = vmatpush.bf16.msra.mxu0 %v563
    %684 = vmatpush.bf16.msra.mxu0 %v559
    %685 = vmatpush.bf16.msra.mxu0 %v555
    %686 = vmatpush.bf16.msra.mxu0 %v551
    %687 = vmatmul.bf16.gmra.mxu0 %v355
    %v688 = vpop.f32.mrf.mxu0
    %v689 = vadd.f32 %v341, %v688
    %v690 = vpop.f32.mrf.mxu0
    %v691 = vadd.f32 %v341, %v690
    %692 = vdwg.mxu0
    %693 = vmatpush.bf16.msra.mxu0 %v611
    %694 = vmatpush.bf16.msra.mxu0 %v607
    %695 = vmatpush.bf16.msra.mxu0 %v603
    %696 = vmatpush.bf16.msra.mxu0 %v599
    %697 = vmatpush.bf16.msra.mxu0 %v595
    %698 = vmatpush.bf16.msra.mxu0 %v591
    %699 = vmatpush.bf16.msra.mxu0 %v587
    %700 = vmatpush.bf16.msra.mxu0 %v583
    %701 = vmatmul.bf16.gmra.mxu0 %v356
    %v702 = vpop.f32.mrf.mxu0
    %v703 = vadd.f32 %v689, %v702
    %v704 = vpop.f32.mrf.mxu0
    %v705 = vadd.f32 %v691, %v704
    %706 = vdwg.mxu0
    %707 = vmatpush.bf16.msra.mxu0 %v580
    %708 = vmatpush.bf16.msra.mxu0 %v576
    %709 = vmatpush.bf16.msra.mxu0 %v572
    %710 = vmatpush.bf16.msra.mxu0 %v568
    %711 = vmatpush.bf16.msra.mxu0 %v564
    %712 = vmatpush.bf16.msra.mxu0 %v560
    %713 = vmatpush.bf16.msra.mxu0 %v556
    %714 = vmatpush.bf16.msra.mxu0 %v552
    %715 = vmatmul.bf16.gmra.mxu0 %v355
    %v716 = vpop.f32.mrf.mxu0
    %v717 = vadd.f32 %v342, %v716
    %v718 = vpop.f32.mrf.mxu0
    %v719 = vadd.f32 %v342, %v718
    %720 = vdwg.mxu0
    %721 = vmatpush.bf16.msra.mxu0 %v612
    %722 = vmatpush.bf16.msra.mxu0 %v608
    %723 = vmatpush.bf16.msra.mxu0 %v604
    %724 = vmatpush.bf16.msra.mxu0 %v600
    %725 = vmatpush.bf16.msra.mxu0 %v596
    %726 = vmatpush.bf16.msra.mxu0 %v592
    %727 = vmatpush.bf16.msra.mxu0 %v588
    %728 = vmatpush.bf16.msra.mxu0 %v584
    %729 = vmatmul.bf16.gmra.mxu0 %v356
    %v730 = vpop.f32.mrf.mxu0
    %v731 = vadd.f32 %v717, %v730
    %v732 = vpop.f32.mrf.mxu0
    %v733 = vadd.f32 %v719, %v732
    %734 = vdwg.mxu0
    %735 = vmatpush.bf16.msra.mxu0 %v581
    %736 = vmatpush.bf16.msra.mxu0 %v577
    %737 = vmatpush.bf16.msra.mxu0 %v573
    %738 = vmatpush.bf16.msra.mxu0 %v569
    %739 = vmatpush.bf16.msra.mxu0 %v565
    %740 = vmatpush.bf16.msra.mxu0 %v561
    %741 = vmatpush.bf16.msra.mxu0 %v557
    %742 = vmatpush.bf16.msra.mxu0 %v553
    %743 = vmatmul.bf16.gmra.mxu0 %v355
    %v744 = vpop.f32.mrf.mxu0
    %v745 = vadd.f32 %v343, %v744
    %v746 = vpop.f32.mrf.mxu0
    %v747 = vadd.f32 %v343, %v746
    %748 = vdwg.mxu0
    %749 = vmatpush.bf16.msra.mxu0 %v613
    %750 = vmatpush.bf16.msra.mxu0 %v609
    %751 = vmatpush.bf16.msra.mxu0 %v605
    %752 = vmatpush.bf16.msra.mxu0 %v601
    %753 = vmatpush.bf16.msra.mxu0 %v597
    %754 = vmatpush.bf16.msra.mxu0 %v593
    %755 = vmatpush.bf16.msra.mxu0 %v589
    %756 = vmatpush.bf16.msra.mxu0 %v585
    %757 = vmatmul.bf16.gmra.mxu0 %v356
    %v758 = vpop.f32.mrf.mxu0
    %v759 = vadd.f32 %v745, %v758
    %v760 = vpop.f32.mrf.mxu0
    %v761 = vadd.f32 %v747, %v760
    %762 = vdwg.mxu0
    %763 = vmatpush.bf16.msra.mxu0 %v582
    %764 = vmatpush.bf16.msra.mxu0 %v578
    %765 = vmatpush.bf16.msra.mxu0 %v574
    %766 = vmatpush.bf16.msra.mxu0 %v570
    %767 = vmatpush.bf16.msra.mxu0 %v566
    %768 = vmatpush.bf16.msra.mxu0 %v562
    %769 = vmatpush.bf16.msra.mxu0 %v558
    %770 = vmatpush.bf16.msra.mxu0 %v554
    %771 = vmatmul.bf16.gmra.mxu0 %v355
    %v772 = vpop.f32.mrf.mxu0
    %v773 = vadd.f32 %v344, %v772
    %v774 = vpop.f32.mrf.mxu0
    %v775 = vadd.f32 %v344, %v774
    %776 = vdwg.mxu0
    %777 = vmatpush.bf16.msra.mxu0 %v614
    %778 = vmatpush.bf16.msra.mxu0 %v610
    %779 = vmatpush.bf16.msra.mxu0 %v606
    %780 = vmatpush.bf16.msra.mxu0 %v602
    %781 = vmatpush.bf16.msra.mxu0 %v598
    %782 = vmatpush.bf16.msra.mxu0 %v594
    %783 = vmatpush.bf16.msra.mxu0 %v590
    %784 = vmatpush.bf16.msra.mxu0 %v586
    %785 = vmatmul.bf16.gmra.mxu0 %v356
    %v786 = vpop.f32.mrf.mxu0
    %v787 = vadd.f32 %v773, %v786
    %v788 = vpop.f32.mrf.mxu0
    %v789 = vadd.f32 %v775, %v788
    %790 = vdwg.mxu0
    %v791 = vmax.f32 %v703, 0.0
    %v792 = vmax.f32 %v731, 0.0
    %v793 = vmax.f32 %v759, 0.0
    %v794 = vmax.f32 %v787, 0.0
    %v795 = vmax.f32 %v705, 0.0
    %v796 = vmax.f32 %v733, 0.0
    %v797 = vmax.f32 %v761, 0.0
    %v798 = vmax.f32 %v789, 0.0
    %v799 = vpack.c.bf16 %v795, %v791
    %v800 = vpack.c.bf16 %v796, %v792
    %v801 = vpack.c.bf16 %v797, %v793
    %v802 = vpack.c.bf16 %v798, %v794
    %v803 = vld [vmem:[%s16] sm:$0x1]
    %v804 = vld [vmem:[#allocation19] sm:$0xf]
    %v805 = vld [vmem:[#allocation19 + $0x4] sm:$0xf]
    %v806 = vld [vmem:[#allocation19 + $0x8] sm:$0xf]
    %v807 = vld [vmem:[#allocation19 + $0xc] sm:$0xf]
    %v808 = vld [vmem:[#allocation19 + $0x10] sm:$0xf]
    %v809 = vld [vmem:[#allocation19 + $0x14] sm:$0xf]
    %v810 = vld [vmem:[#allocation19 + $0x18] sm:$0xf]
    %v811 = vld [vmem:[#allocation19 + $0x1c] sm:$0xf]
    %v812 = vld [vmem:[#allocation19 + $0x20] sm:$0xf]
    %v813 = vld [vmem:[#allocation19 + $0x24] sm:$0xf]
    %v814 = vld [vmem:[#allocation19 + $0x28] sm:$0xf]
    %v815 = vld [vmem:[#allocation19 + $0x2c] sm:$0xf]
    %v816 = vld [vmem:[#allocation19 + $0x30] sm:$0xf]
    %v817 = vld [vmem:[#allocation19 + $0x34] sm:$0xf]
    %v818 = vld [vmem:[#allocation19 + $0x38] sm:$0xf]
    %v819 = vld [vmem:[#allocation19 + $0x3c] sm:$0xf]
    %v820 = vld [vmem:[#allocation19 + $0x40] sm:$0xf]
    %v821 = vld [vmem:[#allocation19 + $0x44] sm:$0xf]
    %v822 = vld [vmem:[#allocation19 + $0x48] sm:$0xf]
    %v823 = vld [vmem:[#allocation19 + $0x4c] sm:$0xf]
    %v824 = vld [vmem:[#allocation19 + $0x50] sm:$0xf]
    %v825 = vld [vmem:[#allocation19 + $0x54] sm:$0xf]
    %v826 = vld [vmem:[#allocation19 + $0x58] sm:$0xf]
    %v827 = vld [vmem:[#allocation19 + $0x5c] sm:$0xf]
    %v828 = vld [vmem:[#allocation19 + $0x60] sm:$0xf]
    %v829 = vld [vmem:[#allocation19 + $0x64] sm:$0xf]
    %v830 = vld [vmem:[#allocation19 + $0x68] sm:$0xf]
    %v831 = vld [vmem:[#allocation19 + $0x6c] sm:$0xf]
    %v832 = vld [vmem:[#allocation19 + $0x70] sm:$0xf]
    %v833 = vld [vmem:[#allocation19 + $0x74] sm:$0xf]
    %v834 = vld [vmem:[#allocation19 + $0x78] sm:$0xf]
    %v835 = vld [vmem:[#allocation19 + $0x7c] sm:$0xf]
    %v836 = vld [vmem:[#allocation19 + $0x80] sm:$0xf]
    %v837 = vld [vmem:[#allocation19 + $0x84] sm:$0xf]
    %v838 = vld [vmem:[#allocation19 + $0x88] sm:$0xf]
    %v839 = vld [vmem:[#allocation19 + $0x8c] sm:$0xf]
    %v840 = vld [vmem:[#allocation19 + $0x90] sm:$0xf]
    %v841 = vld [vmem:[#allocation19 + $0x94] sm:$0xf]
    %v842 = vld [vmem:[#allocation19 + $0x98] sm:$0xf]
    %v843 = vld [vmem:[#allocation19 + $0x9c] sm:$0xf]
    %v844 = vld [vmem:[#allocation19 + $0xa0] sm:$0xf]
    %v845 = vld [vmem:[#allocation19 + $0xa4] sm:$0xf]
    %v846 = vld [vmem:[#allocation19 + $0xa8] sm:$0xf]
    %v847 = vld [vmem:[#allocation19 + $0xac] sm:$0xf]
    %v848 = vld [vmem:[#allocation19 + $0xb0] sm:$0xf]
    %v849 = vld [vmem:[#allocation19 + $0xb4] sm:$0xf]
    %v850 = vld [vmem:[#allocation19 + $0xb8] sm:$0xf]
    %v851 = vld [vmem:[#allocation19 + $0xbc] sm:$0xf]
    %v852 = vld [vmem:[#allocation19 + $0xc0] sm:$0xf]
    %v853 = vld [vmem:[#allocation19 + $0xc4] sm:$0xf]
    %v854 = vld [vmem:[#allocation19 + $0xc8] sm:$0xf]
    %v855 = vld [vmem:[#allocation19 + $0xcc] sm:$0xf]
    %v856 = vld [vmem:[#allocation19 + $0xd0] sm:$0xf]
    %v857 = vld [vmem:[#allocation19 + $0xd4] sm:$0xf]
    %v858 = vld [vmem:[#allocation19 + $0xd8] sm:$0xf]
    %v859 = vld [vmem:[#allocation19 + $0xdc] sm:$0xf]
    %v860 = vld [vmem:[#allocation19 + $0xe0] sm:$0xf]
    %v861 = vld [vmem:[#allocation19 + $0xe4] sm:$0xf]
    %v862 = vld [vmem:[#allocation19 + $0xe8] sm:$0xf]
    %v863 = vld [vmem:[#allocation19 + $0xec] sm:$0xf]
    %v864 = vld [vmem:[#allocation19 + $0xf0] sm:$0xf]
    %v865 = vld [vmem:[#allocation19 + $0xf4] sm:$0xf]
    %v866 = vld [vmem:[#allocation19 + $0xf8] sm:$0xf]
    %v867 = vld [vmem:[#allocation19 + $0xfc] sm:$0xf]
    %v932 = vunpack.c.l.b16 %v804
    %v933 = vunpack.c.l.b16 %v805
    %v934 = vunpack.c.l.b16 %v806
    %v935 = vunpack.c.l.b16 %v807
    %v936 = vunpack.c.l.b16 %v808
    %v937 = vunpack.c.l.b16 %v809
    %v938 = vunpack.c.l.b16 %v810
    %v939 = vunpack.c.l.b16 %v811
    %v940 = vunpack.c.l.b16 %v812
    %v941 = vunpack.c.l.b16 %v813
    %v942 = vunpack.c.l.b16 %v814
    %v943 = vunpack.c.l.b16 %v815
    %v944 = vunpack.c.l.b16 %v816
    %v945 = vunpack.c.l.b16 %v817
    %v946 = vunpack.c.l.b16 %v818
    %v947 = vunpack.c.l.b16 %v819
    %v948 = vunpack.c.l.b16 %v820
    %v949 = vunpack.c.l.b16 %v821
    %v950 = vunpack.c.l.b16 %v822
    %v951 = vunpack.c.l.b16 %v823
    %v952 = vunpack.c.l.b16 %v824
    %v953 = vunpack.c.l.b16 %v825
    %v954 = vunpack.c.l.b16 %v826
    %v955 = vunpack.c.l.b16 %v827
    %v956 = vunpack.c.l.b16 %v828
    %v957 = vunpack.c.l.b16 %v829
    %v958 = vunpack.c.l.b16 %v830
    %v959 = vunpack.c.l.b16 %v831
    %v960 = vunpack.c.l.b16 %v832
    %v961 = vunpack.c.l.b16 %v833
    %v962 = vunpack.c.l.b16 %v834
    %v963 = vunpack.c.l.b16 %v835
    %v964 = vunpack.c.l.b16 %v836
    %v965 = vunpack.c.l.b16 %v837
    %v966 = vunpack.c.l.b16 %v838
    %v967 = vunpack.c.l.b16 %v839
    %v968 = vunpack.c.l.b16 %v840
    %v969 = vunpack.c.l.b16 %v841
    %v970 = vunpack.c.l.b16 %v842
    %v971 = vunpack.c.l.b16 %v843
    %v972 = vunpack.c.l.b16 %v844
    %v973 = vunpack.c.l.b16 %v845
    %v974 = vunpack.c.l.b16 %v846
    %v975 = vunpack.c.l.b16 %v847
    %v976 = vunpack.c.l.b16 %v848
    %v977 = vunpack.c.l.b16 %v849
    %v978 = vunpack.c.l.b16 %v850
    %v979 = vunpack.c.l.b16 %v851
    %v980 = vunpack.c.l.b16 %v852
    %v981 = vunpack.c.l.b16 %v853
    %v982 = vunpack.c.l.b16 %v854
    %v983 = vunpack.c.l.b16 %v855
    %v984 = vunpack.c.l.b16 %v856
    %v985 = vunpack.c.l.b16 %v857
    %v986 = vunpack.c.l.b16 %v858
    %v987 = vunpack.c.l.b16 %v859
    %v988 = vunpack.c.l.b16 %v860
    %v989 = vunpack.c.l.b16 %v861
    %v990 = vunpack.c.l.b16 %v862
    %v991 = vunpack.c.l.b16 %v863
    %v992 = vunpack.c.l.b16 %v864
    %v993 = vunpack.c.l.b16 %v865
    %v994 = vunpack.c.l.b16 %v866
    %v995 = vunpack.c.l.b16 %v867
    %v996 = vpack.c.b16 %v933, %v932
    %v997 = vpack.c.b16 %v935, %v934
    %v998 = vpack.c.b16 %v937, %v936
    %v999 = vpack.c.b16 %v939, %v938
    %v1000 = vpack.c.b16 %v941, %v940
    %v1001 = vpack.c.b16 %v943, %v942
    %v1002 = vpack.c.b16 %v945, %v944
    %v1003 = vpack.c.b16 %v947, %v946
    %v1004 = vpack.c.b16 %v949, %v948
    %v1005 = vpack.c.b16 %v951, %v950
    %v1006 = vpack.c.b16 %v953, %v952
    %v1007 = vpack.c.b16 %v955, %v954
    %v1008 = vpack.c.b16 %v957, %v956
    %v1009 = vpack.c.b16 %v959, %v958
    %v1010 = vpack.c.b16 %v961, %v960
    %v1011 = vpack.c.b16 %v963, %v962
    %v1012 = vpack.c.b16 %v965, %v964
    %v1013 = vpack.c.b16 %v967, %v966
    %v1014 = vpack.c.b16 %v969, %v968
    %v1015 = vpack.c.b16 %v971, %v970
    %v1016 = vpack.c.b16 %v973, %v972
    %v1017 = vpack.c.b16 %v975, %v974
    %v1018 = vpack.c.b16 %v977, %v976
    %v1019 = vpack.c.b16 %v979, %v978
    %v1020 = vpack.c.b16 %v981, %v980
    %v1021 = vpack.c.b16 %v983, %v982
    %v1022 = vpack.c.b16 %v985, %v984
    %v1023 = vpack.c.b16 %v987, %v986
    %v1024 = vpack.c.b16 %v989, %v988
    %v1025 = vpack.c.b16 %v991, %v990
    %v1026 = vpack.c.b16 %v993, %v992
    %v1027 = vpack.c.b16 %v995, %v994
    %1060 = vmatpush.bf16.msra.mxu0 %v1003
    %1061 = vmatpush.bf16.msra.mxu0 %v1002
    %1062 = vmatpush.bf16.msra.mxu0 %v1001
    %1063 = vmatpush.bf16.msra.mxu0 %v1000
    %1064 = vmatpush.bf16.msra.mxu0 %v999
    %1065 = vmatpush.bf16.msra.mxu0 %v998
    %1066 = vmatpush.bf16.msra.mxu0 %v997
    %1067 = vmatpush.bf16.msra.mxu0 %v996
    %1068 = vmatmul.bf16.gmra.mxu0 %v799
    %v1069 = vpop.f32.mrf.mxu0
    %v1070 = vadd.f32 0.0, %v1069
    %v1071 = vpop.f32.mrf.mxu0
    %v1072 = vadd.f32 0.0, %v1071
    %1073 = vdwg.mxu0
    %1074 = vmatpush.bf16.msra.mxu0 %v1011
    %1075 = vmatpush.bf16.msra.mxu0 %v1010
    %1076 = vmatpush.bf16.msra.mxu0 %v1009
    %1077 = vmatpush.bf16.msra.mxu0 %v1008
    %1078 = vmatpush.bf16.msra.mxu0 %v1007
    %1079 = vmatpush.bf16.msra.mxu0 %v1006
    %1080 = vmatpush.bf16.msra.mxu0 %v1005
    %1081 = vmatpush.bf16.msra.mxu0 %v1004
    %1082 = vmatmul.bf16.gmra.mxu0 %v800
    %v1083 = vpop.f32.mrf.mxu0
    %v1084 = vadd.f32 %v1070, %v1083
    %v1085 = vpop.f32.mrf.mxu0
    %v1086 = vadd.f32 %v1072, %v1085
    %1087 = vdwg.mxu0
    %1088 = vmatpush.bf16.msra.mxu0 %v1019
    %1089 = vmatpush.bf16.msra.mxu0 %v1018
    %1090 = vmatpush.bf16.msra.mxu0 %v1017
    %1091 = vmatpush.bf16.msra.mxu0 %v1016
    %1092 = vmatpush.bf16.msra.mxu0 %v1015
    %1093 = vmatpush.bf16.msra.mxu0 %v1014
    %1094 = vmatpush.bf16.msra.mxu0 %v1013
    %1095 = vmatpush.bf16.msra.mxu0 %v1012
    %1096 = vmatmul.bf16.gmra.mxu0 %v801
    %v1097 = vpop.f32.mrf.mxu0
    %v1098 = vadd.f32 %v1084, %v1097
    %v1099 = vpop.f32.mrf.mxu0
    %v1100 = vadd.f32 %v1086, %v1099
    %1101 = vdwg.mxu0
    %1102 = vmatpush.bf16.msra.mxu0 %v1027
    %1103 = vmatpush.bf16.msra.mxu0 %v1026
    %1104 = vmatpush.bf16.msra.mxu0 %v1025
    %1105 = vmatpush.bf16.msra.mxu0 %v1024
    %1106 = vmatpush.bf16.msra.mxu0 %v1023
    %1107 = vmatpush.bf16.msra.mxu0 %v1022
    %1108 = vmatpush.bf16.msra.mxu0 %v1021
    %1109 = vmatpush.bf16.msra.mxu0 %v1020
    %1110 = vmatmul.bf16.gmra.mxu0 %v802
    %v1111 = vpop.f32.mrf.mxu0
    %v1112 = vadd.f32 %v1098, %v1111
    %v1113 = vpop.f32.mrf.mxu0
    %v1114 = vadd.f32 %v1100, %v1113
    %1115 = vdwg.mxu0
    %v1117 = vperm.slane %v803, 0
    %v1119 = vadd.f32 %v1117, %v1112
    %v1120 = vadd.f32 %v1117, %v1114
    %v1121 = vld [vmem:[#allocation8] sm:$0xff]
    %v1122 = vld [vmem:[#allocation8 + $0x8] sm:$0xff]
    %v1123 = vld [vmem:[#allocation8 + $0x10] sm:$0xff]
    %v1124 = vld [vmem:[#allocation8 + $0x18] sm:$0xff]
    %v1125 = vld [vmem:[#allocation8 + $0x20] sm:$0xff]
    %v1126 = vld [vmem:[#allocation8 + $0x28] sm:$0xff]
    %v1127 = vld [vmem:[#allocation8 + $0x30] sm:$0xff]
    %v1128 = vld [vmem:[#allocation8 + $0x38] sm:$0xff]
    %v1129 = vld [vmem:[#allocation8 + $0x40] sm:$0xff]
    %v1130 = vld [vmem:[#allocation8 + $0x48] sm:$0xff]
    %v1131 = vld [vmem:[#allocation8 + $0x50] sm:$0xff]
    %v1132 = vld [vmem:[#allocation8 + $0x58] sm:$0xff]
    %v1133 = vld [vmem:[#allocation8 + $0x60] sm:$0xff]
    %v1134 = vld [vmem:[#allocation8 + $0x68] sm:$0xff]
    %v1135 = vld [vmem:[#allocation8 + $0x70] sm:$0xff]
    %v1136 = vld [vmem:[#allocation8 + $0x78] sm:$0xff]
    %v1137 = vld [vmem:[#allocation8 + $0x80] sm:$0xff]
    %v1138 = vld [vmem:[#allocation8 + $0x88] sm:$0xff]
    %v1139 = vld [vmem:[#allocation8 + $0x90] sm:$0xff]
    %v1140 = vld [vmem:[#allocation8 + $0x98] sm:$0xff]
    %v1141 = vld [vmem:[#allocation8 + $0xa0] sm:$0xff]
    %v1142 = vld [vmem:[#allocation8 + $0xa8] sm:$0xff]
    %v1143 = vld [vmem:[#allocation8 + $0xb0] sm:$0xff]
    %v1144 = vld [vmem:[#allocation8 + $0xb8] sm:$0xff]
    %v1145 = vld [vmem:[#allocation8 + $0xc0] sm:$0xff]
    %v1146 = vld [vmem:[#allocation8 + $0xc8] sm:$0xff]
    %v1147 = vld [vmem:[#allocation8 + $0xd0] sm:$0xff]
    %v1148 = vld [vmem:[#allocation8 + $0xd8] sm:$0xff]
    %v1149 = vld [vmem:[#allocation8 + $0xe0] sm:$0xff]
    %v1150 = vld [vmem:[#allocation8 + $0xe8] sm:$0xff]
    %v1151 = vld [vmem:[#allocation8 + $0xf0] sm:$0xff]
    %v1152 = vld [vmem:[#allocation8 + $0xf8] sm:$0xff]
    %v1153 = vld [vmem:[#allocation8 + $0x100] sm:$0xff]
    %v1154 = vld [vmem:[#allocation8 + $0x108] sm:$0xff]
    %v1155 = vld [vmem:[#allocation8 + $0x110] sm:$0xff]
    %v1156 = vld [vmem:[#allocation8 + $0x118] sm:$0xff]
    %v1157 = vld [vmem:[#allocation8 + $0x120] sm:$0xff]
    %v1158 = vld [vmem:[#allocation8 + $0x128] sm:$0xff]
    %v1159 = vld [vmem:[#allocation8 + $0x130] sm:$0xff]
    %v1160 = vld [vmem:[#allocation8 + $0x138] sm:$0xff]
    %v1161 = vld [vmem:[#allocation8 + $0x140] sm:$0xff]
    %v1162 = vld [vmem:[#allocation8 + $0x148] sm:$0xff]
    %v1163 = vld [vmem:[#allocation8 + $0x150] sm:$0xff]
    %v1164 = vld [vmem:[#allocation8 + $0x158] sm:$0xff]
    %v1165 = vld [vmem:[#allocation8 + $0x160] sm:$0xff]
    %v1166 = vld [vmem:[#allocation8 + $0x168] sm:$0xff]
    %v1167 = vld [vmem:[#allocation8 + $0x170] sm:$0xff]
    %v1168 = vld [vmem:[#allocation8 + $0x178] sm:$0xff]
    %v1169 = vld [vmem:[#allocation8 + $0x180] sm:$0xff]
    %v1170 = vld [vmem:[#allocation8 + $0x188] sm:$0xff]
    %v1171 = vld [vmem:[#allocation8 + $0x190] sm:$0xff]
    %v1172 = vld [vmem:[#allocation8 + $0x198] sm:$0xff]
    %v1173 = vld [vmem:[#allocation8 + $0x1a0] sm:$0xff]
    %v1174 = vld [vmem:[#allocation8 + $0x1a8] sm:$0xff]
    %v1175 = vld [vmem:[#allocation8 + $0x1b0] sm:$0xff]
    %v1176 = vld [vmem:[#allocation8 + $0x1b8] sm:$0xff]
    %v1177 = vld [vmem:[#allocation8 + $0x1c0] sm:$0xff]
    %v1178 = vld [vmem:[#allocation8 + $0x1c8] sm:$0xff]
    %v1179 = vld [vmem:[#allocation8 + $0x1d0] sm:$0xff]
    %v1180 = vld [vmem:[#allocation8 + $0x1d8] sm:$0xff]
    %v1181 = vld [vmem:[#allocation8 + $0x1e0] sm:$0xff]
    %v1182 = vld [vmem:[#allocation8 + $0x1e8] sm:$0xff]
    %v1183 = vld [vmem:[#allocation8 + $0x1f0] sm:$0xff]
    %v1184 = vld [vmem:[#allocation8 + $0x1f8] sm:$0xff]
    %v1185 = vld [vmem:[#allocation10] sm:$0xff]
    %v1186 = vld [vmem:[#allocation10 + $0x8] sm:$0xff]
    %v1187 = vld [vmem:[#allocation10 + $0x10] sm:$0xff]
    %v1188 = vld [vmem:[#allocation10 + $0x18] sm:$0xff]
    %v1189 = vld [vmem:[#allocation10 + $0x20] sm:$0xff]
    %v1190 = vld [vmem:[#allocation10 + $0x28] sm:$0xff]
    %v1191 = vld [vmem:[#allocation10 + $0x30] sm:$0xff]
    %v1192 = vld [vmem:[#allocation10 + $0x38] sm:$0xff]
    %v1193 = vld [vmem:[#allocation10 + $0x40] sm:$0xff]
    %v1194 = vld [vmem:[#allocation10 + $0x48] sm:$0xff]
    %v1195 = vld [vmem:[#allocation10 + $0x50] sm:$0xff]
    %v1196 = vld [vmem:[#allocation10 + $0x58] sm:$0xff]
    %v1197 = vld [vmem:[#allocation10 + $0x60] sm:$0xff]
    %v1198 = vld [vmem:[#allocation10 + $0x68] sm:$0xff]
    %v1199 = vld [vmem:[#allocation10 + $0x70] sm:$0xff]
    %v1200 = vld [vmem:[#allocation10 + $0x78] sm:$0xff]
    %v1201 = vld [vmem:[#allocation10 + $0x80] sm:$0xff]
    %v1202 = vld [vmem:[#allocation10 + $0x88] sm:$0xff]
    %v1203 = vld [vmem:[#allocation10 + $0x90] sm:$0xff]
    %v1204 = vld [vmem:[#allocation10 + $0x98] sm:$0xff]
    %v1205 = vld [vmem:[#allocation10 + $0xa0] sm:$0xff]
    %v1206 = vld [vmem:[#allocation10 + $0xa8] sm:$0xff]
    %v1207 = vld [vmem:[#allocation10 + $0xb0] sm:$0xff]
    %v1208 = vld [vmem:[#allocation10 + $0xb8] sm:$0xff]
    %v1209 = vld [vmem:[#allocation10 + $0xc0] sm:$0xff]
    %v1210 = vld [vmem:[#allocation10 + $0xc8] sm:$0xff]
    %v1211 = vld [vmem:[#allocation10 + $0xd0] sm:$0xff]
    %v1212 = vld [vmem:[#allocation10 + $0xd8] sm:$0xff]
    %v1213 = vld [vmem:[#allocation10 + $0xe0] sm:$0xff]
    %v1214 = vld [vmem:[#allocation10 + $0xe8] sm:$0xff]
    %v1215 = vld [vmem:[#allocation10 + $0xf0] sm:$0xff]
    %v1216 = vld [vmem:[#allocation10 + $0xf8] sm:$0xff]
    %v1217 = vld [vmem:[#allocation10 + $0x100] sm:$0xff]
    %v1218 = vld [vmem:[#allocation10 + $0x108] sm:$0xff]
    %v1219 = vld [vmem:[#allocation10 + $0x110] sm:$0xff]
    %v1220 = vld [vmem:[#allocation10 + $0x118] sm:$0xff]
    %v1221 = vld [vmem:[#allocation10 + $0x120] sm:$0xff]
    %v1222 = vld [vmem:[#allocation10 + $0x128] sm:$0xff]
    %v1223 = vld [vmem:[#allocation10 + $0x130] sm:$0xff]
    %v1224 = vld [vmem:[#allocation10 + $0x138] sm:$0xff]
    %v1225 = vld [vmem:[#allocation10 + $0x140] sm:$0xff]
    %v1226 = vld [vmem:[#allocation10 + $0x148] sm:$0xff]
    %v1227 = vld [vmem:[#allocation10 + $0x150] sm:$0xff]
    %v1228 = vld [vmem:[#allocation10 + $0x158] sm:$0xff]
    %v1229 = vld [vmem:[#allocation10 + $0x160] sm:$0xff]
    %v1230 = vld [vmem:[#allocation10 + $0x168] sm:$0xff]
    %v1231 = vld [vmem:[#allocation10 + $0x170] sm:$0xff]
    %v1232 = vld [vmem:[#allocation10 + $0x178] sm:$0xff]
    %v1233 = vld [vmem:[#allocation10 + $0x180] sm:$0xff]
    %v1234 = vld [vmem:[#allocation10 + $0x188] sm:$0xff]
    %v1235 = vld [vmem:[#allocation10 + $0x190] sm:$0xff]
    %v1236 = vld [vmem:[#allocation10 + $0x198] sm:$0xff]
    %v1237 = vld [vmem:[#allocation10 + $0x1a0] sm:$0xff]
    %v1238 = vld [vmem:[#allocation10 + $0x1a8] sm:$0xff]
    %v1239 = vld [vmem:[#allocation10 + $0x1b0] sm:$0xff]
    %v1240 = vld [vmem:[#allocation10 + $0x1b8] sm:$0xff]
    %v1241 = vld [vmem:[#allocation10 + $0x1c0] sm:$0xff]
    %v1242 = vld [vmem:[#allocation10 + $0x1c8] sm:$0xff]
    %v1243 = vld [vmem:[#allocation10 + $0x1d0] sm:$0xff]
    %v1244 = vld [vmem:[#allocation10 + $0x1d8] sm:$0xff]
    %v1245 = vld [vmem:[#allocation10 + $0x1e0] sm:$0xff]
    %v1246 = vld [vmem:[#allocation10 + $0x1e8] sm:$0xff]
    %v1247 = vld [vmem:[#allocation10 + $0x1f0] sm:$0xff]
    %v1248 = vld [vmem:[#allocation10 + $0x1f8] sm:$0xff]
    %v1249 = vld [vmem:[#allocation10 + $0x200] sm:$0xff]
    %v1250 = vld [vmem:[#allocation10 + $0x208] sm:$0xff]
    %v1251 = vld [vmem:[#allocation10 + $0x210] sm:$0xff]
    %v1252 = vld [vmem:[#allocation10 + $0x218] sm:$0xff]
    %v1253 = vld [vmem:[#allocation10 + $0x220] sm:$0xff]
    %v1254 = vld [vmem:[#allocation10 + $0x228] sm:$0xff]
    %v1255 = vld [vmem:[#allocation10 + $0x230] sm:$0xff]
    %v1256 = vld [vmem:[#allocation10 + $0x238] sm:$0xff]
    %v1257 = vld [vmem:[#allocation10 + $0x240] sm:$0xff]
    %v1258 = vld [vmem:[#allocation10 + $0x248] sm:$0xff]
    %v1259 = vld [vmem:[#allocation10 + $0x250] sm:$0xff]
    %v1260 = vld [vmem:[#allocation10 + $0x258] sm:$0xff]
    %v1261 = vld [vmem:[#allocation10 + $0x260] sm:$0xff]
    %v1262 = vld [vmem:[#allocation10 + $0x268] sm:$0xff]
    %v1263 = vld [vmem:[#allocation10 + $0x270] sm:$0xff]
    %v1264 = vld [vmem:[#allocation10 + $0x278] sm:$0xff]
    %v1265 = vld [vmem:[#allocation10 + $0x280] sm:$0xff]
    %v1266 = vld [vmem:[#allocation10 + $0x288] sm:$0xff]
    %v1267 = vld [vmem:[#allocation10 + $0x290] sm:$0xff]
    %v1268 = vld [vmem:[#allocation10 + $0x298] sm:$0xff]
    %v1269 = vld [vmem:[#allocation10 + $0x2a0] sm:$0xff]
    %v1270 = vld [vmem:[#allocation10 + $0x2a8] sm:$0xff]
    %v1271 = vld [vmem:[#allocation10 + $0x2b0] sm:$0xff]
    %v1272 = vld [vmem:[#allocation10 + $0x2b8] sm:$0xff]
    %v1273 = vld [vmem:[#allocation10 + $0x2c0] sm:$0xff]
    %v1274 = vld [vmem:[#allocation10 + $0x2c8] sm:$0xff]
    %v1275 = vld [vmem:[#allocation10 + $0x2d0] sm:$0xff]
    %v1276 = vld [vmem:[#allocation10 + $0x2d8] sm:$0xff]
    %v1277 = vld [vmem:[#allocation10 + $0x2e0] sm:$0xff]
    %v1278 = vld [vmem:[#allocation10 + $0x2e8] sm:$0xff]
    %v1279 = vld [vmem:[#allocation10 + $0x2f0] sm:$0xff]
    %v1280 = vld [vmem:[#allocation10 + $0x2f8] sm:$0xff]
    %v1281 = vld [vmem:[#allocation10 + $0x300] sm:$0xff]
    %v1282 = vld [vmem:[#allocation10 + $0x308] sm:$0xff]
    %v1283 = vld [vmem:[#allocation10 + $0x310] sm:$0xff]
    %v1284 = vld [vmem:[#allocation10 + $0x318] sm:$0xff]
    %v1285 = vld [vmem:[#allocation10 + $0x320] sm:$0xff]
    %v1286 = vld [vmem:[#allocation10 + $0x328] sm:$0xff]
    %v1287 = vld [vmem:[#allocation10 + $0x330] sm:$0xff]
    %v1288 = vld [vmem:[#allocation10 + $0x338] sm:$0xff]
    %v1289 = vld [vmem:[#allocation10 + $0x340] sm:$0xff]
    %v1290 = vld [vmem:[#allocation10 + $0x348] sm:$0xff]
    %v1291 = vld [vmem:[#allocation10 + $0x350] sm:$0xff]
    %v1292 = vld [vmem:[#allocation10 + $0x358] sm:$0xff]
    %v1293 = vld [vmem:[#allocation10 + $0x360] sm:$0xff]
    %v1294 = vld [vmem:[#allocation10 + $0x368] sm:$0xff]
    %v1295 = vld [vmem:[#allocation10 + $0x370] sm:$0xff]
    %v1296 = vld [vmem:[#allocation10 + $0x378] sm:$0xff]
    %v1297 = vld [vmem:[#allocation10 + $0x380] sm:$0xff]
    %v1298 = vld [vmem:[#allocation10 + $0x388] sm:$0xff]
    %v1299 = vld [vmem:[#allocation10 + $0x390] sm:$0xff]
    %v1300 = vld [vmem:[#allocation10 + $0x398] sm:$0xff]
    %v1301 = vld [vmem:[#allocation10 + $0x3a0] sm:$0xff]
    %v1302 = vld [vmem:[#allocation10 + $0x3a8] sm:$0xff]
    %v1303 = vld [vmem:[#allocation10 + $0x3b0] sm:$0xff]
    %v1304 = vld [vmem:[#allocation10 + $0x3b8] sm:$0xff]
    %v1305 = vld [vmem:[#allocation10 + $0x3c0] sm:$0xff]
    %v1306 = vld [vmem:[#allocation10 + $0x3c8] sm:$0xff]
    %v1307 = vld [vmem:[#allocation10 + $0x3d0] sm:$0xff]
    %v1308 = vld [vmem:[#allocation10 + $0x3d8] sm:$0xff]
    %v1309 = vld [vmem:[#allocation10 + $0x3e0] sm:$0xff]
    %v1310 = vld [vmem:[#allocation10 + $0x3e8] sm:$0xff]
    %v1311 = vld [vmem:[#allocation10 + $0x3f0] sm:$0xff]
    %v1312 = vld [vmem:[#allocation10 + $0x3f8] sm:$0xff]
    %v1441 = vunpack.c.l.b16 %v1185
    %v1442 = vunpack.c.h.b16 %v1185
    %v1443 = vunpack.c.l.b16 %v1186
    %v1444 = vunpack.c.h.b16 %v1186
    %v1445 = vunpack.c.l.b16 %v1187
    %v1446 = vunpack.c.h.b16 %v1187
    %v1447 = vunpack.c.l.b16 %v1188
    %v1448 = vunpack.c.h.b16 %v1188
    %v1449 = vunpack.c.l.b16 %v1189
    %v1450 = vunpack.c.h.b16 %v1189
    %v1451 = vunpack.c.l.b16 %v1190
    %v1452 = vunpack.c.h.b16 %v1190
    %v1453 = vunpack.c.l.b16 %v1191
    %v1454 = vunpack.c.h.b16 %v1191
    %v1455 = vunpack.c.l.b16 %v1192
    %v1456 = vunpack.c.h.b16 %v1192
    %v1457 = vunpack.c.l.b16 %v1193
    %v1458 = vunpack.c.h.b16 %v1193
    %v1459 = vunpack.c.l.b16 %v1194
    %v1460 = vunpack.c.h.b16 %v1194
    %v1461 = vunpack.c.l.b16 %v1195
    %v1462 = vunpack.c.h.b16 %v1195
    %v1463 = vunpack.c.l.b16 %v1196
    %v1464 = vunpack.c.h.b16 %v1196
    %v1465 = vunpack.c.l.b16 %v1197
    %v1466 = vunpack.c.h.b16 %v1197
    %v1467 = vunpack.c.l.b16 %v1198
    %v1468 = vunpack.c.h.b16 %v1198
    %v1469 = vunpack.c.l.b16 %v1199
    %v1470 = vunpack.c.h.b16 %v1199
    %v1471 = vunpack.c.l.b16 %v1200
    %v1472 = vunpack.c.h.b16 %v1200
    %v1473 = vunpack.c.l.b16 %v1201
    %v1474 = vunpack.c.h.b16 %v1201
    %v1475 = vunpack.c.l.b16 %v1202
    %v1476 = vunpack.c.h.b16 %v1202
    %v1477 = vunpack.c.l.b16 %v1203
    %v1478 = vunpack.c.h.b16 %v1203
    %v1479 = vunpack.c.l.b16 %v1204
    %v1480 = vunpack.c.h.b16 %v1204
    %v1481 = vunpack.c.l.b16 %v1205
    %v1482 = vunpack.c.h.b16 %v1205
    %v1483 = vunpack.c.l.b16 %v1206
    %v1484 = vunpack.c.h.b16 %v1206
    %v1485 = vunpack.c.l.b16 %v1207
    %v1486 = vunpack.c.h.b16 %v1207
    %v1487 = vunpack.c.l.b16 %v1208
    %v1488 = vunpack.c.h.b16 %v1208
    %v1489 = vunpack.c.l.b16 %v1209
    %v1490 = vunpack.c.h.b16 %v1209
    %v1491 = vunpack.c.l.b16 %v1210
    %v1492 = vunpack.c.h.b16 %v1210
    %v1493 = vunpack.c.l.b16 %v1211
    %v1494 = vunpack.c.h.b16 %v1211
    %v1495 = vunpack.c.l.b16 %v1212
    %v1496 = vunpack.c.h.b16 %v1212
    %v1497 = vunpack.c.l.b16 %v1213
    %v1498 = vunpack.c.h.b16 %v1213
    %v1499 = vunpack.c.l.b16 %v1214
    %v1500 = vunpack.c.h.b16 %v1214
    %v1501 = vunpack.c.l.b16 %v1215
    %v1502 = vunpack.c.h.b16 %v1215
    %v1503 = vunpack.c.l.b16 %v1216
    %v1504 = vunpack.c.h.b16 %v1216
    %v1505 = vunpack.c.l.b16 %v1217
    %v1506 = vunpack.c.h.b16 %v1217
    %v1507 = vunpack.c.l.b16 %v1218
    %v1508 = vunpack.c.h.b16 %v1218
    %v1509 = vunpack.c.l.b16 %v1219
    %v1510 = vunpack.c.h.b16 %v1219
    %v1511 = vunpack.c.l.b16 %v1220
    %v1512 = vunpack.c.h.b16 %v1220
    %v1513 = vunpack.c.l.b16 %v1221
    %v1514 = vunpack.c.h.b16 %v1221
    %v1515 = vunpack.c.l.b16 %v1222
    %v1516 = vunpack.c.h.b16 %v1222
    %v1517 = vunpack.c.l.b16 %v1223
    %v1518 = vunpack.c.h.b16 %v1223
    %v1519 = vunpack.c.l.b16 %v1224
    %v1520 = vunpack.c.h.b16 %v1224
    %v1521 = vunpack.c.l.b16 %v1225
    %v1522 = vunpack.c.h.b16 %v1225
    %v1523 = vunpack.c.l.b16 %v1226
    %v1524 = vunpack.c.h.b16 %v1226
    %v1525 = vunpack.c.l.b16 %v1227
    %v1526 = vunpack.c.h.b16 %v1227
    %v1527 = vunpack.c.l.b16 %v1228
    %v1528 = vunpack.c.h.b16 %v1228
    %v1529 = vunpack.c.l.b16 %v1229
    %v1530 = vunpack.c.h.b16 %v1229
    %v1531 = vunpack.c.l.b16 %v1230
    %v1532 = vunpack.c.h.b16 %v1230
    %v1533 = vunpack.c.l.b16 %v1231
    %v1534 = vunpack.c.h.b16 %v1231
    %v1535 = vunpack.c.l.b16 %v1232
    %v1536 = vunpack.c.h.b16 %v1232
    %v1537 = vunpack.c.l.b16 %v1233
    %v1538 = vunpack.c.h.b16 %v1233
    %v1539 = vunpack.c.l.b16 %v1234
    %v1540 = vunpack.c.h.b16 %v1234
    %v1541 = vunpack.c.l.b16 %v1235
    %v1542 = vunpack.c.h.b16 %v1235
    %v1543 = vunpack.c.l.b16 %v1236
    %v1544 = vunpack.c.h.b16 %v1236
    %v1545 = vunpack.c.l.b16 %v1237
    %v1546 = vunpack.c.h.b16 %v1237
    %v1547 = vunpack.c.l.b16 %v1238
    %v1548 = vunpack.c.h.b16 %v1238
    %v1549 = vunpack.c.l.b16 %v1239
    %v1550 = vunpack.c.h.b16 %v1239
    %v1551 = vunpack.c.l.b16 %v1240
    %v1552 = vunpack.c.h.b16 %v1240
    %v1553 = vunpack.c.l.b16 %v1241
    %v1554 = vunpack.c.h.b16 %v1241
    %v1555 = vunpack.c.l.b16 %v1242
    %v1556 = vunpack.c.h.b16 %v1242
    %v1557 = vunpack.c.l.b16 %v1243
    %v1558 = vunpack.c.h.b16 %v1243
    %v1559 = vunpack.c.l.b16 %v1244
    %v1560 = vunpack.c.h.b16 %v1244
    %v1561 = vunpack.c.l.b16 %v1245
    %v1562 = vunpack.c.h.b16 %v1245
    %v1563 = vunpack.c.l.b16 %v1246
    %v1564 = vunpack.c.h.b16 %v1246
    %v1565 = vunpack.c.l.b16 %v1247
    %v1566 = vunpack.c.h.b16 %v1247
    %v1567 = vunpack.c.l.b16 %v1248
    %v1568 = vunpack.c.h.b16 %v1248
    %v1569 = vunpack.c.l.b16 %v1249
    %v1570 = vunpack.c.h.b16 %v1249
    %v1571 = vunpack.c.l.b16 %v1250
    %v1572 = vunpack.c.h.b16 %v1250
    %v1573 = vunpack.c.l.b16 %v1251
    %v1574 = vunpack.c.h.b16 %v1251
    %v1575 = vunpack.c.l.b16 %v1252
    %v1576 = vunpack.c.h.b16 %v1252
    %v1577 = vunpack.c.l.b16 %v1253
    %v1578 = vunpack.c.h.b16 %v1253
    %v1579 = vunpack.c.l.b16 %v1254
    %v1580 = vunpack.c.h.b16 %v1254
    %v1581 = vunpack.c.l.b16 %v1255
    %v1582 = vunpack.c.h.b16 %v1255
    %v1583 = vunpack.c.l.b16 %v1256
    %v1584 = vunpack.c.h.b16 %v1256
    %v1585 = vunpack.c.l.b16 %v1257
    %v1586 = vunpack.c.h.b16 %v1257
    %v1587 = vunpack.c.l.b16 %v1258
    %v1588 = vunpack.c.h.b16 %v1258
    %v1589 = vunpack.c.l.b16 %v1259
    %v1590 = vunpack.c.h.b16 %v1259
    %v1591 = vunpack.c.l.b16 %v1260
    %v1592 = vunpack.c.h.b16 %v1260
    %v1593 = vunpack.c.l.b16 %v1261
    %v1594 = vunpack.c.h.b16 %v1261
    %v1595 = vunpack.c.l.b16 %v1262
    %v1596 = vunpack.c.h.b16 %v1262
    %v1597 = vunpack.c.l.b16 %v1263
    %v1598 = vunpack.c.h.b16 %v1263
    %v1599 = vunpack.c.l.b16 %v1264
    %v1600 = vunpack.c.h.b16 %v1264
    %v1601 = vunpack.c.l.b16 %v1265
    %v1602 = vunpack.c.h.b16 %v1265
    %v1603 = vunpack.c.l.b16 %v1266
    %v1604 = vunpack.c.h.b16 %v1266
    %v1605 = vunpack.c.l.b16 %v1267
    %v1606 = vunpack.c.h.b16 %v1267
    %v1607 = vunpack.c.l.b16 %v1268
    %v1608 = vunpack.c.h.b16 %v1268
    %v1609 = vunpack.c.l.b16 %v1269
    %v1610 = vunpack.c.h.b16 %v1269
    %v1611 = vunpack.c.l.b16 %v1270
    %v1612 = vunpack.c.h.b16 %v1270
    %v1613 = vunpack.c.l.b16 %v1271
    %v1614 = vunpack.c.h.b16 %v1271
    %v1615 = vunpack.c.l.b16 %v1272
    %v1616 = vunpack.c.h.b16 %v1272
    %v1617 = vunpack.c.l.b16 %v1273
    %v1618 = vunpack.c.h.b16 %v1273
    %v1619 = vunpack.c.l.b16 %v1274
    %v1620 = vunpack.c.h.b16 %v1274
    %v1621 = vunpack.c.l.b16 %v1275
    %v1622 = vunpack.c.h.b16 %v1275
    %v1623 = vunpack.c.l.b16 %v1276
    %v1624 = vunpack.c.h.b16 %v1276
    %v1625 = vunpack.c.l.b16 %v1277
    %v1626 = vunpack.c.h.b16 %v1277
    %v1627 = vunpack.c.l.b16 %v1278
    %v1628 = vunpack.c.h.b16 %v1278
    %v1629 = vunpack.c.l.b16 %v1279
    %v1630 = vunpack.c.h.b16 %v1279
    %v1631 = vunpack.c.l.b16 %v1280
    %v1632 = vunpack.c.h.b16 %v1280
    %v1633 = vunpack.c.l.b16 %v1281
    %v1634 = vunpack.c.h.b16 %v1281
    %v1635 = vunpack.c.l.b16 %v1282
    %v1636 = vunpack.c.h.b16 %v1282
    %v1637 = vunpack.c.l.b16 %v1283
    %v1638 = vunpack.c.h.b16 %v1283
    %v1639 = vunpack.c.l.b16 %v1284
    %v1640 = vunpack.c.h.b16 %v1284
    %v1641 = vunpack.c.l.b16 %v1285
    %v1642 = vunpack.c.h.b16 %v1285
    %v1643 = vunpack.c.l.b16 %v1286
    %v1644 = vunpack.c.h.b16 %v1286
    %v1645 = vunpack.c.l.b16 %v1287
    %v1646 = vunpack.c.h.b16 %v1287
    %v1647 = vunpack.c.l.b16 %v1288
    %v1648 = vunpack.c.h.b16 %v1288
    %v1649 = vunpack.c.l.b16 %v1289
    %v1650 = vunpack.c.h.b16 %v1289
    %v1651 = vunpack.c.l.b16 %v1290
    %v1652 = vunpack.c.h.b16 %v1290
    %v1653 = vunpack.c.l.b16 %v1291
    %v1654 = vunpack.c.h.b16 %v1291
    %v1655 = vunpack.c.l.b16 %v1292
    %v1656 = vunpack.c.h.b16 %v1292
    %v1657 = vunpack.c.l.b16 %v1293
    %v1658 = vunpack.c.h.b16 %v1293
    %v1659 = vunpack.c.l.b16 %v1294
    %v1660 = vunpack.c.h.b16 %v1294
    %v1661 = vunpack.c.l.b16 %v1295
    %v1662 = vunpack.c.h.b16 %v1295
    %v1663 = vunpack.c.l.b16 %v1296
    %v1664 = vunpack.c.h.b16 %v1296
    %v1665 = vunpack.c.l.b16 %v1297
    %v1666 = vunpack.c.h.b16 %v1297
    %v1667 = vunpack.c.l.b16 %v1298
    %v1668 = vunpack.c.h.b16 %v1298
    %v1669 = vunpack.c.l.b16 %v1299
    %v1670 = vunpack.c.h.b16 %v1299
    %v1671 = vunpack.c.l.b16 %v1300
    %v1672 = vunpack.c.h.b16 %v1300
    %v1673 = vunpack.c.l.b16 %v1301
    %v1674 = vunpack.c.h.b16 %v1301
    %v1675 = vunpack.c.l.b16 %v1302
    %v1676 = vunpack.c.h.b16 %v1302
    %v1677 = vunpack.c.l.b16 %v1303
    %v1678 = vunpack.c.h.b16 %v1303
    %v1679 = vunpack.c.l.b16 %v1304
    %v1680 = vunpack.c.h.b16 %v1304
    %v1681 = vunpack.c.l.b16 %v1305
    %v1682 = vunpack.c.h.b16 %v1305
    %v1683 = vunpack.c.l.b16 %v1306
    %v1684 = vunpack.c.h.b16 %v1306
    %v1685 = vunpack.c.l.b16 %v1307
    %v1686 = vunpack.c.h.b16 %v1307
    %v1687 = vunpack.c.l.b16 %v1308
    %v1688 = vunpack.c.h.b16 %v1308
    %v1689 = vunpack.c.l.b16 %v1309
    %v1690 = vunpack.c.h.b16 %v1309
    %v1691 = vunpack.c.l.b16 %v1310
    %v1692 = vunpack.c.h.b16 %v1310
    %v1693 = vunpack.c.l.b16 %v1311
    %v1694 = vunpack.c.h.b16 %v1311
    %v1695 = vunpack.c.l.b16 %v1312
    %v1696 = vunpack.c.h.b16 %v1312
    %v1697 = vpack.c.b16 %v1445, %v1441
    %v1698 = vpack.c.b16 %v1446, %v1442
    %v1699 = vpack.c.b16 %v1447, %v1443
    %v1700 = vpack.c.b16 %v1448, %v1444
    %v1701 = vpack.c.b16 %v1453, %v1449
    %v1702 = vpack.c.b16 %v1454, %v1450
    %v1703 = vpack.c.b16 %v1455, %v1451
    %v1704 = vpack.c.b16 %v1456, %v1452
    %v1705 = vpack.c.b16 %v1461, %v1457
    %v1706 = vpack.c.b16 %v1462, %v1458
    %v1707 = vpack.c.b16 %v1463, %v1459
    %v1708 = vpack.c.b16 %v1464, %v1460
    %v1709 = vpack.c.b16 %v1469, %v1465
    %v1710 = vpack.c.b16 %v1470, %v1466
    %v1711 = vpack.c.b16 %v1471, %v1467
    %v1712 = vpack.c.b16 %v1472, %v1468
    %v1713 = vpack.c.b16 %v1477, %v1473
    %v1714 = vpack.c.b16 %v1478, %v1474
    %v1715 = vpack.c.b16 %v1479, %v1475
    %v1716 = vpack.c.b16 %v1480, %v1476
    %v1717 = vpack.c.b16 %v1485, %v1481
    %v1718 = vpack.c.b16 %v1486, %v1482
    %v1719 = vpack.c.b16 %v1487, %v1483
    %v1720 = vpack.c.b16 %v1488, %v1484
    %v1721 = vpack.c.b16 %v1493, %v1489
    %v1722 = vpack.c.b16 %v1494, %v1490
    %v1723 = vpack.c.b16 %v1495, %v1491
    %v1724 = vpack.c.b16 %v1496, %v1492
    %v1725 = vpack.c.b16 %v1501, %v1497
    %v1726 = vpack.c.b16 %v1502, %v1498
    %v1727 = vpack.c.b16 %v1503, %v1499
    %v1728 = vpack.c.b16 %v1504, %v1500
    %v1729 = vpack.c.b16 %v1509, %v1505
    %v1730 = vpack.c.b16 %v1510, %v1506
    %v1731 = vpack.c.b16 %v1511, %v1507
    %v1732 = vpack.c.b16 %v1512, %v1508
    %v1733 = vpack.c.b16 %v1517, %v1513
    %v1734 = vpack.c.b16 %v1518, %v1514
    %v1735 = vpack.c.b16 %v1519, %v1515
    %v1736 = vpack.c.b16 %v1520, %v1516
    %v1737 = vpack.c.b16 %v1525, %v1521
    %v1738 = vpack.c.b16 %v1526, %v1522
    %v1739 = vpack.c.b16 %v1527, %v1523
    %v1740 = vpack.c.b16 %v1528, %v1524
    %v1741 = vpack.c.b16 %v1533, %v1529
    %v1742 = vpack.c.b16 %v1534, %v1530
    %v1743 = vpack.c.b16 %v1535, %v1531
    %v1744 = vpack.c.b16 %v1536, %v1532
    %v1745 = vpack.c.b16 %v1541, %v1537
    %v1746 = vpack.c.b16 %v1542, %v1538
    %v1747 = vpack.c.b16 %v1543, %v1539
    %v1748 = vpack.c.b16 %v1544, %v1540
    %v1749 = vpack.c.b16 %v1549, %v1545
    %v1750 = vpack.c.b16 %v1550, %v1546
    %v1751 = vpack.c.b16 %v1551, %v1547
    %v1752 = vpack.c.b16 %v1552, %v1548
    %v1753 = vpack.c.b16 %v1557, %v1553
    %v1754 = vpack.c.b16 %v1558, %v1554
    %v1755 = vpack.c.b16 %v1559, %v1555
    %v1756 = vpack.c.b16 %v1560, %v1556
    %v1757 = vpack.c.b16 %v1565, %v1561
    %v1758 = vpack.c.b16 %v1566, %v1562
    %v1759 = vpack.c.b16 %v1567, %v1563
    %v1760 = vpack.c.b16 %v1568, %v1564
    %v1761 = vpack.c.b16 %v1573, %v1569
    %v1762 = vpack.c.b16 %v1574, %v1570
    %v1763 = vpack.c.b16 %v1575, %v1571
    %v1764 = vpack.c.b16 %v1576, %v1572
    %v1765 = vpack.c.b16 %v1581, %v1577
    %v1766 = vpack.c.b16 %v1582, %v1578
    %v1767 = vpack.c.b16 %v1583, %v1579
    %v1768 = vpack.c.b16 %v1584, %v1580
    %v1769 = vpack.c.b16 %v1589, %v1585
    %v1770 = vpack.c.b16 %v1590, %v1586
    %v1771 = vpack.c.b16 %v1591, %v1587
    %v1772 = vpack.c.b16 %v1592, %v1588
    %v1773 = vpack.c.b16 %v1597, %v1593
    %v1774 = vpack.c.b16 %v1598, %v1594
    %v1775 = vpack.c.b16 %v1599, %v1595
    %v1776 = vpack.c.b16 %v1600, %v1596
    %v1777 = vpack.c.b16 %v1605, %v1601
    %v1778 = vpack.c.b16 %v1606, %v1602
    %v1779 = vpack.c.b16 %v1607, %v1603
    %v1780 = vpack.c.b16 %v1608, %v1604
    %v1781 = vpack.c.b16 %v1613, %v1609
    %v1782 = vpack.c.b16 %v1614, %v1610
    %v1783 = vpack.c.b16 %v1615, %v1611
    %v1784 = vpack.c.b16 %v1616, %v1612
    %v1785 = vpack.c.b16 %v1621, %v1617
    %v1786 = vpack.c.b16 %v1622, %v1618
    %v1787 = vpack.c.b16 %v1623, %v1619
    %v1788 = vpack.c.b16 %v1624, %v1620
    %v1789 = vpack.c.b16 %v1629, %v1625
    %v1790 = vpack.c.b16 %v1630, %v1626
    %v1791 = vpack.c.b16 %v1631, %v1627
    %v1792 = vpack.c.b16 %v1632, %v1628
    %v1793 = vpack.c.b16 %v1637, %v1633
    %v1794 = vpack.c.b16 %v1638, %v1634
    %v1795 = vpack.c.b16 %v1639, %v1635
    %v1796 = vpack.c.b16 %v1640, %v1636
    %v1797 = vpack.c.b16 %v1645, %v1641
    %v1798 = vpack.c.b16 %v1646, %v1642
    %v1799 = vpack.c.b16 %v1647, %v1643
    %v1800 = vpack.c.b16 %v1648, %v1644
    %v1801 = vpack.c.b16 %v1653, %v1649
    %v1802 = vpack.c.b16 %v1654, %v1650
    %v1803 = vpack.c.b16 %v1655, %v1651
    %v1804 = vpack.c.b16 %v1656, %v1652
    %v1805 = vpack.c.b16 %v1661, %v1657
    %v1806 = vpack.c.b16 %v1662, %v1658
    %v1807 = vpack.c.b16 %v1663, %v1659
    %v1808 = vpack.c.b16 %v1664, %v1660
    %v1809 = vpack.c.b16 %v1669, %v1665
    %v1810 = vpack.c.b16 %v1670, %v1666
    %v1811 = vpack.c.b16 %v1671, %v1667
    %v1812 = vpack.c.b16 %v1672, %v1668
    %v1813 = vpack.c.b16 %v1677, %v1673
    %v1814 = vpack.c.b16 %v1678, %v1674
    %v1815 = vpack.c.b16 %v1679, %v1675
    %v1816 = vpack.c.b16 %v1680, %v1676
    %v1817 = vpack.c.b16 %v1685, %v1681
    %v1818 = vpack.c.b16 %v1686, %v1682
    %v1819 = vpack.c.b16 %v1687, %v1683
    %v1820 = vpack.c.b16 %v1688, %v1684
    %v1821 = vpack.c.b16 %v1693, %v1689
    %v1822 = vpack.c.b16 %v1694, %v1690
    %v1823 = vpack.c.b16 %v1695, %v1691
    %v1824 = vpack.c.b16 %v1696, %v1692
    %1953 = vmatpush.bf16.msra.mxu0 %v1725
    %1954 = vmatpush.bf16.msra.mxu0 %v1721
    %1955 = vmatpush.bf16.msra.mxu0 %v1717
    %1956 = vmatpush.bf16.msra.mxu0 %v1713
    %1957 = vmatpush.bf16.msra.mxu0 %v1709
    %1958 = vmatpush.bf16.msra.mxu0 %v1705
    %1959 = vmatpush.bf16.msra.mxu0 %v1701
    %1960 = vmatpush.bf16.msra.mxu0 %v1697
    %1961 = vmatmul.bf16.gmra.mxu0 %v799
    %v1962 = vpop.f32.mrf.mxu0
    %v1963 = vadd.f32 0.0, %v1962
    %v1964 = vpop.f32.mrf.mxu0
    %v1965 = vadd.f32 0.0, %v1964
    %1966 = vdwg.mxu0
    %1967 = vmatpush.bf16.msra.mxu0 %v1757
    %1968 = vmatpush.bf16.msra.mxu0 %v1753
    %1969 = vmatpush.bf16.msra.mxu0 %v1749
    %1970 = vmatpush.bf16.msra.mxu0 %v1745
    %1971 = vmatpush.bf16.msra.mxu0 %v1741
    %1972 = vmatpush.bf16.msra.mxu0 %v1737
    %1973 = vmatpush.bf16.msra.mxu0 %v1733
    %1974 = vmatpush.bf16.msra.mxu0 %v1729
    %1975 = vmatmul.bf16.gmra.mxu0 %v800
    %v1976 = vpop.f32.mrf.mxu0
    %v1977 = vadd.f32 %v1963, %v1976
    %v1978 = vpop.f32.mrf.mxu0
    %v1979 = vadd.f32 %v1965, %v1978
    %1980 = vdwg.mxu0
    %1981 = vmatpush.bf16.msra.mxu0 %v1789
    %1982 = vmatpush.bf16.msra.mxu0 %v1785
    %1983 = vmatpush.bf16.msra.mxu0 %v1781
    %1984 = vmatpush.bf16.msra.mxu0 %v1777
    %1985 = vmatpush.bf16.msra.mxu0 %v1773
    %1986 = vmatpush.bf16.msra.mxu0 %v1769
    %1987 = vmatpush.bf16.msra.mxu0 %v1765
    %1988 = vmatpush.bf16.msra.mxu0 %v1761
    %1989 = vmatmul.bf16.gmra.mxu0 %v801
    %v1990 = vpop.f32.mrf.mxu0
    %v1991 = vadd.f32 %v1977, %v1990
    %v1992 = vpop.f32.mrf.mxu0
    %v1993 = vadd.f32 %v1979, %v1992
    %1994 = vdwg.mxu0
    %1995 = vmatpush.bf16.msra.mxu0 %v1821
    %1996 = vmatpush.bf16.msra.mxu0 %v1817
    %1997 = vmatpush.bf16.msra.mxu0 %v1813
    %1998 = vmatpush.bf16.msra.mxu0 %v1809
    %1999 = vmatpush.bf16.msra.mxu0 %v1805
    %2000 = vmatpush.bf16.msra.mxu0 %v1801
    %2001 = vmatpush.bf16.msra.mxu0 %v1797
    %2002 = vmatpush.bf16.msra.mxu0 %v1793
    %2003 = vmatmul.bf16.gmra.mxu0 %v802
    %v2004 = vpop.f32.mrf.mxu0
    %v2005 = vadd.f32 %v1991, %v2004
    %v2006 = vpop.f32.mrf.mxu0
    %v2007 = vadd.f32 %v1993, %v2006
    %2008 = vdwg.mxu0
    %2009 = vmatpush.bf16.msra.mxu0 %v1726
    %2010 = vmatpush.bf16.msra.mxu0 %v1722
    %2011 = vmatpush.bf16.msra.mxu0 %v1718
    %2012 = vmatpush.bf16.msra.mxu0 %v1714
    %2013 = vmatpush.bf16.msra.mxu0 %v1710
    %2014 = vmatpush.bf16.msra.mxu0 %v1706
    %2015 = vmatpush.bf16.msra.mxu0 %v1702
    %2016 = vmatpush.bf16.msra.mxu0 %v1698
    %2017 = vmatmul.bf16.gmra.mxu0 %v799
    %v2018 = vpop.f32.mrf.mxu0
    %v2019 = vadd.f32 0.0, %v2018
    %v2020 = vpop.f32.mrf.mxu0
    %v2021 = vadd.f32 0.0, %v2020
    %2022 = vdwg.mxu0
    %2023 = vmatpush.bf16.msra.mxu0 %v1758
    %2024 = vmatpush.bf16.msra.mxu0 %v1754
    %2025 = vmatpush.bf16.msra.mxu0 %v1750
    %2026 = vmatpush.bf16.msra.mxu0 %v1746
    %2027 = vmatpush.bf16.msra.mxu0 %v1742
    %2028 = vmatpush.bf16.msra.mxu0 %v1738
    %2029 = vmatpush.bf16.msra.mxu0 %v1734
    %2030 = vmatpush.bf16.msra.mxu0 %v1730
    %2031 = vmatmul.bf16.gmra.mxu0 %v800
    %v2032 = vpop.f32.mrf.mxu0
    %v2033 = vadd.f32 %v2019, %v2032
    %v2034 = vpop.f32.mrf.mxu0
    %v2035 = vadd.f32 %v2021, %v2034
    %2036 = vdwg.mxu0
    %2037 = vmatpush.bf16.msra.mxu0 %v1790
    %2038 = vmatpush.bf16.msra.mxu0 %v1786
    %2039 = vmatpush.bf16.msra.mxu0 %v1782
    %2040 = vmatpush.bf16.msra.mxu0 %v1778
    %2041 = vmatpush.bf16.msra.mxu0 %v1774
    %2042 = vmatpush.bf16.msra.mxu0 %v1770
    %2043 = vmatpush.bf16.msra.mxu0 %v1766
    %2044 = vmatpush.bf16.msra.mxu0 %v1762
    %2045 = vmatmul.bf16.gmra.mxu0 %v801
    %v2046 = vpop.f32.mrf.mxu0
    %v2047 = vadd.f32 %v2033, %v2046
    %v2048 = vpop.f32.mrf.mxu0
    %v2049 = vadd.f32 %v2035, %v2048
    %2050 = vdwg.mxu0
    %2051 = vmatpush.bf16.msra.mxu0 %v1822
    %2052 = vmatpush.bf16.msra.mxu0 %v1818
    %2053 = vmatpush.bf16.msra.mxu0 %v1814
    %2054 = vmatpush.bf16.msra.mxu0 %v1810
    %2055 = vmatpush.bf16.msra.mxu0 %v1806
    %2056 = vmatpush.bf16.msra.mxu0 %v1802
    %2057 = vmatpush.bf16.msra.mxu0 %v1798
    %2058 = vmatpush.bf16.msra.mxu0 %v1794
    %2059 = vmatmul.bf16.gmra.mxu0 %v802
    %v2060 = vpop.f32.mrf.mxu0
    %v2061 = vadd.f32 %v2047, %v2060
    %v2062 = vpop.f32.mrf.mxu0
    %v2063 = vadd.f32 %v2049, %v2062
    %2064 = vdwg.mxu0
    %2065 = vmatpush.bf16.msra.mxu0 %v1727
    %2066 = vmatpush.bf16.msra.mxu0 %v1723
    %2067 = vmatpush.bf16.msra.mxu0 %v1719
    %2068 = vmatpush.bf16.msra.mxu0 %v1715
    %2069 = vmatpush.bf16.msra.mxu0 %v1711
    %2070 = vmatpush.bf16.msra.mxu0 %v1707
    %2071 = vmatpush.bf16.msra.mxu0 %v1703
    %2072 = vmatpush.bf16.msra.mxu0 %v1699
    %2073 = vmatmul.bf16.gmra.mxu0 %v799
    %v2074 = vpop.f32.mrf.mxu0
    %v2075 = vadd.f32 0.0, %v2074
    %v2076 = vpop.f32.mrf.mxu0
    %v2077 = vadd.f32 0.0, %v2076
    %2078 = vdwg.mxu0
    %2079 = vmatpush.bf16.msra.mxu0 %v1759
    %2080 = vmatpush.bf16.msra.mxu0 %v1755
    %2081 = vmatpush.bf16.msra.mxu0 %v1751
    %2082 = vmatpush.bf16.msra.mxu0 %v1747
    %2083 = vmatpush.bf16.msra.mxu0 %v1743
    %2084 = vmatpush.bf16.msra.mxu0 %v1739
    %2085 = vmatpush.bf16.msra.mxu0 %v1735
    %2086 = vmatpush.bf16.msra.mxu0 %v1731
    %2087 = vmatmul.bf16.gmra.mxu0 %v800
    %v2088 = vpop.f32.mrf.mxu0
    %v2089 = vadd.f32 %v2075, %v2088
    %v2090 = vpop.f32.mrf.mxu0
    %v2091 = vadd.f32 %v2077, %v2090
    %2092 = vdwg.mxu0
    %2093 = vmatpush.bf16.msra.mxu0 %v1791
    %2094 = vmatpush.bf16.msra.mxu0 %v1787
    %2095 = vmatpush.bf16.msra.mxu0 %v1783
    %2096 = vmatpush.bf16.msra.mxu0 %v1779
    %2097 = vmatpush.bf16.msra.mxu0 %v1775
    %2098 = vmatpush.bf16.msra.mxu0 %v1771
    %2099 = vmatpush.bf16.msra.mxu0 %v1767
    %2100 = vmatpush.bf16.msra.mxu0 %v1763
    %2101 = vmatmul.bf16.gmra.mxu0 %v801
    %v2102 = vpop.f32.mrf.mxu0
    %v2103 = vadd.f32 %v2089, %v2102
    %v2104 = vpop.f32.mrf.mxu0
    %v2105 = vadd.f32 %v2091, %v2104
    %2106 = vdwg.mxu0
    %2107 = vmatpush.bf16.msra.mxu0 %v1823
    %2108 = vmatpush.bf16.msra.mxu0 %v1819
    %2109 = vmatpush.bf16.msra.mxu0 %v1815
    %2110 = vmatpush.bf16.msra.mxu0 %v1811
    %2111 = vmatpush.bf16.msra.mxu0 %v1807
    %2112 = vmatpush.bf16.msra.mxu0 %v1803
    %2113 = vmatpush.bf16.msra.mxu0 %v1799
    %2114 = vmatpush.bf16.msra.mxu0 %v1795
    %2115 = vmatmul.bf16.gmra.mxu0 %v802
    %v2116 = vpop.f32.mrf.mxu0
    %v2117 = vadd.f32 %v2103, %v2116
    %v2118 = vpop.f32.mrf.mxu0
    %v2119 = vadd.f32 %v2105, %v2118
    %2120 = vdwg.mxu0
    %2121 = vmatpush.bf16.msra.mxu0 %v1728
    %2122 = vmatpush.bf16.msra.mxu0 %v1724
    %2123 = vmatpush.bf16.msra.mxu0 %v1720
    %2124 = vmatpush.bf16.msra.mxu0 %v1716
    %2125 = vmatpush.bf16.msra.mxu0 %v1712
    %2126 = vmatpush.bf16.msra.mxu0 %v1708
    %2127 = vmatpush.bf16.msra.mxu0 %v1704
    %2128 = vmatpush.bf16.msra.mxu0 %v1700
    %2129 = vmatmul.bf16.gmra.mxu0 %v799
    %v2130 = vpop.f32.mrf.mxu0
    %v2131 = vadd.f32 0.0, %v2130
    %v2132 = vpop.f32.mrf.mxu0
    %v2133 = vadd.f32 0.0, %v2132
    %2134 = vdwg.mxu0
    %2135 = vmatpush.bf16.msra.mxu0 %v1760
    %2136 = vmatpush.bf16.msra.mxu0 %v1756
    %2137 = vmatpush.bf16.msra.mxu0 %v1752
    %2138 = vmatpush.bf16.msra.mxu0 %v1748
    %2139 = vmatpush.bf16.msra.mxu0 %v1744
    %2140 = vmatpush.bf16.msra.mxu0 %v1740
    %2141 = vmatpush.bf16.msra.mxu0 %v1736
    %2142 = vmatpush.bf16.msra.mxu0 %v1732
    %2143 = vmatmul.bf16.gmra.mxu0 %v800
    %v2144 = vpop.f32.mrf.mxu0
    %v2145 = vadd.f32 %v2131, %v2144
    %v2146 = vpop.f32.mrf.mxu0
    %v2147 = vadd.f32 %v2133, %v2146
    %2148 = vdwg.mxu0
    %2149 = vmatpush.bf16.msra.mxu0 %v1792
    %2150 = vmatpush.bf16.msra.mxu0 %v1788
    %2151 = vmatpush.bf16.msra.mxu0 %v1784
    %2152 = vmatpush.bf16.msra.mxu0 %v1780
    %2153 = vmatpush.bf16.msra.mxu0 %v1776
    %2154 = vmatpush.bf16.msra.mxu0 %v1772
    %2155 = vmatpush.bf16.msra.mxu0 %v1768
    %2156 = vmatpush.bf16.msra.mxu0 %v1764
    %2157 = vmatmul.bf16.gmra.mxu0 %v801
    %v2158 = vpop.f32.mrf.mxu0
    %v2159 = vadd.f32 %v2145, %v2158
    %v2160 = vpop.f32.mrf.mxu0
    %v2161 = vadd.f32 %v2147, %v2160
    %2162 = vdwg.mxu0
    %2163 = vmatpush.bf16.msra.mxu0 %v1824
    %2164 = vmatpush.bf16.msra.mxu0 %v1820
    %2165 = vmatpush.bf16.msra.mxu0 %v1816
    %2166 = vmatpush.bf16.msra.mxu0 %v1812
    %2167 = vmatpush.bf16.msra.mxu0 %v1808
    %2168 = vmatpush.bf16.msra.mxu0 %v1804
    %2169 = vmatpush.bf16.msra.mxu0 %v1800
    %2170 = vmatpush.bf16.msra.mxu0 %v1796
    %2171 = vmatmul.bf16.gmra.mxu0 %v802
    %v2172 = vpop.f32.mrf.mxu0
    %v2173 = vadd.f32 %v2159, %v2172
    %v2174 = vpop.f32.mrf.mxu0
    %v2175 = vadd.f32 %v2161, %v2174
    %2176 = vdwg.mxu0
    %v2179 = vunpack.c.l.b16 %v272
    %v2180 = vunpack.c.h.b16 %v272
    %v2181 = vunpack.c.l.b16 %v274
    %v2182 = vunpack.c.h.b16 %v274
    %v2183 = vpack.c.b16 %v2181, %v2179
    %v2184 = vpack.c.b16 %v2182, %v2180
    %v2251 = vunpack.c.l.b16 %v1121
    %v2252 = vunpack.c.h.b16 %v1121
    %v2253 = vunpack.c.l.b16 %v1122
    %v2254 = vunpack.c.h.b16 %v1122
    %v2255 = vunpack.c.l.b16 %v1123
    %v2256 = vunpack.c.h.b16 %v1123
    %v2257 = vunpack.c.l.b16 %v1124
    %v2258 = vunpack.c.h.b16 %v1124
    %v2259 = vunpack.c.l.b16 %v1125
    %v2260 = vunpack.c.h.b16 %v1125
    %v2261 = vunpack.c.l.b16 %v1126
    %v2262 = vunpack.c.h.b16 %v1126
    %v2263 = vunpack.c.l.b16 %v1127
    %v2264 = vunpack.c.h.b16 %v1127
    %v2265 = vunpack.c.l.b16 %v1128
    %v2266 = vunpack.c.h.b16 %v1128
    %v2267 = vunpack.c.l.b16 %v1129
    %v2268 = vunpack.c.h.b16 %v1129
    %v2269 = vunpack.c.l.b16 %v1130
    %v2270 = vunpack.c.h.b16 %v1130
    %v2271 = vunpack.c.l.b16 %v1131
    %v2272 = vunpack.c.h.b16 %v1131
    %v2273 = vunpack.c.l.b16 %v1132
    %v2274 = vunpack.c.h.b16 %v1132
    %v2275 = vunpack.c.l.b16 %v1133
    %v2276 = vunpack.c.h.b16 %v1133
    %v2277 = vunpack.c.l.b16 %v1134
    %v2278 = vunpack.c.h.b16 %v1134
    %v2279 = vunpack.c.l.b16 %v1135
    %v2280 = vunpack.c.h.b16 %v1135
    %v2281 = vunpack.c.l.b16 %v1136
    %v2282 = vunpack.c.h.b16 %v1136
    %v2283 = vunpack.c.l.b16 %v1137
    %v2284 = vunpack.c.h.b16 %v1137
    %v2285 = vunpack.c.l.b16 %v1138
    %v2286 = vunpack.c.h.b16 %v1138
    %v2287 = vunpack.c.l.b16 %v1139
    %v2288 = vunpack.c.h.b16 %v1139
    %v2289 = vunpack.c.l.b16 %v1140
    %v2290 = vunpack.c.h.b16 %v1140
    %v2291 = vunpack.c.l.b16 %v1141
    %v2292 = vunpack.c.h.b16 %v1141
    %v2293 = vunpack.c.l.b16 %v1142
    %v2294 = vunpack.c.h.b16 %v1142
    %v2295 = vunpack.c.l.b16 %v1143
    %v2296 = vunpack.c.h.b16 %v1143
    %v2297 = vunpack.c.l.b16 %v1144
    %v2298 = vunpack.c.h.b16 %v1144
    %v2299 = vunpack.c.l.b16 %v1145
    %v2300 = vunpack.c.h.b16 %v1145
    %v2301 = vunpack.c.l.b16 %v1146
    %v2302 = vunpack.c.h.b16 %v1146
    %v2303 = vunpack.c.l.b16 %v1147
    %v2304 = vunpack.c.h.b16 %v1147
    %v2305 = vunpack.c.l.b16 %v1148
    %v2306 = vunpack.c.h.b16 %v1148
    %v2307 = vunpack.c.l.b16 %v1149
    %v2308 = vunpack.c.h.b16 %v1149
    %v2309 = vunpack.c.l.b16 %v1150
    %v2310 = vunpack.c.h.b16 %v1150
    %v2311 = vunpack.c.l.b16 %v1151
    %v2312 = vunpack.c.h.b16 %v1151
    %v2313 = vunpack.c.l.b16 %v1152
    %v2314 = vunpack.c.h.b16 %v1152
    %v2315 = vunpack.c.l.b16 %v1153
    %v2316 = vunpack.c.h.b16 %v1153
    %v2317 = vunpack.c.l.b16 %v1154
    %v2318 = vunpack.c.h.b16 %v1154
    %v2319 = vunpack.c.l.b16 %v1155
    %v2320 = vunpack.c.h.b16 %v1155
    %v2321 = vunpack.c.l.b16 %v1156
    %v2322 = vunpack.c.h.b16 %v1156
    %v2323 = vunpack.c.l.b16 %v1157
    %v2324 = vunpack.c.h.b16 %v1157
    %v2325 = vunpack.c.l.b16 %v1158
    %v2326 = vunpack.c.h.b16 %v1158
    %v2327 = vunpack.c.l.b16 %v1159
    %v2328 = vunpack.c.h.b16 %v1159
    %v2329 = vunpack.c.l.b16 %v1160
    %v2330 = vunpack.c.h.b16 %v1160
    %v2331 = vunpack.c.l.b16 %v1161
    %v2332 = vunpack.c.h.b16 %v1161
    %v2333 = vunpack.c.l.b16 %v1162
    %v2334 = vunpack.c.h.b16 %v1162
    %v2335 = vunpack.c.l.b16 %v1163
    %v2336 = vunpack.c.h.b16 %v1163
    %v2337 = vunpack.c.l.b16 %v1164
    %v2338 = vunpack.c.h.b16 %v1164
    %v2339 = vunpack.c.l.b16 %v1165
    %v2340 = vunpack.c.h.b16 %v1165
    %v2341 = vunpack.c.l.b16 %v1166
    %v2342 = vunpack.c.h.b16 %v1166
    %v2343 = vunpack.c.l.b16 %v1167
    %v2344 = vunpack.c.h.b16 %v1167
    %v2345 = vunpack.c.l.b16 %v1168
    %v2346 = vunpack.c.h.b16 %v1168
    %v2347 = vunpack.c.l.b16 %v1169
    %v2348 = vunpack.c.h.b16 %v1169
    %v2349 = vunpack.c.l.b16 %v1170
    %v2350 = vunpack.c.h.b16 %v1170
    %v2351 = vunpack.c.l.b16 %v1171
    %v2352 = vunpack.c.h.b16 %v1171
    %v2353 = vunpack.c.l.b16 %v1172
    %v2354 = vunpack.c.h.b16 %v1172
    %v2355 = vunpack.c.l.b16 %v1173
    %v2356 = vunpack.c.h.b16 %v1173
    %v2357 = vunpack.c.l.b16 %v1174
    %v2358 = vunpack.c.h.b16 %v1174
    %v2359 = vunpack.c.l.b16 %v1175
    %v2360 = vunpack.c.h.b16 %v1175
    %v2361 = vunpack.c.l.b16 %v1176
    %v2362 = vunpack.c.h.b16 %v1176
    %v2363 = vunpack.c.l.b16 %v1177
    %v2364 = vunpack.c.h.b16 %v1177
    %v2365 = vunpack.c.l.b16 %v1178
    %v2366 = vunpack.c.h.b16 %v1178
    %v2367 = vunpack.c.l.b16 %v1179
    %v2368 = vunpack.c.h.b16 %v1179
    %v2369 = vunpack.c.l.b16 %v1180
    %v2370 = vunpack.c.h.b16 %v1180
    %v2371 = vunpack.c.l.b16 %v1181
    %v2372 = vunpack.c.h.b16 %v1181
    %v2373 = vunpack.c.l.b16 %v1182
    %v2374 = vunpack.c.h.b16 %v1182
    %v2375 = vunpack.c.l.b16 %v1183
    %v2376 = vunpack.c.h.b16 %v1183
    %v2377 = vunpack.c.l.b16 %v1184
    %v2378 = vunpack.c.h.b16 %v1184
    %v2379 = vpack.c.b16 %v2255, %v2251
    %v2380 = vpack.c.b16 %v2256, %v2252
    %v2381 = vpack.c.b16 %v2257, %v2253
    %v2382 = vpack.c.b16 %v2258, %v2254
    %v2383 = vpack.c.b16 %v2263, %v2259
    %v2384 = vpack.c.b16 %v2264, %v2260
    %v2385 = vpack.c.b16 %v2265, %v2261
    %v2386 = vpack.c.b16 %v2266, %v2262
    %v2387 = vpack.c.b16 %v2271, %v2267
    %v2388 = vpack.c.b16 %v2272, %v2268
    %v2389 = vpack.c.b16 %v2273, %v2269
    %v2390 = vpack.c.b16 %v2274, %v2270
    %v2391 = vpack.c.b16 %v2279, %v2275
    %v2392 = vpack.c.b16 %v2280, %v2276
    %v2393 = vpack.c.b16 %v2281, %v2277
    %v2394 = vpack.c.b16 %v2282, %v2278
    %v2395 = vpack.c.b16 %v2287, %v2283
    %v2396 = vpack.c.b16 %v2288, %v2284
    %v2397 = vpack.c.b16 %v2289, %v2285
    %v2398 = vpack.c.b16 %v2290, %v2286
    %v2399 = vpack.c.b16 %v2295, %v2291
    %v2400 = vpack.c.b16 %v2296, %v2292
    %v2401 = vpack.c.b16 %v2297, %v2293
    %v2402 = vpack.c.b16 %v2298, %v2294
    %v2403 = vpack.c.b16 %v2303, %v2299
    %v2404 = vpack.c.b16 %v2304, %v2300
    %v2405 = vpack.c.b16 %v2305, %v2301
    %v2406 = vpack.c.b16 %v2306, %v2302
    %v2407 = vpack.c.b16 %v2311, %v2307
    %v2408 = vpack.c.b16 %v2312, %v2308
    %v2409 = vpack.c.b16 %v2313, %v2309
    %v2410 = vpack.c.b16 %v2314, %v2310
    %v2411 = vpack.c.b16 %v2319, %v2315
    %v2412 = vpack.c.b16 %v2320, %v2316
    %v2413 = vpack.c.b16 %v2321, %v2317
    %v2414 = vpack.c.b16 %v2322, %v2318
    %v2415 = vpack.c.b16 %v2327, %v2323
    %v2416 = vpack.c.b16 %v2328, %v2324
    %v2417 = vpack.c.b16 %v2329, %v2325
    %v2418 = vpack.c.b16 %v2330, %v2326
    %v2419 = vpack.c.b16 %v2335, %v2331
    %v2420 = vpack.c.b16 %v2336, %v2332
    %v2421 = vpack.c.b16 %v2337, %v2333
    %v2422 = vpack.c.b16 %v2338, %v2334
    %v2423 = vpack.c.b16 %v2343, %v2339
    %v2424 = vpack.c.b16 %v2344, %v2340
    %v2425 = vpack.c.b16 %v2345, %v2341
    %v2426 = vpack.c.b16 %v2346, %v2342
    %v2427 = vpack.c.b16 %v2351, %v2347
    %v2428 = vpack.c.b16 %v2352, %v2348
    %v2429 = vpack.c.b16 %v2353, %v2349
    %v2430 = vpack.c.b16 %v2354, %v2350
    %v2431 = vpack.c.b16 %v2359, %v2355
    %v2432 = vpack.c.b16 %v2360, %v2356
    %v2433 = vpack.c.b16 %v2361, %v2357
    %v2434 = vpack.c.b16 %v2362, %v2358
    %v2435 = vpack.c.b16 %v2367, %v2363
    %v2436 = vpack.c.b16 %v2368, %v2364
    %v2437 = vpack.c.b16 %v2369, %v2365
    %v2438 = vpack.c.b16 %v2370, %v2366
    %v2439 = vpack.c.b16 %v2375, %v2371
    %v2440 = vpack.c.b16 %v2376, %v2372
    %v2441 = vpack.c.b16 %v2377, %v2373
    %v2442 = vpack.c.b16 %v2378, %v2374
    %2507 = vmatpush.bf16.msra.mxu0 %v2407
    %2508 = vmatpush.bf16.msra.mxu0 %v2403
    %2509 = vmatpush.bf16.msra.mxu0 %v2399
    %2510 = vmatpush.bf16.msra.mxu0 %v2395
    %2511 = vmatpush.bf16.msra.mxu0 %v2391
    %2512 = vmatpush.bf16.msra.mxu0 %v2387
    %2513 = vmatpush.bf16.msra.mxu0 %v2383
    %2514 = vmatpush.bf16.msra.mxu0 %v2379
    %2515 = vmatmul.bf16.gmra.mxu0 %v2183
    %v2516 = vpop.f32.mrf.mxu0
    %v2517 = vadd.f32 %v2005, %v2516
    %v2518 = vpop.f32.mrf.mxu0
    %v2519 = vadd.f32 %v2007, %v2518
    %2520 = vdwg.mxu0
    %2521 = vmatpush.bf16.msra.mxu0 %v2439
    %2522 = vmatpush.bf16.msra.mxu0 %v2435
    %2523 = vmatpush.bf16.msra.mxu0 %v2431
    %2524 = vmatpush.bf16.msra.mxu0 %v2427
    %2525 = vmatpush.bf16.msra.mxu0 %v2423
    %2526 = vmatpush.bf16.msra.mxu0 %v2419
    %2527 = vmatpush.bf16.msra.mxu0 %v2415
    %2528 = vmatpush.bf16.msra.mxu0 %v2411
    %2529 = vmatmul.bf16.gmra.mxu0 %v2184
    %v2530 = vpop.f32.mrf.mxu0
    %v2531 = vadd.f32 %v2517, %v2530
    %v2532 = vpop.f32.mrf.mxu0
    %v2533 = vadd.f32 %v2519, %v2532
    %2534 = vdwg.mxu0
    %2535 = vmatpush.bf16.msra.mxu0 %v2408
    %2536 = vmatpush.bf16.msra.mxu0 %v2404
    %2537 = vmatpush.bf16.msra.mxu0 %v2400
    %2538 = vmatpush.bf16.msra.mxu0 %v2396
    %2539 = vmatpush.bf16.msra.mxu0 %v2392
    %2540 = vmatpush.bf16.msra.mxu0 %v2388
    %2541 = vmatpush.bf16.msra.mxu0 %v2384
    %2542 = vmatpush.bf16.msra.mxu0 %v2380
    %2543 = vmatmul.bf16.gmra.mxu0 %v2183
    %v2544 = vpop.f32.mrf.mxu0
    %v2545 = vadd.f32 %v2061, %v2544
    %v2546 = vpop.f32.mrf.mxu0
    %v2547 = vadd.f32 %v2063, %v2546
    %2548 = vdwg.mxu0
    %2549 = vmatpush.bf16.msra.mxu0 %v2440
    %2550 = vmatpush.bf16.msra.mxu0 %v2436
    %2551 = vmatpush.bf16.msra.mxu0 %v2432
    %2552 = vmatpush.bf16.msra.mxu0 %v2428
    %2553 = vmatpush.bf16.msra.mxu0 %v2424
    %2554 = vmatpush.bf16.msra.mxu0 %v2420
    %2555 = vmatpush.bf16.msra.mxu0 %v2416
    %2556 = vmatpush.bf16.msra.mxu0 %v2412
    %2557 = vmatmul.bf16.gmra.mxu0 %v2184
    %v2558 = vpop.f32.mrf.mxu0
    %v2559 = vadd.f32 %v2545, %v2558
    %v2560 = vpop.f32.mrf.mxu0
    %v2561 = vadd.f32 %v2547, %v2560
    %2562 = vdwg.mxu0
    %2563 = vmatpush.bf16.msra.mxu0 %v2409
    %2564 = vmatpush.bf16.msra.mxu0 %v2405
    %2565 = vmatpush.bf16.msra.mxu0 %v2401
    %2566 = vmatpush.bf16.msra.mxu0 %v2397
    %2567 = vmatpush.bf16.msra.mxu0 %v2393
    %2568 = vmatpush.bf16.msra.mxu0 %v2389
    %2569 = vmatpush.bf16.msra.mxu0 %v2385
    %2570 = vmatpush.bf16.msra.mxu0 %v2381
    %2571 = vmatmul.bf16.gmra.mxu0 %v2183
    %v2572 = vpop.f32.mrf.mxu0
    %v2573 = vadd.f32 %v2117, %v2572
    %v2574 = vpop.f32.mrf.mxu0
    %v2575 = vadd.f32 %v2119, %v2574
    %2576 = vdwg.mxu0
    %2577 = vmatpush.bf16.msra.mxu0 %v2441
    %2578 = vmatpush.bf16.msra.mxu0 %v2437
    %2579 = vmatpush.bf16.msra.mxu0 %v2433
    %2580 = vmatpush.bf16.msra.mxu0 %v2429
    %2581 = vmatpush.bf16.msra.mxu0 %v2425
    %2582 = vmatpush.bf16.msra.mxu0 %v2421
    %2583 = vmatpush.bf16.msra.mxu0 %v2417
    %2584 = vmatpush.bf16.msra.mxu0 %v2413
    %2585 = vmatmul.bf16.gmra.mxu0 %v2184
    %v2586 = vpop.f32.mrf.mxu0
    %v2587 = vadd.f32 %v2573, %v2586
    %v2588 = vpop.f32.mrf.mxu0
    %v2589 = vadd.f32 %v2575, %v2588
    %2590 = vdwg.mxu0
    %2591 = vmatpush.bf16.msra.mxu0 %v2410
    %2592 = vmatpush.bf16.msra.mxu0 %v2406
    %2593 = vmatpush.bf16.msra.mxu0 %v2402
    %2594 = vmatpush.bf16.msra.mxu0 %v2398
    %2595 = vmatpush.bf16.msra.mxu0 %v2394
    %2596 = vmatpush.bf16.msra.mxu0 %v2390
    %2597 = vmatpush.bf16.msra.mxu0 %v2386
    %2598 = vmatpush.bf16.msra.mxu0 %v2382
    %2599 = vmatmul.bf16.gmra.mxu0 %v2183
    %v2600 = vpop.f32.mrf.mxu0
    %v2601 = vadd.f32 %v2173, %v2600
    %v2602 = vpop.f32.mrf.mxu0
    %v2603 = vadd.f32 %v2175, %v2602
    %2604 = vdwg.mxu0
    %2605 = vmatpush.bf16.msra.mxu0 %v2442
    %2606 = vmatpush.bf16.msra.mxu0 %v2438
    %2607 = vmatpush.bf16.msra.mxu0 %v2434
    %2608 = vmatpush.bf16.msra.mxu0 %v2430
    %2609 = vmatpush.bf16.msra.mxu0 %v2426
    %2610 = vmatpush.bf16.msra.mxu0 %v2422
    %2611 = vmatpush.bf16.msra.mxu0 %v2418
    %2612 = vmatpush.bf16.msra.mxu0 %v2414
    %2613 = vmatmul.bf16.gmra.mxu0 %v2184
    %v2614 = vpop.f32.mrf.mxu0
    %v2615 = vadd.f32 %v2601, %v2614
    %v2616 = vpop.f32.mrf.mxu0
    %v2617 = vadd.f32 %v2603, %v2616
    %2618 = vdwg.mxu0
    %v2619 = vld [vmem:[%s5] sm:$0xf]
    %v2621 = vperm.slane %v2619, 0
    %v2622 = vperm.slane %v2619, 1
    %v2623 = vperm.slane %v2619, 2
    %v2624 = vperm.slane %v2619, 3
    %v2629 = vadd.f32 %v2531, %v2621
    %v2630 = vadd.f32 %v2559, %v2622
    %v2631 = vadd.f32 %v2587, %v2623
    %v2632 = vadd.f32 %v2615, %v2624
    %v2633 = vadd.f32 %v2533, %v2621
    %v2634 = vadd.f32 %v2561, %v2622
    %v2635 = vadd.f32 %v2589, %v2623
    %v2636 = vadd.f32 %v2617, %v2624
    %v2637 = vmax.f32 %v2629, 0.0
    %v2638 = vmax.f32 %v2630, 0.0
    %v2639 = vmax.f32 %v2631, 0.0
    %v2640 = vmax.f32 %v2632, 0.0
    %v2641 = vmax.f32 %v2633, 0.0
    %v2642 = vmax.f32 %v2634, 0.0
    %v2643 = vmax.f32 %v2635, 0.0
    %v2644 = vmax.f32 %v2636, 0.0
    %v2645 = vpack.c.bf16 %v2641, %v2637
    %v2646 = vpack.c.bf16 %v2642, %v2638
    %v2647 = vpack.c.bf16 %v2643, %v2639
    %v2648 = vpack.c.bf16 %v2644, %v2640
    %v2649 = vld [vmem:[#allocation20] sm:$0xf]
    %v2650 = vld [vmem:[#allocation20 + $0x4] sm:$0xf]
    %v2651 = vld [vmem:[#allocation20 + $0x8] sm:$0xf]
    %v2652 = vld [vmem:[#allocation20 + $0xc] sm:$0xf]
    %v2653 = vld [vmem:[#allocation20 + $0x10] sm:$0xf]
    %v2654 = vld [vmem:[#allocation20 + $0x14] sm:$0xf]
    %v2655 = vld [vmem:[#allocation20 + $0x18] sm:$0xf]
    %v2656 = vld [vmem:[#allocation20 + $0x1c] sm:$0xf]
    %v2657 = vld [vmem:[#allocation20 + $0x20] sm:$0xf]
    %v2658 = vld [vmem:[#allocation20 + $0x24] sm:$0xf]
    %v2659 = vld [vmem:[#allocation20 + $0x28] sm:$0xf]
    %v2660 = vld [vmem:[#allocation20 + $0x2c] sm:$0xf]
    %v2661 = vld [vmem:[#allocation20 + $0x30] sm:$0xf]
    %v2662 = vld [vmem:[#allocation20 + $0x34] sm:$0xf]
    %v2663 = vld [vmem:[#allocation20 + $0x38] sm:$0xf]
    %v2664 = vld [vmem:[#allocation20 + $0x3c] sm:$0xf]
    %v2665 = vld [vmem:[#allocation20 + $0x40] sm:$0xf]
    %v2666 = vld [vmem:[#allocation20 + $0x44] sm:$0xf]
    %v2667 = vld [vmem:[#allocation20 + $0x48] sm:$0xf]
    %v2668 = vld [vmem:[#allocation20 + $0x4c] sm:$0xf]
    %v2669 = vld [vmem:[#allocation20 + $0x50] sm:$0xf]
    %v2670 = vld [vmem:[#allocation20 + $0x54] sm:$0xf]
    %v2671 = vld [vmem:[#allocation20 + $0x58] sm:$0xf]
    %v2672 = vld [vmem:[#allocation20 + $0x5c] sm:$0xf]
    %v2673 = vld [vmem:[#allocation20 + $0x60] sm:$0xf]
    %v2674 = vld [vmem:[#allocation20 + $0x64] sm:$0xf]
    %v2675 = vld [vmem:[#allocation20 + $0x68] sm:$0xf]
    %v2676 = vld [vmem:[#allocation20 + $0x6c] sm:$0xf]
    %v2677 = vld [vmem:[#allocation20 + $0x70] sm:$0xf]
    %v2678 = vld [vmem:[#allocation20 + $0x74] sm:$0xf]
    %v2679 = vld [vmem:[#allocation20 + $0x78] sm:$0xf]
    %v2680 = vld [vmem:[#allocation20 + $0x7c] sm:$0xf]
    %v2681 = vld [vmem:[#allocation20 + $0x80] sm:$0xf]
    %v2682 = vld [vmem:[#allocation20 + $0x84] sm:$0xf]
    %v2683 = vld [vmem:[#allocation20 + $0x88] sm:$0xf]
    %v2684 = vld [vmem:[#allocation20 + $0x8c] sm:$0xf]
    %v2685 = vld [vmem:[#allocation20 + $0x90] sm:$0xf]
    %v2686 = vld [vmem:[#allocation20 + $0x94] sm:$0xf]
    %v2687 = vld [vmem:[#allocation20 + $0x98] sm:$0xf]
    %v2688 = vld [vmem:[#allocation20 + $0x9c] sm:$0xf]
    %v2689 = vld [vmem:[#allocation20 + $0xa0] sm:$0xf]
    %v2690 = vld [vmem:[#allocation20 + $0xa4] sm:$0xf]
    %v2691 = vld [vmem:[#allocation20 + $0xa8] sm:$0xf]
    %v2692 = vld [vmem:[#allocation20 + $0xac] sm:$0xf]
    %v2693 = vld [vmem:[#allocation20 + $0xb0] sm:$0xf]
    %v2694 = vld [vmem:[#allocation20 + $0xb4] sm:$0xf]
    %v2695 = vld [vmem:[#allocation20 + $0xb8] sm:$0xf]
    %v2696 = vld [vmem:[#allocation20 + $0xbc] sm:$0xf]
    %v2697 = vld [vmem:[#allocation20 + $0xc0] sm:$0xf]
    %v2698 = vld [vmem:[#allocation20 + $0xc4] sm:$0xf]
    %v2699 = vld [vmem:[#allocation20 + $0xc8] sm:$0xf]
    %v2700 = vld [vmem:[#allocation20 + $0xcc] sm:$0xf]
    %v2701 = vld [vmem:[#allocation20 + $0xd0] sm:$0xf]
    %v2702 = vld [vmem:[#allocation20 + $0xd4] sm:$0xf]
    %v2703 = vld [vmem:[#allocation20 + $0xd8] sm:$0xf]
    %v2704 = vld [vmem:[#allocation20 + $0xdc] sm:$0xf]
    %v2705 = vld [vmem:[#allocation20 + $0xe0] sm:$0xf]
    %v2706 = vld [vmem:[#allocation20 + $0xe4] sm:$0xf]
    %v2707 = vld [vmem:[#allocation20 + $0xe8] sm:$0xf]
    %v2708 = vld [vmem:[#allocation20 + $0xec] sm:$0xf]
    %v2709 = vld [vmem:[#allocation20 + $0xf0] sm:$0xf]
    %v2710 = vld [vmem:[#allocation20 + $0xf4] sm:$0xf]
    %v2711 = vld [vmem:[#allocation20 + $0xf8] sm:$0xf]
    %v2712 = vld [vmem:[#allocation20 + $0xfc] sm:$0xf]
    %v2777 = vunpack.c.l.b16 %v2649
    %v2778 = vunpack.c.l.b16 %v2650
    %v2779 = vunpack.c.l.b16 %v2651
    %v2780 = vunpack.c.l.b16 %v2652
    %v2781 = vunpack.c.l.b16 %v2653
    %v2782 = vunpack.c.l.b16 %v2654
    %v2783 = vunpack.c.l.b16 %v2655
    %v2784 = vunpack.c.l.b16 %v2656
    %v2785 = vunpack.c.l.b16 %v2657
    %v2786 = vunpack.c.l.b16 %v2658
    %v2787 = vunpack.c.l.b16 %v2659
    %v2788 = vunpack.c.l.b16 %v2660
    %v2789 = vunpack.c.l.b16 %v2661
    %v2790 = vunpack.c.l.b16 %v2662
    %v2791 = vunpack.c.l.b16 %v2663
    %v2792 = vunpack.c.l.b16 %v2664
    %v2793 = vunpack.c.l.b16 %v2665
    %v2794 = vunpack.c.l.b16 %v2666
    %v2795 = vunpack.c.l.b16 %v2667
    %v2796 = vunpack.c.l.b16 %v2668
    %v2797 = vunpack.c.l.b16 %v2669
    %v2798 = vunpack.c.l.b16 %v2670
    %v2799 = vunpack.c.l.b16 %v2671
    %v2800 = vunpack.c.l.b16 %v2672
    %v2801 = vunpack.c.l.b16 %v2673
    %v2802 = vunpack.c.l.b16 %v2674
    %v2803 = vunpack.c.l.b16 %v2675
    %v2804 = vunpack.c.l.b16 %v2676
    %v2805 = vunpack.c.l.b16 %v2677
    %v2806 = vunpack.c.l.b16 %v2678
    %v2807 = vunpack.c.l.b16 %v2679
    %v2808 = vunpack.c.l.b16 %v2680
    %v2809 = vunpack.c.l.b16 %v2681
    %v2810 = vunpack.c.l.b16 %v2682
    %v2811 = vunpack.c.l.b16 %v2683
    %v2812 = vunpack.c.l.b16 %v2684
    %v2813 = vunpack.c.l.b16 %v2685
    %v2814 = vunpack.c.l.b16 %v2686
    %v2815 = vunpack.c.l.b16 %v2687
    %v2816 = vunpack.c.l.b16 %v2688
    %v2817 = vunpack.c.l.b16 %v2689
    %v2818 = vunpack.c.l.b16 %v2690
    %v2819 = vunpack.c.l.b16 %v2691
    %v2820 = vunpack.c.l.b16 %v2692
    %v2821 = vunpack.c.l.b16 %v2693
    %v2822 = vunpack.c.l.b16 %v2694
    %v2823 = vunpack.c.l.b16 %v2695
    %v2824 = vunpack.c.l.b16 %v2696
    %v2825 = vunpack.c.l.b16 %v2697
    %v2826 = vunpack.c.l.b16 %v2698
    %v2827 = vunpack.c.l.b16 %v2699
    %v2828 = vunpack.c.l.b16 %v2700
    %v2829 = vunpack.c.l.b16 %v2701
    %v2830 = vunpack.c.l.b16 %v2702
    %v2831 = vunpack.c.l.b16 %v2703
    %v2832 = vunpack.c.l.b16 %v2704
    %v2833 = vunpack.c.l.b16 %v2705
    %v2834 = vunpack.c.l.b16 %v2706
    %v2835 = vunpack.c.l.b16 %v2707
    %v2836 = vunpack.c.l.b16 %v2708
    %v2837 = vunpack.c.l.b16 %v2709
    %v2838 = vunpack.c.l.b16 %v2710
    %v2839 = vunpack.c.l.b16 %v2711
    %v2840 = vunpack.c.l.b16 %v2712
    %v2841 = vpack.c.b16 %v2778, %v2777
    %v2842 = vpack.c.b16 %v2780, %v2779
    %v2843 = vpack.c.b16 %v2782, %v2781
    %v2844 = vpack.c.b16 %v2784, %v2783
    %v2845 = vpack.c.b16 %v2786, %v2785
    %v2846 = vpack.c.b16 %v2788, %v2787
    %v2847 = vpack.c.b16 %v2790, %v2789
    %v2848 = vpack.c.b16 %v2792, %v2791
    %v2849 = vpack.c.b16 %v2794, %v2793
    %v2850 = vpack.c.b16 %v2796, %v2795
    %v2851 = vpack.c.b16 %v2798, %v2797
    %v2852 = vpack.c.b16 %v2800, %v2799
    %v2853 = vpack.c.b16 %v2802, %v2801
    %v2854 = vpack.c.b16 %v2804, %v2803
    %v2855 = vpack.c.b16 %v2806, %v2805
    %v2856 = vpack.c.b16 %v2808, %v2807
    %v2857 = vpack.c.b16 %v2810, %v2809
    %v2858 = vpack.c.b16 %v2812, %v2811
    %v2859 = vpack.c.b16 %v2814, %v2813
    %v2860 = vpack.c.b16 %v2816, %v2815
    %v2861 = vpack.c.b16 %v2818, %v2817
    %v2862 = vpack.c.b16 %v2820, %v2819
    %v2863 = vpack.c.b16 %v2822, %v2821
    %v2864 = vpack.c.b16 %v2824, %v2823
    %v2865 = vpack.c.b16 %v2826, %v2825
    %v2866 = vpack.c.b16 %v2828, %v2827
    %v2867 = vpack.c.b16 %v2830, %v2829
    %v2868 = vpack.c.b16 %v2832, %v2831
    %v2869 = vpack.c.b16 %v2834, %v2833
    %v2870 = vpack.c.b16 %v2836, %v2835
    %v2871 = vpack.c.b16 %v2838, %v2837
    %v2872 = vpack.c.b16 %v2840, %v2839
    %2905 = vmatpush.bf16.msra.mxu0 %v2848
    %2906 = vmatpush.bf16.msra.mxu0 %v2847
    %2907 = vmatpush.bf16.msra.mxu0 %v2846
    %2908 = vmatpush.bf16.msra.mxu0 %v2845
    %2909 = vmatpush.bf16.msra.mxu0 %v2844
    %2910 = vmatpush.bf16.msra.mxu0 %v2843
    %2911 = vmatpush.bf16.msra.mxu0 %v2842
    %2912 = vmatpush.bf16.msra.mxu0 %v2841
    %2913 = vmatmul.bf16.gmra.mxu0 %v2645
    %v2914 = vpop.f32.mrf.mxu0
    %v2915 = vadd.f32 0.0, %v2914
    %v2916 = vpop.f32.mrf.mxu0
    %v2917 = vadd.f32 0.0, %v2916
    %2918 = vdwg.mxu0
    %2919 = vmatpush.bf16.msra.mxu0 %v2856
    %2920 = vmatpush.bf16.msra.mxu0 %v2855
    %2921 = vmatpush.bf16.msra.mxu0 %v2854
    %2922 = vmatpush.bf16.msra.mxu0 %v2853
    %2923 = vmatpush.bf16.msra.mxu0 %v2852
    %2924 = vmatpush.bf16.msra.mxu0 %v2851
    %2925 = vmatpush.bf16.msra.mxu0 %v2850
    %2926 = vmatpush.bf16.msra.mxu0 %v2849
    %2927 = vmatmul.bf16.gmra.mxu0 %v2646
    %v2928 = vpop.f32.mrf.mxu0
    %v2929 = vadd.f32 %v2915, %v2928
    %v2930 = vpop.f32.mrf.mxu0
    %v2931 = vadd.f32 %v2917, %v2930
    %2932 = vdwg.mxu0
    %2933 = vmatpush.bf16.msra.mxu0 %v2864
    %2934 = vmatpush.bf16.msra.mxu0 %v2863
    %2935 = vmatpush.bf16.msra.mxu0 %v2862
    %2936 = vmatpush.bf16.msra.mxu0 %v2861
    %2937 = vmatpush.bf16.msra.mxu0 %v2860
    %2938 = vmatpush.bf16.msra.mxu0 %v2859
    %2939 = vmatpush.bf16.msra.mxu0 %v2858
    %2940 = vmatpush.bf16.msra.mxu0 %v2857
    %2941 = vmatmul.bf16.gmra.mxu0 %v2647
    %v2942 = vpop.f32.mrf.mxu0
    %v2943 = vadd.f32 %v2929, %v2942
    %v2944 = vpop.f32.mrf.mxu0
    %v2945 = vadd.f32 %v2931, %v2944
    %2946 = vdwg.mxu0
    %2947 = vmatpush.bf16.msra.mxu0 %v2872
    %2948 = vmatpush.bf16.msra.mxu0 %v2871
    %2949 = vmatpush.bf16.msra.mxu0 %v2870
    %2950 = vmatpush.bf16.msra.mxu0 %v2869
    %2951 = vmatpush.bf16.msra.mxu0 %v2868
    %2952 = vmatpush.bf16.msra.mxu0 %v2867
    %2953 = vmatpush.bf16.msra.mxu0 %v2866
    %2954 = vmatpush.bf16.msra.mxu0 %v2865
    %2955 = vmatmul.bf16.gmra.mxu0 %v2648
    %v2956 = vpop.f32.mrf.mxu0
    %v2957 = vadd.f32 %v2943, %v2956
    %v2958 = vpop.f32.mrf.mxu0
    %v2959 = vadd.f32 %v2945, %v2958
    %2960 = vdwg.mxu0
    %v2961 = vadd.f32 %v1119, %v2957
    %v2962 = vadd.f32 %v1120, %v2959
    %v2963 = vld [vmem:[#allocation11] sm:$0xff]
    %v2964 = vld [vmem:[#allocation11 + $0x8] sm:$0xff]
    %v2965 = vld [vmem:[#allocation11 + $0x10] sm:$0xff]
    %v2966 = vld [vmem:[#allocation11 + $0x18] sm:$0xff]
    %v2967 = vld [vmem:[#allocation11 + $0x20] sm:$0xff]
    %v2968 = vld [vmem:[#allocation11 + $0x28] sm:$0xff]
    %v2969 = vld [vmem:[#allocation11 + $0x30] sm:$0xff]
    %v2970 = vld [vmem:[#allocation11 + $0x38] sm:$0xff]
    %v2971 = vld [vmem:[#allocation11 + $0x40] sm:$0xff]
    %v2972 = vld [vmem:[#allocation11 + $0x48] sm:$0xff]
    %v2973 = vld [vmem:[#allocation11 + $0x50] sm:$0xff]
    %v2974 = vld [vmem:[#allocation11 + $0x58] sm:$0xff]
    %v2975 = vld [vmem:[#allocation11 + $0x60] sm:$0xff]
    %v2976 = vld [vmem:[#allocation11 + $0x68] sm:$0xff]
    %v2977 = vld [vmem:[#allocation11 + $0x70] sm:$0xff]
    %v2978 = vld [vmem:[#allocation11 + $0x78] sm:$0xff]
    %v2979 = vld [vmem:[#allocation11 + $0x80] sm:$0xff]
    %v2980 = vld [vmem:[#allocation11 + $0x88] sm:$0xff]
    %v2981 = vld [vmem:[#allocation11 + $0x90] sm:$0xff]
    %v2982 = vld [vmem:[#allocation11 + $0x98] sm:$0xff]
    %v2983 = vld [vmem:[#allocation11 + $0xa0] sm:$0xff]
    %v2984 = vld [vmem:[#allocation11 + $0xa8] sm:$0xff]
    %v2985 = vld [vmem:[#allocation11 + $0xb0] sm:$0xff]
    %v2986 = vld [vmem:[#allocation11 + $0xb8] sm:$0xff]
    %v2987 = vld [vmem:[#allocation11 + $0xc0] sm:$0xff]
    %v2988 = vld [vmem:[#allocation11 + $0xc8] sm:$0xff]
    %v2989 = vld [vmem:[#allocation11 + $0xd0] sm:$0xff]
    %v2990 = vld [vmem:[#allocation11 + $0xd8] sm:$0xff]
    %v2991 = vld [vmem:[#allocation11 + $0xe0] sm:$0xff]
    %v2992 = vld [vmem:[#allocation11 + $0xe8] sm:$0xff]
    %v2993 = vld [vmem:[#allocation11 + $0xf0] sm:$0xff]
    %v2994 = vld [vmem:[#allocation11 + $0xf8] sm:$0xff]
    %v2995 = vld [vmem:[#allocation11 + $0x100] sm:$0xff]
    %v2996 = vld [vmem:[#allocation11 + $0x108] sm:$0xff]
    %v2997 = vld [vmem:[#allocation11 + $0x110] sm:$0xff]
    %v2998 = vld [vmem:[#allocation11 + $0x118] sm:$0xff]
    %v2999 = vld [vmem:[#allocation11 + $0x120] sm:$0xff]
    %v3000 = vld [vmem:[#allocation11 + $0x128] sm:$0xff]
    %v3001 = vld [vmem:[#allocation11 + $0x130] sm:$0xff]
    %v3002 = vld [vmem:[#allocation11 + $0x138] sm:$0xff]
    %v3003 = vld [vmem:[#allocation11 + $0x140] sm:$0xff]
    %v3004 = vld [vmem:[#allocation11 + $0x148] sm:$0xff]
    %v3005 = vld [vmem:[#allocation11 + $0x150] sm:$0xff]
    %v3006 = vld [vmem:[#allocation11 + $0x158] sm:$0xff]
    %v3007 = vld [vmem:[#allocation11 + $0x160] sm:$0xff]
    %v3008 = vld [vmem:[#allocation11 + $0x168] sm:$0xff]
    %v3009 = vld [vmem:[#allocation11 + $0x170] sm:$0xff]
    %v3010 = vld [vmem:[#allocation11 + $0x178] sm:$0xff]
    %v3011 = vld [vmem:[#allocation11 + $0x180] sm:$0xff]
    %v3012 = vld [vmem:[#allocation11 + $0x188] sm:$0xff]
    %v3013 = vld [vmem:[#allocation11 + $0x190] sm:$0xff]
    %v3014 = vld [vmem:[#allocation11 + $0x198] sm:$0xff]
    %v3015 = vld [vmem:[#allocation11 + $0x1a0] sm:$0xff]
    %v3016 = vld [vmem:[#allocation11 + $0x1a8] sm:$0xff]
    %v3017 = vld [vmem:[#allocation11 + $0x1b0] sm:$0xff]
    %v3018 = vld [vmem:[#allocation11 + $0x1b8] sm:$0xff]
    %v3019 = vld [vmem:[#allocation11 + $0x1c0] sm:$0xff]
    %v3020 = vld [vmem:[#allocation11 + $0x1c8] sm:$0xff]
    %v3021 = vld [vmem:[#allocation11 + $0x1d0] sm:$0xff]
    %v3022 = vld [vmem:[#allocation11 + $0x1d8] sm:$0xff]
    %v3023 = vld [vmem:[#allocation11 + $0x1e0] sm:$0xff]
    %v3024 = vld [vmem:[#allocation11 + $0x1e8] sm:$0xff]
    %v3025 = vld [vmem:[#allocation11 + $0x1f0] sm:$0xff]
    %v3026 = vld [vmem:[#allocation11 + $0x1f8] sm:$0xff]
    %v3027 = vld [vmem:[#allocation13] sm:$0xff]
    %v3028 = vld [vmem:[#allocation13 + $0x8] sm:$0xff]
    %v3029 = vld [vmem:[#allocation13 + $0x10] sm:$0xff]
    %v3030 = vld [vmem:[#allocation13 + $0x18] sm:$0xff]
    %v3031 = vld [vmem:[#allocation13 + $0x20] sm:$0xff]
    %v3032 = vld [vmem:[#allocation13 + $0x28] sm:$0xff]
    %v3033 = vld [vmem:[#allocation13 + $0x30] sm:$0xff]
    %v3034 = vld [vmem:[#allocation13 + $0x38] sm:$0xff]
    %v3035 = vld [vmem:[#allocation13 + $0x40] sm:$0xff]
    %v3036 = vld [vmem:[#allocation13 + $0x48] sm:$0xff]
    %v3037 = vld [vmem:[#allocation13 + $0x50] sm:$0xff]
    %v3038 = vld [vmem:[#allocation13 + $0x58] sm:$0xff]
    %v3039 = vld [vmem:[#allocation13 + $0x60] sm:$0xff]
    %v3040 = vld [vmem:[#allocation13 + $0x68] sm:$0xff]
    %v3041 = vld [vmem:[#allocation13 + $0x70] sm:$0xff]
    %v3042 = vld [vmem:[#allocation13 + $0x78] sm:$0xff]
    %v3043 = vld [vmem:[#allocation13 + $0x80] sm:$0xff]
    %v3044 = vld [vmem:[#allocation13 + $0x88] sm:$0xff]
    %v3045 = vld [vmem:[#allocation13 + $0x90] sm:$0xff]
    %v3046 = vld [vmem:[#allocation13 + $0x98] sm:$0xff]
    %v3047 = vld [vmem:[#allocation13 + $0xa0] sm:$0xff]
    %v3048 = vld [vmem:[#allocation13 + $0xa8] sm:$0xff]
    %v3049 = vld [vmem:[#allocation13 + $0xb0] sm:$0xff]
    %v3050 = vld [vmem:[#allocation13 + $0xb8] sm:$0xff]
    %v3051 = vld [vmem:[#allocation13 + $0xc0] sm:$0xff]
    %v3052 = vld [vmem:[#allocation13 + $0xc8] sm:$0xff]
    %v3053 = vld [vmem:[#allocation13 + $0xd0] sm:$0xff]
    %v3054 = vld [vmem:[#allocation13 + $0xd8] sm:$0xff]
    %v3055 = vld [vmem:[#allocation13 + $0xe0] sm:$0xff]
    %v3056 = vld [vmem:[#allocation13 + $0xe8] sm:$0xff]
    %v3057 = vld [vmem:[#allocation13 + $0xf0] sm:$0xff]
    %v3058 = vld [vmem:[#allocation13 + $0xf8] sm:$0xff]
    %v3059 = vld [vmem:[#allocation13 + $0x100] sm:$0xff]
    %v3060 = vld [vmem:[#allocation13 + $0x108] sm:$0xff]
    %v3061 = vld [vmem:[#allocation13 + $0x110] sm:$0xff]
    %v3062 = vld [vmem:[#allocation13 + $0x118] sm:$0xff]
    %v3063 = vld [vmem:[#allocation13 + $0x120] sm:$0xff]
    %v3064 = vld [vmem:[#allocation13 + $0x128] sm:$0xff]
    %v3065 = vld [vmem:[#allocation13 + $0x130] sm:$0xff]
    %v3066 = vld [vmem:[#allocation13 + $0x138] sm:$0xff]
    %v3067 = vld [vmem:[#allocation13 + $0x140] sm:$0xff]
    %v3068 = vld [vmem:[#allocation13 + $0x148] sm:$0xff]
    %v3069 = vld [vmem:[#allocation13 + $0x150] sm:$0xff]
    %v3070 = vld [vmem:[#allocation13 + $0x158] sm:$0xff]
    %v3071 = vld [vmem:[#allocation13 + $0x160] sm:$0xff]
    %v3072 = vld [vmem:[#allocation13 + $0x168] sm:$0xff]
    %v3073 = vld [vmem:[#allocation13 + $0x170] sm:$0xff]
    %v3074 = vld [vmem:[#allocation13 + $0x178] sm:$0xff]
    %v3075 = vld [vmem:[#allocation13 + $0x180] sm:$0xff]
    %v3076 = vld [vmem:[#allocation13 + $0x188] sm:$0xff]
    %v3077 = vld [vmem:[#allocation13 + $0x190] sm:$0xff]
    %v3078 = vld [vmem:[#allocation13 + $0x198] sm:$0xff]
    %v3079 = vld [vmem:[#allocation13 + $0x1a0] sm:$0xff]
    %v3080 = vld [vmem:[#allocation13 + $0x1a8] sm:$0xff]
    %v3081 = vld [vmem:[#allocation13 + $0x1b0] sm:$0xff]
    %v3082 = vld [vmem:[#allocation13 + $0x1b8] sm:$0xff]
    %v3083 = vld [vmem:[#allocation13 + $0x1c0] sm:$0xff]
    %v3084 = vld [vmem:[#allocation13 + $0x1c8] sm:$0xff]
    %v3085 = vld [vmem:[#allocation13 + $0x1d0] sm:$0xff]
    %v3086 = vld [vmem:[#allocation13 + $0x1d8] sm:$0xff]
    %v3087 = vld [vmem:[#allocation13 + $0x1e0] sm:$0xff]
    %v3088 = vld [vmem:[#allocation13 + $0x1e8] sm:$0xff]
    %v3089 = vld [vmem:[#allocation13 + $0x1f0] sm:$0xff]
    %v3090 = vld [vmem:[#allocation13 + $0x1f8] sm:$0xff]
    %v3091 = vld [vmem:[#allocation13 + $0x200] sm:$0xff]
    %v3092 = vld [vmem:[#allocation13 + $0x208] sm:$0xff]
    %v3093 = vld [vmem:[#allocation13 + $0x210] sm:$0xff]
    %v3094 = vld [vmem:[#allocation13 + $0x218] sm:$0xff]
    %v3095 = vld [vmem:[#allocation13 + $0x220] sm:$0xff]
    %v3096 = vld [vmem:[#allocation13 + $0x228] sm:$0xff]
    %v3097 = vld [vmem:[#allocation13 + $0x230] sm:$0xff]
    %v3098 = vld [vmem:[#allocation13 + $0x238] sm:$0xff]
    %v3099 = vld [vmem:[#allocation13 + $0x240] sm:$0xff]
    %v3100 = vld [vmem:[#allocation13 + $0x248] sm:$0xff]
    %v3101 = vld [vmem:[#allocation13 + $0x250] sm:$0xff]
    %v3102 = vld [vmem:[#allocation13 + $0x258] sm:$0xff]
    %v3103 = vld [vmem:[#allocation13 + $0x260] sm:$0xff]
    %v3104 = vld [vmem:[#allocation13 + $0x268] sm:$0xff]
    %v3105 = vld [vmem:[#allocation13 + $0x270] sm:$0xff]
    %v3106 = vld [vmem:[#allocation13 + $0x278] sm:$0xff]
    %v3107 = vld [vmem:[#allocation13 + $0x280] sm:$0xff]
    %v3108 = vld [vmem:[#allocation13 + $0x288] sm:$0xff]
    %v3109 = vld [vmem:[#allocation13 + $0x290] sm:$0xff]
    %v3110 = vld [vmem:[#allocation13 + $0x298] sm:$0xff]
    %v3111 = vld [vmem:[#allocation13 + $0x2a0] sm:$0xff]
    %v3112 = vld [vmem:[#allocation13 + $0x2a8] sm:$0xff]
    %v3113 = vld [vmem:[#allocation13 + $0x2b0] sm:$0xff]
    %v3114 = vld [vmem:[#allocation13 + $0x2b8] sm:$0xff]
    %v3115 = vld [vmem:[#allocation13 + $0x2c0] sm:$0xff]
    %v3116 = vld [vmem:[#allocation13 + $0x2c8] sm:$0xff]
    %v3117 = vld [vmem:[#allocation13 + $0x2d0] sm:$0xff]
    %v3118 = vld [vmem:[#allocation13 + $0x2d8] sm:$0xff]
    %v3119 = vld [vmem:[#allocation13 + $0x2e0] sm:$0xff]
    %v3120 = vld [vmem:[#allocation13 + $0x2e8] sm:$0xff]
    %v3121 = vld [vmem:[#allocation13 + $0x2f0] sm:$0xff]
    %v3122 = vld [vmem:[#allocation13 + $0x2f8] sm:$0xff]
    %v3123 = vld [vmem:[#allocation13 + $0x300] sm:$0xff]
    %v3124 = vld [vmem:[#allocation13 + $0x308] sm:$0xff]
    %v3125 = vld [vmem:[#allocation13 + $0x310] sm:$0xff]
    %v3126 = vld [vmem:[#allocation13 + $0x318] sm:$0xff]
    %v3127 = vld [vmem:[#allocation13 + $0x320] sm:$0xff]
    %v3128 = vld [vmem:[#allocation13 + $0x328] sm:$0xff]
    %v3129 = vld [vmem:[#allocation13 + $0x330] sm:$0xff]
    %v3130 = vld [vmem:[#allocation13 + $0x338] sm:$0xff]
    %v3131 = vld [vmem:[#allocation13 + $0x340] sm:$0xff]
    %v3132 = vld [vmem:[#allocation13 + $0x348] sm:$0xff]
    %v3133 = vld [vmem:[#allocation13 + $0x350] sm:$0xff]
    %v3134 = vld [vmem:[#allocation13 + $0x358] sm:$0xff]
    %v3135 = vld [vmem:[#allocation13 + $0x360] sm:$0xff]
    %v3136 = vld [vmem:[#allocation13 + $0x368] sm:$0xff]
    %v3137 = vld [vmem:[#allocation13 + $0x370] sm:$0xff]
    %v3138 = vld [vmem:[#allocation13 + $0x378] sm:$0xff]
    %v3139 = vld [vmem:[#allocation13 + $0x380] sm:$0xff]
    %v3140 = vld [vmem:[#allocation13 + $0x388] sm:$0xff]
    %v3141 = vld [vmem:[#allocation13 + $0x390] sm:$0xff]
    %v3142 = vld [vmem:[#allocation13 + $0x398] sm:$0xff]
    %v3143 = vld [vmem:[#allocation13 + $0x3a0] sm:$0xff]
    %v3144 = vld [vmem:[#allocation13 + $0x3a8] sm:$0xff]
    %v3145 = vld [vmem:[#allocation13 + $0x3b0] sm:$0xff]
    %v3146 = vld [vmem:[#allocation13 + $0x3b8] sm:$0xff]
    %v3147 = vld [vmem:[#allocation13 + $0x3c0] sm:$0xff]
    %v3148 = vld [vmem:[#allocation13 + $0x3c8] sm:$0xff]
    %v3149 = vld [vmem:[#allocation13 + $0x3d0] sm:$0xff]
    %v3150 = vld [vmem:[#allocation13 + $0x3d8] sm:$0xff]
    %v3151 = vld [vmem:[#allocation13 + $0x3e0] sm:$0xff]
    %v3152 = vld [vmem:[#allocation13 + $0x3e8] sm:$0xff]
    %v3153 = vld [vmem:[#allocation13 + $0x3f0] sm:$0xff]
    %v3154 = vld [vmem:[#allocation13 + $0x3f8] sm:$0xff]
    %v3283 = vunpack.c.l.b16 %v3027
    %v3284 = vunpack.c.h.b16 %v3027
    %v3285 = vunpack.c.l.b16 %v3028
    %v3286 = vunpack.c.h.b16 %v3028
    %v3287 = vunpack.c.l.b16 %v3029
    %v3288 = vunpack.c.h.b16 %v3029
    %v3289 = vunpack.c.l.b16 %v3030
    %v3290 = vunpack.c.h.b16 %v3030
    %v3291 = vunpack.c.l.b16 %v3031
    %v3292 = vunpack.c.h.b16 %v3031
    %v3293 = vunpack.c.l.b16 %v3032
    %v3294 = vunpack.c.h.b16 %v3032
    %v3295 = vunpack.c.l.b16 %v3033
    %v3296 = vunpack.c.h.b16 %v3033
    %v3297 = vunpack.c.l.b16 %v3034
    %v3298 = vunpack.c.h.b16 %v3034
    %v3299 = vunpack.c.l.b16 %v3035
    %v3300 = vunpack.c.h.b16 %v3035
    %v3301 = vunpack.c.l.b16 %v3036
    %v3302 = vunpack.c.h.b16 %v3036
    %v3303 = vunpack.c.l.b16 %v3037
    %v3304 = vunpack.c.h.b16 %v3037
    %v3305 = vunpack.c.l.b16 %v3038
    %v3306 = vunpack.c.h.b16 %v3038
    %v3307 = vunpack.c.l.b16 %v3039
    %v3308 = vunpack.c.h.b16 %v3039
    %v3309 = vunpack.c.l.b16 %v3040
    %v3310 = vunpack.c.h.b16 %v3040
    %v3311 = vunpack.c.l.b16 %v3041
    %v3312 = vunpack.c.h.b16 %v3041
    %v3313 = vunpack.c.l.b16 %v3042
    %v3314 = vunpack.c.h.b16 %v3042
    %v3315 = vunpack.c.l.b16 %v3043
    %v3316 = vunpack.c.h.b16 %v3043
    %v3317 = vunpack.c.l.b16 %v3044
    %v3318 = vunpack.c.h.b16 %v3044
    %v3319 = vunpack.c.l.b16 %v3045
    %v3320 = vunpack.c.h.b16 %v3045
    %v3321 = vunpack.c.l.b16 %v3046
    %v3322 = vunpack.c.h.b16 %v3046
    %v3323 = vunpack.c.l.b16 %v3047
    %v3324 = vunpack.c.h.b16 %v3047
    %v3325 = vunpack.c.l.b16 %v3048
    %v3326 = vunpack.c.h.b16 %v3048
    %v3327 = vunpack.c.l.b16 %v3049
    %v3328 = vunpack.c.h.b16 %v3049
    %v3329 = vunpack.c.l.b16 %v3050
    %v3330 = vunpack.c.h.b16 %v3050
    %v3331 = vunpack.c.l.b16 %v3051
    %v3332 = vunpack.c.h.b16 %v3051
    %v3333 = vunpack.c.l.b16 %v3052
    %v3334 = vunpack.c.h.b16 %v3052
    %v3335 = vunpack.c.l.b16 %v3053
    %v3336 = vunpack.c.h.b16 %v3053
    %v3337 = vunpack.c.l.b16 %v3054
    %v3338 = vunpack.c.h.b16 %v3054
    %v3339 = vunpack.c.l.b16 %v3055
    %v3340 = vunpack.c.h.b16 %v3055
    %v3341 = vunpack.c.l.b16 %v3056
    %v3342 = vunpack.c.h.b16 %v3056
    %v3343 = vunpack.c.l.b16 %v3057
    %v3344 = vunpack.c.h.b16 %v3057
    %v3345 = vunpack.c.l.b16 %v3058
    %v3346 = vunpack.c.h.b16 %v3058
    %v3347 = vunpack.c.l.b16 %v3059
    %v3348 = vunpack.c.h.b16 %v3059
    %v3349 = vunpack.c.l.b16 %v3060
    %v3350 = vunpack.c.h.b16 %v3060
    %v3351 = vunpack.c.l.b16 %v3061
    %v3352 = vunpack.c.h.b16 %v3061
    %v3353 = vunpack.c.l.b16 %v3062
    %v3354 = vunpack.c.h.b16 %v3062
    %v3355 = vunpack.c.l.b16 %v3063
    %v3356 = vunpack.c.h.b16 %v3063
    %v3357 = vunpack.c.l.b16 %v3064
    %v3358 = vunpack.c.h.b16 %v3064
    %v3359 = vunpack.c.l.b16 %v3065
    %v3360 = vunpack.c.h.b16 %v3065
    %v3361 = vunpack.c.l.b16 %v3066
    %v3362 = vunpack.c.h.b16 %v3066
    %v3363 = vunpack.c.l.b16 %v3067
    %v3364 = vunpack.c.h.b16 %v3067
    %v3365 = vunpack.c.l.b16 %v3068
    %v3366 = vunpack.c.h.b16 %v3068
    %v3367 = vunpack.c.l.b16 %v3069
    %v3368 = vunpack.c.h.b16 %v3069
    %v3369 = vunpack.c.l.b16 %v3070
    %v3370 = vunpack.c.h.b16 %v3070
    %v3371 = vunpack.c.l.b16 %v3071
    %v3372 = vunpack.c.h.b16 %v3071
    %v3373 = vunpack.c.l.b16 %v3072
    %v3374 = vunpack.c.h.b16 %v3072
    %v3375 = vunpack.c.l.b16 %v3073
    %v3376 = vunpack.c.h.b16 %v3073
    %v3377 = vunpack.c.l.b16 %v3074
    %v3378 = vunpack.c.h.b16 %v3074
    %v3379 = vunpack.c.l.b16 %v3075
    %v3380 = vunpack.c.h.b16 %v3075
    %v3381 = vunpack.c.l.b16 %v3076
    %v3382 = vunpack.c.h.b16 %v3076
    %v3383 = vunpack.c.l.b16 %v3077
    %v3384 = vunpack.c.h.b16 %v3077
    %v3385 = vunpack.c.l.b16 %v3078
    %v3386 = vunpack.c.h.b16 %v3078
    %v3387 = vunpack.c.l.b16 %v3079
    %v3388 = vunpack.c.h.b16 %v3079
    %v3389 = vunpack.c.l.b16 %v3080
    %v3390 = vunpack.c.h.b16 %v3080
    %v3391 = vunpack.c.l.b16 %v3081
    %v3392 = vunpack.c.h.b16 %v3081
    %v3393 = vunpack.c.l.b16 %v3082
    %v3394 = vunpack.c.h.b16 %v3082
    %v3395 = vunpack.c.l.b16 %v3083
    %v3396 = vunpack.c.h.b16 %v3083
    %v3397 = vunpack.c.l.b16 %v3084
    %v3398 = vunpack.c.h.b16 %v3084
    %v3399 = vunpack.c.l.b16 %v3085
    %v3400 = vunpack.c.h.b16 %v3085
    %v3401 = vunpack.c.l.b16 %v3086
    %v3402 = vunpack.c.h.b16 %v3086
    %v3403 = vunpack.c.l.b16 %v3087
    %v3404 = vunpack.c.h.b16 %v3087
    %v3405 = vunpack.c.l.b16 %v3088
    %v3406 = vunpack.c.h.b16 %v3088
    %v3407 = vunpack.c.l.b16 %v3089
    %v3408 = vunpack.c.h.b16 %v3089
    %v3409 = vunpack.c.l.b16 %v3090
    %v3410 = vunpack.c.h.b16 %v3090
    %v3411 = vunpack.c.l.b16 %v3091
    %v3412 = vunpack.c.h.b16 %v3091
    %v3413 = vunpack.c.l.b16 %v3092
    %v3414 = vunpack.c.h.b16 %v3092
    %v3415 = vunpack.c.l.b16 %v3093
    %v3416 = vunpack.c.h.b16 %v3093
    %v3417 = vunpack.c.l.b16 %v3094
    %v3418 = vunpack.c.h.b16 %v3094
    %v3419 = vunpack.c.l.b16 %v3095
    %v3420 = vunpack.c.h.b16 %v3095
    %v3421 = vunpack.c.l.b16 %v3096
    %v3422 = vunpack.c.h.b16 %v3096
    %v3423 = vunpack.c.l.b16 %v3097
    %v3424 = vunpack.c.h.b16 %v3097
    %v3425 = vunpack.c.l.b16 %v3098
    %v3426 = vunpack.c.h.b16 %v3098
    %v3427 = vunpack.c.l.b16 %v3099
    %v3428 = vunpack.c.h.b16 %v3099
    %v3429 = vunpack.c.l.b16 %v3100
    %v3430 = vunpack.c.h.b16 %v3100
    %v3431 = vunpack.c.l.b16 %v3101
    %v3432 = vunpack.c.h.b16 %v3101
    %v3433 = vunpack.c.l.b16 %v3102
    %v3434 = vunpack.c.h.b16 %v3102
    %v3435 = vunpack.c.l.b16 %v3103
    %v3436 = vunpack.c.h.b16 %v3103
    %v3437 = vunpack.c.l.b16 %v3104
    %v3438 = vunpack.c.h.b16 %v3104
    %v3439 = vunpack.c.l.b16 %v3105
    %v3440 = vunpack.c.h.b16 %v3105
    %v3441 = vunpack.c.l.b16 %v3106
    %v3442 = vunpack.c.h.b16 %v3106
    %v3443 = vunpack.c.l.b16 %v3107
    %v3444 = vunpack.c.h.b16 %v3107
    %v3445 = vunpack.c.l.b16 %v3108
    %v3446 = vunpack.c.h.b16 %v3108
    %v3447 = vunpack.c.l.b16 %v3109
    %v3448 = vunpack.c.h.b16 %v3109
    %v3449 = vunpack.c.l.b16 %v3110
    %v3450 = vunpack.c.h.b16 %v3110
    %v3451 = vunpack.c.l.b16 %v3111
    %v3452 = vunpack.c.h.b16 %v3111
    %v3453 = vunpack.c.l.b16 %v3112
    %v3454 = vunpack.c.h.b16 %v3112
    %v3455 = vunpack.c.l.b16 %v3113
    %v3456 = vunpack.c.h.b16 %v3113
    %v3457 = vunpack.c.l.b16 %v3114
    %v3458 = vunpack.c.h.b16 %v3114
    %v3459 = vunpack.c.l.b16 %v3115
    %v3460 = vunpack.c.h.b16 %v3115
    %v3461 = vunpack.c.l.b16 %v3116
    %v3462 = vunpack.c.h.b16 %v3116
    %v3463 = vunpack.c.l.b16 %v3117
    %v3464 = vunpack.c.h.b16 %v3117
    %v3465 = vunpack.c.l.b16 %v3118
    %v3466 = vunpack.c.h.b16 %v3118
    %v3467 = vunpack.c.l.b16 %v3119
    %v3468 = vunpack.c.h.b16 %v3119
    %v3469 = vunpack.c.l.b16 %v3120
    %v3470 = vunpack.c.h.b16 %v3120
    %v3471 = vunpack.c.l.b16 %v3121
    %v3472 = vunpack.c.h.b16 %v3121
    %v3473 = vunpack.c.l.b16 %v3122
    %v3474 = vunpack.c.h.b16 %v3122
    %v3475 = vunpack.c.l.b16 %v3123
    %v3476 = vunpack.c.h.b16 %v3123
    %v3477 = vunpack.c.l.b16 %v3124
    %v3478 = vunpack.c.h.b16 %v3124
    %v3479 = vunpack.c.l.b16 %v3125
    %v3480 = vunpack.c.h.b16 %v3125
    %v3481 = vunpack.c.l.b16 %v3126
    %v3482 = vunpack.c.h.b16 %v3126
    %v3483 = vunpack.c.l.b16 %v3127
    %v3484 = vunpack.c.h.b16 %v3127
    %v3485 = vunpack.c.l.b16 %v3128
    %v3486 = vunpack.c.h.b16 %v3128
    %v3487 = vunpack.c.l.b16 %v3129
    %v3488 = vunpack.c.h.b16 %v3129
    %v3489 = vunpack.c.l.b16 %v3130
    %v3490 = vunpack.c.h.b16 %v3130
    %v3491 = vunpack.c.l.b16 %v3131
    %v3492 = vunpack.c.h.b16 %v3131
    %v3493 = vunpack.c.l.b16 %v3132
    %v3494 = vunpack.c.h.b16 %v3132
    %v3495 = vunpack.c.l.b16 %v3133
    %v3496 = vunpack.c.h.b16 %v3133
    %v3497 = vunpack.c.l.b16 %v3134
    %v3498 = vunpack.c.h.b16 %v3134
    %v3499 = vunpack.c.l.b16 %v3135
    %v3500 = vunpack.c.h.b16 %v3135
    %v3501 = vunpack.c.l.b16 %v3136
    %v3502 = vunpack.c.h.b16 %v3136
    %v3503 = vunpack.c.l.b16 %v3137
    %v3504 = vunpack.c.h.b16 %v3137
    %v3505 = vunpack.c.l.b16 %v3138
    %v3506 = vunpack.c.h.b16 %v3138
    %v3507 = vunpack.c.l.b16 %v3139
    %v3508 = vunpack.c.h.b16 %v3139
    %v3509 = vunpack.c.l.b16 %v3140
    %v3510 = vunpack.c.h.b16 %v3140
    %v3511 = vunpack.c.l.b16 %v3141
    %v3512 = vunpack.c.h.b16 %v3141
    %v3513 = vunpack.c.l.b16 %v3142
    %v3514 = vunpack.c.h.b16 %v3142
    %v3515 = vunpack.c.l.b16 %v3143
    %v3516 = vunpack.c.h.b16 %v3143
    %v3517 = vunpack.c.l.b16 %v3144
    %v3518 = vunpack.c.h.b16 %v3144
    %v3519 = vunpack.c.l.b16 %v3145
    %v3520 = vunpack.c.h.b16 %v3145
    %v3521 = vunpack.c.l.b16 %v3146
    %v3522 = vunpack.c.h.b16 %v3146
    %v3523 = vunpack.c.l.b16 %v3147
    %v3524 = vunpack.c.h.b16 %v3147
    %v3525 = vunpack.c.l.b16 %v3148
    %v3526 = vunpack.c.h.b16 %v3148
    %v3527 = vunpack.c.l.b16 %v3149
    %v3528 = vunpack.c.h.b16 %v3149
    %v3529 = vunpack.c.l.b16 %v3150
    %v3530 = vunpack.c.h.b16 %v3150
    %v3531 = vunpack.c.l.b16 %v3151
    %v3532 = vunpack.c.h.b16 %v3151
    %v3533 = vunpack.c.l.b16 %v3152
    %v3534 = vunpack.c.h.b16 %v3152
    %v3535 = vunpack.c.l.b16 %v3153
    %v3536 = vunpack.c.h.b16 %v3153
    %v3537 = vunpack.c.l.b16 %v3154
    %v3538 = vunpack.c.h.b16 %v3154
    %v3539 = vpack.c.b16 %v3287, %v3283
    %v3540 = vpack.c.b16 %v3288, %v3284
    %v3541 = vpack.c.b16 %v3289, %v3285
    %v3542 = vpack.c.b16 %v3290, %v3286
    %v3543 = vpack.c.b16 %v3295, %v3291
    %v3544 = vpack.c.b16 %v3296, %v3292
    %v3545 = vpack.c.b16 %v3297, %v3293
    %v3546 = vpack.c.b16 %v3298, %v3294
    %v3547 = vpack.c.b16 %v3303, %v3299
    %v3548 = vpack.c.b16 %v3304, %v3300
    %v3549 = vpack.c.b16 %v3305, %v3301
    %v3550 = vpack.c.b16 %v3306, %v3302
    %v3551 = vpack.c.b16 %v3311, %v3307
    %v3552 = vpack.c.b16 %v3312, %v3308
    %v3553 = vpack.c.b16 %v3313, %v3309
    %v3554 = vpack.c.b16 %v3314, %v3310
    %v3555 = vpack.c.b16 %v3319, %v3315
    %v3556 = vpack.c.b16 %v3320, %v3316
    %v3557 = vpack.c.b16 %v3321, %v3317
    %v3558 = vpack.c.b16 %v3322, %v3318
    %v3559 = vpack.c.b16 %v3327, %v3323
    %v3560 = vpack.c.b16 %v3328, %v3324
    %v3561 = vpack.c.b16 %v3329, %v3325
    %v3562 = vpack.c.b16 %v3330, %v3326
    %v3563 = vpack.c.b16 %v3335, %v3331
    %v3564 = vpack.c.b16 %v3336, %v3332
    %v3565 = vpack.c.b16 %v3337, %v3333
    %v3566 = vpack.c.b16 %v3338, %v3334
    %v3567 = vpack.c.b16 %v3343, %v3339
    %v3568 = vpack.c.b16 %v3344, %v3340
    %v3569 = vpack.c.b16 %v3345, %v3341
    %v3570 = vpack.c.b16 %v3346, %v3342
    %v3571 = vpack.c.b16 %v3351, %v3347
    %v3572 = vpack.c.b16 %v3352, %v3348
    %v3573 = vpack.c.b16 %v3353, %v3349
    %v3574 = vpack.c.b16 %v3354, %v3350
    %v3575 = vpack.c.b16 %v3359, %v3355
    %v3576 = vpack.c.b16 %v3360, %v3356
    %v3577 = vpack.c.b16 %v3361, %v3357
    %v3578 = vpack.c.b16 %v3362, %v3358
    %v3579 = vpack.c.b16 %v3367, %v3363
    %v3580 = vpack.c.b16 %v3368, %v3364
    %v3581 = vpack.c.b16 %v3369, %v3365
    %v3582 = vpack.c.b16 %v3370, %v3366
    %v3583 = vpack.c.b16 %v3375, %v3371
    %v3584 = vpack.c.b16 %v3376, %v3372
    %v3585 = vpack.c.b16 %v3377, %v3373
    %v3586 = vpack.c.b16 %v3378, %v3374
    %v3587 = vpack.c.b16 %v3383, %v3379
    %v3588 = vpack.c.b16 %v3384, %v3380
    %v3589 = vpack.c.b16 %v3385, %v3381
    %v3590 = vpack.c.b16 %v3386, %v3382
    %v3591 = vpack.c.b16 %v3391, %v3387
    %v3592 = vpack.c.b16 %v3392, %v3388
    %v3593 = vpack.c.b16 %v3393, %v3389
    %v3594 = vpack.c.b16 %v3394, %v3390
    %v3595 = vpack.c.b16 %v3399, %v3395
    %v3596 = vpack.c.b16 %v3400, %v3396
    %v3597 = vpack.c.b16 %v3401, %v3397
    %v3598 = vpack.c.b16 %v3402, %v3398
    %v3599 = vpack.c.b16 %v3407, %v3403
    %v3600 = vpack.c.b16 %v3408, %v3404
    %v3601 = vpack.c.b16 %v3409, %v3405
    %v3602 = vpack.c.b16 %v3410, %v3406
    %v3603 = vpack.c.b16 %v3415, %v3411
    %v3604 = vpack.c.b16 %v3416, %v3412
    %v3605 = vpack.c.b16 %v3417, %v3413
    %v3606 = vpack.c.b16 %v3418, %v3414
    %v3607 = vpack.c.b16 %v3423, %v3419
    %v3608 = vpack.c.b16 %v3424, %v3420
    %v3609 = vpack.c.b16 %v3425, %v3421
    %v3610 = vpack.c.b16 %v3426, %v3422
    %v3611 = vpack.c.b16 %v3431, %v3427
    %v3612 = vpack.c.b16 %v3432, %v3428
    %v3613 = vpack.c.b16 %v3433, %v3429
    %v3614 = vpack.c.b16 %v3434, %v3430
    %v3615 = vpack.c.b16 %v3439, %v3435
    %v3616 = vpack.c.b16 %v3440, %v3436
    %v3617 = vpack.c.b16 %v3441, %v3437
    %v3618 = vpack.c.b16 %v3442, %v3438
    %v3619 = vpack.c.b16 %v3447, %v3443
    %v3620 = vpack.c.b16 %v3448, %v3444
    %v3621 = vpack.c.b16 %v3449, %v3445
    %v3622 = vpack.c.b16 %v3450, %v3446
    %v3623 = vpack.c.b16 %v3455, %v3451
    %v3624 = vpack.c.b16 %v3456, %v3452
    %v3625 = vpack.c.b16 %v3457, %v3453
    %v3626 = vpack.c.b16 %v3458, %v3454
    %v3627 = vpack.c.b16 %v3463, %v3459
    %v3628 = vpack.c.b16 %v3464, %v3460
    %v3629 = vpack.c.b16 %v3465, %v3461
    %v3630 = vpack.c.b16 %v3466, %v3462
    %v3631 = vpack.c.b16 %v3471, %v3467
    %v3632 = vpack.c.b16 %v3472, %v3468
    %v3633 = vpack.c.b16 %v3473, %v3469
    %v3634 = vpack.c.b16 %v3474, %v3470
    %v3635 = vpack.c.b16 %v3479, %v3475
    %v3636 = vpack.c.b16 %v3480, %v3476
    %v3637 = vpack.c.b16 %v3481, %v3477
    %v3638 = vpack.c.b16 %v3482, %v3478
    %v3639 = vpack.c.b16 %v3487, %v3483
    %v3640 = vpack.c.b16 %v3488, %v3484
    %v3641 = vpack.c.b16 %v3489, %v3485
    %v3642 = vpack.c.b16 %v3490, %v3486
    %v3643 = vpack.c.b16 %v3495, %v3491
    %v3644 = vpack.c.b16 %v3496, %v3492
    %v3645 = vpack.c.b16 %v3497, %v3493
    %v3646 = vpack.c.b16 %v3498, %v3494
    %v3647 = vpack.c.b16 %v3503, %v3499
    %v3648 = vpack.c.b16 %v3504, %v3500
    %v3649 = vpack.c.b16 %v3505, %v3501
    %v3650 = vpack.c.b16 %v3506, %v3502
    %v3651 = vpack.c.b16 %v3511, %v3507
    %v3652 = vpack.c.b16 %v3512, %v3508
    %v3653 = vpack.c.b16 %v3513, %v3509
    %v3654 = vpack.c.b16 %v3514, %v3510
    %v3655 = vpack.c.b16 %v3519, %v3515
    %v3656 = vpack.c.b16 %v3520, %v3516
    %v3657 = vpack.c.b16 %v3521, %v3517
    %v3658 = vpack.c.b16 %v3522, %v3518
    %v3659 = vpack.c.b16 %v3527, %v3523
    %v3660 = vpack.c.b16 %v3528, %v3524
    %v3661 = vpack.c.b16 %v3529, %v3525
    %v3662 = vpack.c.b16 %v3530, %v3526
    %v3663 = vpack.c.b16 %v3535, %v3531
    %v3664 = vpack.c.b16 %v3536, %v3532
    %v3665 = vpack.c.b16 %v3537, %v3533
    %v3666 = vpack.c.b16 %v3538, %v3534
    %3795 = vmatpush.bf16.msra.mxu0 %v3567
    %3796 = vmatpush.bf16.msra.mxu0 %v3563
    %3797 = vmatpush.bf16.msra.mxu0 %v3559
    %3798 = vmatpush.bf16.msra.mxu0 %v3555
    %3799 = vmatpush.bf16.msra.mxu0 %v3551
    %3800 = vmatpush.bf16.msra.mxu0 %v3547
    %3801 = vmatpush.bf16.msra.mxu0 %v3543
    %3802 = vmatpush.bf16.msra.mxu0 %v3539
    %3803 = vmatmul.bf16.gmra.mxu0 %v2645
    %v3804 = vpop.f32.mrf.mxu0
    %v3805 = vadd.f32 0.0, %v3804
    %v3806 = vpop.f32.mrf.mxu0
    %v3807 = vadd.f32 0.0, %v3806
    %3808 = vdwg.mxu0
    %3809 = vmatpush.bf16.msra.mxu0 %v3599
    %3810 = vmatpush.bf16.msra.mxu0 %v3595
    %3811 = vmatpush.bf16.msra.mxu0 %v3591
    %3812 = vmatpush.bf16.msra.mxu0 %v3587
    %3813 = vmatpush.bf16.msra.mxu0 %v3583
    %3814 = vmatpush.bf16.msra.mxu0 %v3579
    %3815 = vmatpush.bf16.msra.mxu0 %v3575
    %3816 = vmatpush.bf16.msra.mxu0 %v3571
    %3817 = vmatmul.bf16.gmra.mxu0 %v2646
    %v3818 = vpop.f32.mrf.mxu0
    %v3819 = vadd.f32 %v3805, %v3818
    %v3820 = vpop.f32.mrf.mxu0
    %v3821 = vadd.f32 %v3807, %v3820
    %3822 = vdwg.mxu0
    %3823 = vmatpush.bf16.msra.mxu0 %v3631
    %3824 = vmatpush.bf16.msra.mxu0 %v3627
    %3825 = vmatpush.bf16.msra.mxu0 %v3623
    %3826 = vmatpush.bf16.msra.mxu0 %v3619
    %3827 = vmatpush.bf16.msra.mxu0 %v3615
    %3828 = vmatpush.bf16.msra.mxu0 %v3611
    %3829 = vmatpush.bf16.msra.mxu0 %v3607
    %3830 = vmatpush.bf16.msra.mxu0 %v3603
    %3831 = vmatmul.bf16.gmra.mxu0 %v2647
    %v3832 = vpop.f32.mrf.mxu0
    %v3833 = vadd.f32 %v3819, %v3832
    %v3834 = vpop.f32.mrf.mxu0
    %v3835 = vadd.f32 %v3821, %v3834
    %3836 = vdwg.mxu0
    %3837 = vmatpush.bf16.msra.mxu0 %v3663
    %3838 = vmatpush.bf16.msra.mxu0 %v3659
    %3839 = vmatpush.bf16.msra.mxu0 %v3655
    %3840 = vmatpush.bf16.msra.mxu0 %v3651
    %3841 = vmatpush.bf16.msra.mxu0 %v3647
    %3842 = vmatpush.bf16.msra.mxu0 %v3643
    %3843 = vmatpush.bf16.msra.mxu0 %v3639
    %3844 = vmatpush.bf16.msra.mxu0 %v3635
    %3845 = vmatmul.bf16.gmra.mxu0 %v2648
    %v3846 = vpop.f32.mrf.mxu0
    %v3847 = vadd.f32 %v3833, %v3846
    %v3848 = vpop.f32.mrf.mxu0
    %v3849 = vadd.f32 %v3835, %v3848
    %3850 = vdwg.mxu0
    %3851 = vmatpush.bf16.msra.mxu0 %v3568
    %3852 = vmatpush.bf16.msra.mxu0 %v3564
    %3853 = vmatpush.bf16.msra.mxu0 %v3560
    %3854 = vmatpush.bf16.msra.mxu0 %v3556
    %3855 = vmatpush.bf16.msra.mxu0 %v3552
    %3856 = vmatpush.bf16.msra.mxu0 %v3548
    %3857 = vmatpush.bf16.msra.mxu0 %v3544
    %3858 = vmatpush.bf16.msra.mxu0 %v3540
    %3859 = vmatmul.bf16.gmra.mxu0 %v2645
    %v3860 = vpop.f32.mrf.mxu0
    %v3861 = vadd.f32 0.0, %v3860
    %v3862 = vpop.f32.mrf.mxu0
    %v3863 = vadd.f32 0.0, %v3862
    %3864 = vdwg.mxu0
    %3865 = vmatpush.bf16.msra.mxu0 %v3600
    %3866 = vmatpush.bf16.msra.mxu0 %v3596
    %3867 = vmatpush.bf16.msra.mxu0 %v3592
    %3868 = vmatpush.bf16.msra.mxu0 %v3588
    %3869 = vmatpush.bf16.msra.mxu0 %v3584
    %3870 = vmatpush.bf16.msra.mxu0 %v3580
    %3871 = vmatpush.bf16.msra.mxu0 %v3576
    %3872 = vmatpush.bf16.msra.mxu0 %v3572
    %3873 = vmatmul.bf16.gmra.mxu0 %v2646
    %v3874 = vpop.f32.mrf.mxu0
    %v3875 = vadd.f32 %v3861, %v3874
    %v3876 = vpop.f32.mrf.mxu0
    %v3877 = vadd.f32 %v3863, %v3876
    %3878 = vdwg.mxu0
    %3879 = vmatpush.bf16.msra.mxu0 %v3632
    %3880 = vmatpush.bf16.msra.mxu0 %v3628
    %3881 = vmatpush.bf16.msra.mxu0 %v3624
    %3882 = vmatpush.bf16.msra.mxu0 %v3620
    %3883 = vmatpush.bf16.msra.mxu0 %v3616
    %3884 = vmatpush.bf16.msra.mxu0 %v3612
    %3885 = vmatpush.bf16.msra.mxu0 %v3608
    %3886 = vmatpush.bf16.msra.mxu0 %v3604
    %3887 = vmatmul.bf16.gmra.mxu0 %v2647
    %v3888 = vpop.f32.mrf.mxu0
    %v3889 = vadd.f32 %v3875, %v3888
    %v3890 = vpop.f32.mrf.mxu0
    %v3891 = vadd.f32 %v3877, %v3890
    %3892 = vdwg.mxu0
    %3893 = vmatpush.bf16.msra.mxu0 %v3664
    %3894 = vmatpush.bf16.msra.mxu0 %v3660
    %3895 = vmatpush.bf16.msra.mxu0 %v3656
    %3896 = vmatpush.bf16.msra.mxu0 %v3652
    %3897 = vmatpush.bf16.msra.mxu0 %v3648
    %3898 = vmatpush.bf16.msra.mxu0 %v3644
    %3899 = vmatpush.bf16.msra.mxu0 %v3640
    %3900 = vmatpush.bf16.msra.mxu0 %v3636
    %3901 = vmatmul.bf16.gmra.mxu0 %v2648
    %v3902 = vpop.f32.mrf.mxu0
    %v3903 = vadd.f32 %v3889, %v3902
    %v3904 = vpop.f32.mrf.mxu0
    %v3905 = vadd.f32 %v3891, %v3904
    %3906 = vdwg.mxu0
    %3907 = vmatpush.bf16.msra.mxu0 %v3569
    %3908 = vmatpush.bf16.msra.mxu0 %v3565
    %3909 = vmatpush.bf16.msra.mxu0 %v3561
    %3910 = vmatpush.bf16.msra.mxu0 %v3557
    %3911 = vmatpush.bf16.msra.mxu0 %v3553
    %3912 = vmatpush.bf16.msra.mxu0 %v3549
    %3913 = vmatpush.bf16.msra.mxu0 %v3545
    %3914 = vmatpush.bf16.msra.mxu0 %v3541
    %3915 = vmatmul.bf16.gmra.mxu0 %v2645
    %v3916 = vpop.f32.mrf.mxu0
    %v3917 = vadd.f32 0.0, %v3916
    %v3918 = vpop.f32.mrf.mxu0
    %v3919 = vadd.f32 0.0, %v3918
    %3920 = vdwg.mxu0
    %3921 = vmatpush.bf16.msra.mxu0 %v3601
    %3922 = vmatpush.bf16.msra.mxu0 %v3597
    %3923 = vmatpush.bf16.msra.mxu0 %v3593
    %3924 = vmatpush.bf16.msra.mxu0 %v3589
    %3925 = vmatpush.bf16.msra.mxu0 %v3585
    %3926 = vmatpush.bf16.msra.mxu0 %v3581
    %3927 = vmatpush.bf16.msra.mxu0 %v3577
    %3928 = vmatpush.bf16.msra.mxu0 %v3573
    %3929 = vmatmul.bf16.gmra.mxu0 %v2646
    %v3930 = vpop.f32.mrf.mxu0
    %v3931 = vadd.f32 %v3917, %v3930
    %v3932 = vpop.f32.mrf.mxu0
    %v3933 = vadd.f32 %v3919, %v3932
    %3934 = vdwg.mxu0
    %3935 = vmatpush.bf16.msra.mxu0 %v3633
    %3936 = vmatpush.bf16.msra.mxu0 %v3629
    %3937 = vmatpush.bf16.msra.mxu0 %v3625
    %3938 = vmatpush.bf16.msra.mxu0 %v3621
    %3939 = vmatpush.bf16.msra.mxu0 %v3617
    %3940 = vmatpush.bf16.msra.mxu0 %v3613
    %3941 = vmatpush.bf16.msra.mxu0 %v3609
    %3942 = vmatpush.bf16.msra.mxu0 %v3605
    %3943 = vmatmul.bf16.gmra.mxu0 %v2647
    %v3944 = vpop.f32.mrf.mxu0
    %v3945 = vadd.f32 %v3931, %v3944
    %v3946 = vpop.f32.mrf.mxu0
    %v3947 = vadd.f32 %v3933, %v3946
    %3948 = vdwg.mxu0
    %3949 = vmatpush.bf16.msra.mxu0 %v3665
    %3950 = vmatpush.bf16.msra.mxu0 %v3661
    %3951 = vmatpush.bf16.msra.mxu0 %v3657
    %3952 = vmatpush.bf16.msra.mxu0 %v3653
    %3953 = vmatpush.bf16.msra.mxu0 %v3649
    %3954 = vmatpush.bf16.msra.mxu0 %v3645
    %3955 = vmatpush.bf16.msra.mxu0 %v3641
    %3956 = vmatpush.bf16.msra.mxu0 %v3637
    %3957 = vmatmul.bf16.gmra.mxu0 %v2648
    %v3958 = vpop.f32.mrf.mxu0
    %v3959 = vadd.f32 %v3945, %v3958
    %v3960 = vpop.f32.mrf.mxu0
    %v3961 = vadd.f32 %v3947, %v3960
    %3962 = vdwg.mxu0
    %3963 = vmatpush.bf16.msra.mxu0 %v3570
    %3964 = vmatpush.bf16.msra.mxu0 %v3566
    %3965 = vmatpush.bf16.msra.mxu0 %v3562
    %3966 = vmatpush.bf16.msra.mxu0 %v3558
    %3967 = vmatpush.bf16.msra.mxu0 %v3554
    %3968 = vmatpush.bf16.msra.mxu0 %v3550
    %3969 = vmatpush.bf16.msra.mxu0 %v3546
    %3970 = vmatpush.bf16.msra.mxu0 %v3542
    %3971 = vmatmul.bf16.gmra.mxu0 %v2645
    %v3972 = vpop.f32.mrf.mxu0
    %v3973 = vadd.f32 0.0, %v3972
    %v3974 = vpop.f32.mrf.mxu0
    %v3975 = vadd.f32 0.0, %v3974
    %3976 = vdwg.mxu0
    %3977 = vmatpush.bf16.msra.mxu0 %v3602
    %3978 = vmatpush.bf16.msra.mxu0 %v3598
    %3979 = vmatpush.bf16.msra.mxu0 %v3594
    %3980 = vmatpush.bf16.msra.mxu0 %v3590
    %3981 = vmatpush.bf16.msra.mxu0 %v3586
    %3982 = vmatpush.bf16.msra.mxu0 %v3582
    %3983 = vmatpush.bf16.msra.mxu0 %v3578
    %3984 = vmatpush.bf16.msra.mxu0 %v3574
    %3985 = vmatmul.bf16.gmra.mxu0 %v2646
    %v3986 = vpop.f32.mrf.mxu0
    %v3987 = vadd.f32 %v3973, %v3986
    %v3988 = vpop.f32.mrf.mxu0
    %v3989 = vadd.f32 %v3975, %v3988
    %3990 = vdwg.mxu0
    %3991 = vmatpush.bf16.msra.mxu0 %v3634
    %3992 = vmatpush.bf16.msra.mxu0 %v3630
    %3993 = vmatpush.bf16.msra.mxu0 %v3626
    %3994 = vmatpush.bf16.msra.mxu0 %v3622
    %3995 = vmatpush.bf16.msra.mxu0 %v3618
    %3996 = vmatpush.bf16.msra.mxu0 %v3614
    %3997 = vmatpush.bf16.msra.mxu0 %v3610
    %3998 = vmatpush.bf16.msra.mxu0 %v3606
    %3999 = vmatmul.bf16.gmra.mxu0 %v2647
    %v4000 = vpop.f32.mrf.mxu0
    %v4001 = vadd.f32 %v3987, %v4000
    %v4002 = vpop.f32.mrf.mxu0
    %v4003 = vadd.f32 %v3989, %v4002
    %4004 = vdwg.mxu0
    %4005 = vmatpush.bf16.msra.mxu0 %v3666
    %4006 = vmatpush.bf16.msra.mxu0 %v3662
    %4007 = vmatpush.bf16.msra.mxu0 %v3658
    %4008 = vmatpush.bf16.msra.mxu0 %v3654
    %4009 = vmatpush.bf16.msra.mxu0 %v3650
    %4010 = vmatpush.bf16.msra.mxu0 %v3646
    %4011 = vmatpush.bf16.msra.mxu0 %v3642
    %4012 = vmatpush.bf16.msra.mxu0 %v3638
    %4013 = vmatmul.bf16.gmra.mxu0 %v2648
    %v4014 = vpop.f32.mrf.mxu0
    %v4015 = vadd.f32 %v4001, %v4014
    %v4016 = vpop.f32.mrf.mxu0
    %v4017 = vadd.f32 %v4003, %v4016
    %4018 = vdwg.mxu0
    %v4083 = vunpack.c.l.b16 %v2963
    %v4084 = vunpack.c.h.b16 %v2963
    %v4085 = vunpack.c.l.b16 %v2964
    %v4086 = vunpack.c.h.b16 %v2964
    %v4087 = vunpack.c.l.b16 %v2965
    %v4088 = vunpack.c.h.b16 %v2965
    %v4089 = vunpack.c.l.b16 %v2966
    %v4090 = vunpack.c.h.b16 %v2966
    %v4091 = vunpack.c.l.b16 %v2967
    %v4092 = vunpack.c.h.b16 %v2967
    %v4093 = vunpack.c.l.b16 %v2968
    %v4094 = vunpack.c.h.b16 %v2968
    %v4095 = vunpack.c.l.b16 %v2969
    %v4096 = vunpack.c.h.b16 %v2969
    %v4097 = vunpack.c.l.b16 %v2970
    %v4098 = vunpack.c.h.b16 %v2970
    %v4099 = vunpack.c.l.b16 %v2971
    %v4100 = vunpack.c.h.b16 %v2971
    %v4101 = vunpack.c.l.b16 %v2972
    %v4102 = vunpack.c.h.b16 %v2972
    %v4103 = vunpack.c.l.b16 %v2973
    %v4104 = vunpack.c.h.b16 %v2973
    %v4105 = vunpack.c.l.b16 %v2974
    %v4106 = vunpack.c.h.b16 %v2974
    %v4107 = vunpack.c.l.b16 %v2975
    %v4108 = vunpack.c.h.b16 %v2975
    %v4109 = vunpack.c.l.b16 %v2976
    %v4110 = vunpack.c.h.b16 %v2976
    %v4111 = vunpack.c.l.b16 %v2977
    %v4112 = vunpack.c.h.b16 %v2977
    %v4113 = vunpack.c.l.b16 %v2978
    %v4114 = vunpack.c.h.b16 %v2978
    %v4115 = vunpack.c.l.b16 %v2979
    %v4116 = vunpack.c.h.b16 %v2979
    %v4117 = vunpack.c.l.b16 %v2980
    %v4118 = vunpack.c.h.b16 %v2980
    %v4119 = vunpack.c.l.b16 %v2981
    %v4120 = vunpack.c.h.b16 %v2981
    %v4121 = vunpack.c.l.b16 %v2982
    %v4122 = vunpack.c.h.b16 %v2982
    %v4123 = vunpack.c.l.b16 %v2983
    %v4124 = vunpack.c.h.b16 %v2983
    %v4125 = vunpack.c.l.b16 %v2984
    %v4126 = vunpack.c.h.b16 %v2984
    %v4127 = vunpack.c.l.b16 %v2985
    %v4128 = vunpack.c.h.b16 %v2985
    %v4129 = vunpack.c.l.b16 %v2986
    %v4130 = vunpack.c.h.b16 %v2986
    %v4131 = vunpack.c.l.b16 %v2987
    %v4132 = vunpack.c.h.b16 %v2987
    %v4133 = vunpack.c.l.b16 %v2988
    %v4134 = vunpack.c.h.b16 %v2988
    %v4135 = vunpack.c.l.b16 %v2989
    %v4136 = vunpack.c.h.b16 %v2989
    %v4137 = vunpack.c.l.b16 %v2990
    %v4138 = vunpack.c.h.b16 %v2990
    %v4139 = vunpack.c.l.b16 %v2991
    %v4140 = vunpack.c.h.b16 %v2991
    %v4141 = vunpack.c.l.b16 %v2992
    %v4142 = vunpack.c.h.b16 %v2992
    %v4143 = vunpack.c.l.b16 %v2993
    %v4144 = vunpack.c.h.b16 %v2993
    %v4145 = vunpack.c.l.b16 %v2994
    %v4146 = vunpack.c.h.b16 %v2994
    %v4147 = vunpack.c.l.b16 %v2995
    %v4148 = vunpack.c.h.b16 %v2995
    %v4149 = vunpack.c.l.b16 %v2996
    %v4150 = vunpack.c.h.b16 %v2996
    %v4151 = vunpack.c.l.b16 %v2997
    %v4152 = vunpack.c.h.b16 %v2997
    %v4153 = vunpack.c.l.b16 %v2998
    %v4154 = vunpack.c.h.b16 %v2998
    %v4155 = vunpack.c.l.b16 %v2999
    %v4156 = vunpack.c.h.b16 %v2999
    %v4157 = vunpack.c.l.b16 %v3000
    %v4158 = vunpack.c.h.b16 %v3000
    %v4159 = vunpack.c.l.b16 %v3001
    %v4160 = vunpack.c.h.b16 %v3001
    %v4161 = vunpack.c.l.b16 %v3002
    %v4162 = vunpack.c.h.b16 %v3002
    %v4163 = vunpack.c.l.b16 %v3003
    %v4164 = vunpack.c.h.b16 %v3003
    %v4165 = vunpack.c.l.b16 %v3004
    %v4166 = vunpack.c.h.b16 %v3004
    %v4167 = vunpack.c.l.b16 %v3005
    %v4168 = vunpack.c.h.b16 %v3005
    %v4169 = vunpack.c.l.b16 %v3006
    %v4170 = vunpack.c.h.b16 %v3006
    %v4171 = vunpack.c.l.b16 %v3007
    %v4172 = vunpack.c.h.b16 %v3007
    %v4173 = vunpack.c.l.b16 %v3008
    %v4174 = vunpack.c.h.b16 %v3008
    %v4175 = vunpack.c.l.b16 %v3009
    %v4176 = vunpack.c.h.b16 %v3009
    %v4177 = vunpack.c.l.b16 %v3010
    %v4178 = vunpack.c.h.b16 %v3010
    %v4179 = vunpack.c.l.b16 %v3011
    %v4180 = vunpack.c.h.b16 %v3011
    %v4181 = vunpack.c.l.b16 %v3012
    %v4182 = vunpack.c.h.b16 %v3012
    %v4183 = vunpack.c.l.b16 %v3013
    %v4184 = vunpack.c.h.b16 %v3013
    %v4185 = vunpack.c.l.b16 %v3014
    %v4186 = vunpack.c.h.b16 %v3014
    %v4187 = vunpack.c.l.b16 %v3015
    %v4188 = vunpack.c.h.b16 %v3015
    %v4189 = vunpack.c.l.b16 %v3016
    %v4190 = vunpack.c.h.b16 %v3016
    %v4191 = vunpack.c.l.b16 %v3017
    %v4192 = vunpack.c.h.b16 %v3017
    %v4193 = vunpack.c.l.b16 %v3018
    %v4194 = vunpack.c.h.b16 %v3018
    %v4195 = vunpack.c.l.b16 %v3019
    %v4196 = vunpack.c.h.b16 %v3019
    %v4197 = vunpack.c.l.b16 %v3020
    %v4198 = vunpack.c.h.b16 %v3020
    %v4199 = vunpack.c.l.b16 %v3021
    %v4200 = vunpack.c.h.b16 %v3021
    %v4201 = vunpack.c.l.b16 %v3022
    %v4202 = vunpack.c.h.b16 %v3022
    %v4203 = vunpack.c.l.b16 %v3023
    %v4204 = vunpack.c.h.b16 %v3023
    %v4205 = vunpack.c.l.b16 %v3024
    %v4206 = vunpack.c.h.b16 %v3024
    %v4207 = vunpack.c.l.b16 %v3025
    %v4208 = vunpack.c.h.b16 %v3025
    %v4209 = vunpack.c.l.b16 %v3026
    %v4210 = vunpack.c.h.b16 %v3026
    %v4211 = vpack.c.b16 %v4087, %v4083
    %v4212 = vpack.c.b16 %v4088, %v4084
    %v4213 = vpack.c.b16 %v4089, %v4085
    %v4214 = vpack.c.b16 %v4090, %v4086
    %v4215 = vpack.c.b16 %v4095, %v4091
    %v4216 = vpack.c.b16 %v4096, %v4092
    %v4217 = vpack.c.b16 %v4097, %v4093
    %v4218 = vpack.c.b16 %v4098, %v4094
    %v4219 = vpack.c.b16 %v4103, %v4099
    %v4220 = vpack.c.b16 %v4104, %v4100
    %v4221 = vpack.c.b16 %v4105, %v4101
    %v4222 = vpack.c.b16 %v4106, %v4102
    %v4223 = vpack.c.b16 %v4111, %v4107
    %v4224 = vpack.c.b16 %v4112, %v4108
    %v4225 = vpack.c.b16 %v4113, %v4109
    %v4226 = vpack.c.b16 %v4114, %v4110
    %v4227 = vpack.c.b16 %v4119, %v4115
    %v4228 = vpack.c.b16 %v4120, %v4116
    %v4229 = vpack.c.b16 %v4121, %v4117
    %v4230 = vpack.c.b16 %v4122, %v4118
    %v4231 = vpack.c.b16 %v4127, %v4123
    %v4232 = vpack.c.b16 %v4128, %v4124
    %v4233 = vpack.c.b16 %v4129, %v4125
    %v4234 = vpack.c.b16 %v4130, %v4126
    %v4235 = vpack.c.b16 %v4135, %v4131
    %v4236 = vpack.c.b16 %v4136, %v4132
    %v4237 = vpack.c.b16 %v4137, %v4133
    %v4238 = vpack.c.b16 %v4138, %v4134
    %v4239 = vpack.c.b16 %v4143, %v4139
    %v4240 = vpack.c.b16 %v4144, %v4140
    %v4241 = vpack.c.b16 %v4145, %v4141
    %v4242 = vpack.c.b16 %v4146, %v4142
    %v4243 = vpack.c.b16 %v4151, %v4147
    %v4244 = vpack.c.b16 %v4152, %v4148
    %v4245 = vpack.c.b16 %v4153, %v4149
    %v4246 = vpack.c.b16 %v4154, %v4150
    %v4247 = vpack.c.b16 %v4159, %v4155
    %v4248 = vpack.c.b16 %v4160, %v4156
    %v4249 = vpack.c.b16 %v4161, %v4157
    %v4250 = vpack.c.b16 %v4162, %v4158
    %v4251 = vpack.c.b16 %v4167, %v4163
    %v4252 = vpack.c.b16 %v4168, %v4164
    %v4253 = vpack.c.b16 %v4169, %v4165
    %v4254 = vpack.c.b16 %v4170, %v4166
    %v4255 = vpack.c.b16 %v4175, %v4171
    %v4256 = vpack.c.b16 %v4176, %v4172
    %v4257 = vpack.c.b16 %v4177, %v4173
    %v4258 = vpack.c.b16 %v4178, %v4174
    %v4259 = vpack.c.b16 %v4183, %v4179
    %v4260 = vpack.c.b16 %v4184, %v4180
    %v4261 = vpack.c.b16 %v4185, %v4181
    %v4262 = vpack.c.b16 %v4186, %v4182
    %v4263 = vpack.c.b16 %v4191, %v4187
    %v4264 = vpack.c.b16 %v4192, %v4188
    %v4265 = vpack.c.b16 %v4193, %v4189
    %v4266 = vpack.c.b16 %v4194, %v4190
    %v4267 = vpack.c.b16 %v4199, %v4195
    %v4268 = vpack.c.b16 %v4200, %v4196
    %v4269 = vpack.c.b16 %v4201, %v4197
    %v4270 = vpack.c.b16 %v4202, %v4198
    %v4271 = vpack.c.b16 %v4207, %v4203
    %v4272 = vpack.c.b16 %v4208, %v4204
    %v4273 = vpack.c.b16 %v4209, %v4205
    %v4274 = vpack.c.b16 %v4210, %v4206
    %4339 = vmatpush.bf16.msra.mxu0 %v4239
    %4340 = vmatpush.bf16.msra.mxu0 %v4235
    %4341 = vmatpush.bf16.msra.mxu0 %v4231
    %4342 = vmatpush.bf16.msra.mxu0 %v4227
    %4343 = vmatpush.bf16.msra.mxu0 %v4223
    %4344 = vmatpush.bf16.msra.mxu0 %v4219
    %4345 = vmatpush.bf16.msra.mxu0 %v4215
    %4346 = vmatpush.bf16.msra.mxu0 %v4211
    %4347 = vmatmul.bf16.gmra.mxu0 %v355
    %v4348 = vpop.f32.mrf.mxu0
    %v4349 = vadd.f32 %v3847, %v4348
    %v4350 = vpop.f32.mrf.mxu0
    %v4351 = vadd.f32 %v3849, %v4350
    %4352 = vdwg.mxu0
    %4353 = vmatpush.bf16.msra.mxu0 %v4271
    %4354 = vmatpush.bf16.msra.mxu0 %v4267
    %4355 = vmatpush.bf16.msra.mxu0 %v4263
    %4356 = vmatpush.bf16.msra.mxu0 %v4259
    %4357 = vmatpush.bf16.msra.mxu0 %v4255
    %4358 = vmatpush.bf16.msra.mxu0 %v4251
    %4359 = vmatpush.bf16.msra.mxu0 %v4247
    %4360 = vmatpush.bf16.msra.mxu0 %v4243
    %4361 = vmatmul.bf16.gmra.mxu0 %v356
    %v4362 = vpop.f32.mrf.mxu0
    %v4363 = vadd.f32 %v4349, %v4362
    %v4364 = vpop.f32.mrf.mxu0
    %v4365 = vadd.f32 %v4351, %v4364
    %4366 = vdwg.mxu0
    %4367 = vmatpush.bf16.msra.mxu0 %v4240
    %4368 = vmatpush.bf16.msra.mxu0 %v4236
    %4369 = vmatpush.bf16.msra.mxu0 %v4232
    %4370 = vmatpush.bf16.msra.mxu0 %v4228
    %4371 = vmatpush.bf16.msra.mxu0 %v4224
    %4372 = vmatpush.bf16.msra.mxu0 %v4220
    %4373 = vmatpush.bf16.msra.mxu0 %v4216
    %4374 = vmatpush.bf16.msra.mxu0 %v4212
    %4375 = vmatmul.bf16.gmra.mxu0 %v355
    %v4376 = vpop.f32.mrf.mxu0
    %v4377 = vadd.f32 %v3903, %v4376
    %v4378 = vpop.f32.mrf.mxu0
    %v4379 = vadd.f32 %v3905, %v4378
    %4380 = vdwg.mxu0
    %4381 = vmatpush.bf16.msra.mxu0 %v4272
    %4382 = vmatpush.bf16.msra.mxu0 %v4268
    %4383 = vmatpush.bf16.msra.mxu0 %v4264
    %4384 = vmatpush.bf16.msra.mxu0 %v4260
    %4385 = vmatpush.bf16.msra.mxu0 %v4256
    %4386 = vmatpush.bf16.msra.mxu0 %v4252
    %4387 = vmatpush.bf16.msra.mxu0 %v4248
    %4388 = vmatpush.bf16.msra.mxu0 %v4244
    %4389 = vmatmul.bf16.gmra.mxu0 %v356
    %v4390 = vpop.f32.mrf.mxu0
    %v4391 = vadd.f32 %v4377, %v4390
    %v4392 = vpop.f32.mrf.mxu0
    %v4393 = vadd.f32 %v4379, %v4392
    %4394 = vdwg.mxu0
    %4395 = vmatpush.bf16.msra.mxu0 %v4241
    %4396 = vmatpush.bf16.msra.mxu0 %v4237
    %4397 = vmatpush.bf16.msra.mxu0 %v4233
    %4398 = vmatpush.bf16.msra.mxu0 %v4229
    %4399 = vmatpush.bf16.msra.mxu0 %v4225
    %4400 = vmatpush.bf16.msra.mxu0 %v4221
    %4401 = vmatpush.bf16.msra.mxu0 %v4217
    %4402 = vmatpush.bf16.msra.mxu0 %v4213
    %4403 = vmatmul.bf16.gmra.mxu0 %v355
    %v4404 = vpop.f32.mrf.mxu0
    %v4405 = vadd.f32 %v3959, %v4404
    %v4406 = vpop.f32.mrf.mxu0
    %v4407 = vadd.f32 %v3961, %v4406
    %4408 = vdwg.mxu0
    %4409 = vmatpush.bf16.msra.mxu0 %v4273
    %4410 = vmatpush.bf16.msra.mxu0 %v4269
    %4411 = vmatpush.bf16.msra.mxu0 %v4265
    %4412 = vmatpush.bf16.msra.mxu0 %v4261
    %4413 = vmatpush.bf16.msra.mxu0 %v4257
    %4414 = vmatpush.bf16.msra.mxu0 %v4253
    %4415 = vmatpush.bf16.msra.mxu0 %v4249
    %4416 = vmatpush.bf16.msra.mxu0 %v4245
    %4417 = vmatmul.bf16.gmra.mxu0 %v356
    %v4418 = vpop.f32.mrf.mxu0
    %v4419 = vadd.f32 %v4405, %v4418
    %v4420 = vpop.f32.mrf.mxu0
    %v4421 = vadd.f32 %v4407, %v4420
    %4422 = vdwg.mxu0
    %4423 = vmatpush.bf16.msra.mxu0 %v4242
    %4424 = vmatpush.bf16.msra.mxu0 %v4238
    %4425 = vmatpush.bf16.msra.mxu0 %v4234
    %4426 = vmatpush.bf16.msra.mxu0 %v4230
    %4427 = vmatpush.bf16.msra.mxu0 %v4226
    %4428 = vmatpush.bf16.msra.mxu0 %v4222
    %4429 = vmatpush.bf16.msra.mxu0 %v4218
    %4430 = vmatpush.bf16.msra.mxu0 %v4214
    %4431 = vmatmul.bf16.gmra.mxu0 %v355
    %v4432 = vpop.f32.mrf.mxu0
    %v4433 = vadd.f32 %v4015, %v4432
    %v4434 = vpop.f32.mrf.mxu0
    %v4435 = vadd.f32 %v4017, %v4434
    %4436 = vdwg.mxu0
    %4437 = vmatpush.bf16.msra.mxu0 %v4274
    %4438 = vmatpush.bf16.msra.mxu0 %v4270
    %4439 = vmatpush.bf16.msra.mxu0 %v4266
    %4440 = vmatpush.bf16.msra.mxu0 %v4262
    %4441 = vmatpush.bf16.msra.mxu0 %v4258
    %4442 = vmatpush.bf16.msra.mxu0 %v4254
    %4443 = vmatpush.bf16.msra.mxu0 %v4250
    %4444 = vmatpush.bf16.msra.mxu0 %v4246
    %4445 = vmatmul.bf16.gmra.mxu0 %v356
    %v4446 = vpop.f32.mrf.mxu0
    %v4447 = vadd.f32 %v4433, %v4446
    %v4448 = vpop.f32.mrf.mxu0
    %v4449 = vadd.f32 %v4435, %v4448
    %4450 = vdwg.mxu0
    %v4451 = vld [vmem:[#allocation14] sm:$0xf]
    %v4453 = vperm.slane %v4451, 0
    %v4454 = vperm.slane %v4451, 1
    %v4455 = vperm.slane %v4451, 2
    %v4456 = vperm.slane %v4451, 3
    %v4461 = vadd.f32 %v4363, %v4453
    %v4462 = vadd.f32 %v4391, %v4454
    %v4463 = vadd.f32 %v4419, %v4455
    %v4464 = vadd.f32 %v4447, %v4456
    %v4465 = vadd.f32 %v4365, %v4453
    %v4466 = vadd.f32 %v4393, %v4454
    %v4467 = vadd.f32 %v4421, %v4455
    %v4468 = vadd.f32 %v4449, %v4456
    %v4469 = vmax.f32 %v4461, 0.0
    %v4470 = vmax.f32 %v4462, 0.0
    %v4471 = vmax.f32 %v4463, 0.0
    %v4472 = vmax.f32 %v4464, 0.0
    %v4473 = vmax.f32 %v4465, 0.0
    %v4474 = vmax.f32 %v4466, 0.0
    %v4475 = vmax.f32 %v4467, 0.0
    %v4476 = vmax.f32 %v4468, 0.0
    %v4477 = vpack.c.bf16 %v4473, %v4469
    %v4478 = vpack.c.bf16 %v4474, %v4470
    %v4479 = vpack.c.bf16 %v4475, %v4471
    %v4480 = vpack.c.bf16 %v4476, %v4472
    %v4481 = vld [vmem:[#allocation22] sm:$0xf]
    %v4482 = vld [vmem:[#allocation22 + $0x4] sm:$0xf]
    %v4483 = vld [vmem:[#allocation22 + $0x8] sm:$0xf]
    %v4484 = vld [vmem:[#allocation22 + $0xc] sm:$0xf]
    %v4485 = vld [vmem:[#allocation22 + $0x10] sm:$0xf]
    %v4486 = vld [vmem:[#allocation22 + $0x14] sm:$0xf]
    %v4487 = vld [vmem:[#allocation22 + $0x18] sm:$0xf]
    %v4488 = vld [vmem:[#allocation22 + $0x1c] sm:$0xf]
    %v4489 = vld [vmem:[#allocation22 + $0x20] sm:$0xf]
    %v4490 = vld [vmem:[#allocation22 + $0x24] sm:$0xf]
    %v4491 = vld [vmem:[#allocation22 + $0x28] sm:$0xf]
    %v4492 = vld [vmem:[#allocation22 + $0x2c] sm:$0xf]
    %v4493 = vld [vmem:[#allocation22 + $0x30] sm:$0xf]
    %v4494 = vld [vmem:[#allocation22 + $0x34] sm:$0xf]
    %v4495 = vld [vmem:[#allocation22 + $0x38] sm:$0xf]
    %v4496 = vld [vmem:[#allocation22 + $0x3c] sm:$0xf]
    %v4497 = vld [vmem:[#allocation22 + $0x40] sm:$0xf]
    %v4498 = vld [vmem:[#allocation22 + $0x44] sm:$0xf]
    %v4499 = vld [vmem:[#allocation22 + $0x48] sm:$0xf]
    %v4500 = vld [vmem:[#allocation22 + $0x4c] sm:$0xf]
    %v4501 = vld [vmem:[#allocation22 + $0x50] sm:$0xf]
    %v4502 = vld [vmem:[#allocation22 + $0x54] sm:$0xf]
    %v4503 = vld [vmem:[#allocation22 + $0x58] sm:$0xf]
    %v4504 = vld [vmem:[#allocation22 + $0x5c] sm:$0xf]
    %v4505 = vld [vmem:[#allocation22 + $0x60] sm:$0xf]
    %v4506 = vld [vmem:[#allocation22 + $0x64] sm:$0xf]
    %v4507 = vld [vmem:[#allocation22 + $0x68] sm:$0xf]
    %v4508 = vld [vmem:[#allocation22 + $0x6c] sm:$0xf]
    %v4509 = vld [vmem:[#allocation22 + $0x70] sm:$0xf]
    %v4510 = vld [vmem:[#allocation22 + $0x74] sm:$0xf]
    %v4511 = vld [vmem:[#allocation22 + $0x78] sm:$0xf]
    %v4512 = vld [vmem:[#allocation22 + $0x7c] sm:$0xf]
    %v4513 = vld [vmem:[#allocation22 + $0x80] sm:$0xf]
    %v4514 = vld [vmem:[#allocation22 + $0x84] sm:$0xf]
    %v4515 = vld [vmem:[#allocation22 + $0x88] sm:$0xf]
    %v4516 = vld [vmem:[#allocation22 + $0x8c] sm:$0xf]
    %v4517 = vld [vmem:[#allocation22 + $0x90] sm:$0xf]
    %v4518 = vld [vmem:[#allocation22 + $0x94] sm:$0xf]
    %v4519 = vld [vmem:[#allocation22 + $0x98] sm:$0xf]
    %v4520 = vld [vmem:[#allocation22 + $0x9c] sm:$0xf]
    %v4521 = vld [vmem:[#allocation22 + $0xa0] sm:$0xf]
    %v4522 = vld [vmem:[#allocation22 + $0xa4] sm:$0xf]
    %v4523 = vld [vmem:[#allocation22 + $0xa8] sm:$0xf]
    %v4524 = vld [vmem:[#allocation22 + $0xac] sm:$0xf]
    %v4525 = vld [vmem:[#allocation22 + $0xb0] sm:$0xf]
    %v4526 = vld [vmem:[#allocation22 + $0xb4] sm:$0xf]
    %v4527 = vld [vmem:[#allocation22 + $0xb8] sm:$0xf]
    %v4528 = vld [vmem:[#allocation22 + $0xbc] sm:$0xf]
    %v4529 = vld [vmem:[#allocation22 + $0xc0] sm:$0xf]
    %v4530 = vld [vmem:[#allocation22 + $0xc4] sm:$0xf]
    %v4531 = vld [vmem:[#allocation22 + $0xc8] sm:$0xf]
    %v4532 = vld [vmem:[#allocation22 + $0xcc] sm:$0xf]
    %v4533 = vld [vmem:[#allocation22 + $0xd0] sm:$0xf]
    %v4534 = vld [vmem:[#allocation22 + $0xd4] sm:$0xf]
    %v4535 = vld [vmem:[#allocation22 + $0xd8] sm:$0xf]
    %v4536 = vld [vmem:[#allocation22 + $0xdc] sm:$0xf]
    %v4537 = vld [vmem:[#allocation22 + $0xe0] sm:$0xf]
    %v4538 = vld [vmem:[#allocation22 + $0xe4] sm:$0xf]
    %v4539 = vld [vmem:[#allocation22 + $0xe8] sm:$0xf]
    %v4540 = vld [vmem:[#allocation22 + $0xec] sm:$0xf]
    %v4541 = vld [vmem:[#allocation22 + $0xf0] sm:$0xf]
    %v4542 = vld [vmem:[#allocation22 + $0xf4] sm:$0xf]
    %v4543 = vld [vmem:[#allocation22 + $0xf8] sm:$0xf]
    %v4544 = vld [vmem:[#allocation22 + $0xfc] sm:$0xf]
    %v4609 = vunpack.c.l.b16 %v4481
    %v4610 = vunpack.c.l.b16 %v4482
    %v4611 = vunpack.c.l.b16 %v4483
    %v4612 = vunpack.c.l.b16 %v4484
    %v4613 = vunpack.c.l.b16 %v4485
    %v4614 = vunpack.c.l.b16 %v4486
    %v4615 = vunpack.c.l.b16 %v4487
    %v4616 = vunpack.c.l.b16 %v4488
    %v4617 = vunpack.c.l.b16 %v4489
    %v4618 = vunpack.c.l.b16 %v4490
    %v4619 = vunpack.c.l.b16 %v4491
    %v4620 = vunpack.c.l.b16 %v4492
    %v4621 = vunpack.c.l.b16 %v4493
    %v4622 = vunpack.c.l.b16 %v4494
    %v4623 = vunpack.c.l.b16 %v4495
    %v4624 = vunpack.c.l.b16 %v4496
    %v4625 = vunpack.c.l.b16 %v4497
    %v4626 = vunpack.c.l.b16 %v4498
    %v4627 = vunpack.c.l.b16 %v4499
    %v4628 = vunpack.c.l.b16 %v4500
    %v4629 = vunpack.c.l.b16 %v4501
    %v4630 = vunpack.c.l.b16 %v4502
    %v4631 = vunpack.c.l.b16 %v4503
    %v4632 = vunpack.c.l.b16 %v4504
    %v4633 = vunpack.c.l.b16 %v4505
    %v4634 = vunpack.c.l.b16 %v4506
    %v4635 = vunpack.c.l.b16 %v4507
    %v4636 = vunpack.c.l.b16 %v4508
    %v4637 = vunpack.c.l.b16 %v4509
    %v4638 = vunpack.c.l.b16 %v4510
    %v4639 = vunpack.c.l.b16 %v4511
    %v4640 = vunpack.c.l.b16 %v4512
    %v4641 = vunpack.c.l.b16 %v4513
    %v4642 = vunpack.c.l.b16 %v4514
    %v4643 = vunpack.c.l.b16 %v4515
    %v4644 = vunpack.c.l.b16 %v4516
    %v4645 = vunpack.c.l.b16 %v4517
    %v4646 = vunpack.c.l.b16 %v4518
    %v4647 = vunpack.c.l.b16 %v4519
    %v4648 = vunpack.c.l.b16 %v4520
    %v4649 = vunpack.c.l.b16 %v4521
    %v4650 = vunpack.c.l.b16 %v4522
    %v4651 = vunpack.c.l.b16 %v4523
    %v4652 = vunpack.c.l.b16 %v4524
    %v4653 = vunpack.c.l.b16 %v4525
    %v4654 = vunpack.c.l.b16 %v4526
    %v4655 = vunpack.c.l.b16 %v4527
    %v4656 = vunpack.c.l.b16 %v4528
    %v4657 = vunpack.c.l.b16 %v4529
    %v4658 = vunpack.c.l.b16 %v4530
    %v4659 = vunpack.c.l.b16 %v4531
    %v4660 = vunpack.c.l.b16 %v4532
    %v4661 = vunpack.c.l.b16 %v4533
    %v4662 = vunpack.c.l.b16 %v4534
    %v4663 = vunpack.c.l.b16 %v4535
    %v4664 = vunpack.c.l.b16 %v4536
    %v4665 = vunpack.c.l.b16 %v4537
    %v4666 = vunpack.c.l.b16 %v4538
    %v4667 = vunpack.c.l.b16 %v4539
    %v4668 = vunpack.c.l.b16 %v4540
    %v4669 = vunpack.c.l.b16 %v4541
    %v4670 = vunpack.c.l.b16 %v4542
    %v4671 = vunpack.c.l.b16 %v4543
    %v4672 = vunpack.c.l.b16 %v4544
    %v4673 = vpack.c.b16 %v4610, %v4609
    %v4674 = vpack.c.b16 %v4612, %v4611
    %v4675 = vpack.c.b16 %v4614, %v4613
    %v4676 = vpack.c.b16 %v4616, %v4615
    %v4677 = vpack.c.b16 %v4618, %v4617
    %v4678 = vpack.c.b16 %v4620, %v4619
    %v4679 = vpack.c.b16 %v4622, %v4621
    %v4680 = vpack.c.b16 %v4624, %v4623
    %v4681 = vpack.c.b16 %v4626, %v4625
    %v4682 = vpack.c.b16 %v4628, %v4627
    %v4683 = vpack.c.b16 %v4630, %v4629
    %v4684 = vpack.c.b16 %v4632, %v4631
    %v4685 = vpack.c.b16 %v4634, %v4633
    %v4686 = vpack.c.b16 %v4636, %v4635
    %v4687 = vpack.c.b16 %v4638, %v4637
    %v4688 = vpack.c.b16 %v4640, %v4639
    %v4689 = vpack.c.b16 %v4642, %v4641
    %v4690 = vpack.c.b16 %v4644, %v4643
    %v4691 = vpack.c.b16 %v4646, %v4645
    %v4692 = vpack.c.b16 %v4648, %v4647
    %v4693 = vpack.c.b16 %v4650, %v4649
    %v4694 = vpack.c.b16 %v4652, %v4651
    %v4695 = vpack.c.b16 %v4654, %v4653
    %v4696 = vpack.c.b16 %v4656, %v4655
    %v4697 = vpack.c.b16 %v4658, %v4657
    %v4698 = vpack.c.b16 %v4660, %v4659
    %v4699 = vpack.c.b16 %v4662, %v4661
    %v4700 = vpack.c.b16 %v4664, %v4663
    %v4701 = vpack.c.b16 %v4666, %v4665
    %v4702 = vpack.c.b16 %v4668, %v4667
    %v4703 = vpack.c.b16 %v4670, %v4669
    %v4704 = vpack.c.b16 %v4672, %v4671
    %4737 = vmatpush.bf16.msra.mxu0 %v4680
    %4738 = vmatpush.bf16.msra.mxu0 %v4679
    %4739 = vmatpush.bf16.msra.mxu0 %v4678
    %4740 = vmatpush.bf16.msra.mxu0 %v4677
    %4741 = vmatpush.bf16.msra.mxu0 %v4676
    %4742 = vmatpush.bf16.msra.mxu0 %v4675
    %4743 = vmatpush.bf16.msra.mxu0 %v4674
    %4744 = vmatpush.bf16.msra.mxu0 %v4673
    %4745 = vmatmul.bf16.gmra.mxu0 %v4477
    %v4746 = vpop.f32.mrf.mxu0
    %v4747 = vadd.f32 0.0, %v4746
    %v4748 = vpop.f32.mrf.mxu0
    %v4749 = vadd.f32 0.0, %v4748
    %4750 = vdwg.mxu0
    %4751 = vmatpush.bf16.msra.mxu0 %v4688
    %4752 = vmatpush.bf16.msra.mxu0 %v4687
    %4753 = vmatpush.bf16.msra.mxu0 %v4686
    %4754 = vmatpush.bf16.msra.mxu0 %v4685
    %4755 = vmatpush.bf16.msra.mxu0 %v4684
    %4756 = vmatpush.bf16.msra.mxu0 %v4683
    %4757 = vmatpush.bf16.msra.mxu0 %v4682
    %4758 = vmatpush.bf16.msra.mxu0 %v4681
    %4759 = vmatmul.bf16.gmra.mxu0 %v4478
    %v4760 = vpop.f32.mrf.mxu0
    %v4761 = vadd.f32 %v4747, %v4760
    %v4762 = vpop.f32.mrf.mxu0
    %v4763 = vadd.f32 %v4749, %v4762
    %4764 = vdwg.mxu0
    %4765 = vmatpush.bf16.msra.mxu0 %v4696
    %4766 = vmatpush.bf16.msra.mxu0 %v4695
    %4767 = vmatpush.bf16.msra.mxu0 %v4694
    %4768 = vmatpush.bf16.msra.mxu0 %v4693
    %4769 = vmatpush.bf16.msra.mxu0 %v4692
    %4770 = vmatpush.bf16.msra.mxu0 %v4691
    %4771 = vmatpush.bf16.msra.mxu0 %v4690
    %4772 = vmatpush.bf16.msra.mxu0 %v4689
    %4773 = vmatmul.bf16.gmra.mxu0 %v4479
    %v4774 = vpop.f32.mrf.mxu0
    %v4775 = vadd.f32 %v4761, %v4774
    %v4776 = vpop.f32.mrf.mxu0
    %v4777 = vadd.f32 %v4763, %v4776
    %4778 = vdwg.mxu0
    %4779 = vmatpush.bf16.msra.mxu0 %v4704
    %4780 = vmatpush.bf16.msra.mxu0 %v4703
    %4781 = vmatpush.bf16.msra.mxu0 %v4702
    %4782 = vmatpush.bf16.msra.mxu0 %v4701
    %4783 = vmatpush.bf16.msra.mxu0 %v4700
    %4784 = vmatpush.bf16.msra.mxu0 %v4699
    %4785 = vmatpush.bf16.msra.mxu0 %v4698
    %4786 = vmatpush.bf16.msra.mxu0 %v4697
    %4787 = vmatmul.bf16.gmra.mxu0 %v4480
    %v4788 = vpop.f32.mrf.mxu0
    %v4789 = vadd.f32 %v4775, %v4788
    %v4790 = vpop.f32.mrf.mxu0
    %v4791 = vadd.f32 %v4777, %v4790
    %4792 = vdwg.mxu0
    %v4793 = vadd.f32 %v2961, %v4789
    %v4794 = vadd.f32 %v2962, %v4791
    %v4795 = vld [vmem:[#allocation16] sm:$0xff]
    %v4796 = vld [vmem:[#allocation16 + $0x8] sm:$0xff]
    %v4797 = vld [vmem:[#allocation16 + $0x10] sm:$0xff]
    %v4798 = vld [vmem:[#allocation16 + $0x18] sm:$0xff]
    %v4799 = vld [vmem:[#allocation16 + $0x20] sm:$0xff]
    %v4800 = vld [vmem:[#allocation16 + $0x28] sm:$0xff]
    %v4801 = vld [vmem:[#allocation16 + $0x30] sm:$0xff]
    %v4802 = vld [vmem:[#allocation16 + $0x38] sm:$0xff]
    %v4803 = vld [vmem:[#allocation16 + $0x40] sm:$0xff]
    %v4804 = vld [vmem:[#allocation16 + $0x48] sm:$0xff]
    %v4805 = vld [vmem:[#allocation16 + $0x50] sm:$0xff]
    %v4806 = vld [vmem:[#allocation16 + $0x58] sm:$0xff]
    %v4807 = vld [vmem:[#allocation16 + $0x60] sm:$0xff]
    %v4808 = vld [vmem:[#allocation16 + $0x68] sm:$0xff]
    %v4809 = vld [vmem:[#allocation16 + $0x70] sm:$0xff]
    %v4810 = vld [vmem:[#allocation16 + $0x78] sm:$0xff]
    %v4811 = vld [vmem:[#allocation16 + $0x80] sm:$0xff]
    %v4812 = vld [vmem:[#allocation16 + $0x88] sm:$0xff]
    %v4813 = vld [vmem:[#allocation16 + $0x90] sm:$0xff]
    %v4814 = vld [vmem:[#allocation16 + $0x98] sm:$0xff]
    %v4815 = vld [vmem:[#allocation16 + $0xa0] sm:$0xff]
    %v4816 = vld [vmem:[#allocation16 + $0xa8] sm:$0xff]
    %v4817 = vld [vmem:[#allocation16 + $0xb0] sm:$0xff]
    %v4818 = vld [vmem:[#allocation16 + $0xb8] sm:$0xff]
    %v4819 = vld [vmem:[#allocation16 + $0xc0] sm:$0xff]
    %v4820 = vld [vmem:[#allocation16 + $0xc8] sm:$0xff]
    %v4821 = vld [vmem:[#allocation16 + $0xd0] sm:$0xff]
    %v4822 = vld [vmem:[#allocation16 + $0xd8] sm:$0xff]
    %v4823 = vld [vmem:[#allocation16 + $0xe0] sm:$0xff]
    %v4824 = vld [vmem:[#allocation16 + $0xe8] sm:$0xff]
    %v4825 = vld [vmem:[#allocation16 + $0xf0] sm:$0xff]
    %v4826 = vld [vmem:[#allocation16 + $0xf8] sm:$0xff]
    %v4827 = vld [vmem:[#allocation16 + $0x100] sm:$0xff]
    %v4828 = vld [vmem:[#allocation16 + $0x108] sm:$0xff]
    %v4829 = vld [vmem:[#allocation16 + $0x110] sm:$0xff]
    %v4830 = vld [vmem:[#allocation16 + $0x118] sm:$0xff]
    %v4831 = vld [vmem:[#allocation16 + $0x120] sm:$0xff]
    %v4832 = vld [vmem:[#allocation16 + $0x128] sm:$0xff]
    %v4833 = vld [vmem:[#allocation16 + $0x130] sm:$0xff]
    %v4834 = vld [vmem:[#allocation16 + $0x138] sm:$0xff]
    %v4835 = vld [vmem:[#allocation16 + $0x140] sm:$0xff]
    %v4836 = vld [vmem:[#allocation16 + $0x148] sm:$0xff]
    %v4837 = vld [vmem:[#allocation16 + $0x150] sm:$0xff]
    %v4838 = vld [vmem:[#allocation16 + $0x158] sm:$0xff]
    %v4839 = vld [vmem:[#allocation16 + $0x160] sm:$0xff]
    %v4840 = vld [vmem:[#allocation16 + $0x168] sm:$0xff]
    %v4841 = vld [vmem:[#allocation16 + $0x170] sm:$0xff]
    %v4842 = vld [vmem:[#allocation16 + $0x178] sm:$0xff]
    %v4843 = vld [vmem:[#allocation16 + $0x180] sm:$0xff]
    %v4844 = vld [vmem:[#allocation16 + $0x188] sm:$0xff]
    %v4845 = vld [vmem:[#allocation16 + $0x190] sm:$0xff]
    %v4846 = vld [vmem:[#allocation16 + $0x198] sm:$0xff]
    %v4847 = vld [vmem:[#allocation16 + $0x1a0] sm:$0xff]
    %v4848 = vld [vmem:[#allocation16 + $0x1a8] sm:$0xff]
    %v4849 = vld [vmem:[#allocation16 + $0x1b0] sm:$0xff]
    %v4850 = vld [vmem:[#allocation16 + $0x1b8] sm:$0xff]
    %v4851 = vld [vmem:[#allocation16 + $0x1c0] sm:$0xff]
    %v4852 = vld [vmem:[#allocation16 + $0x1c8] sm:$0xff]
    %v4853 = vld [vmem:[#allocation16 + $0x1d0] sm:$0xff]
    %v4854 = vld [vmem:[#allocation16 + $0x1d8] sm:$0xff]
    %v4855 = vld [vmem:[#allocation16 + $0x1e0] sm:$0xff]
    %v4856 = vld [vmem:[#allocation16 + $0x1e8] sm:$0xff]
    %v4857 = vld [vmem:[#allocation16 + $0x1f0] sm:$0xff]
    %v4858 = vld [vmem:[#allocation16 + $0x1f8] sm:$0xff]
    %v4859 = vld [vmem:[#allocation17] sm:$0xff]
    %v4860 = vld [vmem:[#allocation17 + $0x8] sm:$0xff]
    %v4861 = vld [vmem:[#allocation17 + $0x10] sm:$0xff]
    %v4862 = vld [vmem:[#allocation17 + $0x18] sm:$0xff]
    %v4863 = vld [vmem:[#allocation17 + $0x20] sm:$0xff]
    %v4864 = vld [vmem:[#allocation17 + $0x28] sm:$0xff]
    %v4865 = vld [vmem:[#allocation17 + $0x30] sm:$0xff]
    %v4866 = vld [vmem:[#allocation17 + $0x38] sm:$0xff]
    %v4867 = vld [vmem:[#allocation17 + $0x40] sm:$0xff]
    %v4868 = vld [vmem:[#allocation17 + $0x48] sm:$0xff]
    %v4869 = vld [vmem:[#allocation17 + $0x50] sm:$0xff]
    %v4870 = vld [vmem:[#allocation17 + $0x58] sm:$0xff]
    %v4871 = vld [vmem:[#allocation17 + $0x60] sm:$0xff]
    %v4872 = vld [vmem:[#allocation17 + $0x68] sm:$0xff]
    %v4873 = vld [vmem:[#allocation17 + $0x70] sm:$0xff]
    %v4874 = vld [vmem:[#allocation17 + $0x78] sm:$0xff]
    %v4875 = vld [vmem:[#allocation17 + $0x80] sm:$0xff]
    %v4876 = vld [vmem:[#allocation17 + $0x88] sm:$0xff]
    %v4877 = vld [vmem:[#allocation17 + $0x90] sm:$0xff]
    %v4878 = vld [vmem:[#allocation17 + $0x98] sm:$0xff]
    %v4879 = vld [vmem:[#allocation17 + $0xa0] sm:$0xff]
    %v4880 = vld [vmem:[#allocation17 + $0xa8] sm:$0xff]
    %v4881 = vld [vmem:[#allocation17 + $0xb0] sm:$0xff]
    %v4882 = vld [vmem:[#allocation17 + $0xb8] sm:$0xff]
    %v4883 = vld [vmem:[#allocation17 + $0xc0] sm:$0xff]
    %v4884 = vld [vmem:[#allocation17 + $0xc8] sm:$0xff]
    %v4885 = vld [vmem:[#allocation17 + $0xd0] sm:$0xff]
    %v4886 = vld [vmem:[#allocation17 + $0xd8] sm:$0xff]
    %v4887 = vld [vmem:[#allocation17 + $0xe0] sm:$0xff]
    %v4888 = vld [vmem:[#allocation17 + $0xe8] sm:$0xff]
    %v4889 = vld [vmem:[#allocation17 + $0xf0] sm:$0xff]
    %v4890 = vld [vmem:[#allocation17 + $0xf8] sm:$0xff]
    %v4891 = vld [vmem:[#allocation17 + $0x100] sm:$0xff]
    %v4892 = vld [vmem:[#allocation17 + $0x108] sm:$0xff]
    %v4893 = vld [vmem:[#allocation17 + $0x110] sm:$0xff]
    %v4894 = vld [vmem:[#allocation17 + $0x118] sm:$0xff]
    %v4895 = vld [vmem:[#allocation17 + $0x120] sm:$0xff]
    %v4896 = vld [vmem:[#allocation17 + $0x128] sm:$0xff]
    %v4897 = vld [vmem:[#allocation17 + $0x130] sm:$0xff]
    %v4898 = vld [vmem:[#allocation17 + $0x138] sm:$0xff]
    %v4899 = vld [vmem:[#allocation17 + $0x140] sm:$0xff]
    %v4900 = vld [vmem:[#allocation17 + $0x148] sm:$0xff]
    %v4901 = vld [vmem:[#allocation17 + $0x150] sm:$0xff]
    %v4902 = vld [vmem:[#allocation17 + $0x158] sm:$0xff]
    %v4903 = vld [vmem:[#allocation17 + $0x160] sm:$0xff]
    %v4904 = vld [vmem:[#allocation17 + $0x168] sm:$0xff]
    %v4905 = vld [vmem:[#allocation17 + $0x170] sm:$0xff]
    %v4906 = vld [vmem:[#allocation17 + $0x178] sm:$0xff]
    %v4907 = vld [vmem:[#allocation17 + $0x180] sm:$0xff]
    %v4908 = vld [vmem:[#allocation17 + $0x188] sm:$0xff]
    %v4909 = vld [vmem:[#allocation17 + $0x190] sm:$0xff]
    %v4910 = vld [vmem:[#allocation17 + $0x198] sm:$0xff]
    %v4911 = vld [vmem:[#allocation17 + $0x1a0] sm:$0xff]
    %v4912 = vld [vmem:[#allocation17 + $0x1a8] sm:$0xff]
    %v4913 = vld [vmem:[#allocation17 + $0x1b0] sm:$0xff]
    %v4914 = vld [vmem:[#allocation17 + $0x1b8] sm:$0xff]
    %v4915 = vld [vmem:[#allocation17 + $0x1c0] sm:$0xff]
    %v4916 = vld [vmem:[#allocation17 + $0x1c8] sm:$0xff]
    %v4917 = vld [vmem:[#allocation17 + $0x1d0] sm:$0xff]
    %v4918 = vld [vmem:[#allocation17 + $0x1d8] sm:$0xff]
    %v4919 = vld [vmem:[#allocation17 + $0x1e0] sm:$0xff]
    %v4920 = vld [vmem:[#allocation17 + $0x1e8] sm:$0xff]
    %v4921 = vld [vmem:[#allocation17 + $0x1f0] sm:$0xff]
    %v4922 = vld [vmem:[#allocation17 + $0x1f8] sm:$0xff]
    %v4923 = vld [vmem:[#allocation17 + $0x200] sm:$0xff]
    %v4924 = vld [vmem:[#allocation17 + $0x208] sm:$0xff]
    %v4925 = vld [vmem:[#allocation17 + $0x210] sm:$0xff]
    %v4926 = vld [vmem:[#allocation17 + $0x218] sm:$0xff]
    %v4927 = vld [vmem:[#allocation17 + $0x220] sm:$0xff]
    %v4928 = vld [vmem:[#allocation17 + $0x228] sm:$0xff]
    %v4929 = vld [vmem:[#allocation17 + $0x230] sm:$0xff]
    %v4930 = vld [vmem:[#allocation17 + $0x238] sm:$0xff]
    %v4931 = vld [vmem:[#allocation17 + $0x240] sm:$0xff]
    %v4932 = vld [vmem:[#allocation17 + $0x248] sm:$0xff]
    %v4933 = vld [vmem:[#allocation17 + $0x250] sm:$0xff]
    %v4934 = vld [vmem:[#allocation17 + $0x258] sm:$0xff]
    %v4935 = vld [vmem:[#allocation17 + $0x260] sm:$0xff]
    %v4936 = vld [vmem:[#allocation17 + $0x268] sm:$0xff]
    %v4937 = vld [vmem:[#allocation17 + $0x270] sm:$0xff]
    %v4938 = vld [vmem:[#allocation17 + $0x278] sm:$0xff]
    %v4939 = vld [vmem:[#allocation17 + $0x280] sm:$0xff]
    %v4940 = vld [vmem:[#allocation17 + $0x288] sm:$0xff]
    %v4941 = vld [vmem:[#allocation17 + $0x290] sm:$0xff]
    %v4942 = vld [vmem:[#allocation17 + $0x298] sm:$0xff]
    %v4943 = vld [vmem:[#allocation17 + $0x2a0] sm:$0xff]
    %v4944 = vld [vmem:[#allocation17 + $0x2a8] sm:$0xff]
    %v4945 = vld [vmem:[#allocation17 + $0x2b0] sm:$0xff]
    %v4946 = vld [vmem:[#allocation17 + $0x2b8] sm:$0xff]
    %v4947 = vld [vmem:[#allocation17 + $0x2c0] sm:$0xff]
    %v4948 = vld [vmem:[#allocation17 + $0x2c8] sm:$0xff]
    %v4949 = vld [vmem:[#allocation17 + $0x2d0] sm:$0xff]
    %v4950 = vld [vmem:[#allocation17 + $0x2d8] sm:$0xff]
    %v4951 = vld [vmem:[#allocation17 + $0x2e0] sm:$0xff]
    %v4952 = vld [vmem:[#allocation17 + $0x2e8] sm:$0xff]
    %v4953 = vld [vmem:[#allocation17 + $0x2f0] sm:$0xff]
    %v4954 = vld [vmem:[#allocation17 + $0x2f8] sm:$0xff]
    %v4955 = vld [vmem:[#allocation17 + $0x300] sm:$0xff]
    %v4956 = vld [vmem:[#allocation17 + $0x308] sm:$0xff]
    %v4957 = vld [vmem:[#allocation17 + $0x310] sm:$0xff]
    %v4958 = vld [vmem:[#allocation17 + $0x318] sm:$0xff]
    %v4959 = vld [vmem:[#allocation17 + $0x320] sm:$0xff]
    %v4960 = vld [vmem:[#allocation17 + $0x328] sm:$0xff]
    %v4961 = vld [vmem:[#allocation17 + $0x330] sm:$0xff]
    %v4962 = vld [vmem:[#allocation17 + $0x338] sm:$0xff]
    %v4963 = vld [vmem:[#allocation17 + $0x340] sm:$0xff]
    %v4964 = vld [vmem:[#allocation17 + $0x348] sm:$0xff]
    %v4965 = vld [vmem:[#allocation17 + $0x350] sm:$0xff]
    %v4966 = vld [vmem:[#allocation17 + $0x358] sm:$0xff]
    %v4967 = vld [vmem:[#allocation17 + $0x360] sm:$0xff]
    %v4968 = vld [vmem:[#allocation17 + $0x368] sm:$0xff]
    %v4969 = vld [vmem:[#allocation17 + $0x370] sm:$0xff]
    %v4970 = vld [vmem:[#allocation17 + $0x378] sm:$0xff]
    %v4971 = vld [vmem:[#allocation17 + $0x380] sm:$0xff]
    %v4972 = vld [vmem:[#allocation17 + $0x388] sm:$0xff]
    %v4973 = vld [vmem:[#allocation17 + $0x390] sm:$0xff]
    %v4974 = vld [vmem:[#allocation17 + $0x398] sm:$0xff]
    %v4975 = vld [vmem:[#allocation17 + $0x3a0] sm:$0xff]
    %v4976 = vld [vmem:[#allocation17 + $0x3a8] sm:$0xff]
    %v4977 = vld [vmem:[#allocation17 + $0x3b0] sm:$0xff]
    %v4978 = vld [vmem:[#allocation17 + $0x3b8] sm:$0xff]
    %v4979 = vld [vmem:[#allocation17 + $0x3c0] sm:$0xff]
    %v4980 = vld [vmem:[#allocation17 + $0x3c8] sm:$0xff]
    %v4981 = vld [vmem:[#allocation17 + $0x3d0] sm:$0xff]
    %v4982 = vld [vmem:[#allocation17 + $0x3d8] sm:$0xff]
    %v4983 = vld [vmem:[#allocation17 + $0x3e0] sm:$0xff]
    %v4984 = vld [vmem:[#allocation17 + $0x3e8] sm:$0xff]
    %v4985 = vld [vmem:[#allocation17 + $0x3f0] sm:$0xff]
    %v4986 = vld [vmem:[#allocation17 + $0x3f8] sm:$0xff]
    %v5115 = vunpack.c.l.b16 %v4859
    %v5116 = vunpack.c.h.b16 %v4859
    %v5117 = vunpack.c.l.b16 %v4860
    %v5118 = vunpack.c.h.b16 %v4860
    %v5119 = vunpack.c.l.b16 %v4861
    %v5120 = vunpack.c.h.b16 %v4861
    %v5121 = vunpack.c.l.b16 %v4862
    %v5122 = vunpack.c.h.b16 %v4862
    %v5123 = vunpack.c.l.b16 %v4863
    %v5124 = vunpack.c.h.b16 %v4863
    %v5125 = vunpack.c.l.b16 %v4864
    %v5126 = vunpack.c.h.b16 %v4864
    %v5127 = vunpack.c.l.b16 %v4865
    %v5128 = vunpack.c.h.b16 %v4865
    %v5129 = vunpack.c.l.b16 %v4866
    %v5130 = vunpack.c.h.b16 %v4866
    %v5131 = vunpack.c.l.b16 %v4867
    %v5132 = vunpack.c.h.b16 %v4867
    %v5133 = vunpack.c.l.b16 %v4868
    %v5134 = vunpack.c.h.b16 %v4868
    %v5135 = vunpack.c.l.b16 %v4869
    %v5136 = vunpack.c.h.b16 %v4869
    %v5137 = vunpack.c.l.b16 %v4870
    %v5138 = vunpack.c.h.b16 %v4870
    %v5139 = vunpack.c.l.b16 %v4871
    %v5140 = vunpack.c.h.b16 %v4871
    %v5141 = vunpack.c.l.b16 %v4872
    %v5142 = vunpack.c.h.b16 %v4872
    %v5143 = vunpack.c.l.b16 %v4873
    %v5144 = vunpack.c.h.b16 %v4873
    %v5145 = vunpack.c.l.b16 %v4874
    %v5146 = vunpack.c.h.b16 %v4874
    %v5147 = vunpack.c.l.b16 %v4875
    %v5148 = vunpack.c.h.b16 %v4875
    %v5149 = vunpack.c.l.b16 %v4876
    %v5150 = vunpack.c.h.b16 %v4876
    %v5151 = vunpack.c.l.b16 %v4877
    %v5152 = vunpack.c.h.b16 %v4877
    %v5153 = vunpack.c.l.b16 %v4878
    %v5154 = vunpack.c.h.b16 %v4878
    %v5155 = vunpack.c.l.b16 %v4879
    %v5156 = vunpack.c.h.b16 %v4879
    %v5157 = vunpack.c.l.b16 %v4880
    %v5158 = vunpack.c.h.b16 %v4880
    %v5159 = vunpack.c.l.b16 %v4881
    %v5160 = vunpack.c.h.b16 %v4881
    %v5161 = vunpack.c.l.b16 %v4882
    %v5162 = vunpack.c.h.b16 %v4882
    %v5163 = vunpack.c.l.b16 %v4883
    %v5164 = vunpack.c.h.b16 %v4883
    %v5165 = vunpack.c.l.b16 %v4884
    %v5166 = vunpack.c.h.b16 %v4884
    %v5167 = vunpack.c.l.b16 %v4885
    %v5168 = vunpack.c.h.b16 %v4885
    %v5169 = vunpack.c.l.b16 %v4886
    %v5170 = vunpack.c.h.b16 %v4886
    %v5171 = vunpack.c.l.b16 %v4887
    %v5172 = vunpack.c.h.b16 %v4887
    %v5173 = vunpack.c.l.b16 %v4888
    %v5174 = vunpack.c.h.b16 %v4888
    %v5175 = vunpack.c.l.b16 %v4889
    %v5176 = vunpack.c.h.b16 %v4889
    %v5177 = vunpack.c.l.b16 %v4890
    %v5178 = vunpack.c.h.b16 %v4890
    %v5179 = vunpack.c.l.b16 %v4891
    %v5180 = vunpack.c.h.b16 %v4891
    %v5181 = vunpack.c.l.b16 %v4892
    %v5182 = vunpack.c.h.b16 %v4892
    %v5183 = vunpack.c.l.b16 %v4893
    %v5184 = vunpack.c.h.b16 %v4893
    %v5185 = vunpack.c.l.b16 %v4894
    %v5186 = vunpack.c.h.b16 %v4894
    %v5187 = vunpack.c.l.b16 %v4895
    %v5188 = vunpack.c.h.b16 %v4895
    %v5189 = vunpack.c.l.b16 %v4896
    %v5190 = vunpack.c.h.b16 %v4896
    %v5191 = vunpack.c.l.b16 %v4897
    %v5192 = vunpack.c.h.b16 %v4897
    %v5193 = vunpack.c.l.b16 %v4898
    %v5194 = vunpack.c.h.b16 %v4898
    %v5195 = vunpack.c.l.b16 %v4899
    %v5196 = vunpack.c.h.b16 %v4899
    %v5197 = vunpack.c.l.b16 %v4900
    %v5198 = vunpack.c.h.b16 %v4900
    %v5199 = vunpack.c.l.b16 %v4901
    %v5200 = vunpack.c.h.b16 %v4901
    %v5201 = vunpack.c.l.b16 %v4902
    %v5202 = vunpack.c.h.b16 %v4902
    %v5203 = vunpack.c.l.b16 %v4903
    %v5204 = vunpack.c.h.b16 %v4903
    %v5205 = vunpack.c.l.b16 %v4904
    %v5206 = vunpack.c.h.b16 %v4904
    %v5207 = vunpack.c.l.b16 %v4905
    %v5208 = vunpack.c.h.b16 %v4905
    %v5209 = vunpack.c.l.b16 %v4906
    %v5210 = vunpack.c.h.b16 %v4906
    %v5211 = vunpack.c.l.b16 %v4907
    %v5212 = vunpack.c.h.b16 %v4907
    %v5213 = vunpack.c.l.b16 %v4908
    %v5214 = vunpack.c.h.b16 %v4908
    %v5215 = vunpack.c.l.b16 %v4909
    %v5216 = vunpack.c.h.b16 %v4909
    %v5217 = vunpack.c.l.b16 %v4910
    %v5218 = vunpack.c.h.b16 %v4910
    %v5219 = vunpack.c.l.b16 %v4911
    %v5220 = vunpack.c.h.b16 %v4911
    %v5221 = vunpack.c.l.b16 %v4912
    %v5222 = vunpack.c.h.b16 %v4912
    %v5223 = vunpack.c.l.b16 %v4913
    %v5224 = vunpack.c.h.b16 %v4913
    %v5225 = vunpack.c.l.b16 %v4914
    %v5226 = vunpack.c.h.b16 %v4914
    %v5227 = vunpack.c.l.b16 %v4915
    %v5228 = vunpack.c.h.b16 %v4915
    %v5229 = vunpack.c.l.b16 %v4916
    %v5230 = vunpack.c.h.b16 %v4916
    %v5231 = vunpack.c.l.b16 %v4917
    %v5232 = vunpack.c.h.b16 %v4917
    %v5233 = vunpack.c.l.b16 %v4918
    %v5234 = vunpack.c.h.b16 %v4918
    %v5235 = vunpack.c.l.b16 %v4919
    %v5236 = vunpack.c.h.b16 %v4919
    %v5237 = vunpack.c.l.b16 %v4920
    %v5238 = vunpack.c.h.b16 %v4920
    %v5239 = vunpack.c.l.b16 %v4921
    %v5240 = vunpack.c.h.b16 %v4921
    %v5241 = vunpack.c.l.b16 %v4922
    %v5242 = vunpack.c.h.b16 %v4922
    %v5243 = vunpack.c.l.b16 %v4923
    %v5244 = vunpack.c.h.b16 %v4923
    %v5245 = vunpack.c.l.b16 %v4924
    %v5246 = vunpack.c.h.b16 %v4924
    %v5247 = vunpack.c.l.b16 %v4925
    %v5248 = vunpack.c.h.b16 %v4925
    %v5249 = vunpack.c.l.b16 %v4926
    %v5250 = vunpack.c.h.b16 %v4926
    %v5251 = vunpack.c.l.b16 %v4927
    %v5252 = vunpack.c.h.b16 %v4927
    %v5253 = vunpack.c.l.b16 %v4928
    %v5254 = vunpack.c.h.b16 %v4928
    %v5255 = vunpack.c.l.b16 %v4929
    %v5256 = vunpack.c.h.b16 %v4929
    %v5257 = vunpack.c.l.b16 %v4930
    %v5258 = vunpack.c.h.b16 %v4930
    %v5259 = vunpack.c.l.b16 %v4931
    %v5260 = vunpack.c.h.b16 %v4931
    %v5261 = vunpack.c.l.b16 %v4932
    %v5262 = vunpack.c.h.b16 %v4932
    %v5263 = vunpack.c.l.b16 %v4933
    %v5264 = vunpack.c.h.b16 %v4933
    %v5265 = vunpack.c.l.b16 %v4934
    %v5266 = vunpack.c.h.b16 %v4934
    %v5267 = vunpack.c.l.b16 %v4935
    %v5268 = vunpack.c.h.b16 %v4935
    %v5269 = vunpack.c.l.b16 %v4936
    %v5270 = vunpack.c.h.b16 %v4936
    %v5271 = vunpack.c.l.b16 %v4937
    %v5272 = vunpack.c.h.b16 %v4937
    %v5273 = vunpack.c.l.b16 %v4938
    %v5274 = vunpack.c.h.b16 %v4938
    %v5275 = vunpack.c.l.b16 %v4939
    %v5276 = vunpack.c.h.b16 %v4939
    %v5277 = vunpack.c.l.b16 %v4940
    %v5278 = vunpack.c.h.b16 %v4940
    %v5279 = vunpack.c.l.b16 %v4941
    %v5280 = vunpack.c.h.b16 %v4941
    %v5281 = vunpack.c.l.b16 %v4942
    %v5282 = vunpack.c.h.b16 %v4942
    %v5283 = vunpack.c.l.b16 %v4943
    %v5284 = vunpack.c.h.b16 %v4943
    %v5285 = vunpack.c.l.b16 %v4944
    %v5286 = vunpack.c.h.b16 %v4944
    %v5287 = vunpack.c.l.b16 %v4945
    %v5288 = vunpack.c.h.b16 %v4945
    %v5289 = vunpack.c.l.b16 %v4946
    %v5290 = vunpack.c.h.b16 %v4946
    %v5291 = vunpack.c.l.b16 %v4947
    %v5292 = vunpack.c.h.b16 %v4947
    %v5293 = vunpack.c.l.b16 %v4948
    %v5294 = vunpack.c.h.b16 %v4948
    %v5295 = vunpack.c.l.b16 %v4949
    %v5296 = vunpack.c.h.b16 %v4949
    %v5297 = vunpack.c.l.b16 %v4950
    %v5298 = vunpack.c.h.b16 %v4950
    %v5299 = vunpack.c.l.b16 %v4951
    %v5300 = vunpack.c.h.b16 %v4951
    %v5301 = vunpack.c.l.b16 %v4952
    %v5302 = vunpack.c.h.b16 %v4952
    %v5303 = vunpack.c.l.b16 %v4953
    %v5304 = vunpack.c.h.b16 %v4953
    %v5305 = vunpack.c.l.b16 %v4954
    %v5306 = vunpack.c.h.b16 %v4954
    %v5307 = vunpack.c.l.b16 %v4955
    %v5308 = vunpack.c.h.b16 %v4955
    %v5309 = vunpack.c.l.b16 %v4956
    %v5310 = vunpack.c.h.b16 %v4956
    %v5311 = vunpack.c.l.b16 %v4957
    %v5312 = vunpack.c.h.b16 %v4957
    %v5313 = vunpack.c.l.b16 %v4958
    %v5314 = vunpack.c.h.b16 %v4958
    %v5315 = vunpack.c.l.b16 %v4959
    %v5316 = vunpack.c.h.b16 %v4959
    %v5317 = vunpack.c.l.b16 %v4960
    %v5318 = vunpack.c.h.b16 %v4960
    %v5319 = vunpack.c.l.b16 %v4961
    %v5320 = vunpack.c.h.b16 %v4961
    %v5321 = vunpack.c.l.b16 %v4962
    %v5322 = vunpack.c.h.b16 %v4962
    %v5323 = vunpack.c.l.b16 %v4963
    %v5324 = vunpack.c.h.b16 %v4963
    %v5325 = vunpack.c.l.b16 %v4964
    %v5326 = vunpack.c.h.b16 %v4964
    %v5327 = vunpack.c.l.b16 %v4965
    %v5328 = vunpack.c.h.b16 %v4965
    %v5329 = vunpack.c.l.b16 %v4966
    %v5330 = vunpack.c.h.b16 %v4966
    %v5331 = vunpack.c.l.b16 %v4967
    %v5332 = vunpack.c.h.b16 %v4967
    %v5333 = vunpack.c.l.b16 %v4968
    %v5334 = vunpack.c.h.b16 %v4968
    %v5335 = vunpack.c.l.b16 %v4969
    %v5336 = vunpack.c.h.b16 %v4969
    %v5337 = vunpack.c.l.b16 %v4970
    %v5338 = vunpack.c.h.b16 %v4970
    %v5339 = vunpack.c.l.b16 %v4971
    %v5340 = vunpack.c.h.b16 %v4971
    %v5341 = vunpack.c.l.b16 %v4972
    %v5342 = vunpack.c.h.b16 %v4972
    %v5343 = vunpack.c.l.b16 %v4973
    %v5344 = vunpack.c.h.b16 %v4973
    %v5345 = vunpack.c.l.b16 %v4974
    %v5346 = vunpack.c.h.b16 %v4974
    %v5347 = vunpack.c.l.b16 %v4975
    %v5348 = vunpack.c.h.b16 %v4975
    %v5349 = vunpack.c.l.b16 %v4976
    %v5350 = vunpack.c.h.b16 %v4976
    %v5351 = vunpack.c.l.b16 %v4977
    %v5352 = vunpack.c.h.b16 %v4977
    %v5353 = vunpack.c.l.b16 %v4978
    %v5354 = vunpack.c.h.b16 %v4978
    %v5355 = vunpack.c.l.b16 %v4979
    %v5356 = vunpack.c.h.b16 %v4979
    %v5357 = vunpack.c.l.b16 %v4980
    %v5358 = vunpack.c.h.b16 %v4980
    %v5359 = vunpack.c.l.b16 %v4981
    %v5360 = vunpack.c.h.b16 %v4981
    %v5361 = vunpack.c.l.b16 %v4982
    %v5362 = vunpack.c.h.b16 %v4982
    %v5363 = vunpack.c.l.b16 %v4983
    %v5364 = vunpack.c.h.b16 %v4983
    %v5365 = vunpack.c.l.b16 %v4984
    %v5366 = vunpack.c.h.b16 %v4984
    %v5367 = vunpack.c.l.b16 %v4985
    %v5368 = vunpack.c.h.b16 %v4985
    %v5369 = vunpack.c.l.b16 %v4986
    %v5370 = vunpack.c.h.b16 %v4986
    %v5371 = vpack.c.b16 %v5119, %v5115
    %v5372 = vpack.c.b16 %v5120, %v5116
    %v5373 = vpack.c.b16 %v5121, %v5117
    %v5374 = vpack.c.b16 %v5122, %v5118
    %v5375 = vpack.c.b16 %v5127, %v5123
    %v5376 = vpack.c.b16 %v5128, %v5124
    %v5377 = vpack.c.b16 %v5129, %v5125
    %v5378 = vpack.c.b16 %v5130, %v5126
    %v5379 = vpack.c.b16 %v5135, %v5131
    %v5380 = vpack.c.b16 %v5136, %v5132
    %v5381 = vpack.c.b16 %v5137, %v5133
    %v5382 = vpack.c.b16 %v5138, %v5134
    %v5383 = vpack.c.b16 %v5143, %v5139
    %v5384 = vpack.c.b16 %v5144, %v5140
    %v5385 = vpack.c.b16 %v5145, %v5141
    %v5386 = vpack.c.b16 %v5146, %v5142
    %v5387 = vpack.c.b16 %v5151, %v5147
    %v5388 = vpack.c.b16 %v5152, %v5148
    %v5389 = vpack.c.b16 %v5153, %v5149
    %v5390 = vpack.c.b16 %v5154, %v5150
    %v5391 = vpack.c.b16 %v5159, %v5155
    %v5392 = vpack.c.b16 %v5160, %v5156
    %v5393 = vpack.c.b16 %v5161, %v5157
    %v5394 = vpack.c.b16 %v5162, %v5158
    %v5395 = vpack.c.b16 %v5167, %v5163
    %v5396 = vpack.c.b16 %v5168, %v5164
    %v5397 = vpack.c.b16 %v5169, %v5165
    %v5398 = vpack.c.b16 %v5170, %v5166
    %v5399 = vpack.c.b16 %v5175, %v5171
    %v5400 = vpack.c.b16 %v5176, %v5172
    %v5401 = vpack.c.b16 %v5177, %v5173
    %v5402 = vpack.c.b16 %v5178, %v5174
    %v5403 = vpack.c.b16 %v5183, %v5179
    %v5404 = vpack.c.b16 %v5184, %v5180
    %v5405 = vpack.c.b16 %v5185, %v5181
    %v5406 = vpack.c.b16 %v5186, %v5182
    %v5407 = vpack.c.b16 %v5191, %v5187
    %v5408 = vpack.c.b16 %v5192, %v5188
    %v5409 = vpack.c.b16 %v5193, %v5189
    %v5410 = vpack.c.b16 %v5194, %v5190
    %v5411 = vpack.c.b16 %v5199, %v5195
    %v5412 = vpack.c.b16 %v5200, %v5196
    %v5413 = vpack.c.b16 %v5201, %v5197
    %v5414 = vpack.c.b16 %v5202, %v5198
    %v5415 = vpack.c.b16 %v5207, %v5203
    %v5416 = vpack.c.b16 %v5208, %v5204
    %v5417 = vpack.c.b16 %v5209, %v5205
    %v5418 = vpack.c.b16 %v5210, %v5206
    %v5419 = vpack.c.b16 %v5215, %v5211
    %v5420 = vpack.c.b16 %v5216, %v5212
    %v5421 = vpack.c.b16 %v5217, %v5213
    %v5422 = vpack.c.b16 %v5218, %v5214
    %v5423 = vpack.c.b16 %v5223, %v5219
    %v5424 = vpack.c.b16 %v5224, %v5220
    %v5425 = vpack.c.b16 %v5225, %v5221
    %v5426 = vpack.c.b16 %v5226, %v5222
    %v5427 = vpack.c.b16 %v5231, %v5227
    %v5428 = vpack.c.b16 %v5232, %v5228
    %v5429 = vpack.c.b16 %v5233, %v5229
    %v5430 = vpack.c.b16 %v5234, %v5230
    %v5431 = vpack.c.b16 %v5239, %v5235
    %v5432 = vpack.c.b16 %v5240, %v5236
    %v5433 = vpack.c.b16 %v5241, %v5237
    %v5434 = vpack.c.b16 %v5242, %v5238
    %v5435 = vpack.c.b16 %v5247, %v5243
    %v5436 = vpack.c.b16 %v5248, %v5244
    %v5437 = vpack.c.b16 %v5249, %v5245
    %v5438 = vpack.c.b16 %v5250, %v5246
    %v5439 = vpack.c.b16 %v5255, %v5251
    %v5440 = vpack.c.b16 %v5256, %v5252
    %v5441 = vpack.c.b16 %v5257, %v5253
    %v5442 = vpack.c.b16 %v5258, %v5254
    %v5443 = vpack.c.b16 %v5263, %v5259
    %v5444 = vpack.c.b16 %v5264, %v5260
    %v5445 = vpack.c.b16 %v5265, %v5261
    %v5446 = vpack.c.b16 %v5266, %v5262
    %v5447 = vpack.c.b16 %v5271, %v5267
    %v5448 = vpack.c.b16 %v5272, %v5268
    %v5449 = vpack.c.b16 %v5273, %v5269
    %v5450 = vpack.c.b16 %v5274, %v5270
    %v5451 = vpack.c.b16 %v5279, %v5275
    %v5452 = vpack.c.b16 %v5280, %v5276
    %v5453 = vpack.c.b16 %v5281, %v5277
    %v5454 = vpack.c.b16 %v5282, %v5278
    %v5455 = vpack.c.b16 %v5287, %v5283
    %v5456 = vpack.c.b16 %v5288, %v5284
    %v5457 = vpack.c.b16 %v5289, %v5285
    %v5458 = vpack.c.b16 %v5290, %v5286
    %v5459 = vpack.c.b16 %v5295, %v5291
    %v5460 = vpack.c.b16 %v5296, %v5292
    %v5461 = vpack.c.b16 %v5297, %v5293
    %v5462 = vpack.c.b16 %v5298, %v5294
    %v5463 = vpack.c.b16 %v5303, %v5299
    %v5464 = vpack.c.b16 %v5304, %v5300
    %v5465 = vpack.c.b16 %v5305, %v5301
    %v5466 = vpack.c.b16 %v5306, %v5302
    %v5467 = vpack.c.b16 %v5311, %v5307
    %v5468 = vpack.c.b16 %v5312, %v5308
    %v5469 = vpack.c.b16 %v5313, %v5309
    %v5470 = vpack.c.b16 %v5314, %v5310
    %v5471 = vpack.c.b16 %v5319, %v5315
    %v5472 = vpack.c.b16 %v5320, %v5316
    %v5473 = vpack.c.b16 %v5321, %v5317
    %v5474 = vpack.c.b16 %v5322, %v5318
    %v5475 = vpack.c.b16 %v5327, %v5323
    %v5476 = vpack.c.b16 %v5328, %v5324
    %v5477 = vpack.c.b16 %v5329, %v5325
    %v5478 = vpack.c.b16 %v5330, %v5326
    %v5479 = vpack.c.b16 %v5335, %v5331
    %v5480 = vpack.c.b16 %v5336, %v5332
    %v5481 = vpack.c.b16 %v5337, %v5333
    %v5482 = vpack.c.b16 %v5338, %v5334
    %v5483 = vpack.c.b16 %v5343, %v5339
    %v5484 = vpack.c.b16 %v5344, %v5340
    %v5485 = vpack.c.b16 %v5345, %v5341
    %v5486 = vpack.c.b16 %v5346, %v5342
    %v5487 = vpack.c.b16 %v5351, %v5347
    %v5488 = vpack.c.b16 %v5352, %v5348
    %v5489 = vpack.c.b16 %v5353, %v5349
    %v5490 = vpack.c.b16 %v5354, %v5350
    %v5491 = vpack.c.b16 %v5359, %v5355
    %v5492 = vpack.c.b16 %v5360, %v5356
    %v5493 = vpack.c.b16 %v5361, %v5357
    %v5494 = vpack.c.b16 %v5362, %v5358
    %v5495 = vpack.c.b16 %v5367, %v5363
    %v5496 = vpack.c.b16 %v5368, %v5364
    %v5497 = vpack.c.b16 %v5369, %v5365
    %v5498 = vpack.c.b16 %v5370, %v5366
    %5627 = vmatpush.bf16.msra.mxu0 %v5399
    %5628 = vmatpush.bf16.msra.mxu0 %v5395
    %5629 = vmatpush.bf16.msra.mxu0 %v5391
    %5630 = vmatpush.bf16.msra.mxu0 %v5387
    %5631 = vmatpush.bf16.msra.mxu0 %v5383
    %5632 = vmatpush.bf16.msra.mxu0 %v5379
    %5633 = vmatpush.bf16.msra.mxu0 %v5375
    %5634 = vmatpush.bf16.msra.mxu0 %v5371
    %5635 = vmatmul.bf16.gmra.mxu0 %v4477
    %v5636 = vpop.f32.mrf.mxu0
    %v5637 = vadd.f32 0.0, %v5636
    %v5638 = vpop.f32.mrf.mxu0
    %v5639 = vadd.f32 0.0, %v5638
    %5640 = vdwg.mxu0
    %5641 = vmatpush.bf16.msra.mxu0 %v5431
    %5642 = vmatpush.bf16.msra.mxu0 %v5427
    %5643 = vmatpush.bf16.msra.mxu0 %v5423
    %5644 = vmatpush.bf16.msra.mxu0 %v5419
    %5645 = vmatpush.bf16.msra.mxu0 %v5415
    %5646 = vmatpush.bf16.msra.mxu0 %v5411
    %5647 = vmatpush.bf16.msra.mxu0 %v5407
    %5648 = vmatpush.bf16.msra.mxu0 %v5403
    %5649 = vmatmul.bf16.gmra.mxu0 %v4478
    %v5650 = vpop.f32.mrf.mxu0
    %v5651 = vadd.f32 %v5637, %v5650
    %v5652 = vpop.f32.mrf.mxu0
    %v5653 = vadd.f32 %v5639, %v5652
    %5654 = vdwg.mxu0
    %5655 = vmatpush.bf16.msra.mxu0 %v5463
    %5656 = vmatpush.bf16.msra.mxu0 %v5459
    %5657 = vmatpush.bf16.msra.mxu0 %v5455
    %5658 = vmatpush.bf16.msra.mxu0 %v5451
    %5659 = vmatpush.bf16.msra.mxu0 %v5447
    %5660 = vmatpush.bf16.msra.mxu0 %v5443
    %5661 = vmatpush.bf16.msra.mxu0 %v5439
    %5662 = vmatpush.bf16.msra.mxu0 %v5435
    %5663 = vmatmul.bf16.gmra.mxu0 %v4479
    %v5664 = vpop.f32.mrf.mxu0
    %v5665 = vadd.f32 %v5651, %v5664
    %v5666 = vpop.f32.mrf.mxu0
    %v5667 = vadd.f32 %v5653, %v5666
    %5668 = vdwg.mxu0
    %5669 = vmatpush.bf16.msra.mxu0 %v5495
    %5670 = vmatpush.bf16.msra.mxu0 %v5491
    %5671 = vmatpush.bf16.msra.mxu0 %v5487
    %5672 = vmatpush.bf16.msra.mxu0 %v5483
    %5673 = vmatpush.bf16.msra.mxu0 %v5479
    %5674 = vmatpush.bf16.msra.mxu0 %v5475
    %5675 = vmatpush.bf16.msra.mxu0 %v5471
    %5676 = vmatpush.bf16.msra.mxu0 %v5467
    %5677 = vmatmul.bf16.gmra.mxu0 %v4480
    %v5678 = vpop.f32.mrf.mxu0
    %v5679 = vadd.f32 %v5665, %v5678
    %v5680 = vpop.f32.mrf.mxu0
    %v5681 = vadd.f32 %v5667, %v5680
    %5682 = vdwg.mxu0
    %5683 = vmatpush.bf16.msra.mxu0 %v5400
    %5684 = vmatpush.bf16.msra.mxu0 %v5396
    %5685 = vmatpush.bf16.msra.mxu0 %v5392
    %5686 = vmatpush.bf16.msra.mxu0 %v5388
    %5687 = vmatpush.bf16.msra.mxu0 %v5384
    %5688 = vmatpush.bf16.msra.mxu0 %v5380
    %5689 = vmatpush.bf16.msra.mxu0 %v5376
    %5690 = vmatpush.bf16.msra.mxu0 %v5372
    %5691 = vmatmul.bf16.gmra.mxu0 %v4477
    %v5692 = vpop.f32.mrf.mxu0
    %v5693 = vadd.f32 0.0, %v5692
    %v5694 = vpop.f32.mrf.mxu0
    %v5695 = vadd.f32 0.0, %v5694
    %5696 = vdwg.mxu0
    %5697 = vmatpush.bf16.msra.mxu0 %v5432
    %5698 = vmatpush.bf16.msra.mxu0 %v5428
    %5699 = vmatpush.bf16.msra.mxu0 %v5424
    %5700 = vmatpush.bf16.msra.mxu0 %v5420
    %5701 = vmatpush.bf16.msra.mxu0 %v5416
    %5702 = vmatpush.bf16.msra.mxu0 %v5412
    %5703 = vmatpush.bf16.msra.mxu0 %v5408
    %5704 = vmatpush.bf16.msra.mxu0 %v5404
    %5705 = vmatmul.bf16.gmra.mxu0 %v4478
    %v5706 = vpop.f32.mrf.mxu0
    %v5707 = vadd.f32 %v5693, %v5706
    %v5708 = vpop.f32.mrf.mxu0
    %v5709 = vadd.f32 %v5695, %v5708
    %5710 = vdwg.mxu0
    %5711 = vmatpush.bf16.msra.mxu0 %v5464
    %5712 = vmatpush.bf16.msra.mxu0 %v5460
    %5713 = vmatpush.bf16.msra.mxu0 %v5456
    %5714 = vmatpush.bf16.msra.mxu0 %v5452
    %5715 = vmatpush.bf16.msra.mxu0 %v5448
    %5716 = vmatpush.bf16.msra.mxu0 %v5444
    %5717 = vmatpush.bf16.msra.mxu0 %v5440
    %5718 = vmatpush.bf16.msra.mxu0 %v5436
    %5719 = vmatmul.bf16.gmra.mxu0 %v4479
    %v5720 = vpop.f32.mrf.mxu0
    %v5721 = vadd.f32 %v5707, %v5720
    %v5722 = vpop.f32.mrf.mxu0
    %v5723 = vadd.f32 %v5709, %v5722
    %5724 = vdwg.mxu0
    %5725 = vmatpush.bf16.msra.mxu0 %v5496
    %5726 = vmatpush.bf16.msra.mxu0 %v5492
    %5727 = vmatpush.bf16.msra.mxu0 %v5488
    %5728 = vmatpush.bf16.msra.mxu0 %v5484
    %5729 = vmatpush.bf16.msra.mxu0 %v5480
    %5730 = vmatpush.bf16.msra.mxu0 %v5476
    %5731 = vmatpush.bf16.msra.mxu0 %v5472
    %5732 = vmatpush.bf16.msra.mxu0 %v5468
    %5733 = vmatmul.bf16.gmra.mxu0 %v4480
    %v5734 = vpop.f32.mrf.mxu0
    %v5735 = vadd.f32 %v5721, %v5734
    %v5736 = vpop.f32.mrf.mxu0
    %v5737 = vadd.f32 %v5723, %v5736
    %5738 = vdwg.mxu0
    %5739 = vmatpush.bf16.msra.mxu0 %v5401
    %5740 = vmatpush.bf16.msra.mxu0 %v5397
    %5741 = vmatpush.bf16.msra.mxu0 %v5393
    %5742 = vmatpush.bf16.msra.mxu0 %v5389
    %5743 = vmatpush.bf16.msra.mxu0 %v5385
    %5744 = vmatpush.bf16.msra.mxu0 %v5381
    %5745 = vmatpush.bf16.msra.mxu0 %v5377
    %5746 = vmatpush.bf16.msra.mxu0 %v5373
    %5747 = vmatmul.bf16.gmra.mxu0 %v4477
    %v5748 = vpop.f32.mrf.mxu0
    %v5749 = vadd.f32 0.0, %v5748
    %v5750 = vpop.f32.mrf.mxu0
    %v5751 = vadd.f32 0.0, %v5750
    %5752 = vdwg.mxu0
    %5753 = vmatpush.bf16.msra.mxu0 %v5433
    %5754 = vmatpush.bf16.msra.mxu0 %v5429
    %5755 = vmatpush.bf16.msra.mxu0 %v5425
    %5756 = vmatpush.bf16.msra.mxu0 %v5421
    %5757 = vmatpush.bf16.msra.mxu0 %v5417
    %5758 = vmatpush.bf16.msra.mxu0 %v5413
    %5759 = vmatpush.bf16.msra.mxu0 %v5409
    %5760 = vmatpush.bf16.msra.mxu0 %v5405
    %5761 = vmatmul.bf16.gmra.mxu0 %v4478
    %v5762 = vpop.f32.mrf.mxu0
    %v5763 = vadd.f32 %v5749, %v5762
    %v5764 = vpop.f32.mrf.mxu0
    %v5765 = vadd.f32 %v5751, %v5764
    %5766 = vdwg.mxu0
    %5767 = vmatpush.bf16.msra.mxu0 %v5465
    %5768 = vmatpush.bf16.msra.mxu0 %v5461
    %5769 = vmatpush.bf16.msra.mxu0 %v5457
    %5770 = vmatpush.bf16.msra.mxu0 %v5453
    %5771 = vmatpush.bf16.msra.mxu0 %v5449
    %5772 = vmatpush.bf16.msra.mxu0 %v5445
    %5773 = vmatpush.bf16.msra.mxu0 %v5441
    %5774 = vmatpush.bf16.msra.mxu0 %v5437
    %5775 = vmatmul.bf16.gmra.mxu0 %v4479
    %v5776 = vpop.f32.mrf.mxu0
    %v5777 = vadd.f32 %v5763, %v5776
    %v5778 = vpop.f32.mrf.mxu0
    %v5779 = vadd.f32 %v5765, %v5778
    %5780 = vdwg.mxu0
    %5781 = vmatpush.bf16.msra.mxu0 %v5497
    %5782 = vmatpush.bf16.msra.mxu0 %v5493
    %5783 = vmatpush.bf16.msra.mxu0 %v5489
    %5784 = vmatpush.bf16.msra.mxu0 %v5485
    %5785 = vmatpush.bf16.msra.mxu0 %v5481
    %5786 = vmatpush.bf16.msra.mxu0 %v5477
    %5787 = vmatpush.bf16.msra.mxu0 %v5473
    %5788 = vmatpush.bf16.msra.mxu0 %v5469
    %5789 = vmatmul.bf16.gmra.mxu0 %v4480
    %v5790 = vpop.f32.mrf.mxu0
    %v5791 = vadd.f32 %v5777, %v5790
    %v5792 = vpop.f32.mrf.mxu0
    %v5793 = vadd.f32 %v5779, %v5792
    %5794 = vdwg.mxu0
    %5795 = vmatpush.bf16.msra.mxu0 %v5402
    %5796 = vmatpush.bf16.msra.mxu0 %v5398
    %5797 = vmatpush.bf16.msra.mxu0 %v5394
    %5798 = vmatpush.bf16.msra.mxu0 %v5390
    %5799 = vmatpush.bf16.msra.mxu0 %v5386
    %5800 = vmatpush.bf16.msra.mxu0 %v5382
    %5801 = vmatpush.bf16.msra.mxu0 %v5378
    %5802 = vmatpush.bf16.msra.mxu0 %v5374
    %5803 = vmatmul.bf16.gmra.mxu0 %v4477
    %v5804 = vpop.f32.mrf.mxu0
    %v5805 = vadd.f32 0.0, %v5804
    %v5806 = vpop.f32.mrf.mxu0
    %v5807 = vadd.f32 0.0, %v5806
    %5808 = vdwg.mxu0
    %5809 = vmatpush.bf16.msra.mxu0 %v5434
    %5810 = vmatpush.bf16.msra.mxu0 %v5430
    %5811 = vmatpush.bf16.msra.mxu0 %v5426
    %5812 = vmatpush.bf16.msra.mxu0 %v5422
    %5813 = vmatpush.bf16.msra.mxu0 %v5418
    %5814 = vmatpush.bf16.msra.mxu0 %v5414
    %5815 = vmatpush.bf16.msra.mxu0 %v5410
    %5816 = vmatpush.bf16.msra.mxu0 %v5406
    %5817 = vmatmul.bf16.gmra.mxu0 %v4478
    %v5818 = vpop.f32.mrf.mxu0
    %v5819 = vadd.f32 %v5805, %v5818
    %v5820 = vpop.f32.mrf.mxu0
    %v5821 = vadd.f32 %v5807, %v5820
    %5822 = vdwg.mxu0
    %5823 = vmatpush.bf16.msra.mxu0 %v5466
    %5824 = vmatpush.bf16.msra.mxu0 %v5462
    %5825 = vmatpush.bf16.msra.mxu0 %v5458
    %5826 = vmatpush.bf16.msra.mxu0 %v5454
    %5827 = vmatpush.bf16.msra.mxu0 %v5450
    %5828 = vmatpush.bf16.msra.mxu0 %v5446
    %5829 = vmatpush.bf16.msra.mxu0 %v5442
    %5830 = vmatpush.bf16.msra.mxu0 %v5438
    %5831 = vmatmul.bf16.gmra.mxu0 %v4479
    %v5832 = vpop.f32.mrf.mxu0
    %v5833 = vadd.f32 %v5819, %v5832
    %v5834 = vpop.f32.mrf.mxu0
    %v5835 = vadd.f32 %v5821, %v5834
    %5836 = vdwg.mxu0
    %5837 = vmatpush.bf16.msra.mxu0 %v5498
    %5838 = vmatpush.bf16.msra.mxu0 %v5494
    %5839 = vmatpush.bf16.msra.mxu0 %v5490
    %5840 = vmatpush.bf16.msra.mxu0 %v5486
    %5841 = vmatpush.bf16.msra.mxu0 %v5482
    %5842 = vmatpush.bf16.msra.mxu0 %v5478
    %5843 = vmatpush.bf16.msra.mxu0 %v5474
    %5844 = vmatpush.bf16.msra.mxu0 %v5470
    %5845 = vmatmul.bf16.gmra.mxu0 %v4480
    %v5846 = vpop.f32.mrf.mxu0
    %v5847 = vadd.f32 %v5833, %v5846
    %v5848 = vpop.f32.mrf.mxu0
    %v5849 = vadd.f32 %v5835, %v5848
    %5850 = vdwg.mxu0
    %v5915 = vunpack.c.l.b16 %v4795
    %v5916 = vunpack.c.h.b16 %v4795
    %v5917 = vunpack.c.l.b16 %v4796
    %v5918 = vunpack.c.h.b16 %v4796
    %v5919 = vunpack.c.l.b16 %v4797
    %v5920 = vunpack.c.h.b16 %v4797
    %v5921 = vunpack.c.l.b16 %v4798
    %v5922 = vunpack.c.h.b16 %v4798
    %v5923 = vunpack.c.l.b16 %v4799
    %v5924 = vunpack.c.h.b16 %v4799
    %v5925 = vunpack.c.l.b16 %v4800
    %v5926 = vunpack.c.h.b16 %v4800
    %v5927 = vunpack.c.l.b16 %v4801
    %v5928 = vunpack.c.h.b16 %v4801
    %v5929 = vunpack.c.l.b16 %v4802
    %v5930 = vunpack.c.h.b16 %v4802
    %v5931 = vunpack.c.l.b16 %v4803
    %v5932 = vunpack.c.h.b16 %v4803
    %v5933 = vunpack.c.l.b16 %v4804
    %v5934 = vunpack.c.h.b16 %v4804
    %v5935 = vunpack.c.l.b16 %v4805
    %v5936 = vunpack.c.h.b16 %v4805
    %v5937 = vunpack.c.l.b16 %v4806
    %v5938 = vunpack.c.h.b16 %v4806
    %v5939 = vunpack.c.l.b16 %v4807
    %v5940 = vunpack.c.h.b16 %v4807
    %v5941 = vunpack.c.l.b16 %v4808
    %v5942 = vunpack.c.h.b16 %v4808
    %v5943 = vunpack.c.l.b16 %v4809
    %v5944 = vunpack.c.h.b16 %v4809
    %v5945 = vunpack.c.l.b16 %v4810
    %v5946 = vunpack.c.h.b16 %v4810
    %v5947 = vunpack.c.l.b16 %v4811
    %v5948 = vunpack.c.h.b16 %v4811
    %v5949 = vunpack.c.l.b16 %v4812
    %v5950 = vunpack.c.h.b16 %v4812
    %v5951 = vunpack.c.l.b16 %v4813
    %v5952 = vunpack.c.h.b16 %v4813
    %v5953 = vunpack.c.l.b16 %v4814
    %v5954 = vunpack.c.h.b16 %v4814
    %v5955 = vunpack.c.l.b16 %v4815
    %v5956 = vunpack.c.h.b16 %v4815
    %v5957 = vunpack.c.l.b16 %v4816
    %v5958 = vunpack.c.h.b16 %v4816
    %v5959 = vunpack.c.l.b16 %v4817
    %v5960 = vunpack.c.h.b16 %v4817
    %v5961 = vunpack.c.l.b16 %v4818
    %v5962 = vunpack.c.h.b16 %v4818
    %v5963 = vunpack.c.l.b16 %v4819
    %v5964 = vunpack.c.h.b16 %v4819
    %v5965 = vunpack.c.l.b16 %v4820
    %v5966 = vunpack.c.h.b16 %v4820
    %v5967 = vunpack.c.l.b16 %v4821
    %v5968 = vunpack.c.h.b16 %v4821
    %v5969 = vunpack.c.l.b16 %v4822
    %v5970 = vunpack.c.h.b16 %v4822
    %v5971 = vunpack.c.l.b16 %v4823
    %v5972 = vunpack.c.h.b16 %v4823
    %v5973 = vunpack.c.l.b16 %v4824
    %v5974 = vunpack.c.h.b16 %v4824
    %v5975 = vunpack.c.l.b16 %v4825
    %v5976 = vunpack.c.h.b16 %v4825
    %v5977 = vunpack.c.l.b16 %v4826
    %v5978 = vunpack.c.h.b16 %v4826
    %v5979 = vunpack.c.l.b16 %v4827
    %v5980 = vunpack.c.h.b16 %v4827
    %v5981 = vunpack.c.l.b16 %v4828
    %v5982 = vunpack.c.h.b16 %v4828
    %v5983 = vunpack.c.l.b16 %v4829
    %v5984 = vunpack.c.h.b16 %v4829
    %v5985 = vunpack.c.l.b16 %v4830
    %v5986 = vunpack.c.h.b16 %v4830
    %v5987 = vunpack.c.l.b16 %v4831
    %v5988 = vunpack.c.h.b16 %v4831
    %v5989 = vunpack.c.l.b16 %v4832
    %v5990 = vunpack.c.h.b16 %v4832
    %v5991 = vunpack.c.l.b16 %v4833
    %v5992 = vunpack.c.h.b16 %v4833
    %v5993 = vunpack.c.l.b16 %v4834
    %v5994 = vunpack.c.h.b16 %v4834
    %v5995 = vunpack.c.l.b16 %v4835
    %v5996 = vunpack.c.h.b16 %v4835
    %v5997 = vunpack.c.l.b16 %v4836
    %v5998 = vunpack.c.h.b16 %v4836
    %v5999 = vunpack.c.l.b16 %v4837
    %v6000 = vunpack.c.h.b16 %v4837
    %v6001 = vunpack.c.l.b16 %v4838
    %v6002 = vunpack.c.h.b16 %v4838
    %v6003 = vunpack.c.l.b16 %v4839
    %v6004 = vunpack.c.h.b16 %v4839
    %v6005 = vunpack.c.l.b16 %v4840
    %v6006 = vunpack.c.h.b16 %v4840
    %v6007 = vunpack.c.l.b16 %v4841
    %v6008 = vunpack.c.h.b16 %v4841
    %v6009 = vunpack.c.l.b16 %v4842
    %v6010 = vunpack.c.h.b16 %v4842
    %v6011 = vunpack.c.l.b16 %v4843
    %v6012 = vunpack.c.h.b16 %v4843
    %v6013 = vunpack.c.l.b16 %v4844
    %v6014 = vunpack.c.h.b16 %v4844
    %v6015 = vunpack.c.l.b16 %v4845
    %v6016 = vunpack.c.h.b16 %v4845
    %v6017 = vunpack.c.l.b16 %v4846
    %v6018 = vunpack.c.h.b16 %v4846
    %v6019 = vunpack.c.l.b16 %v4847
    %v6020 = vunpack.c.h.b16 %v4847
    %v6021 = vunpack.c.l.b16 %v4848
    %v6022 = vunpack.c.h.b16 %v4848
    %v6023 = vunpack.c.l.b16 %v4849
    %v6024 = vunpack.c.h.b16 %v4849
    %v6025 = vunpack.c.l.b16 %v4850
    %v6026 = vunpack.c.h.b16 %v4850
    %v6027 = vunpack.c.l.b16 %v4851
    %v6028 = vunpack.c.h.b16 %v4851
    %v6029 = vunpack.c.l.b16 %v4852
    %v6030 = vunpack.c.h.b16 %v4852
    %v6031 = vunpack.c.l.b16 %v4853
    %v6032 = vunpack.c.h.b16 %v4853
    %v6033 = vunpack.c.l.b16 %v4854
    %v6034 = vunpack.c.h.b16 %v4854
    %v6035 = vunpack.c.l.b16 %v4855
    %v6036 = vunpack.c.h.b16 %v4855
    %v6037 = vunpack.c.l.b16 %v4856
    %v6038 = vunpack.c.h.b16 %v4856
    %v6039 = vunpack.c.l.b16 %v4857
    %v6040 = vunpack.c.h.b16 %v4857
    %v6041 = vunpack.c.l.b16 %v4858
    %v6042 = vunpack.c.h.b16 %v4858
    %v6043 = vpack.c.b16 %v5919, %v5915
    %v6044 = vpack.c.b16 %v5920, %v5916
    %v6045 = vpack.c.b16 %v5921, %v5917
    %v6046 = vpack.c.b16 %v5922, %v5918
    %v6047 = vpack.c.b16 %v5927, %v5923
    %v6048 = vpack.c.b16 %v5928, %v5924
    %v6049 = vpack.c.b16 %v5929, %v5925
    %v6050 = vpack.c.b16 %v5930, %v5926
    %v6051 = vpack.c.b16 %v5935, %v5931
    %v6052 = vpack.c.b16 %v5936, %v5932
    %v6053 = vpack.c.b16 %v5937, %v5933
    %v6054 = vpack.c.b16 %v5938, %v5934
    %v6055 = vpack.c.b16 %v5943, %v5939
    %v6056 = vpack.c.b16 %v5944, %v5940
    %v6057 = vpack.c.b16 %v5945, %v5941
    %v6058 = vpack.c.b16 %v5946, %v5942
    %v6059 = vpack.c.b16 %v5951, %v5947
    %v6060 = vpack.c.b16 %v5952, %v5948
    %v6061 = vpack.c.b16 %v5953, %v5949
    %v6062 = vpack.c.b16 %v5954, %v5950
    %v6063 = vpack.c.b16 %v5959, %v5955
    %v6064 = vpack.c.b16 %v5960, %v5956
    %v6065 = vpack.c.b16 %v5961, %v5957
    %v6066 = vpack.c.b16 %v5962, %v5958
    %v6067 = vpack.c.b16 %v5967, %v5963
    %v6068 = vpack.c.b16 %v5968, %v5964
    %v6069 = vpack.c.b16 %v5969, %v5965
    %v6070 = vpack.c.b16 %v5970, %v5966
    %v6071 = vpack.c.b16 %v5975, %v5971
    %v6072 = vpack.c.b16 %v5976, %v5972
    %v6073 = vpack.c.b16 %v5977, %v5973
    %v6074 = vpack.c.b16 %v5978, %v5974
    %v6075 = vpack.c.b16 %v5983, %v5979
    %v6076 = vpack.c.b16 %v5984, %v5980
    %v6077 = vpack.c.b16 %v5985, %v5981
    %v6078 = vpack.c.b16 %v5986, %v5982
    %v6079 = vpack.c.b16 %v5991, %v5987
    %v6080 = vpack.c.b16 %v5992, %v5988
    %v6081 = vpack.c.b16 %v5993, %v5989
    %v6082 = vpack.c.b16 %v5994, %v5990
    %v6083 = vpack.c.b16 %v5999, %v5995
    %v6084 = vpack.c.b16 %v6000, %v5996
    %v6085 = vpack.c.b16 %v6001, %v5997
    %v6086 = vpack.c.b16 %v6002, %v5998
    %v6087 = vpack.c.b16 %v6007, %v6003
    %v6088 = vpack.c.b16 %v6008, %v6004
    %v6089 = vpack.c.b16 %v6009, %v6005
    %v6090 = vpack.c.b16 %v6010, %v6006
    %v6091 = vpack.c.b16 %v6015, %v6011
    %v6092 = vpack.c.b16 %v6016, %v6012
    %v6093 = vpack.c.b16 %v6017, %v6013
    %v6094 = vpack.c.b16 %v6018, %v6014
    %v6095 = vpack.c.b16 %v6023, %v6019
    %v6096 = vpack.c.b16 %v6024, %v6020
    %v6097 = vpack.c.b16 %v6025, %v6021
    %v6098 = vpack.c.b16 %v6026, %v6022
    %v6099 = vpack.c.b16 %v6031, %v6027
    %v6100 = vpack.c.b16 %v6032, %v6028
    %v6101 = vpack.c.b16 %v6033, %v6029
    %v6102 = vpack.c.b16 %v6034, %v6030
    %v6103 = vpack.c.b16 %v6039, %v6035
    %v6104 = vpack.c.b16 %v6040, %v6036
    %v6105 = vpack.c.b16 %v6041, %v6037
    %v6106 = vpack.c.b16 %v6042, %v6038
    %6171 = vmatpush.bf16.msra.mxu0 %v6071
    %6172 = vmatpush.bf16.msra.mxu0 %v6067
    %6173 = vmatpush.bf16.msra.mxu0 %v6063
    %6174 = vmatpush.bf16.msra.mxu0 %v6059
    %6175 = vmatpush.bf16.msra.mxu0 %v6055
    %6176 = vmatpush.bf16.msra.mxu0 %v6051
    %6177 = vmatpush.bf16.msra.mxu0 %v6047
    %6178 = vmatpush.bf16.msra.mxu0 %v6043
    %6179 = vmatmul.bf16.gmra.mxu0 %v2183
    %v6180 = vpop.f32.mrf.mxu0
    %v6181 = vadd.f32 %v5679, %v6180
    %v6182 = vpop.f32.mrf.mxu0
    %v6183 = vadd.f32 %v5681, %v6182
    %6184 = vdwg.mxu0
    %6185 = vmatpush.bf16.msra.mxu0 %v6103
    %6186 = vmatpush.bf16.msra.mxu0 %v6099
    %6187 = vmatpush.bf16.msra.mxu0 %v6095
    %6188 = vmatpush.bf16.msra.mxu0 %v6091
    %6189 = vmatpush.bf16.msra.mxu0 %v6087
    %6190 = vmatpush.bf16.msra.mxu0 %v6083
    %6191 = vmatpush.bf16.msra.mxu0 %v6079
    %6192 = vmatpush.bf16.msra.mxu0 %v6075
    %6193 = vmatmul.bf16.gmra.mxu0 %v2184
    %v6194 = vpop.f32.mrf.mxu0
    %v6195 = vadd.f32 %v6181, %v6194
    %v6196 = vpop.f32.mrf.mxu0
    %v6197 = vadd.f32 %v6183, %v6196
    %6198 = vdwg.mxu0
    %6199 = vmatpush.bf16.msra.mxu0 %v6072
    %6200 = vmatpush.bf16.msra.mxu0 %v6068
    %6201 = vmatpush.bf16.msra.mxu0 %v6064
    %6202 = vmatpush.bf16.msra.mxu0 %v6060
    %6203 = vmatpush.bf16.msra.mxu0 %v6056
    %6204 = vmatpush.bf16.msra.mxu0 %v6052
    %6205 = vmatpush.bf16.msra.mxu0 %v6048
    %6206 = vmatpush.bf16.msra.mxu0 %v6044
    %6207 = vmatmul.bf16.gmra.mxu0 %v2183
    %v6208 = vpop.f32.mrf.mxu0
    %v6209 = vadd.f32 %v5735, %v6208
    %v6210 = vpop.f32.mrf.mxu0
    %v6211 = vadd.f32 %v5737, %v6210
    %6212 = vdwg.mxu0
    %6213 = vmatpush.bf16.msra.mxu0 %v6104
    %6214 = vmatpush.bf16.msra.mxu0 %v6100
    %6215 = vmatpush.bf16.msra.mxu0 %v6096
    %6216 = vmatpush.bf16.msra.mxu0 %v6092
    %6217 = vmatpush.bf16.msra.mxu0 %v6088
    %6218 = vmatpush.bf16.msra.mxu0 %v6084
    %6219 = vmatpush.bf16.msra.mxu0 %v6080
    %6220 = vmatpush.bf16.msra.mxu0 %v6076
    %6221 = vmatmul.bf16.gmra.mxu0 %v2184
    %v6222 = vpop.f32.mrf.mxu0
    %v6223 = vadd.f32 %v6209, %v6222
    %v6224 = vpop.f32.mrf.mxu0
    %v6225 = vadd.f32 %v6211, %v6224
    %6226 = vdwg.mxu0
    %6227 = vmatpush.bf16.msra.mxu0 %v6073
    %6228 = vmatpush.bf16.msra.mxu0 %v6069
    %6229 = vmatpush.bf16.msra.mxu0 %v6065
    %6230 = vmatpush.bf16.msra.mxu0 %v6061
    %6231 = vmatpush.bf16.msra.mxu0 %v6057
    %6232 = vmatpush.bf16.msra.mxu0 %v6053
    %6233 = vmatpush.bf16.msra.mxu0 %v6049
    %6234 = vmatpush.bf16.msra.mxu0 %v6045
    %6235 = vmatmul.bf16.gmra.mxu0 %v2183
    %v6236 = vpop.f32.mrf.mxu0
    %v6237 = vadd.f32 %v5791, %v6236
    %v6238 = vpop.f32.mrf.mxu0
    %v6239 = vadd.f32 %v5793, %v6238
    %6240 = vdwg.mxu0
    %6241 = vmatpush.bf16.msra.mxu0 %v6105
    %6242 = vmatpush.bf16.msra.mxu0 %v6101
    %6243 = vmatpush.bf16.msra.mxu0 %v6097
    %6244 = vmatpush.bf16.msra.mxu0 %v6093
    %6245 = vmatpush.bf16.msra.mxu0 %v6089
    %6246 = vmatpush.bf16.msra.mxu0 %v6085
    %6247 = vmatpush.bf16.msra.mxu0 %v6081
    %6248 = vmatpush.bf16.msra.mxu0 %v6077
    %6249 = vmatmul.bf16.gmra.mxu0 %v2184
    %v6250 = vpop.f32.mrf.mxu0
    %v6251 = vadd.f32 %v6237, %v6250
    %v6252 = vpop.f32.mrf.mxu0
    %v6253 = vadd.f32 %v6239, %v6252
    %6254 = vdwg.mxu0
    %6255 = vmatpush.bf16.msra.mxu0 %v6074
    %6256 = vmatpush.bf16.msra.mxu0 %v6070
    %6257 = vmatpush.bf16.msra.mxu0 %v6066
    %6258 = vmatpush.bf16.msra.mxu0 %v6062
    %6259 = vmatpush.bf16.msra.mxu0 %v6058
    %6260 = vmatpush.bf16.msra.mxu0 %v6054
    %6261 = vmatpush.bf16.msra.mxu0 %v6050
    %6262 = vmatpush.bf16.msra.mxu0 %v6046
    %6263 = vmatmul.bf16.gmra.mxu0 %v2183
    %v6264 = vpop.f32.mrf.mxu0
    %v6265 = vadd.f32 %v5847, %v6264
    %v6266 = vpop.f32.mrf.mxu0
    %v6267 = vadd.f32 %v5849, %v6266
    %6268 = vdwg.mxu0
    %6269 = vmatpush.bf16.msra.mxu0 %v6106
    %6270 = vmatpush.bf16.msra.mxu0 %v6102
    %6271 = vmatpush.bf16.msra.mxu0 %v6098
    %6272 = vmatpush.bf16.msra.mxu0 %v6094
    %6273 = vmatpush.bf16.msra.mxu0 %v6090
    %6274 = vmatpush.bf16.msra.mxu0 %v6086
    %6275 = vmatpush.bf16.msra.mxu0 %v6082
    %6276 = vmatpush.bf16.msra.mxu0 %v6078
    %6277 = vmatmul.bf16.gmra.mxu0 %v2184
    %v6278 = vpop.f32.mrf.mxu0
    %v6279 = vadd.f32 %v6265, %v6278
    %v6280 = vpop.f32.mrf.mxu0
    %v6281 = vadd.f32 %v6267, %v6280
    %6282 = vdwg.mxu0
    %v6283 = vld [vmem:[%s11] sm:$0xf]
    %v6285 = vperm.slane %v6283, 0
    %v6286 = vperm.slane %v6283, 1
    %v6287 = vperm.slane %v6283, 2
    %v6288 = vperm.slane %v6283, 3
    %v6293 = vadd.f32 %v6195, %v6285
    %v6294 = vadd.f32 %v6223, %v6286
    %v6295 = vadd.f32 %v6251, %v6287
    %v6296 = vadd.f32 %v6279, %v6288
    %v6297 = vadd.f32 %v6197, %v6285
    %v6298 = vadd.f32 %v6225, %v6286
    %v6299 = vadd.f32 %v6253, %v6287
    %v6300 = vadd.f32 %v6281, %v6288
    %v6301 = vmax.f32 %v6293, 0.0
    %v6302 = vmax.f32 %v6294, 0.0
    %v6303 = vmax.f32 %v6295, 0.0
    %v6304 = vmax.f32 %v6296, 0.0
    %v6305 = vmax.f32 %v6297, 0.0
    %v6306 = vmax.f32 %v6298, 0.0
    %v6307 = vmax.f32 %v6299, 0.0
    %v6308 = vmax.f32 %v6300, 0.0
    %v6309 = vpack.c.bf16 %v6305, %v6301
    %v6310 = vpack.c.bf16 %v6306, %v6302
    %v6311 = vpack.c.bf16 %v6307, %v6303
    %v6312 = vpack.c.bf16 %v6308, %v6304
    %v6313 = vld [vmem:[#allocation23] sm:$0xf]
    %v6314 = vld [vmem:[#allocation23 + $0x4] sm:$0xf]
    %v6315 = vld [vmem:[#allocation23 + $0x8] sm:$0xf]
    %v6316 = vld [vmem:[#allocation23 + $0xc] sm:$0xf]
    %v6317 = vld [vmem:[#allocation23 + $0x10] sm:$0xf]
    %v6318 = vld [vmem:[#allocation23 + $0x14] sm:$0xf]
    %v6319 = vld [vmem:[#allocation23 + $0x18] sm:$0xf]
    %v6320 = vld [vmem:[#allocation23 + $0x1c] sm:$0xf]
    %v6321 = vld [vmem:[#allocation23 + $0x20] sm:$0xf]
    %v6322 = vld [vmem:[#allocation23 + $0x24] sm:$0xf]
    %v6323 = vld [vmem:[#allocation23 + $0x28] sm:$0xf]
    %v6324 = vld [vmem:[#allocation23 + $0x2c] sm:$0xf]
    %v6325 = vld [vmem:[#allocation23 + $0x30] sm:$0xf]
    %v6326 = vld [vmem:[#allocation23 + $0x34] sm:$0xf]
    %v6327 = vld [vmem:[#allocation23 + $0x38] sm:$0xf]
    %v6328 = vld [vmem:[#allocation23 + $0x3c] sm:$0xf]
    %v6329 = vld [vmem:[#allocation23 + $0x40] sm:$0xf]
    %v6330 = vld [vmem:[#allocation23 + $0x44] sm:$0xf]
    %v6331 = vld [vmem:[#allocation23 + $0x48] sm:$0xf]
    %v6332 = vld [vmem:[#allocation23 + $0x4c] sm:$0xf]
    %v6333 = vld [vmem:[#allocation23 + $0x50] sm:$0xf]
    %v6334 = vld [vmem:[#allocation23 + $0x54] sm:$0xf]
    %v6335 = vld [vmem:[#allocation23 + $0x58] sm:$0xf]
    %v6336 = vld [vmem:[#allocation23 + $0x5c] sm:$0xf]
    %v6337 = vld [vmem:[#allocation23 + $0x60] sm:$0xf]
    %v6338 = vld [vmem:[#allocation23 + $0x64] sm:$0xf]
    %v6339 = vld [vmem:[#allocation23 + $0x68] sm:$0xf]
    %v6340 = vld [vmem:[#allocation23 + $0x6c] sm:$0xf]
    %v6341 = vld [vmem:[#allocation23 + $0x70] sm:$0xf]
    %v6342 = vld [vmem:[#allocation23 + $0x74] sm:$0xf]
    %v6343 = vld [vmem:[#allocation23 + $0x78] sm:$0xf]
    %v6344 = vld [vmem:[#allocation23 + $0x7c] sm:$0xf]
    %v6345 = vld [vmem:[#allocation23 + $0x80] sm:$0xf]
    %v6346 = vld [vmem:[#allocation23 + $0x84] sm:$0xf]
    %v6347 = vld [vmem:[#allocation23 + $0x88] sm:$0xf]
    %v6348 = vld [vmem:[#allocation23 + $0x8c] sm:$0xf]
    %v6349 = vld [vmem:[#allocation23 + $0x90] sm:$0xf]
    %v6350 = vld [vmem:[#allocation23 + $0x94] sm:$0xf]
    %v6351 = vld [vmem:[#allocation23 + $0x98] sm:$0xf]
    %v6352 = vld [vmem:[#allocation23 + $0x9c] sm:$0xf]
    %v6353 = vld [vmem:[#allocation23 + $0xa0] sm:$0xf]
    %v6354 = vld [vmem:[#allocation23 + $0xa4] sm:$0xf]
    %v6355 = vld [vmem:[#allocation23 + $0xa8] sm:$0xf]
    %v6356 = vld [vmem:[#allocation23 + $0xac] sm:$0xf]
    %v6357 = vld [vmem:[#allocation23 + $0xb0] sm:$0xf]
    %v6358 = vld [vmem:[#allocation23 + $0xb4] sm:$0xf]
    %v6359 = vld [vmem:[#allocation23 + $0xb8] sm:$0xf]
    %v6360 = vld [vmem:[#allocation23 + $0xbc] sm:$0xf]
    %v6361 = vld [vmem:[#allocation23 + $0xc0] sm:$0xf]
    %v6362 = vld [vmem:[#allocation23 + $0xc4] sm:$0xf]
    %v6363 = vld [vmem:[#allocation23 + $0xc8] sm:$0xf]
    %v6364 = vld [vmem:[#allocation23 + $0xcc] sm:$0xf]
    %v6365 = vld [vmem:[#allocation23 + $0xd0] sm:$0xf]
    %v6366 = vld [vmem:[#allocation23 + $0xd4] sm:$0xf]
    %v6367 = vld [vmem:[#allocation23 + $0xd8] sm:$0xf]
    %v6368 = vld [vmem:[#allocation23 + $0xdc] sm:$0xf]
    %v6369 = vld [vmem:[#allocation23 + $0xe0] sm:$0xf]
    %v6370 = vld [vmem:[#allocation23 + $0xe4] sm:$0xf]
    %v6371 = vld [vmem:[#allocation23 + $0xe8] sm:$0xf]
    %v6372 = vld [vmem:[#allocation23 + $0xec] sm:$0xf]
    %v6373 = vld [vmem:[#allocation23 + $0xf0] sm:$0xf]
    %v6374 = vld [vmem:[#allocation23 + $0xf4] sm:$0xf]
    %v6375 = vld [vmem:[#allocation23 + $0xf8] sm:$0xf]
    %v6376 = vld [vmem:[#allocation23 + $0xfc] sm:$0xf]
    %v6441 = vunpack.c.l.b16 %v6313
    %v6442 = vunpack.c.l.b16 %v6314
    %v6443 = vunpack.c.l.b16 %v6315
    %v6444 = vunpack.c.l.b16 %v6316
    %v6445 = vunpack.c.l.b16 %v6317
    %v6446 = vunpack.c.l.b16 %v6318
    %v6447 = vunpack.c.l.b16 %v6319
    %v6448 = vunpack.c.l.b16 %v6320
    %v6449 = vunpack.c.l.b16 %v6321
    %v6450 = vunpack.c.l.b16 %v6322
    %v6451 = vunpack.c.l.b16 %v6323
    %v6452 = vunpack.c.l.b16 %v6324
    %v6453 = vunpack.c.l.b16 %v6325
    %v6454 = vunpack.c.l.b16 %v6326
    %v6455 = vunpack.c.l.b16 %v6327
    %v6456 = vunpack.c.l.b16 %v6328
    %v6457 = vunpack.c.l.b16 %v6329
    %v6458 = vunpack.c.l.b16 %v6330
    %v6459 = vunpack.c.l.b16 %v6331
    %v6460 = vunpack.c.l.b16 %v6332
    %v6461 = vunpack.c.l.b16 %v6333
    %v6462 = vunpack.c.l.b16 %v6334
    %v6463 = vunpack.c.l.b16 %v6335
    %v6464 = vunpack.c.l.b16 %v6336
    %v6465 = vunpack.c.l.b16 %v6337
    %v6466 = vunpack.c.l.b16 %v6338
    %v6467 = vunpack.c.l.b16 %v6339
    %v6468 = vunpack.c.l.b16 %v6340
    %v6469 = vunpack.c.l.b16 %v6341
    %v6470 = vunpack.c.l.b16 %v6342
    %v6471 = vunpack.c.l.b16 %v6343
    %v6472 = vunpack.c.l.b16 %v6344
    %v6473 = vunpack.c.l.b16 %v6345
    %v6474 = vunpack.c.l.b16 %v6346
    %v6475 = vunpack.c.l.b16 %v6347
    %v6476 = vunpack.c.l.b16 %v6348
    %v6477 = vunpack.c.l.b16 %v6349
    %v6478 = vunpack.c.l.b16 %v6350
    %v6479 = vunpack.c.l.b16 %v6351
    %v6480 = vunpack.c.l.b16 %v6352
    %v6481 = vunpack.c.l.b16 %v6353
    %v6482 = vunpack.c.l.b16 %v6354
    %v6483 = vunpack.c.l.b16 %v6355
    %v6484 = vunpack.c.l.b16 %v6356
    %v6485 = vunpack.c.l.b16 %v6357
    %v6486 = vunpack.c.l.b16 %v6358
    %v6487 = vunpack.c.l.b16 %v6359
    %v6488 = vunpack.c.l.b16 %v6360
    %v6489 = vunpack.c.l.b16 %v6361
    %v6490 = vunpack.c.l.b16 %v6362
    %v6491 = vunpack.c.l.b16 %v6363
    %v6492 = vunpack.c.l.b16 %v6364
    %v6493 = vunpack.c.l.b16 %v6365
    %v6494 = vunpack.c.l.b16 %v6366
    %v6495 = vunpack.c.l.b16 %v6367
    %v6496 = vunpack.c.l.b16 %v6368
    %v6497 = vunpack.c.l.b16 %v6369
    %v6498 = vunpack.c.l.b16 %v6370
    %v6499 = vunpack.c.l.b16 %v6371
    %v6500 = vunpack.c.l.b16 %v6372
    %v6501 = vunpack.c.l.b16 %v6373
    %v6502 = vunpack.c.l.b16 %v6374
    %v6503 = vunpack.c.l.b16 %v6375
    %v6504 = vunpack.c.l.b16 %v6376
    %v6505 = vpack.c.b16 %v6442, %v6441
    %v6506 = vpack.c.b16 %v6444, %v6443
    %v6507 = vpack.c.b16 %v6446, %v6445
    %v6508 = vpack.c.b16 %v6448, %v6447
    %v6509 = vpack.c.b16 %v6450, %v6449
    %v6510 = vpack.c.b16 %v6452, %v6451
    %v6511 = vpack.c.b16 %v6454, %v6453
    %v6512 = vpack.c.b16 %v6456, %v6455
    %v6513 = vpack.c.b16 %v6458, %v6457
    %v6514 = vpack.c.b16 %v6460, %v6459
    %v6515 = vpack.c.b16 %v6462, %v6461
    %v6516 = vpack.c.b16 %v6464, %v6463
    %v6517 = vpack.c.b16 %v6466, %v6465
    %v6518 = vpack.c.b16 %v6468, %v6467
    %v6519 = vpack.c.b16 %v6470, %v6469
    %v6520 = vpack.c.b16 %v6472, %v6471
    %v6521 = vpack.c.b16 %v6474, %v6473
    %v6522 = vpack.c.b16 %v6476, %v6475
    %v6523 = vpack.c.b16 %v6478, %v6477
    %v6524 = vpack.c.b16 %v6480, %v6479
    %v6525 = vpack.c.b16 %v6482, %v6481
    %v6526 = vpack.c.b16 %v6484, %v6483
    %v6527 = vpack.c.b16 %v6486, %v6485
    %v6528 = vpack.c.b16 %v6488, %v6487
    %v6529 = vpack.c.b16 %v6490, %v6489
    %v6530 = vpack.c.b16 %v6492, %v6491
    %v6531 = vpack.c.b16 %v6494, %v6493
    %v6532 = vpack.c.b16 %v6496, %v6495
    %v6533 = vpack.c.b16 %v6498, %v6497
    %v6534 = vpack.c.b16 %v6500, %v6499
    %v6535 = vpack.c.b16 %v6502, %v6501
    %v6536 = vpack.c.b16 %v6504, %v6503
    %6569 = vmatpush.bf16.msra.mxu0 %v6512
    %6570 = vmatpush.bf16.msra.mxu0 %v6511
    %6571 = vmatpush.bf16.msra.mxu0 %v6510
    %6572 = vmatpush.bf16.msra.mxu0 %v6509
    %6573 = vmatpush.bf16.msra.mxu0 %v6508
    %6574 = vmatpush.bf16.msra.mxu0 %v6507
    %6575 = vmatpush.bf16.msra.mxu0 %v6506
    %6576 = vmatpush.bf16.msra.mxu0 %v6505
    %6577 = vmatmul.bf16.gmra.mxu0 %v6309
    %v6578 = vpop.f32.mrf.mxu0
    %v6579 = vadd.f32 0.0, %v6578
    %v6580 = vpop.f32.mrf.mxu0
    %v6581 = vadd.f32 0.0, %v6580
    %6582 = vdwg.mxu0
    %6583 = vmatpush.bf16.msra.mxu0 %v6520
    %6584 = vmatpush.bf16.msra.mxu0 %v6519
    %6585 = vmatpush.bf16.msra.mxu0 %v6518
    %6586 = vmatpush.bf16.msra.mxu0 %v6517
    %6587 = vmatpush.bf16.msra.mxu0 %v6516
    %6588 = vmatpush.bf16.msra.mxu0 %v6515
    %6589 = vmatpush.bf16.msra.mxu0 %v6514
    %6590 = vmatpush.bf16.msra.mxu0 %v6513
    %6591 = vmatmul.bf16.gmra.mxu0 %v6310
    %v6592 = vpop.f32.mrf.mxu0
    %v6593 = vadd.f32 %v6579, %v6592
    %v6594 = vpop.f32.mrf.mxu0
    %v6595 = vadd.f32 %v6581, %v6594
    %6596 = vdwg.mxu0
    %6597 = vmatpush.bf16.msra.mxu0 %v6528
    %6598 = vmatpush.bf16.msra.mxu0 %v6527
    %6599 = vmatpush.bf16.msra.mxu0 %v6526
    %6600 = vmatpush.bf16.msra.mxu0 %v6525
    %6601 = vmatpush.bf16.msra.mxu0 %v6524
    %6602 = vmatpush.bf16.msra.mxu0 %v6523
    %6603 = vmatpush.bf16.msra.mxu0 %v6522
    %6604 = vmatpush.bf16.msra.mxu0 %v6521
    %6605 = vmatmul.bf16.gmra.mxu0 %v6311
    %v6606 = vpop.f32.mrf.mxu0
    %v6607 = vadd.f32 %v6593, %v6606
    %v6608 = vpop.f32.mrf.mxu0
    %v6609 = vadd.f32 %v6595, %v6608
    %6610 = vdwg.mxu0
    %6611 = vmatpush.bf16.msra.mxu0 %v6536
    %6612 = vmatpush.bf16.msra.mxu0 %v6535
    %6613 = vmatpush.bf16.msra.mxu0 %v6534
    %6614 = vmatpush.bf16.msra.mxu0 %v6533
    %6615 = vmatpush.bf16.msra.mxu0 %v6532
    %6616 = vmatpush.bf16.msra.mxu0 %v6531
    %6617 = vmatpush.bf16.msra.mxu0 %v6530
    %6618 = vmatpush.bf16.msra.mxu0 %v6529
    %6619 = vmatmul.bf16.gmra.mxu0 %v6312
    %v6620 = vpop.f32.mrf.mxu0
    %v6621 = vadd.f32 %v6607, %v6620
    %v6622 = vpop.f32.mrf.mxu0
    %v6623 = vadd.f32 %v6609, %v6622
    %6624 = vdwg.mxu0
    %v6625 = vadd.f32 %v4793, %v6621
    %v6626 = vadd.f32 %v4794, %v6623
    %6627 = vst [vmem:[#allocation25] sm:$0xff] %v6625
    %6628 = vst [vmem:[#allocation25 + $0x8] sm:$0xff] %v6626
    // Predicated region
    $region126: #{tpu_custom_call.1} parent=1 // pred_check
      _
    $region127: #{tpu_custom_call.1} parent=1 // pred_check_branch
      %6630 = sbr.rel (0) target = $region129
    $region128: #{tpu_custom_call.1} parent=1 // pred_region
      %6632 = vsyncadd [#allocation4], 0
      %s6633 = sshll.u32 [#allocation25], 4
      %s6634 = int_to_ptr.vmem [resolvable:$true] %s6633
      %s6635 = sshll.u32 %s17, 4
      %s6636 = int_to_ptr.hbm [resolvable:$true] %s6635
      %6641 = dma.vmem_to_hbm [thread:$0]  %s6634, 256, %s6636, [#allocation4], 128, 128, 8
    $region129: #{tpu_custom_call.1} parent=1 // pred_fallthru
      _
    // Predicated region
    $region130: #{tpu_custom_call.1} parent=1 // pred_check
      _
    $region131: #{tpu_custom_call.1} parent=1 // pred_check_branch
      %6643 = sbr.rel (0) target = $region133
    $region132: #{tpu_custom_call.1} parent=1 // pred_region
      %6645 = dma.done [#allocation4], 256
    $region133: #{tpu_custom_call.1} parent=1 // pred_fallthru
      _
    %6646 = vsyncpa [#allocation3], 1
    %6647 = vsyncpa [#allocation6], 1
    %6648 = vsyncpa [#allocation9], 1
    %6649 = vsyncpa [#allocation12], 1
    %6650 = vsyncpa [#allocation15], 1
    %6651 = vsyncpa [#allocation18], 1
    %6652 = vsyncpa [#allocation21], 1
    %6653 = vsyncpa [#allocation24], 1
    %6654 = vsyncpa [#allocation4], 1

// kernel: tpu_custom_call.1
$region0: #{tpu_custom_call.1}
  #allocation0 [shape = 'u32[]', space=smem, size = 0x4, offset = 0x4, fixed_abs, tag = 'smem constant byte address 0x4 - core index']
  #allocation1 [shape = 'u32[72,128]{1,0:T(1,128)}', space=vmem, size = 0x9000, scoped, tag = 'internal scratch']
  %s0 = inlined_call_operand.hbm [shape: bf16[16,512], index: 0, kind: input, shape index: {}]
  %s1 = inlined_call_operand.hbm [shape: bf16[256,512], index: 1, kind: input, shape index: {}]
  %s2 = inlined_call_operand.hbm [shape: f32[1,512], index: 2, kind: input, shape index: {}]
  %s3 = inlined_call_operand.hbm [shape: bf16[256,512], index: 3, kind: input, shape index: {}]
  %s4 = inlined_call_operand.hbm [shape: bf16[512,512], index: 4, kind: input, shape index: {}]
  %s5 = inlined_call_operand.vmem [shape: f32[1,512], index: 5, kind: input, shape index: {}]
  %s6 = inlined_call_operand.hbm [shape: bf16[256,512], index: 6, kind: input, shape index: {}]
  %s7 = inlined_call_operand.hbm [shape: bf16[512,512], index: 7, kind: input, shape index: {}]
  %s8 = inlined_call_operand.hbm [shape: f32[1,512], index: 8, kind: input, shape index: {}]
  %s9 = inlined_call_operand.hbm [shape: bf16[256,512], index: 9, kind: input, shape index: {}]
  %s10 = inlined_call_operand.hbm [shape: bf16[512,512], index: 10, kind: input, shape index: {}]
  %s11 = inlined_call_operand.vmem [shape: f32[1,512], index: 11, kind: input, shape index: {}]
  %s12 = inlined_call_operand.hbm [shape: bf16[512,128], index: 12, kind: input, shape index: {}]
  %s13 = inlined_call_operand.hbm [shape: bf16[512,128], index: 13, kind: input, shape index: {}]
  %s14 = inlined_call_operand.hbm [shape: bf16[512,128], index: 14, kind: input, shape index: {}]
  %s15 = inlined_call_operand.hbm [shape: bf16[512,128], index: 15, kind: input, shape index: {}]
  %s16 = inlined_call_operand.vmem [shape: f32[1,128], index: 16, kind: input, shape index: {}]
  %s17 = inlined_call_operand.hbm [shape: f32[16,128], index: 17, kind: output, shape index: {}]
  %s18 = sld [smem:[#allocation0]]
  $region134: #{tpu_custom_call.1} parent=0
    _
  %s20 = ssub.s32 1, %s18
  %s21 = scalar_select 0, %s20, %s18
  $region1: #{tpu_custom_call.1} parent=0
    #allocation2 [shape = 'u8[16384]{0}', space=vmem, size = 0x4000, scoped, tag = 'input window, operand 0, single buffered']
    #allocation3 [shape = 's32[1]{0}', space=sflag, size = 0x4, scoped, tag = 'scoped memory for tpu_custom_call.1']
    #allocation4 [shape = 's32[1]{0}', space=sflag, size = 0x4, scoped, tag = 'scoped memory for tpu_custom_call.1']
    #allocation5 [shape = 'u8[262144]{0}', space=vmem, size = 0x40000, scoped, tag = 'input window, operand 1, single buffered']
    #allocation6 [shape = 's32[1]{0}', space=sflag, size = 0x4, scoped, tag = 'scoped memory for tpu_custom_call.1']
    #allocation7 [shape = 'u8[2048]{0}', space=vmem, size = 0x800, scoped, tag = 'input window, operand 2, single buffered']
    #allocation8 [shape = 'u8[262144]{0}', space=vmem, size = 0x40000, scoped, tag = 'input window, operand 3, single buffered']
    #allocation9 [shape = 's32[1]{0}', space=sflag, size = 0x4, scoped, tag = 'scoped memory for tpu_custom_call.1']
    #allocation10 [shape = 'u8[524288]{0}', space=vmem, size = 0x80000, scoped, tag = 'input window, operand 4, single buffered']
    #allocation11 [shape = 'u8[262144]{0}', space=vmem, size = 0x40000, scoped, tag = 'input window, operand 6, single buffered']
    #allocation12 [shape = 's32[1]{0}', space=sflag, size = 0x4, scoped, tag = 'scoped memory for tpu_custom_call.1']
    #allocation13 [shape = 'u8[524288]{0}', space=vmem, size = 0x80000, scoped, tag = 'input window, operand 7, single buffered']
    #allocation14 [shape = 'u8[2048]{0}', space=vmem, size = 0x800, scoped, tag = 'input window, operand 8, single buffered']
    #allocation15 [shape = 's32[1]{0}', space=sflag, size = 0x4, scoped, tag = 'scoped memory for tpu_custom_call.1']
    #allocation16 [shape = 'u8[262144]{0}', space=vmem, size = 0x40000, scoped, tag = 'input window, operand 9, single buffered']
    #allocation17 [shape = 'u8[524288]{0}', space=vmem, size = 0x80000, scoped, tag = 'input window, operand 10, single buffered']
    #allocation18 [shape = 's32[1]{0}', space=sflag, size = 0x4, scoped, tag = 'scoped memory for tpu_custom_call.1']
    #allocation19 [shape = 'u8[131072]{0}', space=vmem, size = 0x20000, scoped, tag = 'input window, operand 12, single buffered']
    #allocation20 [shape = 'u8[131072]{0}', space=vmem, size = 0x20000, scoped, tag = 'input window, operand 13, single buffered']
    #allocation21 [shape = 's32[1]{0}', space=sflag, size = 0x4, scoped, tag = 'scoped memory for tpu_custom_call.1']
    #allocation22 [shape = 'u8[131072]{0}', space=vmem, size = 0x20000, scoped, tag = 'input window, operand 14, single buffered']
    #allocation23 [shape = 'u8[131072]{0}', space=vmem, size = 0x20000, scoped, tag = 'input window, operand 15, single buffered']
    #allocation24 [shape = 's32[1]{0}', space=sflag, size = 0x4, scoped, tag = 'scoped memory for tpu_custom_call.1']
    #allocation25 [shape = 'u8[8192]{0}', space=vmem, size = 0x2000, scoped, tag = 'output window, operand 0, single buffered']
    %22 = vsyncpa [#allocation3], 0
    %23 = vsyncpa [#allocation6], 0
    %24 = vsyncpa [#allocation9], 0
    %25 = vsyncpa [#allocation12], 0
    %26 = vsyncpa [#allocation15], 0
    %27 = vsyncpa [#allocation18], 0
    %28 = vsyncpa [#allocation21], 0
    %29 = vsyncpa [#allocation24], 0
    %30 = vsyncpa [#allocation4], 0
    // Predicated region
    $region2: #{tpu_custom_call.1} parent=1 // pred_check
      _
    $region3: #{tpu_custom_call.1} parent=1 // pred_check_branch
      %32 = sbr.rel (0) target = $region5
    $region4: #{tpu_custom_call.1} parent=1 // pred_region
      %34 = vsyncadd [#allocation3], 0
      %s35 = sshll.u32 %s0, 4
      %s36 = int_to_ptr.hbm [resolvable:$true] %s35
      %s37 = sshll.u32 [#allocation2], 4
      %s38 = int_to_ptr.vmem [resolvable:$true] %s37
      %43 = dma.hbm_to_vmem [thread:$0]  %s36, 512, %s38, [#allocation3], 256, 256, 16
    $region5: #{tpu_custom_call.1} parent=1 // pred_fallthru
      _
    // Predicated region
    $region6: #{tpu_custom_call.1} parent=1 // pred_check
      _
    $region7: #{tpu_custom_call.1} parent=1 // pred_check_branch
      %45 = sbr.rel (0) target = $region9
    $region8: #{tpu_custom_call.1} parent=1 // pred_region
      %47 = vsyncadd [#allocation6], 0
      %s48 = sshll.u32 %s1, 4
      %s49 = int_to_ptr.hbm [resolvable:$true] %s48
      %s50 = sshll.u32 [#allocation5], 4
      %s51 = int_to_ptr.vmem [resolvable:$true] %s50
      %56 = dma.hbm_to_vmem [thread:$0]  %s49, 8192, %s51, [#allocation6], 256, 256, 16
    $region9: #{tpu_custom_call.1} parent=1 // pred_fallthru
      _
    // Predicated region
    $region10: #{tpu_custom_call.1} parent=1 // pred_check
      _
    $region11: #{tpu_custom_call.1} parent=1 // pred_check_branch
      %58 = sbr.rel (0) target = $region13
    $region12: #{tpu_custom_call.1} parent=1 // pred_region
      %60 = vsyncadd [#allocation6], 0
      %s62 = sshll.u32 %s2, 4
      %s63 = int_to_ptr.hbm [resolvable:$true] %s62
      %s64 = sshll.u32 [#allocation7], 4
      %s65 = int_to_ptr.vmem [resolvable:$true] %s64
      %67 = dma.hbm_to_vmem [thread:$0]  %s63, 64, %s65, [#allocation6]
    $region13: #{tpu_custom_call.1} parent=1 // pred_fallthru
      _
    // Predicated region
    $region14: #{tpu_custom_call.1} parent=1 // pred_check
      _
    $region15: #{tpu_custom_call.1} parent=1 // pred_check_branch
      %69 = sbr.rel (0) target = $region17
    $region16: #{tpu_custom_call.1} parent=1 // pred_region
      %71 = vsyncadd [#allocation9], 0
      %s72 = sshll.u32 %s3, 4
      %s73 = int_to_ptr.hbm [resolvable:$true] %s72
      %s74 = sshll.u32 [#allocation8], 4
      %s75 = int_to_ptr.vmem [resolvable:$true] %s74
      %80 = dma.hbm_to_vmem [thread:$0]  %s73, 8192, %s75, [#allocation9], 256, 256, 16
    $region17: #{tpu_custom_call.1} parent=1 // pred_fallthru
      _
    // Predicated region
    $region18: #{tpu_custom_call.1} parent=1 // pred_check
      _
    $region19: #{tpu_custom_call.1} parent=1 // pred_check_branch
      %82 = sbr.rel (0) target = $region21
    $region20: #{tpu_custom_call.1} parent=1 // pred_region
      %84 = vsyncadd [#allocation9], 0
      %s85 = sshll.u32 %s4, 4
      %s86 = int_to_ptr.hbm [resolvable:$true] %s85
      %s87 = sshll.u32 [#allocation10], 4
      %s88 = int_to_ptr.vmem [resolvable:$true] %s87
      %93 = dma.hbm_to_vmem [thread:$0]  %s86, 16384, %s88, [#allocation9], 256, 256, 16
    $region21: #{tpu_custom_call.1} parent=1 // pred_fallthru
      _
    // Predicated region
    $region22: #{tpu_custom_call.1} parent=1 // pred_check
      _
    $region23: #{tpu_custom_call.1} parent=1 // pred_check_branch
      %95 = sbr.rel (0) target = $region25
    $region24: #{tpu_custom_call.1} parent=1 // pred_region
      _
    $region25: #{tpu_custom_call.1} parent=1 // pred_fallthru
      _
    // Predicated region
    $region26: #{tpu_custom_call.1} parent=1 // pred_check
      _
    $region27: #{tpu_custom_call.1} parent=1 // pred_check_branch
      %97 = sbr.rel (0) target = $region29
    $region28: #{tpu_custom_call.1} parent=1 // pred_region
      %99 = vsyncadd [#allocation12], 0
      %s100 = sshll.u32 %s6, 4
      %s101 = int_to_ptr.hbm [resolvable:$true] %s100
      %s102 = sshll.u32 [#allocation11], 4
      %s103 = int_to_ptr.vmem [resolvable:$true] %s102
      %108 = dma.hbm_to_vmem [thread:$0]  %s101, 8192, %s103, [#allocation12], 256, 256, 16
    $region29: #{tpu_custom_call.1} parent=1 // pred_fallthru
      _
    // Predicated region
    $region30: #{tpu_custom_call.1} parent=1 // pred_check
      _
    $region31: #{tpu_custom_call.1} parent=1 // pred_check_branch
      %110 = sbr.rel (0) target = $region33
    $region32: #{tpu_custom_call.1} parent=1 // pred_region
      %112 = vsyncadd [#allocation12], 0
      %s113 = sshll.u32 %s7, 4
      %s114 = int_to_ptr.hbm [resolvable:$true] %s113
      %s115 = sshll.u32 [#allocation13], 4
      %s116 = int_to_ptr.vmem [resolvable:$true] %s115
      %121 = dma.hbm_to_vmem [thread:$0]  %s114, 16384, %s116, [#allocation12], 256, 256, 16
    $region33: #{tpu_custom_call.1} parent=1 // pred_fallthru
      _
    // Predicated region
    $region34: #{tpu_custom_call.1} parent=1 // pred_check
      _
    $region35: #{tpu_custom_call.1} parent=1 // pred_check_branch
      %123 = sbr.rel (0) target = $region37
    $region36: #{tpu_custom_call.1} parent=1 // pred_region
      %125 = vsyncadd [#allocation15], 0
      %s127 = sshll.u32 %s8, 4
      %s128 = int_to_ptr.hbm [resolvable:$true] %s127
      %s129 = sshll.u32 [#allocation14], 4
      %s130 = int_to_ptr.vmem [resolvable:$true] %s129
      %132 = dma.hbm_to_vmem [thread:$0]  %s128, 64, %s130, [#allocation15]
    $region37: #{tpu_custom_call.1} parent=1 // pred_fallthru
      _
    // Predicated region
    $region38: #{tpu_custom_call.1} parent=1 // pred_check
      _
    $region39: #{tpu_custom_call.1} parent=1 // pred_check_branch
      %134 = sbr.rel (0) target = $region41
    $region40: #{tpu_custom_call.1} parent=1 // pred_region
      %136 = vsyncadd [#allocation15], 0
      %s137 = sshll.u32 %s9, 4
      %s138 = int_to_ptr.hbm [resolvable:$true] %s137
      %s139 = sshll.u32 [#allocation16], 4
      %s140 = int_to_ptr.vmem [resolvable:$true] %s139
      %145 = dma.hbm_to_vmem [thread:$0]  %s138, 8192, %s140, [#allocation15], 256, 256, 16
    $region41: #{tpu_custom_call.1} parent=1 // pred_fallthru
      _
    // Predicated region
    $region42: #{tpu_custom_call.1} parent=1 // pred_check
      _
    $region43: #{tpu_custom_call.1} parent=1 // pred_check_branch
      %147 = sbr.rel (0) target = $region45
    $region44: #{tpu_custom_call.1} parent=1 // pred_region
      %149 = vsyncadd [#allocation18], 0
      %s150 = sshll.u32 %s10, 4
      %s151 = int_to_ptr.hbm [resolvable:$true] %s150
      %s152 = sshll.u32 [#allocation17], 4
      %s153 = int_to_ptr.vmem [resolvable:$true] %s152
      %158 = dma.hbm_to_vmem [thread:$0]  %s151, 16384, %s153, [#allocation18], 256, 256, 16
    $region45: #{tpu_custom_call.1} parent=1 // pred_fallthru
      _
    // Predicated region
    $region46: #{tpu_custom_call.1} parent=1 // pred_check
      _
    $region47: #{tpu_custom_call.1} parent=1 // pred_check_branch
      %160 = sbr.rel (0) target = $region49
    $region48: #{tpu_custom_call.1} parent=1 // pred_region
      _
    $region49: #{tpu_custom_call.1} parent=1 // pred_fallthru
      _
    // Predicated region
    $region50: #{tpu_custom_call.1} parent=1 // pred_check
      _
    $region51: #{tpu_custom_call.1} parent=1 // pred_check_branch
      %162 = sbr.rel (0) target = $region53
    $region52: #{tpu_custom_call.1} parent=1 // pred_region
      %164 = vsyncadd [#allocation18], 0
      %s165 = sshll.u32 %s12, 4
      %s166 = int_to_ptr.hbm [resolvable:$true] %s165
      %s167 = sshll.u32 [#allocation19], 4
      %s168 = int_to_ptr.vmem [resolvable:$true] %s167
      %173 = dma.hbm_to_vmem [thread:$0]  %s166, 4096, %s168, [#allocation18], 64, 64, 4
    $region53: #{tpu_custom_call.1} parent=1 // pred_fallthru
      _
    // Predicated region
    $region54: #{tpu_custom_call.1} parent=1 // pred_check
      _
    $region55: #{tpu_custom_call.1} parent=1 // pred_check_branch
      %175 = sbr.rel (0) target = $region57
    $region56: #{tpu_custom_call.1} parent=1 // pred_region
      %177 = vsyncadd [#allocation21], 0
      %s178 = sshll.u32 %s13, 4
      %s179 = int_to_ptr.hbm [resolvable:$true] %s178
      %s180 = sshll.u32 [#allocation20], 4
      %s181 = int_to_ptr.vmem [resolvable:$true] %s180
      %186 = dma.hbm_to_vmem [thread:$0]  %s179, 4096, %s181, [#allocation21], 64, 64, 4
    $region57: #{tpu_custom_call.1} parent=1 // pred_fallthru
      _
    // Predicated region
    $region58: #{tpu_custom_call.1} parent=1 // pred_check
      _
    $region59: #{tpu_custom_call.1} parent=1 // pred_check_branch
      %188 = sbr.rel (0) target = $region61
    $region60: #{tpu_custom_call.1} parent=1 // pred_region
      %190 = vsyncadd [#allocation21], 0
      %s191 = sshll.u32 %s14, 4
      %s192 = int_to_ptr.hbm [resolvable:$true] %s191
      %s193 = sshll.u32 [#allocation22], 4
      %s194 = int_to_ptr.vmem [resolvable:$true] %s193
      %199 = dma.hbm_to_vmem [thread:$0]  %s192, 4096, %s194, [#allocation21], 64, 64, 4
    $region61: #{tpu_custom_call.1} parent=1 // pred_fallthru
      _
    // Predicated region
    $region62: #{tpu_custom_call.1} parent=1 // pred_check
      _
    $region63: #{tpu_custom_call.1} parent=1 // pred_check_branch
      %201 = sbr.rel (0) target = $region65
    $region64: #{tpu_custom_call.1} parent=1 // pred_region
      %203 = vsyncadd [#allocation24], 0
      %s204 = sshll.u32 %s15, 4
      %s205 = int_to_ptr.hbm [resolvable:$true] %s204
      %s206 = sshll.u32 [#allocation23], 4
      %s207 = int_to_ptr.vmem [resolvable:$true] %s206
      %212 = dma.hbm_to_vmem [thread:$0]  %s205, 4096, %s207, [#allocation24], 64, 64, 4
    $region65: #{tpu_custom_call.1} parent=1 // pred_fallthru
      _
    // Predicated region
    $region66: #{tpu_custom_call.1} parent=1 // pred_check
      _
    $region67: #{tpu_custom_call.1} parent=1 // pred_check_branch
      %214 = sbr.rel (0) target = $region69
    $region68: #{tpu_custom_call.1} parent=1 // pred_region
      _
    $region69: #{tpu_custom_call.1} parent=1 // pred_fallthru
      _
    // Predicated region
    $region70: #{tpu_custom_call.1} parent=1 // pred_check
      _
    $region71: #{tpu_custom_call.1} parent=1 // pred_check_branch
      %216 = sbr.rel (0) target = $region73
    $region72: #{tpu_custom_call.1} parent=1 // pred_region
      %218 = dma.done [#allocation3], 512
    $region73: #{tpu_custom_call.1} parent=1 // pred_fallthru
      _
    // Predicated region
    $region74: #{tpu_custom_call.1} parent=1 // pred_check
      _
    $region75: #{tpu_custom_call.1} parent=1 // pred_check_branch
      %220 = sbr.rel (0) target = $region77
    $region76: #{tpu_custom_call.1} parent=1 // pred_region
      %222 = dma.done [#allocation6], 8192
    $region77: #{tpu_custom_call.1} parent=1 // pred_fallthru
      _
    // Predicated region
    $region78: #{tpu_custom_call.1} parent=1 // pred_check
      _
    $region79: #{tpu_custom_call.1} parent=1 // pred_check_branch
      %224 = sbr.rel (0) target = $region81
    $region80: #{tpu_custom_call.1} parent=1 // pred_region
      %226 = dma.done [#allocation6], 64
    $region81: #{tpu_custom_call.1} parent=1 // pred_fallthru
      _
    // Predicated region
    $region82: #{tpu_custom_call.1} parent=1 // pred_check
      _
    $region83: #{tpu_custom_call.1} parent=1 // pred_check_branch
      %228 = sbr.rel (0) target = $region85
    $region84: #{tpu_custom_call.1} parent=1 // pred_region
      %230 = dma.done [#allocation9], 8192
    $region85: #{tpu_custom_call.1} parent=1 // pred_fallthru
      _
    // Predicated region
    $region86: #{tpu_custom_call.1} parent=1 // pred_check
      _
    $region87: #{tpu_custom_call.1} parent=1 // pred_check_branch
      %232 = sbr.rel (0) target = $region89
    $region88: #{tpu_custom_call.1} parent=1 // pred_region
      %234 = dma.done [#allocation9], 16384
    $region89: #{tpu_custom_call.1} parent=1 // pred_fallthru
      _
    // Predicated region
    $region90: #{tpu_custom_call.1} parent=1 // pred_check
      _
    $region91: #{tpu_custom_call.1} parent=1 // pred_check_branch
      %236 = sbr.rel (0) target = $region93
    $region92: #{tpu_custom_call.1} parent=1 // pred_region
      %238 = dma.done [#allocation12], 8192
    $region93: #{tpu_custom_call.1} parent=1 // pred_fallthru
      _
    // Predicated region
    $region94: #{tpu_custom_call.1} parent=1 // pred_check
      _
    $region95: #{tpu_custom_call.1} parent=1 // pred_check_branch
      %240 = sbr.rel (0) target = $region97
    $region96: #{tpu_custom_call.1} parent=1 // pred_region
      %242 = dma.done [#allocation12], 16384
    $region97: #{tpu_custom_call.1} parent=1 // pred_fallthru
      _
    // Predicated region
    $region98: #{tpu_custom_call.1} parent=1 // pred_check
      _
    $region99: #{tpu_custom_call.1} parent=1 // pred_check_branch
      %244 = sbr.rel (0) target = $region101
    $region100: #{tpu_custom_call.1} parent=1 // pred_region
      %246 = dma.done [#allocation15], 64
    $region101: #{tpu_custom_call.1} parent=1 // pred_fallthru
      _
    // Predicated region
    $region102: #{tpu_custom_call.1} parent=1 // pred_check
      _
    $region103: #{tpu_custom_call.1} parent=1 // pred_check_branch
      %248 = sbr.rel (0) target = $region105
    $region104: #{tpu_custom_call.1} parent=1 // pred_region
      %250 = dma.done [#allocation15], 8192
    $region105: #{tpu_custom_call.1} parent=1 // pred_fallthru
      _
    // Predicated region
    $region106: #{tpu_custom_call.1} parent=1 // pred_check
      _
    $region107: #{tpu_custom_call.1} parent=1 // pred_check_branch
      %252 = sbr.rel (0) target = $region109
    $region108: #{tpu_custom_call.1} parent=1 // pred_region
      %254 = dma.done [#allocation18], 16384
    $region109: #{tpu_custom_call.1} parent=1 // pred_fallthru
      _
    // Predicated region
    $region110: #{tpu_custom_call.1} parent=1 // pred_check
      _
    $region111: #{tpu_custom_call.1} parent=1 // pred_check_branch
      %256 = sbr.rel (0) target = $region113
    $region112: #{tpu_custom_call.1} parent=1 // pred_region
      %258 = dma.done [#allocation18], 4096
    $region113: #{tpu_custom_call.1} parent=1 // pred_fallthru
      _
    // Predicated region
    $region114: #{tpu_custom_call.1} parent=1 // pred_check
      _
    $region115: #{tpu_custom_call.1} parent=1 // pred_check_branch
      %260 = sbr.rel (0) target = $region117
    $region116: #{tpu_custom_call.1} parent=1 // pred_region
      %262 = dma.done [#allocation21], 4096
    $region117: #{tpu_custom_call.1} parent=1 // pred_fallthru
      _
    // Predicated region
    $region118: #{tpu_custom_call.1} parent=1 // pred_check
      _
    $region119: #{tpu_custom_call.1} parent=1 // pred_check_branch
      %264 = sbr.rel (0) target = $region121
    $region120: #{tpu_custom_call.1} parent=1 // pred_region
      %266 = dma.done [#allocation21], 4096
    $region121: #{tpu_custom_call.1} parent=1 // pred_fallthru
      _
    // Predicated region
    $region122: #{tpu_custom_call.1} parent=1 // pred_check
      _
    $region123: #{tpu_custom_call.1} parent=1 // pred_check_branch
      %268 = sbr.rel (0) target = $region125
    $region124: #{tpu_custom_call.1} parent=1 // pred_region
      %270 = dma.done [#allocation24], 4096
    $region125: #{tpu_custom_call.1} parent=1 // pred_fallthru
      _
    %v271 = vld [vmem:[#allocation2] sm:$0xff]
    %v272 = vld [vmem:[#allocation2 + $0x8] sm:$0xff]
    %v273 = vld [vmem:[#allocation2 + $0x10] sm:$0xff]
    %v274 = vld [vmem:[#allocation2 + $0x18] sm:$0xff]
    %v275 = vld [vmem:[#allocation5] sm:$0xff]
    %v276 = vld [vmem:[#allocation5 + $0x8] sm:$0xff]
    %v277 = vld [vmem:[#allocation5 + $0x10] sm:$0xff]
    %v278 = vld [vmem:[#allocation5 + $0x18] sm:$0xff]
    %v279 = vld [vmem:[#allocation5 + $0x20] sm:$0xff]
    %v280 = vld [vmem:[#allocation5 + $0x28] sm:$0xff]
    %v281 = vld [vmem:[#allocation5 + $0x30] sm:$0xff]
    %v282 = vld [vmem:[#allocation5 + $0x38] sm:$0xff]
    %v283 = vld [vmem:[#allocation5 + $0x40] sm:$0xff]
    %v284 = vld [vmem:[#allocation5 + $0x48] sm:$0xff]
    %v285 = vld [vmem:[#allocation5 + $0x50] sm:$0xff]
    %v286 = vld [vmem:[#allocation5 + $0x58] sm:$0xff]
    %v287 = vld [vmem:[#allocation5 + $0x60] sm:$0xff]
    %v288 = vld [vmem:[#allocation5 + $0x68] sm:$0xff]
    %v289 = vld [vmem:[#allocation5 + $0x70] sm:$0xff]
    %v290 = vld [vmem:[#allocation5 + $0x78] sm:$0xff]
    %v291 = vld [vmem:[#allocation5 + $0x80] sm:$0xff]
    %v292 = vld [vmem:[#allocation5 + $0x88] sm:$0xff]
    %v293 = vld [vmem:[#allocation5 + $0x90] sm:$0xff]
    %v294 = vld [vmem:[#allocation5 + $0x98] sm:$0xff]
    %v295 = vld [vmem:[#allocation5 + $0xa0] sm:$0xff]
    %v296 = vld [vmem:[#allocation5 + $0xa8] sm:$0xff]
    %v297 = vld [vmem:[#allocation5 + $0xb0] sm:$0xff]
    %v298 = vld [vmem:[#allocation5 + $0xb8] sm:$0xff]
    %v299 = vld [vmem:[#allocation5 + $0xc0] sm:$0xff]
    %v300 = vld [vmem:[#allocation5 + $0xc8] sm:$0xff]
    %v301 = vld [vmem:[#allocation5 + $0xd0] sm:$0xff]
    %v302 = vld [vmem:[#allocation5 + $0xd8] sm:$0xff]
    %v303 = vld [vmem:[#allocation5 + $0xe0] sm:$0xff]
    %v304 = vld [vmem:[#allocation5 + $0xe8] sm:$0xff]
    %v305 = vld [vmem:[#allocation5 + $0xf0] sm:$0xff]
    %v306 = vld [vmem:[#allocation5 + $0xf8] sm:$0xff]
    %v307 = vld [vmem:[#allocation5 + $0x100] sm:$0xff]
    %v308 = vld [vmem:[#allocation5 + $0x108] sm:$0xff]
    %v309 = vld [vmem:[#allocation5 + $0x110] sm:$0xff]
    %v310 = vld [vmem:[#allocation5 + $0x118] sm:$0xff]
    %v311 = vld [vmem:[#allocation5 + $0x120] sm:$0xff]
    %v312 = vld [vmem:[#allocation5 + $0x128] sm:$0xff]
    %v313 = vld [vmem:[#allocation5 + $0x130] sm:$0xff]
    %v314 = vld [vmem:[#allocation5 + $0x138] sm:$0xff]
    %v315 = vld [vmem:[#allocation5 + $0x140] sm:$0xff]
    %v316 = vld [vmem:[#allocation5 + $0x148] sm:$0xff]
    %v317 = vld [vmem:[#allocation5 + $0x150] sm:$0xff]
    %v318 = vld [vmem:[#allocation5 + $0x158] sm:$0xff]
    %v319 = vld [vmem:[#allocation5 + $0x160] sm:$0xff]
    %v320 = vld [vmem:[#allocation5 + $0x168] sm:$0xff]
    %v321 = vld [vmem:[#allocation5 + $0x170] sm:$0xff]
    %v322 = vld [vmem:[#allocation5 + $0x178] sm:$0xff]
    %v323 = vld [vmem:[#allocation5 + $0x180] sm:$0xff]
    %v324 = vld [vmem:[#allocation5 + $0x188] sm:$0xff]
    %v325 = vld [vmem:[#allocation5 + $0x190] sm:$0xff]
    %v326 = vld [vmem:[#allocation5 + $0x198] sm:$0xff]
    %v327 = vld [vmem:[#allocation5 + $0x1a0] sm:$0xff]
    %v328 = vld [vmem:[#allocation5 + $0x1a8] sm:$0xff]
    %v329 = vld [vmem:[#allocation5 + $0x1b0] sm:$0xff]
    %v330 = vld [vmem:[#allocation5 + $0x1b8] sm:$0xff]
    %v331 = vld [vmem:[#allocation5 + $0x1c0] sm:$0xff]
    %v332 = vld [vmem:[#allocation5 + $0x1c8] sm:$0xff]
    %v333 = vld [vmem:[#allocation5 + $0x1d0] sm:$0xff]
    %v334 = vld [vmem:[#allocation5 + $0x1d8] sm:$0xff]
    %v335 = vld [vmem:[#allocation5 + $0x1e0] sm:$0xff]
    %v336 = vld [vmem:[#allocation5 + $0x1e8] sm:$0xff]
    %v337 = vld [vmem:[#allocation5 + $0x1f0] sm:$0xff]
    %v338 = vld [vmem:[#allocation5 + $0x1f8] sm:$0xff]
    %v339 = vld [vmem:[#allocation7] sm:$0xf]
    %v341 = vperm.slane %v339, 0
    %v342 = vperm.slane %v339, 1
    %v343 = vperm.slane %v339, 2
    %v344 = vperm.slane %v339, 3
    %v351 = vunpack.c.l.b16 %v271
    %v352 = vunpack.c.h.b16 %v271
    %v353 = vunpack.c.l.b16 %v273
    %v354 = vunpack.c.h.b16 %v273
    %v355 = vpack.c.b16 %v353, %v351
    %v356 = vpack.c.b16 %v354, %v352
    %v423 = vunpack.c.l.b16 %v275
    %v424 = vunpack.c.h.b16 %v275
    %v425 = vunpack.c.l.b16 %v276
    %v426 = vunpack.c.h.b16 %v276
    %v427 = vunpack.c.l.b16 %v277
    %v428 = vunpack.c.h.b16 %v277
    %v429 = vunpack.c.l.b16 %v278
    %v430 = vunpack.c.h.b16 %v278
    %v431 = vunpack.c.l.b16 %v279
    %v432 = vunpack.c.h.b16 %v279
    %v433 = vunpack.c.l.b16 %v280
    %v434 = vunpack.c.h.b16 %v280
    %v435 = vunpack.c.l.b16 %v281
    %v436 = vunpack.c.h.b16 %v281
    %v437 = vunpack.c.l.b16 %v282
    %v438 = vunpack.c.h.b16 %v282
    %v439 = vunpack.c.l.b16 %v283
    %v440 = vunpack.c.h.b16 %v283
    %v441 = vunpack.c.l.b16 %v284
    %v442 = vunpack.c.h.b16 %v284
    %v443 = vunpack.c.l.b16 %v285
    %v444 = vunpack.c.h.b16 %v285
    %v445 = vunpack.c.l.b16 %v286
    %v446 = vunpack.c.h.b16 %v286
    %v447 = vunpack.c.l.b16 %v287
    %v448 = vunpack.c.h.b16 %v287
    %v449 = vunpack.c.l.b16 %v288
    %v450 = vunpack.c.h.b16 %v288
    %v451 = vunpack.c.l.b16 %v289
    %v452 = vunpack.c.h.b16 %v289
    %v453 = vunpack.c.l.b16 %v290
    %v454 = vunpack.c.h.b16 %v290
    %v455 = vunpack.c.l.b16 %v291
    %v456 = vunpack.c.h.b16 %v291
    %v457 = vunpack.c.l.b16 %v292
    %v458 = vunpack.c.h.b16 %v292
    %v459 = vunpack.c.l.b16 %v293
    %v460 = vunpack.c.h.b16 %v293
    %v461 = vunpack.c.l.b16 %v294
    %v462 = vunpack.c.h.b16 %v294
    %v463 = vunpack.c.l.b16 %v295
    %v464 = vunpack.c.h.b16 %v295
    %v465 = vunpack.c.l.b16 %v296
    %v466 = vunpack.c.h.b16 %v296
    %v467 = vunpack.c.l.b16 %v297
    %v468 = vunpack.c.h.b16 %v297
    %v469 = vunpack.c.l.b16 %v298
    %v470 = vunpack.c.h.b16 %v298
    %v471 = vunpack.c.l.b16 %v299
    %v472 = vunpack.c.h.b16 %v299
    %v473 = vunpack.c.l.b16 %v300
    %v474 = vunpack.c.h.b16 %v300
    %v475 = vunpack.c.l.b16 %v301
    %v476 = vunpack.c.h.b16 %v301
    %v477 = vunpack.c.l.b16 %v302
    %v478 = vunpack.c.h.b16 %v302
    %v479 = vunpack.c.l.b16 %v303
    %v480 = vunpack.c.h.b16 %v303
    %v481 = vunpack.c.l.b16 %v304
    %v482 = vunpack.c.h.b16 %v304
    %v483 = vunpack.c.l.b16 %v305
    %v484 = vunpack.c.h.b16 %v305
    %v485 = vunpack.c.l.b16 %v306
    %v486 = vunpack.c.h.b16 %v306
    %v487 = vunpack.c.l.b16 %v307
    %v488 = vunpack.c.h.b16 %v307
    %v489 = vunpack.c.l.b16 %v308
    %v490 = vunpack.c.h.b16 %v308
    %v491 = vunpack.c.l.b16 %v309
    %v492 = vunpack.c.h.b16 %v309
    %v493 = vunpack.c.l.b16 %v310
    %v494 = vunpack.c.h.b16 %v310
    %v495 = vunpack.c.l.b16 %v311
    %v496 = vunpack.c.h.b16 %v311
    %v497 = vunpack.c.l.b16 %v312
    %v498 = vunpack.c.h.b16 %v312
    %v499 = vunpack.c.l.b16 %v313
    %v500 = vunpack.c.h.b16 %v313
    %v501 = vunpack.c.l.b16 %v314
    %v502 = vunpack.c.h.b16 %v314
    %v503 = vunpack.c.l.b16 %v315
    %v504 = vunpack.c.h.b16 %v315
    %v505 = vunpack.c.l.b16 %v316
    %v506 = vunpack.c.h.b16 %v316
    %v507 = vunpack.c.l.b16 %v317
    %v508 = vunpack.c.h.b16 %v317
    %v509 = vunpack.c.l.b16 %v318
    %v510 = vunpack.c.h.b16 %v318
    %v511 = vunpack.c.l.b16 %v319
    %v512 = vunpack.c.h.b16 %v319
    %v513 = vunpack.c.l.b16 %v320
    %v514 = vunpack.c.h.b16 %v320
    %v515 = vunpack.c.l.b16 %v321
    %v516 = vunpack.c.h.b16 %v321
    %v517 = vunpack.c.l.b16 %v322
    %v518 = vunpack.c.h.b16 %v322
    %v519 = vunpack.c.l.b16 %v323
    %v520 = vunpack.c.h.b16 %v323
    %v521 = vunpack.c.l.b16 %v324
    %v522 = vunpack.c.h.b16 %v324
    %v523 = vunpack.c.l.b16 %v325
    %v524 = vunpack.c.h.b16 %v325
    %v525 = vunpack.c.l.b16 %v326
    %v526 = vunpack.c.h.b16 %v326
    %v527 = vunpack.c.l.b16 %v327
    %v528 = vunpack.c.h.b16 %v327
    %v529 = vunpack.c.l.b16 %v328
    %v530 = vunpack.c.h.b16 %v328
    %v531 = vunpack.c.l.b16 %v329
    %v532 = vunpack.c.h.b16 %v329
    %v533 = vunpack.c.l.b16 %v330
    %v534 = vunpack.c.h.b16 %v330
    %v535 = vunpack.c.l.b16 %v331
    %v536 = vunpack.c.h.b16 %v331
    %v537 = vunpack.c.l.b16 %v332
    %v538 = vunpack.c.h.b16 %v332
    %v539 = vunpack.c.l.b16 %v333
    %v540 = vunpack.c.h.b16 %v333
    %v541 = vunpack.c.l.b16 %v334
    %v542 = vunpack.c.h.b16 %v334
    %v543 = vunpack.c.l.b16 %v335
    %v544 = vunpack.c.h.b16 %v335
    %v545 = vunpack.c.l.b16 %v336
    %v546 = vunpack.c.h.b16 %v336
    %v547 = vunpack.c.l.b16 %v337
    %v548 = vunpack.c.h.b16 %v337
    %v549 = vunpack.c.l.b16 %v338
    %v550 = vunpack.c.h.b16 %v338
    %v551 = vpack.c.b16 %v427, %v423
    %v552 = vpack.c.b16 %v428, %v424
    %v553 = vpack.c.b16 %v429, %v425
    %v554 = vpack.c.b16 %v430, %v426
    %v555 = vpack.c.b16 %v435, %v431
    %v556 = vpack.c.b16 %v436, %v432
    %v557 = vpack.c.b16 %v437, %v433
    %v558 = vpack.c.b16 %v438, %v434
    %v559 = vpack.c.b16 %v443, %v439
    %v560 = vpack.c.b16 %v444, %v440
    %v561 = vpack.c.b16 %v445, %v441
    %v562 = vpack.c.b16 %v446, %v442
    %v563 = vpack.c.b16 %v451, %v447
    %v564 = vpack.c.b16 %v452, %v448
    %v565 = vpack.c.b16 %v453, %v449
    %v566 = vpack.c.b16 %v454, %v450
    %v567 = vpack.c.b16 %v459, %v455
    %v568 = vpack.c.b16 %v460, %v456
    %v569 = vpack.c.b16 %v461, %v457
    %v570 = vpack.c.b16 %v462, %v458
    %v571 = vpack.c.b16 %v467, %v463
    %v572 = vpack.c.b16 %v468, %v464
    %v573 = vpack.c.b16 %v469, %v465
    %v574 = vpack.c.b16 %v470, %v466
    %v575 = vpack.c.b16 %v475, %v471
    %v576 = vpack.c.b16 %v476, %v472
    %v577 = vpack.c.b16 %v477, %v473
    %v578 = vpack.c.b16 %v478, %v474
    %v579 = vpack.c.b16 %v483, %v479
    %v580 = vpack.c.b16 %v484, %v480
    %v581 = vpack.c.b16 %v485, %v481
    %v582 = vpack.c.b16 %v486, %v482
    %v583 = vpack.c.b16 %v491, %v487
    %v584 = vpack.c.b16 %v492, %v488
    %v585 = vpack.c.b16 %v493, %v489
    %v586 = vpack.c.b16 %v494, %v490
    %v587 = vpack.c.b16 %v499, %v495
    %v588 = vpack.c.b16 %v500, %v496
    %v589 = vpack.c.b16 %v501, %v497
    %v590 = vpack.c.b16 %v502, %v498
    %v591 = vpack.c.b16 %v507, %v503
    %v592 = vpack.c.b16 %v508, %v504
    %v593 = vpack.c.b16 %v509, %v505
    %v594 = vpack.c.b16 %v510, %v506
    %v595 = vpack.c.b16 %v515, %v511
    %v596 = vpack.c.b16 %v516, %v512
    %v597 = vpack.c.b16 %v517, %v513
    %v598 = vpack.c.b16 %v518, %v514
    %v599 = vpack.c.b16 %v523, %v519
    %v600 = vpack.c.b16 %v524, %v520
    %v601 = vpack.c.b16 %v525, %v521
    %v602 = vpack.c.b16 %v526, %v522
    %v603 = vpack.c.b16 %v531, %v527
    %v604 = vpack.c.b16 %v532, %v528
    %v605 = vpack.c.b16 %v533, %v529
    %v606 = vpack.c.b16 %v534, %v530
    %v607 = vpack.c.b16 %v539, %v535
    %v608 = vpack.c.b16 %v540, %v536
    %v609 = vpack.c.b16 %v541, %v537
    %v610 = vpack.c.b16 %v542, %v538
    %v611 = vpack.c.b16 %v547, %v543
    %v612 = vpack.c.b16 %v548, %v544
    %v613 = vpack.c.b16 %v549, %v545
    %v614 = vpack.c.b16 %v550, %v546
    %679 = vmatpush.bf16.msra.mxu0 %v579
    %680 = vmatpush.bf16.msra.mxu0 %v575
    %681 = vmatpush.bf16.msra.mxu0 %v571
    %682 = vmatpush.bf16.msra.mxu0 %v567
    %683 = vmatpush.bf16.msra.mxu0 %v563
    %684 = vmatpush.bf16.msra.mxu0 %v559
    %685 = vmatpush.bf16.msra.mxu0 %v555
    %686 = vmatpush.bf16.msra.mxu0 %v551
    %687 = vmatmul.bf16.gmra.mxu0 %v355
    %v688 = vpop.f32.mrf.mxu0
    %v689 = vadd.f32 %v341, %v688
    %v690 = vpop.f32.mrf.mxu0
    %v691 = vadd.f32 %v341, %v690
    %692 = vdwg.mxu0
    %693 = vmatpush.bf16.msra.mxu0 %v611
    %694 = vmatpush.bf16.msra.mxu0 %v607
    %695 = vmatpush.bf16.msra.mxu0 %v603
    %696 = vmatpush.bf16.msra.mxu0 %v599
    %697 = vmatpush.bf16.msra.mxu0 %v595
    %698 = vmatpush.bf16.msra.mxu0 %v591
    %699 = vmatpush.bf16.msra.mxu0 %v587
    %700 = vmatpush.bf16.msra.mxu0 %v583
    %701 = vmatmul.bf16.gmra.mxu0 %v356
    %v702 = vpop.f32.mrf.mxu0
    %v703 = vadd.f32 %v689, %v702
    %v704 = vpop.f32.mrf.mxu0
    %v705 = vadd.f32 %v691, %v704
    %706 = vdwg.mxu0
    %707 = vmatpush.bf16.msra.mxu0 %v580
    %708 = vmatpush.bf16.msra.mxu0 %v576
    %709 = vmatpush.bf16.msra.mxu0 %v572
    %710 = vmatpush.bf16.msra.mxu0 %v568
    %711 = vmatpush.bf16.msra.mxu0 %v564
    %712 = vmatpush.bf16.msra.mxu0 %v560
    %713 = vmatpush.bf16.msra.mxu0 %v556
    %714 = vmatpush.bf16.msra.mxu0 %v552
    %715 = vmatmul.bf16.gmra.mxu0 %v355
    %v716 = vpop.f32.mrf.mxu0
    %v717 = vadd.f32 %v342, %v716
    %v718 = vpop.f32.mrf.mxu0
    %v719 = vadd.f32 %v342, %v718
    %720 = vdwg.mxu0
    %721 = vmatpush.bf16.msra.mxu0 %v612
    %722 = vmatpush.bf16.msra.mxu0 %v608
    %723 = vmatpush.bf16.msra.mxu0 %v604
    %724 = vmatpush.bf16.msra.mxu0 %v600
    %725 = vmatpush.bf16.msra.mxu0 %v596
    %726 = vmatpush.bf16.msra.mxu0 %v592
    %727 = vmatpush.bf16.msra.mxu0 %v588
    %728 = vmatpush.bf16.msra.mxu0 %v584
    %729 = vmatmul.bf16.gmra.mxu0 %v356
    %v730 = vpop.f32.mrf.mxu0
    %v731 = vadd.f32 %v717, %v730
    %v732 = vpop.f32.mrf.mxu0
    %v733 = vadd.f32 %v719, %v732
    %734 = vdwg.mxu0
    %735 = vmatpush.bf16.msra.mxu0 %v581
    %736 = vmatpush.bf16.msra.mxu0 %v577
    %737 = vmatpush.bf16.msra.mxu0 %v573
    %738 = vmatpush.bf16.msra.mxu0 %v569
    %739 = vmatpush.bf16.msra.mxu0 %v565
    %740 = vmatpush.bf16.msra.mxu0 %v561
    %741 = vmatpush.bf16.msra.mxu0 %v557
    %742 = vmatpush.bf16.msra.mxu0 %v553
    %743 = vmatmul.bf16.gmra.mxu0 %v355
    %v744 = vpop.f32.mrf.mxu0
    %v745 = vadd.f32 %v343, %v744
    %v746 = vpop.f32.mrf.mxu0
    %v747 = vadd.f32 %v343, %v746
    %748 = vdwg.mxu0
    %749 = vmatpush.bf16.msra.mxu0 %v613
    %750 = vmatpush.bf16.msra.mxu0 %v609
    %751 = vmatpush.bf16.msra.mxu0 %v605
    %752 = vmatpush.bf16.msra.mxu0 %v601
    %753 = vmatpush.bf16.msra.mxu0 %v597
    %754 = vmatpush.bf16.msra.mxu0 %v593
    %755 = vmatpush.bf16.msra.mxu0 %v589
    %756 = vmatpush.bf16.msra.mxu0 %v585
    %757 = vmatmul.bf16.gmra.mxu0 %v356
    %v758 = vpop.f32.mrf.mxu0
    %v759 = vadd.f32 %v745, %v758
    %v760 = vpop.f32.mrf.mxu0
    %v761 = vadd.f32 %v747, %v760
    %762 = vdwg.mxu0
    %763 = vmatpush.bf16.msra.mxu0 %v582
    %764 = vmatpush.bf16.msra.mxu0 %v578
    %765 = vmatpush.bf16.msra.mxu0 %v574
    %766 = vmatpush.bf16.msra.mxu0 %v570
    %767 = vmatpush.bf16.msra.mxu0 %v566
    %768 = vmatpush.bf16.msra.mxu0 %v562
    %769 = vmatpush.bf16.msra.mxu0 %v558
    %770 = vmatpush.bf16.msra.mxu0 %v554
    %771 = vmatmul.bf16.gmra.mxu0 %v355
    %v772 = vpop.f32.mrf.mxu0
    %v773 = vadd.f32 %v344, %v772
    %v774 = vpop.f32.mrf.mxu0
    %v775 = vadd.f32 %v344, %v774
    %776 = vdwg.mxu0
    %777 = vmatpush.bf16.msra.mxu0 %v614
    %778 = vmatpush.bf16.msra.mxu0 %v610
    %779 = vmatpush.bf16.msra.mxu0 %v606
    %780 = vmatpush.bf16.msra.mxu0 %v602
    %781 = vmatpush.bf16.msra.mxu0 %v598
    %782 = vmatpush.bf16.msra.mxu0 %v594
    %783 = vmatpush.bf16.msra.mxu0 %v590
    %784 = vmatpush.bf16.msra.mxu0 %v586
    %785 = vmatmul.bf16.gmra.mxu0 %v356
    %v786 = vpop.f32.mrf.mxu0
    %v787 = vadd.f32 %v773, %v786
    %v788 = vpop.f32.mrf.mxu0
    %v789 = vadd.f32 %v775, %v788
    %790 = vdwg.mxu0
    %v791 = vmax.f32 %v703, 0.0
    %v792 = vmax.f32 %v731, 0.0
    %v793 = vmax.f32 %v759, 0.0
    %v794 = vmax.f32 %v787, 0.0
    %v795 = vmax.f32 %v705, 0.0
    %v796 = vmax.f32 %v733, 0.0
    %v797 = vmax.f32 %v761, 0.0
    %v798 = vmax.f32 %v789, 0.0
    %v799 = vpack.c.bf16 %v795, %v791
    %v800 = vpack.c.bf16 %v796, %v792
    %v801 = vpack.c.bf16 %v797, %v793
    %v802 = vpack.c.bf16 %v798, %v794
    %v803 = vld [vmem:[%s16] sm:$0x1]
    %v804 = vld [vmem:[#allocation19] sm:$0xf]
    %v805 = vld [vmem:[#allocation19 + $0x4] sm:$0xf]
    %v806 = vld [vmem:[#allocation19 + $0x8] sm:$0xf]
    %v807 = vld [vmem:[#allocation19 + $0xc] sm:$0xf]
    %v808 = vld [vmem:[#allocation19 + $0x10] sm:$0xf]
    %v809 = vld [vmem:[#allocation19 + $0x14] sm:$0xf]
    %v810 = vld [vmem:[#allocation19 + $0x18] sm:$0xf]
    %v811 = vld [vmem:[#allocation19 + $0x1c] sm:$0xf]
    %v812 = vld [vmem:[#allocation19 + $0x20] sm:$0xf]
    %v813 = vld [vmem:[#allocation19 + $0x24] sm:$0xf]
    %v814 = vld [vmem:[#allocation19 + $0x28] sm:$0xf]
    %v815 = vld [vmem:[#allocation19 + $0x2c] sm:$0xf]
    %v816 = vld [vmem:[#allocation19 + $0x30] sm:$0xf]
    %v817 = vld [vmem:[#allocation19 + $0x34] sm:$0xf]
    %v818 = vld [vmem:[#allocation19 + $0x38] sm:$0xf]
    %v819 = vld [vmem:[#allocation19 + $0x3c] sm:$0xf]
    %v820 = vld [vmem:[#allocation19 + $0x40] sm:$0xf]
    %v821 = vld [vmem:[#allocation19 + $0x44] sm:$0xf]
    %v822 = vld [vmem:[#allocation19 + $0x48] sm:$0xf]
    %v823 = vld [vmem:[#allocation19 + $0x4c] sm:$0xf]
    %v824 = vld [vmem:[#allocation19 + $0x50] sm:$0xf]
    %v825 = vld [vmem:[#allocation19 + $0x54] sm:$0xf]
    %v826 = vld [vmem:[#allocation19 + $0x58] sm:$0xf]
    %v827 = vld [vmem:[#allocation19 + $0x5c] sm:$0xf]
    %v828 = vld [vmem:[#allocation19 + $0x60] sm:$0xf]
    %v829 = vld [vmem:[#allocation19 + $0x64] sm:$0xf]
    %v830 = vld [vmem:[#allocation19 + $0x68] sm:$0xf]
    %v831 = vld [vmem:[#allocation19 + $0x6c] sm:$0xf]
    %v832 = vld [vmem:[#allocation19 + $0x70] sm:$0xf]
    %v833 = vld [vmem:[#allocation19 + $0x74] sm:$0xf]
    %v834 = vld [vmem:[#allocation19 + $0x78] sm:$0xf]
    %v835 = vld [vmem:[#allocation19 + $0x7c] sm:$0xf]
    %v836 = vld [vmem:[#allocation19 + $0x80] sm:$0xf]
    %v837 = vld [vmem:[#allocation19 + $0x84] sm:$0xf]
    %v838 = vld [vmem:[#allocation19 + $0x88] sm:$0xf]
    %v839 = vld [vmem:[#allocation19 + $0x8c] sm:$0xf]
    %v840 = vld [vmem:[#allocation19 + $0x90] sm:$0xf]
    %v841 = vld [vmem:[#allocation19 + $0x94] sm:$0xf]
    %v842 = vld [vmem:[#allocation19 + $0x98] sm:$0xf]
    %v843 = vld [vmem:[#allocation19 + $0x9c] sm:$0xf]
    %v844 = vld [vmem:[#allocation19 + $0xa0] sm:$0xf]
    %v845 = vld [vmem:[#allocation19 + $0xa4] sm:$0xf]
    %v846 = vld [vmem:[#allocation19 + $0xa8] sm:$0xf]
    %v847 = vld [vmem:[#allocation19 + $0xac] sm:$0xf]
    %v848 = vld [vmem:[#allocation19 + $0xb0] sm:$0xf]
    %v849 = vld [vmem:[#allocation19 + $0xb4] sm:$0xf]
    %v850 = vld [vmem:[#allocation19 + $0xb8] sm:$0xf]
    %v851 = vld [vmem:[#allocation19 + $0xbc] sm:$0xf]
    %v852 = vld [vmem:[#allocation19 + $0xc0] sm:$0xf]
    %v853 = vld [vmem:[#allocation19 + $0xc4] sm:$0xf]
    %v854 = vld [vmem:[#allocation19 + $0xc8] sm:$0xf]
    %v855 = vld [vmem:[#allocation19 + $0xcc] sm:$0xf]
    %v856 = vld [vmem:[#allocation19 + $0xd0] sm:$0xf]
    %v857 = vld [vmem:[#allocation19 + $0xd4] sm:$0xf]
    %v858 = vld [vmem:[#allocation19 + $0xd8] sm:$0xf]
    %v859 = vld [vmem:[#allocation19 + $0xdc] sm:$0xf]
    %v860 = vld [vmem:[#allocation19 + $0xe0] sm:$0xf]
    %v861 = vld [vmem:[#allocation19 + $0xe4] sm:$0xf]
    %v862 = vld [vmem:[#allocation19 + $0xe8] sm:$0xf]
    %v863 = vld [vmem:[#allocation19 + $0xec] sm:$0xf]
    %v864 = vld [vmem:[#allocation19 + $0xf0] sm:$0xf]
    %v865 = vld [vmem:[#allocation19 + $0xf4] sm:$0xf]
    %v866 = vld [vmem:[#allocation19 + $0xf8] sm:$0xf]
    %v867 = vld [vmem:[#allocation19 + $0xfc] sm:$0xf]
    %v932 = vunpack.c.l.b16 %v804
    %v933 = vunpack.c.l.b16 %v805
    %v934 = vunpack.c.l.b16 %v806
    %v935 = vunpack.c.l.b16 %v807
    %v936 = vunpack.c.l.b16 %v808
    %v937 = vunpack.c.l.b16 %v809
    %v938 = vunpack.c.l.b16 %v810
    %v939 = vunpack.c.l.b16 %v811
    %v940 = vunpack.c.l.b16 %v812
    %v941 = vunpack.c.l.b16 %v813
    %v942 = vunpack.c.l.b16 %v814
    %v943 = vunpack.c.l.b16 %v815
    %v944 = vunpack.c.l.b16 %v816
    %v945 = vunpack.c.l.b16 %v817
    %v946 = vunpack.c.l.b16 %v818
    %v947 = vunpack.c.l.b16 %v819
    %v948 = vunpack.c.l.b16 %v820
    %v949 = vunpack.c.l.b16 %v821
    %v950 = vunpack.c.l.b16 %v822
    %v951 = vunpack.c.l.b16 %v823
    %v952 = vunpack.c.l.b16 %v824
    %v953 = vunpack.c.l.b16 %v825
    %v954 = vunpack.c.l.b16 %v826
    %v955 = vunpack.c.l.b16 %v827
    %v956 = vunpack.c.l.b16 %v828
    %v957 = vunpack.c.l.b16 %v829
    %v958 = vunpack.c.l.b16 %v830
    %v959 = vunpack.c.l.b16 %v831
    %v960 = vunpack.c.l.b16 %v832
    %v961 = vunpack.c.l.b16 %v833
    %v962 = vunpack.c.l.b16 %v834
    %v963 = vunpack.c.l.b16 %v835
    %v964 = vunpack.c.l.b16 %v836
    %v965 = vunpack.c.l.b16 %v837
    %v966 = vunpack.c.l.b16 %v838
    %v967 = vunpack.c.l.b16 %v839
    %v968 = vunpack.c.l.b16 %v840
    %v969 = vunpack.c.l.b16 %v841
    %v970 = vunpack.c.l.b16 %v842
    %v971 = vunpack.c.l.b16 %v843
    %v972 = vunpack.c.l.b16 %v844
    %v973 = vunpack.c.l.b16 %v845
    %v974 = vunpack.c.l.b16 %v846
    %v975 = vunpack.c.l.b16 %v847
    %v976 = vunpack.c.l.b16 %v848
    %v977 = vunpack.c.l.b16 %v849
    %v978 = vunpack.c.l.b16 %v850
    %v979 = vunpack.c.l.b16 %v851
    %v980 = vunpack.c.l.b16 %v852
    %v981 = vunpack.c.l.b16 %v853
    %v982 = vunpack.c.l.b16 %v854
    %v983 = vunpack.c.l.b16 %v855
    %v984 = vunpack.c.l.b16 %v856
    %v985 = vunpack.c.l.b16 %v857
    %v986 = vunpack.c.l.b16 %v858
    %v987 = vunpack.c.l.b16 %v859
    %v988 = vunpack.c.l.b16 %v860
    %v989 = vunpack.c.l.b16 %v861
    %v990 = vunpack.c.l.b16 %v862
    %v991 = vunpack.c.l.b16 %v863
    %v992 = vunpack.c.l.b16 %v864
    %v993 = vunpack.c.l.b16 %v865
    %v994 = vunpack.c.l.b16 %v866
    %v995 = vunpack.c.l.b16 %v867
    %v996 = vpack.c.b16 %v933, %v932
    %v997 = vpack.c.b16 %v935, %v934
    %v998 = vpack.c.b16 %v937, %v936
    %v999 = vpack.c.b16 %v939, %v938
    %v1000 = vpack.c.b16 %v941, %v940
    %v1001 = vpack.c.b16 %v943, %v942
    %v1002 = vpack.c.b16 %v945, %v944
    %v1003 = vpack.c.b16 %v947, %v946
    %v1004 = vpack.c.b16 %v949, %v948
    %v1005 = vpack.c.b16 %v951, %v950
    %v1006 = vpack.c.b16 %v953, %v952
    %v1007 = vpack.c.b16 %v955, %v954
    %v1008 = vpack.c.b16 %v957, %v956
    %v1009 = vpack.c.b16 %v959, %v958
    %v1010 = vpack.c.b16 %v961, %v960
    %v1011 = vpack.c.b16 %v963, %v962
    %v1012 = vpack.c.b16 %v965, %v964
    %v1013 = vpack.c.b16 %v967, %v966
    %v1014 = vpack.c.b16 %v969, %v968
    %v1015 = vpack.c.b16 %v971, %v970
    %v1016 = vpack.c.b16 %v973, %v972
    %v1017 = vpack.c.b16 %v975, %v974
    %v1018 = vpack.c.b16 %v977, %v976
    %v1019 = vpack.c.b16 %v979, %v978
    %v1020 = vpack.c.b16 %v981, %v980
    %v1021 = vpack.c.b16 %v983, %v982
    %v1022 = vpack.c.b16 %v985, %v984
    %v1023 = vpack.c.b16 %v987, %v986
    %v1024 = vpack.c.b16 %v989, %v988
    %v1025 = vpack.c.b16 %v991, %v990
    %v1026 = vpack.c.b16 %v993, %v992
    %v1027 = vpack.c.b16 %v995, %v994
    %1060 = vmatpush.bf16.msra.mxu0 %v1003
    %1061 = vmatpush.bf16.msra.mxu0 %v1002
    %1062 = vmatpush.bf16.msra.mxu0 %v1001
    %1063 = vmatpush.bf16.msra.mxu0 %v1000
    %1064 = vmatpush.bf16.msra.mxu0 %v999
    %1065 = vmatpush.bf16.msra.mxu0 %v998
    %1066 = vmatpush.bf16.msra.mxu0 %v997
    %1067 = vmatpush.bf16.msra.mxu0 %v996
    %1068 = vmatmul.bf16.gmra.mxu0 %v799
    %v1069 = vpop.f32.mrf.mxu0
    %v1070 = vadd.f32 0.0, %v1069
    %v1071 = vpop.f32.mrf.mxu0
    %v1072 = vadd.f32 0.0, %v1071
    %1073 = vdwg.mxu0
    %1074 = vmatpush.bf16.msra.mxu0 %v1011
    %1075 = vmatpush.bf16.msra.mxu0 %v1010
    %1076 = vmatpush.bf16.msra.mxu0 %v1009
    %1077 = vmatpush.bf16.msra.mxu0 %v1008
    %1078 = vmatpush.bf16.msra.mxu0 %v1007
    %1079 = vmatpush.bf16.msra.mxu0 %v1006
    %1080 = vmatpush.bf16.msra.mxu0 %v1005
    %1081 = vmatpush.bf16.msra.mxu0 %v1004
    %1082 = vmatmul.bf16.gmra.mxu0 %v800
    %v1083 = vpop.f32.mrf.mxu0
    %v1084 = vadd.f32 %v1070, %v1083
    %v1085 = vpop.f32.mrf.mxu0
    %v1086 = vadd.f32 %v1072, %v1085
    %1087 = vdwg.mxu0
    %1088 = vmatpush.bf16.msra.mxu0 %v1019
    %1089 = vmatpush.bf16.msra.mxu0 %v1018
    %1090 = vmatpush.bf16.msra.mxu0 %v1017
    %1091 = vmatpush.bf16.msra.mxu0 %v1016
    %1092 = vmatpush.bf16.msra.mxu0 %v1015
    %1093 = vmatpush.bf16.msra.mxu0 %v1014
    %1094 = vmatpush.bf16.msra.mxu0 %v1013
    %1095 = vmatpush.bf16.msra.mxu0 %v1012
    %1096 = vmatmul.bf16.gmra.mxu0 %v801
    %v1097 = vpop.f32.mrf.mxu0
    %v1098 = vadd.f32 %v1084, %v1097
    %v1099 = vpop.f32.mrf.mxu0
    %v1100 = vadd.f32 %v1086, %v1099
    %1101 = vdwg.mxu0
    %1102 = vmatpush.bf16.msra.mxu0 %v1027
    %1103 = vmatpush.bf16.msra.mxu0 %v1026
    %1104 = vmatpush.bf16.msra.mxu0 %v1025
    %1105 = vmatpush.bf16.msra.mxu0 %v1024
    %1106 = vmatpush.bf16.msra.mxu0 %v1023
    %1107 = vmatpush.bf16.msra.mxu0 %v1022
    %1108 = vmatpush.bf16.msra.mxu0 %v1021
    %1109 = vmatpush.bf16.msra.mxu0 %v1020
    %1110 = vmatmul.bf16.gmra.mxu0 %v802
    %v1111 = vpop.f32.mrf.mxu0
    %v1112 = vadd.f32 %v1098, %v1111
    %v1113 = vpop.f32.mrf.mxu0
    %v1114 = vadd.f32 %v1100, %v1113
    %1115 = vdwg.mxu0
    %v1117 = vperm.slane %v803, 0
    %v1119 = vadd.f32 %v1117, %v1112
    %v1120 = vadd.f32 %v1117, %v1114
    %v1121 = vld [vmem:[#allocation8] sm:$0xff]
    %v1122 = vld [vmem:[#allocation8 + $0x8] sm:$0xff]
    %v1123 = vld [vmem:[#allocation8 + $0x10] sm:$0xff]
    %v1124 = vld [vmem:[#allocation8 + $0x18] sm:$0xff]
    %v1125 = vld [vmem:[#allocation8 + $0x20] sm:$0xff]
    %v1126 = vld [vmem:[#allocation8 + $0x28] sm:$0xff]
    %v1127 = vld [vmem:[#allocation8 + $0x30] sm:$0xff]
    %v1128 = vld [vmem:[#allocation8 + $0x38] sm:$0xff]
    %v1129 = vld [vmem:[#allocation8 + $0x40] sm:$0xff]
    %v1130 = vld [vmem:[#allocation8 + $0x48] sm:$0xff]
    %v1131 = vld [vmem:[#allocation8 + $0x50] sm:$0xff]
    %v1132 = vld [vmem:[#allocation8 + $0x58] sm:$0xff]
    %v1133 = vld [vmem:[#allocation8 + $0x60] sm:$0xff]
    %v1134 = vld [vmem:[#allocation8 + $0x68] sm:$0xff]
    %v1135 = vld [vmem:[#allocation8 + $0x70] sm:$0xff]
    %v1136 = vld [vmem:[#allocation8 + $0x78] sm:$0xff]
    %v1137 = vld [vmem:[#allocation8 + $0x80] sm:$0xff]
    %v1138 = vld [vmem:[#allocation8 + $0x88] sm:$0xff]
    %v1139 = vld [vmem:[#allocation8 + $0x90] sm:$0xff]
    %v1140 = vld [vmem:[#allocation8 + $0x98] sm:$0xff]
    %v1141 = vld [vmem:[#allocation8 + $0xa0] sm:$0xff]
    %v1142 = vld [vmem:[#allocation8 + $0xa8] sm:$0xff]
    %v1143 = vld [vmem:[#allocation8 + $0xb0] sm:$0xff]
    %v1144 = vld [vmem:[#allocation8 + $0xb8] sm:$0xff]
    %v1145 = vld [vmem:[#allocation8 + $0xc0] sm:$0xff]
    %v1146 = vld [vmem:[#allocation8 + $0xc8] sm:$0xff]
    %v1147 = vld [vmem:[#allocation8 + $0xd0] sm:$0xff]
    %v1148 = vld [vmem:[#allocation8 + $0xd8] sm:$0xff]
    %v1149 = vld [vmem:[#allocation8 + $0xe0] sm:$0xff]
    %v1150 = vld [vmem:[#allocation8 + $0xe8] sm:$0xff]
    %v1151 = vld [vmem:[#allocation8 + $0xf0] sm:$0xff]
    %v1152 = vld [vmem:[#allocation8 + $0xf8] sm:$0xff]
    %v1153 = vld [vmem:[#allocation8 + $0x100] sm:$0xff]
    %v1154 = vld [vmem:[#allocation8 + $0x108] sm:$0xff]
    %v1155 = vld [vmem:[#allocation8 + $0x110] sm:$0xff]
    %v1156 = vld [vmem:[#allocation8 + $0x118] sm:$0xff]
    %v1157 = vld [vmem:[#allocation8 + $0x120] sm:$0xff]
    %v1158 = vld [vmem:[#allocation8 + $0x128] sm:$0xff]
    %v1159 = vld [vmem:[#allocation8 + $0x130] sm:$0xff]
    %v1160 = vld [vmem:[#allocation8 + $0x138] sm:$0xff]
    %v1161 = vld [vmem:[#allocation8 + $0x140] sm:$0xff]
    %v1162 = vld [vmem:[#allocation8 + $0x148] sm:$0xff]
    %v1163 = vld [vmem:[#allocation8 + $0x150] sm:$0xff]
    %v1164 = vld [vmem:[#allocation8 + $0x158] sm:$0xff]
    %v1165 = vld [vmem:[#allocation8 + $0x160] sm:$0xff]
    %v1166 = vld [vmem:[#allocation8 + $0x168] sm:$0xff]
    %v1167 = vld [vmem:[#allocation8 + $0x170] sm:$0xff]
    %v1168 = vld [vmem:[#allocation8 + $0x178] sm:$0xff]
    %v1169 = vld [vmem:[#allocation8 + $0x180] sm:$0xff]
    %v1170 = vld [vmem:[#allocation8 + $0x188] sm:$0xff]
    %v1171 = vld [vmem:[#allocation8 + $0x190] sm:$0xff]
    %v1172 = vld [vmem:[#allocation8 + $0x198] sm:$0xff]
    %v1173 = vld [vmem:[#allocation8 + $0x1a0] sm:$0xff]
    %v1174 = vld [vmem:[#allocation8 + $0x1a8] sm:$0xff]
    %v1175 = vld [vmem:[#allocation8 + $0x1b0] sm:$0xff]
    %v1176 = vld [vmem:[#allocation8 + $0x1b8] sm:$0xff]
    %v1177 = vld [vmem:[#allocation8 + $0x1c0] sm:$0xff]
    %v1178 = vld [vmem:[#allocation8 + $0x1c8] sm:$0xff]
    %v1179 = vld [vmem:[#allocation8 + $0x1d0] sm:$0xff]
    %v1180 = vld [vmem:[#allocation8 + $0x1d8] sm:$0xff]
    %v1181 = vld [vmem:[#allocation8 + $0x1e0] sm:$0xff]
    %v1182 = vld [vmem:[#allocation8 + $0x1e8] sm:$0xff]
    %v1183 = vld [vmem:[#allocation8 + $0x1f0] sm:$0xff]
    %v1184 = vld [vmem:[#allocation8 + $0x1f8] sm:$0xff]
    %v1185 = vld [vmem:[#allocation10] sm:$0xff]
    %v1186 = vld [vmem:[#allocation10 + $0x8] sm:$0xff]
    %v1187 = vld [vmem:[#allocation10 + $0x10] sm:$0xff]
    %v1188 = vld [vmem:[#allocation10 + $0x18] sm:$0xff]
    %v1189 = vld [vmem:[#allocation10 + $0x20] sm:$0xff]
    %v1190 = vld [vmem:[#allocation10 + $0x28] sm:$0xff]
    %v1191 = vld [vmem:[#allocation10 + $0x30] sm:$0xff]
    %v1192 = vld [vmem:[#allocation10 + $0x38] sm:$0xff]
    %v1193 = vld [vmem:[#allocation10 + $0x40] sm:$0xff]
    %v1194 = vld [vmem:[#allocation10 + $0x48] sm:$0xff]
    %v1195 = vld [vmem:[#allocation10 + $0x50] sm:$0xff]
    %v1196 = vld [vmem:[#allocation10 + $0x58] sm:$0xff]
    %v1197 = vld [vmem:[#allocation10 + $0x60] sm:$0xff]
    %v1198 = vld [vmem:[#allocation10 + $0x68] sm:$0xff]
    %v1199 = vld [vmem:[#allocation10 + $0x70] sm:$0xff]
    %v1200 = vld [vmem:[#allocation10 + $0x78] sm:$0xff]
    %v1201 = vld [vmem:[#allocation10 + $0x80] sm:$0xff]
    %v1202 = vld [vmem:[#allocation10 + $0x88] sm:$0xff]
    %v1203 = vld [vmem:[#allocation10 + $0x90] sm:$0xff]
    %v1204 = vld [vmem:[#allocation10 + $0x98] sm:$0xff]
    %v1205 = vld [vmem:[#allocation10 + $0xa0] sm:$0xff]
    %v1206 = vld [vmem:[#allocation10 + $0xa8] sm:$0xff]
    %v1207 = vld [vmem:[#allocation10 + $0xb0] sm:$0xff]
    %v1208 = vld [vmem:[#allocation10 + $0xb8] sm:$0xff]
    %v1209 = vld [vmem:[#allocation10 + $0xc0] sm:$0xff]
    %v1210 = vld [vmem:[#allocation10 + $0xc8] sm:$0xff]
    %v1211 = vld [vmem:[#allocation10 + $0xd0] sm:$0xff]
    %v1212 = vld [vmem:[#allocation10 + $0xd8] sm:$0xff]
    %v1213 = vld [vmem:[#allocation10 + $0xe0] sm:$0xff]
    %v1214 = vld [vmem:[#allocation10 + $0xe8] sm:$0xff]
    %v1215 = vld [vmem:[#allocation10 + $0xf0] sm:$0xff]
    %v1216 = vld [vmem:[#allocation10 + $0xf8] sm:$0xff]
    %v1217 = vld [vmem:[#allocation10 + $0x100] sm:$0xff]
    %v1218 = vld [vmem:[#allocation10 + $0x108] sm:$0xff]
    %v1219 = vld [vmem:[#allocation10 + $0x110] sm:$0xff]
    %v1220 = vld [vmem:[#allocation10 + $0x118] sm:$0xff]
    %v1221 = vld [vmem:[#allocation10 + $0x120] sm:$0xff]
    %v1222 = vld [vmem:[#allocation10 + $0x128] sm:$0xff]
    %v1223 = vld [vmem:[#allocation10 + $0x130] sm:$0xff]
    %v1224 = vld [vmem:[#allocation10 + $0x138] sm:$0xff]
    %v1225 = vld [vmem:[#allocation10 + $0x140] sm:$0xff]
    %v1226 = vld [vmem:[#allocation10 + $0x148] sm:$0xff]
    %v1227 = vld [vmem:[#allocation10 + $0x150] sm:$0xff]
    %v1228 = vld [vmem:[#allocation10 + $0x158] sm:$0xff]
    %v1229 = vld [vmem:[#allocation10 + $0x160] sm:$0xff]
    %v1230 = vld [vmem:[#allocation10 + $0x168] sm:$0xff]
    %v1231 = vld [vmem:[#allocation10 + $0x170] sm:$0xff]
    %v1232 = vld [vmem:[#allocation10 + $0x178] sm:$0xff]
    %v1233 = vld [vmem:[#allocation10 + $0x180] sm:$0xff]
    %v1234 = vld [vmem:[#allocation10 + $0x188] sm:$0xff]
    %v1235 = vld [vmem:[#allocation10 + $0x190] sm:$0xff]
    %v1236 = vld [vmem:[#allocation10 + $0x198] sm:$0xff]
    %v1237 = vld [vmem:[#allocation10 + $0x1a0] sm:$0xff]
    %v1238 = vld [vmem:[#allocation10 + $0x1a8] sm:$0xff]
    %v1239 = vld [vmem:[#allocation10 + $0x1b0] sm:$0xff]
    %v1240 = vld [vmem:[#allocation10 + $0x1b8] sm:$0xff]
    %v1241 = vld [vmem:[#allocation10 + $0x1c0] sm:$0xff]
    %v1242 = vld [vmem:[#allocation10 + $0x1c8] sm:$0xff]
    %v1243 = vld [vmem:[#allocation10 + $0x1d0] sm:$0xff]
    %v1244 = vld [vmem:[#allocation10 + $0x1d8] sm:$0xff]
    %v1245 = vld [vmem:[#allocation10 + $0x1e0] sm:$0xff]
    %v1246 = vld [vmem:[#allocation10 + $0x1e8] sm:$0xff]
    %v1247 = vld [vmem:[#allocation10 + $0x1f0] sm:$0xff]
    %v1248 = vld [vmem:[#allocation10 + $0x1f8] sm:$0xff]
    %v1249 = vld [vmem:[#allocation10 + $0x200] sm:$0xff]
    %v1250 = vld [vmem:[#allocation10 + $0x208] sm:$0xff]
    %v1251 = vld [vmem:[#allocation10 + $0x210] sm:$0xff]
    %v1252 = vld [vmem:[#allocation10 + $0x218] sm:$0xff]
    %v1253 = vld [vmem:[#allocation10 + $0x220] sm:$0xff]
    %v1254 = vld [vmem:[#allocation10 + $0x228] sm:$0xff]
    %v1255 = vld [vmem:[#allocation10 + $0x230] sm:$0xff]
    %v1256 = vld [vmem:[#allocation10 + $0x238] sm:$0xff]
    %v1257 = vld [vmem:[#allocation10 + $0x240] sm:$0xff]
    %v1258 = vld [vmem:[#allocation10 + $0x248] sm:$0xff]
    %v1259 = vld [vmem:[#allocation10 + $0x250] sm:$0xff]
    %v1260 = vld [vmem:[#allocation10 + $0x258] sm:$0xff]
    %v1261 = vld [vmem:[#allocation10 + $0x260] sm:$0xff]
    %v1262 = vld [vmem:[#allocation10 + $0x268] sm:$0xff]
    %v1263 = vld [vmem:[#allocation10 + $0x270] sm:$0xff]
    %v1264 = vld [vmem:[#allocation10 + $0x278] sm:$0xff]
    %v1265 = vld [vmem:[#allocation10 + $0x280] sm:$0xff]
    %v1266 = vld [vmem:[#allocation10 + $0x288] sm:$0xff]
    %v1267 = vld [vmem:[#allocation10 + $0x290] sm:$0xff]
    %v1268 = vld [vmem:[#allocation10 + $0x298] sm:$0xff]
    %v1269 = vld [vmem:[#allocation10 + $0x2a0] sm:$0xff]
    %v1270 = vld [vmem:[#allocation10 + $0x2a8] sm:$0xff]
    %v1271 = vld [vmem:[#allocation10 + $0x2b0] sm:$0xff]
    %v1272 = vld [vmem:[#allocation10 + $0x2b8] sm:$0xff]
    %v1273 = vld [vmem:[#allocation10 + $0x2c0] sm:$0xff]
    %v1274 = vld [vmem:[#allocation10 + $0x2c8] sm:$0xff]
    %v1275 = vld [vmem:[#allocation10 + $0x2d0] sm:$0xff]
    %v1276 = vld [vmem:[#allocation10 + $0x2d8] sm:$0xff]
    %v1277 = vld [vmem:[#allocation10 + $0x2e0] sm:$0xff]
    %v1278 = vld [vmem:[#allocation10 + $0x2e8] sm:$0xff]
    %v1279 = vld [vmem:[#allocation10 + $0x2f0] sm:$0xff]
    %v1280 = vld [vmem:[#allocation10 + $0x2f8] sm:$0xff]
    %v1281 = vld [vmem:[#allocation10 + $0x300] sm:$0xff]
    %v1282 = vld [vmem:[#allocation10 + $0x308] sm:$0xff]
    %v1283 = vld [vmem:[#allocation10 + $0x310] sm:$0xff]
    %v1284 = vld [vmem:[#allocation10 + $0x318] sm:$0xff]
    %v1285 = vld [vmem:[#allocation10 + $0x320] sm:$0xff]
    %v1286 = vld [vmem:[#allocation10 + $0x328] sm:$0xff]
    %v1287 = vld [vmem:[#allocation10 + $0x330] sm:$0xff]
    %v1288 = vld [vmem:[#allocation10 + $0x338] sm:$0xff]
    %v1289 = vld [vmem:[#allocation10 + $0x340] sm:$0xff]
    %v1290 = vld [vmem:[#allocation10 + $0x348] sm:$0xff]
    %v1291 = vld [vmem:[#allocation10 + $0x350] sm:$0xff]
    %v1292 = vld [vmem:[#allocation10 + $0x358] sm:$0xff]
    %v1293 = vld [vmem:[#allocation10 + $0x360] sm:$0xff]
    %v1294 = vld [vmem:[#allocation10 + $0x368] sm:$0xff]
    %v1295 = vld [vmem:[#allocation10 + $0x370] sm:$0xff]
    %v1296 = vld [vmem:[#allocation10 + $0x378] sm:$0xff]
    %v1297 = vld [vmem:[#allocation10 + $0x380] sm:$0xff]
    %v1298 = vld [vmem:[#allocation10 + $0x388] sm:$0xff]
    %v1299 = vld [vmem:[#allocation10 + $0x390] sm:$0xff]
    %v1300 = vld [vmem:[#allocation10 + $0x398] sm:$0xff]
    %v1301 = vld [vmem:[#allocation10 + $0x3a0] sm:$0xff]
    %v1302 = vld [vmem:[#allocation10 + $0x3a8] sm:$0xff]
    %v1303 = vld [vmem:[#allocation10 + $0x3b0] sm:$0xff]
    %v1304 = vld [vmem:[#allocation10 + $0x3b8] sm:$0xff]
    %v1305 = vld [vmem:[#allocation10 + $0x3c0] sm:$0xff]
    %v1306 = vld [vmem:[#allocation10 + $0x3c8] sm:$0xff]
    %v1307 = vld [vmem:[#allocation10 + $0x3d0] sm:$0xff]
    %v1308 = vld [vmem:[#allocation10 + $0x3d8] sm:$0xff]
    %v1309 = vld [vmem:[#allocation10 + $0x3e0] sm:$0xff]
    %v1310 = vld [vmem:[#allocation10 + $0x3e8] sm:$0xff]
    %v1311 = vld [vmem:[#allocation10 + $0x3f0] sm:$0xff]
    %v1312 = vld [vmem:[#allocation10 + $0x3f8] sm:$0xff]
    %v1441 = vunpack.c.l.b16 %v1185
    %v1442 = vunpack.c.h.b16 %v1185
    %v1443 = vunpack.c.l.b16 %v1186
    %v1444 = vunpack.c.h.b16 %v1186
    %v1445 = vunpack.c.l.b16 %v1187
    %v1446 = vunpack.c.h.b16 %v1187
    %v1447 = vunpack.c.l.b16 %v1188
    %v1448 = vunpack.c.h.b16 %v1188
    %v1449 = vunpack.c.l.b16 %v1189
    %v1450 = vunpack.c.h.b16 %v1189
    %v1451 = vunpack.c.l.b16 %v1190
    %v1452 = vunpack.c.h.b16 %v1190
    %v1453 = vunpack.c.l.b16 %v1191
    %v1454 = vunpack.c.h.b16 %v1191
    %v1455 = vunpack.c.l.b16 %v1192
    %v1456 = vunpack.c.h.b16 %v1192
    %v1457 = vunpack.c.l.b16 %v1193
    %v1458 = vunpack.c.h.b16 %v1193
    %v1459 = vunpack.c.l.b16 %v1194
    %v1460 = vunpack.c.h.b16 %v1194
    %v1461 = vunpack.c.l.b16 %v1195
    %v1462 = vunpack.c.h.b16 %v1195
    %v1463 = vunpack.c.l.b16 %v1196
    %v1464 = vunpack.c.h.b16 %v1196
    %v1465 = vunpack.c.l.b16 %v1197
    %v1466 = vunpack.c.h.b16 %v1197
    %v1467 = vunpack.c.l.b16 %v1198
    %v1468 = vunpack.c.h.b16 %v1198
    %v1469 = vunpack.c.l.b16 %v1199
    %v1470 = vunpack.c.h.b16 %v1199
    %v1471 = vunpack.c.l.b16 %v1200
    %v1472 = vunpack.c.h.b16 %v1200
    %v1473 = vunpack.c.l.b16 %v1201
    %v1474 = vunpack.c.h.b16 %v1201
    %v1475 = vunpack.c.l.b16 %v1202
    %v1476 = vunpack.c.h.b16 %v1202
    %v1477 = vunpack.c.l.b16 %v1203
    %v1478 = vunpack.c.h.b16 %v1203
    %v1479 = vunpack.c.l.b16 %v1204
    %v1480 = vunpack.c.h.b16 %v1204
    %v1481 = vunpack.c.l.b16 %v1205
    %v1482 = vunpack.c.h.b16 %v1205
    %v1483 = vunpack.c.l.b16 %v1206
    %v1484 = vunpack.c.h.b16 %v1206
    %v1485 = vunpack.c.l.b16 %v1207
    %v1486 = vunpack.c.h.b16 %v1207
    %v1487 = vunpack.c.l.b16 %v1208
    %v1488 = vunpack.c.h.b16 %v1208
    %v1489 = vunpack.c.l.b16 %v1209
    %v1490 = vunpack.c.h.b16 %v1209
    %v1491 = vunpack.c.l.b16 %v1210
    %v1492 = vunpack.c.h.b16 %v1210
    %v1493 = vunpack.c.l.b16 %v1211
    %v1494 = vunpack.c.h.b16 %v1211
    %v1495 = vunpack.c.l.b16 %v1212
    %v1496 = vunpack.c.h.b16 %v1212
    %v1497 = vunpack.c.l.b16 %v1213
    %v1498 = vunpack.c.h.b16 %v1213
    %v1499 = vunpack.c.l.b16 %v1214
    %v1500 = vunpack.c.h.b16 %v1214
    %v1501 = vunpack.c.l.b16 %v1215
    %v1502 = vunpack.c.h.b16 %v1215
    %v1503 = vunpack.c.l.b16 %v1216
    %v1504 = vunpack.c.h.b16 %v1216
    %v1505 = vunpack.c.l.b16 %v1217
    %v1506 = vunpack.c.h.b16 %v1217
    %v1507 = vunpack.c.l.b16 %v1218
    %v1508 = vunpack.c.h.b16 %v1218
    %v1509 = vunpack.c.l.b16 %v1219
    %v1510 = vunpack.c.h.b16 %v1219
    %v1511 = vunpack.c.l.b16 %v1220
    %v1512 = vunpack.c.h.b16 %v1220
    %v1513 = vunpack.c.l.b16 %v1221
    %v1514 = vunpack.c.h.b16 %v1221
    %v1515 = vunpack.c.l.b16 %v1222
    %v1516 = vunpack.c.h.b16 %v1222
    %v1517 = vunpack.c.l.b16 %v1223
    %v1518 = vunpack.c.h.b16 %v1223
    %v1519 = vunpack.c.l.b16 %v1224
    %v1520 = vunpack.c.h.b16 %v1224
    %v1521 = vunpack.c.l.b16 %v1225
    %v1522 = vunpack.c.h.b16 %v1225
    %v1523 = vunpack.c.l.b16 %v1226
    %v1524 = vunpack.c.h.b16 %v1226
    %v1525 = vunpack.c.l.b16 %v1227
    %v1526 = vunpack.c.h.b16 %v1227
    %v1527 = vunpack.c.l.b16 %v1228
    %v1528 = vunpack.c.h.b16 %v1228
    %v1529 = vunpack.c.l.b16 %v1229
    %v1530 = vunpack.c.h.b16 %v1229
    %v1531 = vunpack.c.l.b16 %v1230
    %v1532 = vunpack.c.h.b16 %v1230
    %v1533 = vunpack.c.l.b16 %v1231
    %v1534 = vunpack.c.h.b16 %v1231
    %v1535 = vunpack.c.l.b16 %v1232
    %v1536 = vunpack.c.h.b16 %v1232
    %v1537 = vunpack.c.l.b16 %v1233
    %v1538 = vunpack.c.h.b16 %v1233
    %v1539 = vunpack.c.l.b16 %v1234
    %v1540 = vunpack.c.h.b16 %v1234
    %v1541 = vunpack.c.l.b16 %v1235
    %v1542 = vunpack.c.h.b16 %v1235
    %v1543 = vunpack.c.l.b16 %v1236
    %v1544 = vunpack.c.h.b16 %v1236
    %v1545 = vunpack.c.l.b16 %v1237
    %v1546 = vunpack.c.h.b16 %v1237
    %v1547 = vunpack.c.l.b16 %v1238
    %v1548 = vunpack.c.h.b16 %v1238
    %v1549 = vunpack.c.l.b16 %v1239
    %v1550 = vunpack.c.h.b16 %v1239
    %v1551 = vunpack.c.l.b16 %v1240
    %v1552 = vunpack.c.h.b16 %v1240
    %v1553 = vunpack.c.l.b16 %v1241
    %v1554 = vunpack.c.h.b16 %v1241
    %v1555 = vunpack.c.l.b16 %v1242
    %v1556 = vunpack.c.h.b16 %v1242
    %v1557 = vunpack.c.l.b16 %v1243
    %v1558 = vunpack.c.h.b16 %v1243
    %v1559 = vunpack.c.l.b16 %v1244
    %v1560 = vunpack.c.h.b16 %v1244
    %v1561 = vunpack.c.l.b16 %v1245
    %v1562 = vunpack.c.h.b16 %v1245
    %v1563 = vunpack.c.l.b16 %v1246
    %v1564 = vunpack.c.h.b16 %v1246
    %v1565 = vunpack.c.l.b16 %v1247
    %v1566 = vunpack.c.h.b16 %v1247
    %v1567 = vunpack.c.l.b16 %v1248
    %v1568 = vunpack.c.h.b16 %v1248
    %v1569 = vunpack.c.l.b16 %v1249
    %v1570 = vunpack.c.h.b16 %v1249
    %v1571 = vunpack.c.l.b16 %v1250
    %v1572 = vunpack.c.h.b16 %v1250
    %v1573 = vunpack.c.l.b16 %v1251
    %v1574 = vunpack.c.h.b16 %v1251
    %v1575 = vunpack.c.l.b16 %v1252
    %v1576 = vunpack.c.h.b16 %v1252
    %v1577 = vunpack.c.l.b16 %v1253
    %v1578 = vunpack.c.h.b16 %v1253
    %v1579 = vunpack.c.l.b16 %v1254
    %v1580 = vunpack.c.h.b16 %v1254
    %v1581 = vunpack.c.l.b16 %v1255
    %v1582 = vunpack.c.h.b16 %v1255
    %v1583 = vunpack.c.l.b16 %v1256
    %v1584 = vunpack.c.h.b16 %v1256
    %v1585 = vunpack.c.l.b16 %v1257
    %v1586 = vunpack.c.h.b16 %v1257
    %v1587 = vunpack.c.l.b16 %v1258
    %v1588 = vunpack.c.h.b16 %v1258
    %v1589 = vunpack.c.l.b16 %v1259
    %v1590 = vunpack.c.h.b16 %v1259
    %v1591 = vunpack.c.l.b16 %v1260
    %v1592 = vunpack.c.h.b16 %v1260
    %v1593 = vunpack.c.l.b16 %v1261
    %v1594 = vunpack.c.h.b16 %v1261
    %v1595 = vunpack.c.l.b16 %v1262
    %v1596 = vunpack.c.h.b16 %v1262
    %v1597 = vunpack.c.l.b16 %v1263
    %v1598 = vunpack.c.h.b16 %v1263
    %v1599 = vunpack.c.l.b16 %v1264
    %v1600 = vunpack.c.h.b16 %v1264
    %v1601 = vunpack.c.l.b16 %v1265
    %v1602 = vunpack.c.h.b16 %v1265
    %v1603 = vunpack.c.l.b16 %v1266
    %v1604 = vunpack.c.h.b16 %v1266
    %v1605 = vunpack.c.l.b16 %v1267
    %v1606 = vunpack.c.h.b16 %v1267
    %v1607 = vunpack.c.l.b16 %v1268
    %v1608 = vunpack.c.h.b16 %v1268
    %v1609 = vunpack.c.l.b16 %v1269
    %v1610 = vunpack.c.h.b16 %v1269
    %v1611 = vunpack.c.l.b16 %v1270
    %v1612 = vunpack.c.h.b16 %v1270
    %v1613 = vunpack.c.l.b16 %v1271
    %v1614 = vunpack.c.h.b16 %v1271
    %v1615 = vunpack.c.l.b16 %v1272
    %v1616 = vunpack.c.h.b16 %v1272
    %v1617 = vunpack.c.l.b16 %v1273
    %v1618 = vunpack.c.h.b16 %v1273
    %v1619 = vunpack.c.l.b16 %v1274
    %v1620 = vunpack.c.h.b16 %v1274
    %v1621 = vunpack.c.l.b16 %v1275
    %v1622 = vunpack.c.h.b16 %v1275
    %v1623 = vunpack.c.l.b16 %v1276
    %v1624 = vunpack.c.h.b16 %v1276
    %v1625 = vunpack.c.l.b16 %v1277
    %v1626 = vunpack.c.h.b16 %v1277
    %v1627 = vunpack.c.l.b16 %v1278
    %v1628 = vunpack.c.h.b16 %v1278
    %v1629 = vunpack.c.l.b16 %v1279
    %v1630 = vunpack.c.h.b16 %v1279
    %v1631 = vunpack.c.l.b16 %v1280
    %v1632 = vunpack.c.h.b16 %v1280
    %v1633 = vunpack.c.l.b16 %v1281
    %v1634 = vunpack.c.h.b16 %v1281
    %v1635 = vunpack.c.l.b16 %v1282
    %v1636 = vunpack.c.h.b16 %v1282
    %v1637 = vunpack.c.l.b16 %v1283
    %v1638 = vunpack.c.h.b16 %v1283
    %v1639 = vunpack.c.l.b16 %v1284
    %v1640 = vunpack.c.h.b16 %v1284
    %v1641 = vunpack.c.l.b16 %v1285
    %v1642 = vunpack.c.h.b16 %v1285
    %v1643 = vunpack.c.l.b16 %v1286
    %v1644 = vunpack.c.h.b16 %v1286
    %v1645 = vunpack.c.l.b16 %v1287
    %v1646 = vunpack.c.h.b16 %v1287
    %v1647 = vunpack.c.l.b16 %v1288
    %v1648 = vunpack.c.h.b16 %v1288
    %v1649 = vunpack.c.l.b16 %v1289
    %v1650 = vunpack.c.h.b16 %v1289
    %v1651 = vunpack.c.l.b16 %v1290
    %v1652 = vunpack.c.h.b16 %v1290
    %v1653 = vunpack.c.l.b16 %v1291
    %v1654 = vunpack.c.h.b16 %v1291
    %v1655 = vunpack.c.l.b16 %v1292
    %v1656 = vunpack.c.h.b16 %v1292
    %v1657 = vunpack.c.l.b16 %v1293
    %v1658 = vunpack.c.h.b16 %v1293
    %v1659 = vunpack.c.l.b16 %v1294
    %v1660 = vunpack.c.h.b16 %v1294
    %v1661 = vunpack.c.l.b16 %v1295
    %v1662 = vunpack.c.h.b16 %v1295
    %v1663 = vunpack.c.l.b16 %v1296
    %v1664 = vunpack.c.h.b16 %v1296
    %v1665 = vunpack.c.l.b16 %v1297
    %v1666 = vunpack.c.h.b16 %v1297
    %v1667 = vunpack.c.l.b16 %v1298
    %v1668 = vunpack.c.h.b16 %v1298
    %v1669 = vunpack.c.l.b16 %v1299
    %v1670 = vunpack.c.h.b16 %v1299
    %v1671 = vunpack.c.l.b16 %v1300
    %v1672 = vunpack.c.h.b16 %v1300
    %v1673 = vunpack.c.l.b16 %v1301
    %v1674 = vunpack.c.h.b16 %v1301
    %v1675 = vunpack.c.l.b16 %v1302
    %v1676 = vunpack.c.h.b16 %v1302
    %v1677 = vunpack.c.l.b16 %v1303
    %v1678 = vunpack.c.h.b16 %v1303
    %v1679 = vunpack.c.l.b16 %v1304
    %v1680 = vunpack.c.h.b16 %v1304
    %v1681 = vunpack.c.l.b16 %v1305
    %v1682 = vunpack.c.h.b16 %v1305
    %v1683 = vunpack.c.l.b16 %v1306
    %v1684 = vunpack.c.h.b16 %v1306
    %v1685 = vunpack.c.l.b16 %v1307
    %v1686 = vunpack.c.h.b16 %v1307
    %v1687 = vunpack.c.l.b16 %v1308
    %v1688 = vunpack.c.h.b16 %v1308
    %v1689 = vunpack.c.l.b16 %v1309
    %v1690 = vunpack.c.h.b16 %v1309
    %v1691 = vunpack.c.l.b16 %v1310
    %v1692 = vunpack.c.h.b16 %v1310
    %v1693 = vunpack.c.l.b16 %v1311
    %v1694 = vunpack.c.h.b16 %v1311
    %v1695 = vunpack.c.l.b16 %v1312
    %v1696 = vunpack.c.h.b16 %v1312
    %v1697 = vpack.c.b16 %v1445, %v1441
    %v1698 = vpack.c.b16 %v1446, %v1442
    %v1699 = vpack.c.b16 %v1447, %v1443
    %v1700 = vpack.c.b16 %v1448, %v1444
    %v1701 = vpack.c.b16 %v1453, %v1449
    %v1702 = vpack.c.b16 %v1454, %v1450
    %v1703 = vpack.c.b16 %v1455, %v1451
    %v1704 = vpack.c.b16 %v1456, %v1452
    %v1705 = vpack.c.b16 %v1461, %v1457
    %v1706 = vpack.c.b16 %v1462, %v1458
    %v1707 = vpack.c.b16 %v1463, %v1459
    %v1708 = vpack.c.b16 %v1464, %v1460
    %v1709 = vpack.c.b16 %v1469, %v1465
    %v1710 = vpack.c.b16 %v1470, %v1466
    %v1711 = vpack.c.b16 %v1471, %v1467
    %v1712 = vpack.c.b16 %v1472, %v1468
    %v1713 = vpack.c.b16 %v1477, %v1473
    %v1714 = vpack.c.b16 %v1478, %v1474
    %v1715 = vpack.c.b16 %v1479, %v1475
    %v1716 = vpack.c.b16 %v1480, %v1476
    %v1717 = vpack.c.b16 %v1485, %v1481
    %v1718 = vpack.c.b16 %v1486, %v1482
    %v1719 = vpack.c.b16 %v1487, %v1483
    %v1720 = vpack.c.b16 %v1488, %v1484
    %v1721 = vpack.c.b16 %v1493, %v1489
    %v1722 = vpack.c.b16 %v1494, %v1490
    %v1723 = vpack.c.b16 %v1495, %v1491
    %v1724 = vpack.c.b16 %v1496, %v1492
    %v1725 = vpack.c.b16 %v1501, %v1497
    %v1726 = vpack.c.b16 %v1502, %v1498
    %v1727 = vpack.c.b16 %v1503, %v1499
    %v1728 = vpack.c.b16 %v1504, %v1500
    %v1729 = vpack.c.b16 %v1509, %v1505
    %v1730 = vpack.c.b16 %v1510, %v1506
    %v1731 = vpack.c.b16 %v1511, %v1507
    %v1732 = vpack.c.b16 %v1512, %v1508
    %v1733 = vpack.c.b16 %v1517, %v1513
    %v1734 = vpack.c.b16 %v1518, %v1514
    %v1735 = vpack.c.b16 %v1519, %v1515
    %v1736 = vpack.c.b16 %v1520, %v1516
    %v1737 = vpack.c.b16 %v1525, %v1521
    %v1738 = vpack.c.b16 %v1526, %v1522
    %v1739 = vpack.c.b16 %v1527, %v1523
    %v1740 = vpack.c.b16 %v1528, %v1524
    %v1741 = vpack.c.b16 %v1533, %v1529
    %v1742 = vpack.c.b16 %v1534, %v1530
    %v1743 = vpack.c.b16 %v1535, %v1531
    %v1744 = vpack.c.b16 %v1536, %v1532
    %v1745 = vpack.c.b16 %v1541, %v1537
    %v1746 = vpack.c.b16 %v1542, %v1538
    %v1747 = vpack.c.b16 %v1543, %v1539
    %v1748 = vpack.c.b16 %v1544, %v1540
    %v1749 = vpack.c.b16 %v1549, %v1545
    %v1750 = vpack.c.b16 %v1550, %v1546
    %v1751 = vpack.c.b16 %v1551, %v1547
    %v1752 = vpack.c.b16 %v1552, %v1548
    %v1753 = vpack.c.b16 %v1557, %v1553
    %v1754 = vpack.c.b16 %v1558, %v1554
    %v1755 = vpack.c.b16 %v1559, %v1555
    %v1756 = vpack.c.b16 %v1560, %v1556
    %v1757 = vpack.c.b16 %v1565, %v1561
    %v1758 = vpack.c.b16 %v1566, %v1562
    %v1759 = vpack.c.b16 %v1567, %v1563
    %v1760 = vpack.c.b16 %v1568, %v1564
    %v1761 = vpack.c.b16 %v1573, %v1569
    %v1762 = vpack.c.b16 %v1574, %v1570
    %v1763 = vpack.c.b16 %v1575, %v1571
    %v1764 = vpack.c.b16 %v1576, %v1572
    %v1765 = vpack.c.b16 %v1581, %v1577
    %v1766 = vpack.c.b16 %v1582, %v1578
    %v1767 = vpack.c.b16 %v1583, %v1579
    %v1768 = vpack.c.b16 %v1584, %v1580
    %v1769 = vpack.c.b16 %v1589, %v1585
    %v1770 = vpack.c.b16 %v1590, %v1586
    %v1771 = vpack.c.b16 %v1591, %v1587
    %v1772 = vpack.c.b16 %v1592, %v1588
    %v1773 = vpack.c.b16 %v1597, %v1593
    %v1774 = vpack.c.b16 %v1598, %v1594
    %v1775 = vpack.c.b16 %v1599, %v1595
    %v1776 = vpack.c.b16 %v1600, %v1596
    %v1777 = vpack.c.b16 %v1605, %v1601
    %v1778 = vpack.c.b16 %v1606, %v1602
    %v1779 = vpack.c.b16 %v1607, %v1603
    %v1780 = vpack.c.b16 %v1608, %v1604
    %v1781 = vpack.c.b16 %v1613, %v1609
    %v1782 = vpack.c.b16 %v1614, %v1610
    %v1783 = vpack.c.b16 %v1615, %v1611
    %v1784 = vpack.c.b16 %v1616, %v1612
    %v1785 = vpack.c.b16 %v1621, %v1617
    %v1786 = vpack.c.b16 %v1622, %v1618
    %v1787 = vpack.c.b16 %v1623, %v1619
    %v1788 = vpack.c.b16 %v1624, %v1620
    %v1789 = vpack.c.b16 %v1629, %v1625
    %v1790 = vpack.c.b16 %v1630, %v1626
    %v1791 = vpack.c.b16 %v1631, %v1627
    %v1792 = vpack.c.b16 %v1632, %v1628
    %v1793 = vpack.c.b16 %v1637, %v1633
    %v1794 = vpack.c.b16 %v1638, %v1634
    %v1795 = vpack.c.b16 %v1639, %v1635
    %v1796 = vpack.c.b16 %v1640, %v1636
    %v1797 = vpack.c.b16 %v1645, %v1641
    %v1798 = vpack.c.b16 %v1646, %v1642
    %v1799 = vpack.c.b16 %v1647, %v1643
    %v1800 = vpack.c.b16 %v1648, %v1644
    %v1801 = vpack.c.b16 %v1653, %v1649
    %v1802 = vpack.c.b16 %v1654, %v1650
    %v1803 = vpack.c.b16 %v1655, %v1651
    %v1804 = vpack.c.b16 %v1656, %v1652
    %v1805 = vpack.c.b16 %v1661, %v1657
    %v1806 = vpack.c.b16 %v1662, %v1658
    %v1807 = vpack.c.b16 %v1663, %v1659
    %v1808 = vpack.c.b16 %v1664, %v1660
    %v1809 = vpack.c.b16 %v1669, %v1665
    %v1810 = vpack.c.b16 %v1670, %v1666
    %v1811 = vpack.c.b16 %v1671, %v1667
    %v1812 = vpack.c.b16 %v1672, %v1668
    %v1813 = vpack.c.b16 %v1677, %v1673
    %v1814 = vpack.c.b16 %v1678, %v1674
    %v1815 = vpack.c.b16 %v1679, %v1675
    %v1816 = vpack.c.b16 %v1680, %v1676
    %v1817 = vpack.c.b16 %v1685, %v1681
    %v1818 = vpack.c.b16 %v1686, %v1682
    %v1819 = vpack.c.b16 %v1687, %v1683
    %v1820 = vpack.c.b16 %v1688, %v1684
    %v1821 = vpack.c.b16 %v1693, %v1689
    %v1822 = vpack.c.b16 %v1694, %v1690
    %v1823 = vpack.c.b16 %v1695, %v1691
    %v1824 = vpack.c.b16 %v1696, %v1692
    %1953 = vmatpush.bf16.msra.mxu0 %v1725
    %1954 = vmatpush.bf16.msra.mxu0 %v1721
    %1955 = vmatpush.bf16.msra.mxu0 %v1717
    %1956 = vmatpush.bf16.msra.mxu0 %v1713
    %1957 = vmatpush.bf16.msra.mxu0 %v1709
    %1958 = vmatpush.bf16.msra.mxu0 %v1705
    %1959 = vmatpush.bf16.msra.mxu0 %v1701
    %1960 = vmatpush.bf16.msra.mxu0 %v1697
    %1961 = vmatmul.bf16.gmra.mxu0 %v799
    %v1962 = vpop.f32.mrf.mxu0
    %v1963 = vadd.f32 0.0, %v1962
    %v1964 = vpop.f32.mrf.mxu0
    %v1965 = vadd.f32 0.0, %v1964
    %1966 = vdwg.mxu0
    %1967 = vmatpush.bf16.msra.mxu0 %v1757
    %1968 = vmatpush.bf16.msra.mxu0 %v1753
    %1969 = vmatpush.bf16.msra.mxu0 %v1749
    %1970 = vmatpush.bf16.msra.mxu0 %v1745
    %1971 = vmatpush.bf16.msra.mxu0 %v1741
    %1972 = vmatpush.bf16.msra.mxu0 %v1737
    %1973 = vmatpush.bf16.msra.mxu0 %v1733
    %1974 = vmatpush.bf16.msra.mxu0 %v1729
    %1975 = vmatmul.bf16.gmra.mxu0 %v800
    %v1976 = vpop.f32.mrf.mxu0
    %v1977 = vadd.f32 %v1963, %v1976
    %v1978 = vpop.f32.mrf.mxu0
    %v1979 = vadd.f32 %v1965, %v1978
    %1980 = vdwg.mxu0
    %1981 = vmatpush.bf16.msra.mxu0 %v1789
    %1982 = vmatpush.bf16.msra.mxu0 %v1785
    %1983 = vmatpush.bf16.msra.mxu0 %v1781
    %1984 = vmatpush.bf16.msra.mxu0 %v1777
    %1985 = vmatpush.bf16.msra.mxu0 %v1773
    %1986 = vmatpush.bf16.msra.mxu0 %v1769
    %1987 = vmatpush.bf16.msra.mxu0 %v1765
    %1988 = vmatpush.bf16.msra.mxu0 %v1761
    %1989 = vmatmul.bf16.gmra.mxu0 %v801
    %v1990 = vpop.f32.mrf.mxu0
    %v1991 = vadd.f32 %v1977, %v1990
    %v1992 = vpop.f32.mrf.mxu0
    %v1993 = vadd.f32 %v1979, %v1992
    %1994 = vdwg.mxu0
    %1995 = vmatpush.bf16.msra.mxu0 %v1821
    %1996 = vmatpush.bf16.msra.mxu0 %v1817
    %1997 = vmatpush.bf16.msra.mxu0 %v1813
    %1998 = vmatpush.bf16.msra.mxu0 %v1809
    %1999 = vmatpush.bf16.msra.mxu0 %v1805
    %2000 = vmatpush.bf16.msra.mxu0 %v1801
    %2001 = vmatpush.bf16.msra.mxu0 %v1797
    %2002 = vmatpush.bf16.msra.mxu0 %v1793
    %2003 = vmatmul.bf16.gmra.mxu0 %v802
    %v2004 = vpop.f32.mrf.mxu0
    %v2005 = vadd.f32 %v1991, %v2004
    %v2006 = vpop.f32.mrf.mxu0
    %v2007 = vadd.f32 %v1993, %v2006
    %2008 = vdwg.mxu0
    %2009 = vmatpush.bf16.msra.mxu0 %v1726
    %2010 = vmatpush.bf16.msra.mxu0 %v1722
    %2011 = vmatpush.bf16.msra.mxu0 %v1718
    %2012 = vmatpush.bf16.msra.mxu0 %v1714
    %2013 = vmatpush.bf16.msra.mxu0 %v1710
    %2014 = vmatpush.bf16.msra.mxu0 %v1706
    %2015 = vmatpush.bf16.msra.mxu0 %v1702
    %2016 = vmatpush.bf16.msra.mxu0 %v1698
    %2017 = vmatmul.bf16.gmra.mxu0 %v799
    %v2018 = vpop.f32.mrf.mxu0
    %v2019 = vadd.f32 0.0, %v2018
    %v2020 = vpop.f32.mrf.mxu0
    %v2021 = vadd.f32 0.0, %v2020
    %2022 = vdwg.mxu0
    %2023 = vmatpush.bf16.msra.mxu0 %v1758
    %2024 = vmatpush.bf16.msra.mxu0 %v1754
    %2025 = vmatpush.bf16.msra.mxu0 %v1750
    %2026 = vmatpush.bf16.msra.mxu0 %v1746
    %2027 = vmatpush.bf16.msra.mxu0 %v1742
    %2028 = vmatpush.bf16.msra.mxu0 %v1738
    %2029 = vmatpush.bf16.msra.mxu0 %v1734
    %2030 = vmatpush.bf16.msra.mxu0 %v1730
    %2031 = vmatmul.bf16.gmra.mxu0 %v800
    %v2032 = vpop.f32.mrf.mxu0
    %v2033 = vadd.f32 %v2019, %v2032
    %v2034 = vpop.f32.mrf.mxu0
    %v2035 = vadd.f32 %v2021, %v2034
    %2036 = vdwg.mxu0
    %2037 = vmatpush.bf16.msra.mxu0 %v1790
    %2038 = vmatpush.bf16.msra.mxu0 %v1786
    %2039 = vmatpush.bf16.msra.mxu0 %v1782
    %2040 = vmatpush.bf16.msra.mxu0 %v1778
    %2041 = vmatpush.bf16.msra.mxu0 %v1774
    %2042 = vmatpush.bf16.msra.mxu0 %v1770
    %2043 = vmatpush.bf16.msra.mxu0 %v1766
    %2044 = vmatpush.bf16.msra.mxu0 %v1762
    %2045 = vmatmul.bf16.gmra.mxu0 %v801
    %v2046 = vpop.f32.mrf.mxu0
    %v2047 = vadd.f32 %v2033, %v2046
    %v2048 = vpop.f32.mrf.mxu0
    %v2049 = vadd.f32 %v2035, %v2048
    %2050 = vdwg.mxu0
    %2051 = vmatpush.bf16.msra.mxu0 %v1822
    %2052 = vmatpush.bf16.msra.mxu0 %v1818
    %2053 = vmatpush.bf16.msra.mxu0 %v1814
    %2054 = vmatpush.bf16.msra.mxu0 %v1810
    %2055 = vmatpush.bf16.msra.mxu0 %v1806
    %2056 = vmatpush.bf16.msra.mxu0 %v1802
    %2057 = vmatpush.bf16.msra.mxu0 %v1798
    %2058 = vmatpush.bf16.msra.mxu0 %v1794
    %2059 = vmatmul.bf16.gmra.mxu0 %v802
    %v2060 = vpop.f32.mrf.mxu0
    %v2061 = vadd.f32 %v2047, %v2060
    %v2062 = vpop.f32.mrf.mxu0
    %v2063 = vadd.f32 %v2049, %v2062
    %2064 = vdwg.mxu0
    %2065 = vmatpush.bf16.msra.mxu0 %v1727
    %2066 = vmatpush.bf16.msra.mxu0 %v1723
    %2067 = vmatpush.bf16.msra.mxu0 %v1719
    %2068 = vmatpush.bf16.msra.mxu0 %v1715
    %2069 = vmatpush.bf16.msra.mxu0 %v1711
    %2070 = vmatpush.bf16.msra.mxu0 %v1707
    %2071 = vmatpush.bf16.msra.mxu0 %v1703
    %2072 = vmatpush.bf16.msra.mxu0 %v1699
    %2073 = vmatmul.bf16.gmra.mxu0 %v799
    %v2074 = vpop.f32.mrf.mxu0
    %v2075 = vadd.f32 0.0, %v2074
    %v2076 = vpop.f32.mrf.mxu0
    %v2077 = vadd.f32 0.0, %v2076
    %2078 = vdwg.mxu0
    %2079 = vmatpush.bf16.msra.mxu0 %v1759
    %2080 = vmatpush.bf16.msra.mxu0 %v1755
    %2081 = vmatpush.bf16.msra.mxu0 %v1751
    %2082 = vmatpush.bf16.msra.mxu0 %v1747
    %2083 = vmatpush.bf16.msra.mxu0 %v1743
    %2084 = vmatpush.bf16.msra.mxu0 %v1739
    %2085 = vmatpush.bf16.msra.mxu0 %v1735
    %2086 = vmatpush.bf16.msra.mxu0 %v1731
    %2087 = vmatmul.bf16.gmra.mxu0 %v800
    %v2088 = vpop.f32.mrf.mxu0
    %v2089 = vadd.f32 %v2075, %v2088
    %v2090 = vpop.f32.mrf.mxu0
    %v2091 = vadd.f32 %v2077, %v2090
    %2092 = vdwg.mxu0
    %2093 = vmatpush.bf16.msra.mxu0 %v1791
    %2094 = vmatpush.bf16.msra.mxu0 %v1787
    %2095 = vmatpush.bf16.msra.mxu0 %v1783
    %2096 = vmatpush.bf16.msra.mxu0 %v1779
    %2097 = vmatpush.bf16.msra.mxu0 %v1775
    %2098 = vmatpush.bf16.msra.mxu0 %v1771
    %2099 = vmatpush.bf16.msra.mxu0 %v1767
    %2100 = vmatpush.bf16.msra.mxu0 %v1763
    %2101 = vmatmul.bf16.gmra.mxu0 %v801
    %v2102 = vpop.f32.mrf.mxu0
    %v2103 = vadd.f32 %v2089, %v2102
    %v2104 = vpop.f32.mrf.mxu0
    %v2105 = vadd.f32 %v2091, %v2104
    %2106 = vdwg.mxu0
    %2107 = vmatpush.bf16.msra.mxu0 %v1823
    %2108 = vmatpush.bf16.msra.mxu0 %v1819
    %2109 = vmatpush.bf16.msra.mxu0 %v1815
    %2110 = vmatpush.bf16.msra.mxu0 %v1811
    %2111 = vmatpush.bf16.msra.mxu0 %v1807
    %2112 = vmatpush.bf16.msra.mxu0 %v1803
    %2113 = vmatpush.bf16.msra.mxu0 %v1799
    %2114 = vmatpush.bf16.msra.mxu0 %v1795
    %2115 = vmatmul.bf16.gmra.mxu0 %v802
    %v2116 = vpop.f32.mrf.mxu0
    %v2117 = vadd.f32 %v2103, %v2116
    %v2118 = vpop.f32.mrf.mxu0
    %v2119 = vadd.f32 %v2105, %v2118
    %2120 = vdwg.mxu0
    %2121 = vmatpush.bf16.msra.mxu0 %v1728
    %2122 = vmatpush.bf16.msra.mxu0 %v1724
    %2123 = vmatpush.bf16.msra.mxu0 %v1720
    %2124 = vmatpush.bf16.msra.mxu0 %v1716
    %2125 = vmatpush.bf16.msra.mxu0 %v1712
    %2126 = vmatpush.bf16.msra.mxu0 %v1708
    %2127 = vmatpush.bf16.msra.mxu0 %v1704
    %2128 = vmatpush.bf16.msra.mxu0 %v1700
    %2129 = vmatmul.bf16.gmra.mxu0 %v799
    %v2130 = vpop.f32.mrf.mxu0
    %v2131 = vadd.f32 0.0, %v2130
    %v2132 = vpop.f32.mrf.mxu0
    %v2133 = vadd.f32 0.0, %v2132
    %2134 = vdwg.mxu0
    %2135 = vmatpush.bf16.msra.mxu0 %v1760
    %2136 = vmatpush.bf16.msra.mxu0 %v1756
    %2137 = vmatpush.bf16.msra.mxu0 %v1752
    %2138 = vmatpush.bf16.msra.mxu0 %v1748
    %2139 = vmatpush.bf16.msra.mxu0 %v1744
    %2140 = vmatpush.bf16.msra.mxu0 %v1740
    %2141 = vmatpush.bf16.msra.mxu0 %v1736
    %2142 = vmatpush.bf16.msra.mxu0 %v1732
    %2143 = vmatmul.bf16.gmra.mxu0 %v800
    %v2144 = vpop.f32.mrf.mxu0
    %v2145 = vadd.f32 %v2131, %v2144
    %v2146 = vpop.f32.mrf.mxu0
    %v2147 = vadd.f32 %v2133, %v2146
    %2148 = vdwg.mxu0
    %2149 = vmatpush.bf16.msra.mxu0 %v1792
    %2150 = vmatpush.bf16.msra.mxu0 %v1788
    %2151 = vmatpush.bf16.msra.mxu0 %v1784
    %2152 = vmatpush.bf16.msra.mxu0 %v1780
    %2153 = vmatpush.bf16.msra.mxu0 %v1776
    %2154 = vmatpush.bf16.msra.mxu0 %v1772
    %2155 = vmatpush.bf16.msra.mxu0 %v1768
    %2156 = vmatpush.bf16.msra.mxu0 %v1764
    %2157 = vmatmul.bf16.gmra.mxu0 %v801
    %v2158 = vpop.f32.mrf.mxu0
    %v2159 = vadd.f32 %v2145, %v2158
    %v2160 = vpop.f32.mrf.mxu0
    %v2161 = vadd.f32 %v2147, %v2160
    %2162 = vdwg.mxu0
    %2163 = vmatpush.bf16.msra.mxu0 %v1824
    %2164 = vmatpush.bf16.msra.mxu0 %v1820
    %2165 = vmatpush.bf16.msra.mxu0 %v1816
    %2166 = vmatpush.bf16.msra.mxu0 %v1812
    %2167 = vmatpush.bf16.msra.mxu0 %v1808
    %2168 = vmatpush.bf16.msra.mxu0 %v1804
    %2169 = vmatpush.bf16.msra.mxu0 %v1800
    %2170 = vmatpush.bf16.msra.mxu0 %v1796
    %2171 = vmatmul.bf16.gmra.mxu0 %v802
    %v2172 = vpop.f32.mrf.mxu0
    %v2173 = vadd.f32 %v2159, %v2172
    %v2174 = vpop.f32.mrf.mxu0
    %v2175 = vadd.f32 %v2161, %v2174
    %2176 = vdwg.mxu0
    %v2179 = vunpack.c.l.b16 %v272
    %v2180 = vunpack.c.h.b16 %v272
    %v2181 = vunpack.c.l.b16 %v274
    %v2182 = vunpack.c.h.b16 %v274
    %v2183 = vpack.c.b16 %v2181, %v2179
    %v2184 = vpack.c.b16 %v2182, %v2180
    %v2251 = vunpack.c.l.b16 %v1121
    %v2252 = vunpack.c.h.b16 %v1121
    %v2253 = vunpack.c.l.b16 %v1122
    %v2254 = vunpack.c.h.b16 %v1122
    %v2255 = vunpack.c.l.b16 %v1123
    %v2256 = vunpack.c.h.b16 %v1123
    %v2257 = vunpack.c.l.b16 %v1124
    %v2258 = vunpack.c.h.b16 %v1124
    %v2259 = vunpack.c.l.b16 %v1125
    %v2260 = vunpack.c.h.b16 %v1125
    %v2261 = vunpack.c.l.b16 %v1126
    %v2262 = vunpack.c.h.b16 %v1126
    %v2263 = vunpack.c.l.b16 %v1127
    %v2264 = vunpack.c.h.b16 %v1127
    %v2265 = vunpack.c.l.b16 %v1128
    %v2266 = vunpack.c.h.b16 %v1128
    %v2267 = vunpack.c.l.b16 %v1129
    %v2268 = vunpack.c.h.b16 %v1129
    %v2269 = vunpack.c.l.b16 %v1130
    %v2270 = vunpack.c.h.b16 %v1130
    %v2271 = vunpack.c.l.b16 %v1131
    %v2272 = vunpack.c.h.b16 %v1131
    %v2273 = vunpack.c.l.b16 %v1132
    %v2274 = vunpack.c.h.b16 %v1132
    %v2275 = vunpack.c.l.b16 %v1133
    %v2276 = vunpack.c.h.b16 %v1133
    %v2277 = vunpack.c.l.b16 %v1134
    %v2278 = vunpack.c.h.b16 %v1134
    %v2279 = vunpack.c.l.b16 %v1135
    %v2280 = vunpack.c.h.b16 %v1135
    %v2281 = vunpack.c.l.b16 %v1136
    %v2282 = vunpack.c.h.b16 %v1136
    %v2283 = vunpack.c.l.b16 %v1137
    %v2284 = vunpack.c.h.b16 %v1137
    %v2285 = vunpack.c.l.b16 %v1138
    %v2286 = vunpack.c.h.b16 %v1138
    %v2287 = vunpack.c.l.b16 %v1139
    %v2288 = vunpack.c.h.b16 %v1139
    %v2289 = vunpack.c.l.b16 %v1140
    %v2290 = vunpack.c.h.b16 %v1140
    %v2291 = vunpack.c.l.b16 %v1141
    %v2292 = vunpack.c.h.b16 %v1141
    %v2293 = vunpack.c.l.b16 %v1142
    %v2294 = vunpack.c.h.b16 %v1142
    %v2295 = vunpack.c.l.b16 %v1143
    %v2296 = vunpack.c.h.b16 %v1143
    %v2297 = vunpack.c.l.b16 %v1144
    %v2298 = vunpack.c.h.b16 %v1144
    %v2299 = vunpack.c.l.b16 %v1145
    %v2300 = vunpack.c.h.b16 %v1145
    %v2301 = vunpack.c.l.b16 %v1146
    %v2302 = vunpack.c.h.b16 %v1146
    %v2303 = vunpack.c.l.b16 %v1147
    %v2304 = vunpack.c.h.b16 %v1147
    %v2305 = vunpack.c.l.b16 %v1148
    %v2306 = vunpack.c.h.b16 %v1148
    %v2307 = vunpack.c.l.b16 %v1149
    %v2308 = vunpack.c.h.b16 %v1149
    %v2309 = vunpack.c.l.b16 %v1150
    %v2310 = vunpack.c.h.b16 %v1150
    %v2311 = vunpack.c.l.b16 %v1151
    %v2312 = vunpack.c.h.b16 %v1151
    %v2313 = vunpack.c.l.b16 %v1152
    %v2314 = vunpack.c.h.b16 %v1152
    %v2315 = vunpack.c.l.b16 %v1153
    %v2316 = vunpack.c.h.b16 %v1153
    %v2317 = vunpack.c.l.b16 %v1154
    %v2318 = vunpack.c.h.b16 %v1154
    %v2319 = vunpack.c.l.b16 %v1155
    %v2320 = vunpack.c.h.b16 %v1155
    %v2321 = vunpack.c.l.b16 %v1156
    %v2322 = vunpack.c.h.b16 %v1156
    %v2323 = vunpack.c.l.b16 %v1157
    %v2324 = vunpack.c.h.b16 %v1157
    %v2325 = vunpack.c.l.b16 %v1158
    %v2326 = vunpack.c.h.b16 %v1158
    %v2327 = vunpack.c.l.b16 %v1159
    %v2328 = vunpack.c.h.b16 %v1159
    %v2329 = vunpack.c.l.b16 %v1160
    %v2330 = vunpack.c.h.b16 %v1160
    %v2331 = vunpack.c.l.b16 %v1161
    %v2332 = vunpack.c.h.b16 %v1161
    %v2333 = vunpack.c.l.b16 %v1162
    %v2334 = vunpack.c.h.b16 %v1162
    %v2335 = vunpack.c.l.b16 %v1163
    %v2336 = vunpack.c.h.b16 %v1163
    %v2337 = vunpack.c.l.b16 %v1164
    %v2338 = vunpack.c.h.b16 %v1164
    %v2339 = vunpack.c.l.b16 %v1165
    %v2340 = vunpack.c.h.b16 %v1165
    %v2341 = vunpack.c.l.b16 %v1166
    %v2342 = vunpack.c.h.b16 %v1166
    %v2343 = vunpack.c.l.b16 %v1167
    %v2344 = vunpack.c.h.b16 %v1167
    %v2345 = vunpack.c.l.b16 %v1168
    %v2346 = vunpack.c.h.b16 %v1168
    %v2347 = vunpack.c.l.b16 %v1169
    %v2348 = vunpack.c.h.b16 %v1169
    %v2349 = vunpack.c.l.b16 %v1170
    %v2350 = vunpack.c.h.b16 %v1170
    %v2351 = vunpack.c.l.b16 %v1171
    %v2352 = vunpack.c.h.b16 %v1171
    %v2353 = vunpack.c.l.b16 %v1172
    %v2354 = vunpack.c.h.b16 %v1172
    %v2355 = vunpack.c.l.b16 %v1173
    %v2356 = vunpack.c.h.b16 %v1173
    %v2357 = vunpack.c.l.b16 %v1174
    %v2358 = vunpack.c.h.b16 %v1174
    %v2359 = vunpack.c.l.b16 %v1175
    %v2360 = vunpack.c.h.b16 %v1175
    %v2361 = vunpack.c.l.b16 %v1176
    %v2362 = vunpack.c.h.b16 %v1176
    %v2363 = vunpack.c.l.b16 %v1177
    %v2364 = vunpack.c.h.b16 %v1177
    %v2365 = vunpack.c.l.b16 %v1178
    %v2366 = vunpack.c.h.b16 %v1178
    %v2367 = vunpack.c.l.b16 %v1179
    %v2368 = vunpack.c.h.b16 %v1179
    %v2369 = vunpack.c.l.b16 %v1180
    %v2370 = vunpack.c.h.b16 %v1180
    %v2371 = vunpack.c.l.b16 %v1181
    %v2372 = vunpack.c.h.b16 %v1181
    %v2373 = vunpack.c.l.b16 %v1182
    %v2374 = vunpack.c.h.b16 %v1182
    %v2375 = vunpack.c.l.b16 %v1183
    %v2376 = vunpack.c.h.b16 %v1183
    %v2377 = vunpack.c.l.b16 %v1184
    %v2378 = vunpack.c.h.b16 %v1184
    %v2379 = vpack.c.b16 %v2255, %v2251
    %v2380 = vpack.c.b16 %v2256, %v2252
    %v2381 = vpack.c.b16 %v2257, %v2253
    %v2382 = vpack.c.b16 %v2258, %v2254
    %v2383 = vpack.c.b16 %v2263, %v2259
    %v2384 = vpack.c.b16 %v2264, %v2260
    %v2385 = vpack.c.b16 %v2265, %v2261
    %v2386 = vpack.c.b16 %v2266, %v2262
    %v2387 = vpack.c.b16 %v2271, %v2267
    %v2388 = vpack.c.b16 %v2272, %v2268
    %v2389 = vpack.c.b16 %v2273, %v2269
    %v2390 = vpack.c.b16 %v2274, %v2270
    %v2391 = vpack.c.b16 %v2279, %v2275
    %v2392 = vpack.c.b16 %v2280, %v2276
    %v2393 = vpack.c.b16 %v2281, %v2277
    %v2394 = vpack.c.b16 %v2282, %v2278
    %v2395 = vpack.c.b16 %v2287, %v2283
    %v2396 = vpack.c.b16 %v2288, %v2284
    %v2397 = vpack.c.b16 %v2289, %v2285
    %v2398 = vpack.c.b16 %v2290, %v2286
    %v2399 = vpack.c.b16 %v2295, %v2291
    %v2400 = vpack.c.b16 %v2296, %v2292
    %v2401 = vpack.c.b16 %v2297, %v2293
    %v2402 = vpack.c.b16 %v2298, %v2294
    %v2403 = vpack.c.b16 %v2303, %v2299
    %v2404 = vpack.c.b16 %v2304, %v2300
    %v2405 = vpack.c.b16 %v2305, %v2301
    %v2406 = vpack.c.b16 %v2306, %v2302
    %v2407 = vpack.c.b16 %v2311, %v2307
    %v2408 = vpack.c.b16 %v2312, %v2308
    %v2409 = vpack.c.b16 %v2313, %v2309
    %v2410 = vpack.c.b16 %v2314, %v2310
    %v2411 = vpack.c.b16 %v2319, %v2315
    %v2412 = vpack.c.b16 %v2320, %v2316
    %v2413 = vpack.c.b16 %v2321, %v2317
    %v2414 = vpack.c.b16 %v2322, %v2318
    %v2415 = vpack.c.b16 %v2327, %v2323
    %v2416 = vpack.c.b16 %v2328, %v2324
    %v2417 = vpack.c.b16 %v2329, %v2325
    %v2418 = vpack.c.b16 %v2330, %v2326
    %v2419 = vpack.c.b16 %v2335, %v2331
    %v2420 = vpack.c.b16 %v2336, %v2332
    %v2421 = vpack.c.b16 %v2337, %v2333
    %v2422 = vpack.c.b16 %v2338, %v2334
    %v2423 = vpack.c.b16 %v2343, %v2339
    %v2424 = vpack.c.b16 %v2344, %v2340
    %v2425 = vpack.c.b16 %v2345, %v2341
    %v2426 = vpack.c.b16 %v2346, %v2342
    %v2427 = vpack.c.b16 %v2351, %v2347
    %v2428 = vpack.c.b16 %v2352, %v2348
    %v2429 = vpack.c.b16 %v2353, %v2349
    %v2430 = vpack.c.b16 %v2354, %v2350
    %v2431 = vpack.c.b16 %v2359, %v2355
    %v2432 = vpack.c.b16 %v2360, %v2356
    %v2433 = vpack.c.b16 %v2361, %v2357
    %v2434 = vpack.c.b16 %v2362, %v2358
    %v2435 = vpack.c.b16 %v2367, %v2363
    %v2436 = vpack.c.b16 %v2368, %v2364
    %v2437 = vpack.c.b16 %v2369, %v2365
    %v2438 = vpack.c.b16 %v2370, %v2366
    %v2439 = vpack.c.b16 %v2375, %v2371
    %v2440 = vpack.c.b16 %v2376, %v2372
    %v2441 = vpack.c.b16 %v2377, %v2373
    %v2442 = vpack.c.b16 %v2378, %v2374
    %2507 = vmatpush.bf16.msra.mxu0 %v2407
    %2508 = vmatpush.bf16.msra.mxu0 %v2403
    %2509 = vmatpush.bf16.msra.mxu0 %v2399
    %2510 = vmatpush.bf16.msra.mxu0 %v2395
    %2511 = vmatpush.bf16.msra.mxu0 %v2391
    %2512 = vmatpush.bf16.msra.mxu0 %v2387
    %2513 = vmatpush.bf16.msra.mxu0 %v2383
    %2514 = vmatpush.bf16.msra.mxu0 %v2379
    %2515 = vmatmul.bf16.gmra.mxu0 %v2183
    %v2516 = vpop.f32.mrf.mxu0
    %v2517 = vadd.f32 %v2005, %v2516
    %v2518 = vpop.f32.mrf.mxu0
    %v2519 = vadd.f32 %v2007, %v2518
    %2520 = vdwg.mxu0
    %2521 = vmatpush.bf16.msra.mxu0 %v2439
    %2522 = vmatpush.bf16.msra.mxu0 %v2435
    %2523 = vmatpush.bf16.msra.mxu0 %v2431
    %2524 = vmatpush.bf16.msra.mxu0 %v2427
    %2525 = vmatpush.bf16.msra.mxu0 %v2423
    %2526 = vmatpush.bf16.msra.mxu0 %v2419
    %2527 = vmatpush.bf16.msra.mxu0 %v2415
    %2528 = vmatpush.bf16.msra.mxu0 %v2411
    %2529 = vmatmul.bf16.gmra.mxu0 %v2184
    %v2530 = vpop.f32.mrf.mxu0
    %v2531 = vadd.f32 %v2517, %v2530
    %v2532 = vpop.f32.mrf.mxu0
    %v2533 = vadd.f32 %v2519, %v2532
    %2534 = vdwg.mxu0
    %2535 = vmatpush.bf16.msra.mxu0 %v2408
    %2536 = vmatpush.bf16.msra.mxu0 %v2404
    %2537 = vmatpush.bf16.msra.mxu0 %v2400
    %2538 = vmatpush.bf16.msra.mxu0 %v2396
    %2539 = vmatpush.bf16.msra.mxu0 %v2392
    %2540 = vmatpush.bf16.msra.mxu0 %v2388
    %2541 = vmatpush.bf16.msra.mxu0 %v2384
    %2542 = vmatpush.bf16.msra.mxu0 %v2380
    %2543 = vmatmul.bf16.gmra.mxu0 %v2183
    %v2544 = vpop.f32.mrf.mxu0
    %v2545 = vadd.f32 %v2061, %v2544
    %v2546 = vpop.f32.mrf.mxu0
    %v2547 = vadd.f32 %v2063, %v2546
    %2548 = vdwg.mxu0
    %2549 = vmatpush.bf16.msra.mxu0 %v2440
    %2550 = vmatpush.bf16.msra.mxu0 %v2436
    %2551 = vmatpush.bf16.msra.mxu0 %v2432
    %2552 = vmatpush.bf16.msra.mxu0 %v2428
    %2553 = vmatpush.bf16.msra.mxu0 %v2424
    %2554 = vmatpush.bf16.msra.mxu0 %v2420
    %2555 = vmatpush.bf16.msra.mxu0 %v2416
    %2556 = vmatpush.bf16.msra.mxu0 %v2412
    %2557 = vmatmul.bf16.gmra.mxu0 %v2184
    %v2558 = vpop.f32.mrf.mxu0
    %v2559 = vadd.f32 %v2545, %v2558
    %v2560 = vpop.f32.mrf.mxu0
    %v2561 = vadd.f32 %v2547, %v2560
    %2562 = vdwg.mxu0
    %2563 = vmatpush.bf16.msra.mxu0 %v2409
    %2564 = vmatpush.bf16.msra.mxu0 %v2405
    %2565 = vmatpush.bf16.msra.mxu0 %v2401
    %2566 = vmatpush.bf16.msra.mxu0 %v2397
    %2567 = vmatpush.bf16.msra.mxu0 %v2393
    %2568 = vmatpush.bf16.msra.mxu0 %v2389
    %2569 = vmatpush.bf16.msra.mxu0 %v2385
    %2570 = vmatpush.bf16.msra.mxu0 %v2381
    %2571 = vmatmul.bf16.gmra.mxu0 %v2183
    %v2572 = vpop.f32.mrf.mxu0
    %v2573 = vadd.f32 %v2117, %v2572
    %v2574 = vpop.f32.mrf.mxu0
    %v2575 = vadd.f32 %v2119, %v2574
    %2576 = vdwg.mxu0
    %2577 = vmatpush.bf16.msra.mxu0 %v2441
    %2578 = vmatpush.bf16.msra.mxu0 %v2437
    %2579 = vmatpush.bf16.msra.mxu0 %v2433
    %2580 = vmatpush.bf16.msra.mxu0 %v2429
    %2581 = vmatpush.bf16.msra.mxu0 %v2425
    %2582 = vmatpush.bf16.msra.mxu0 %v2421
    %2583 = vmatpush.bf16.msra.mxu0 %v2417
    %2584 = vmatpush.bf16.msra.mxu0 %v2413
    %2585 = vmatmul.bf16.gmra.mxu0 %v2184
    %v2586 = vpop.f32.mrf.mxu0
    %v2587 = vadd.f32 %v2573, %v2586
    %v2588 = vpop.f32.mrf.mxu0
    %v2589 = vadd.f32 %v2575, %v2588
    %2590 = vdwg.mxu0
    %2591 = vmatpush.bf16.msra.mxu0 %v2410
    %2592 = vmatpush.bf16.msra.mxu0 %v2406
    %2593 = vmatpush.bf16.msra.mxu0 %v2402
    %2594 = vmatpush.bf16.msra.mxu0 %v2398
    %2595 = vmatpush.bf16.msra.mxu0 %v2394
    %2596 = vmatpush.bf16.msra.mxu0 %v2390
    %2597 = vmatpush.bf16.msra.mxu0 %v2386
    %2598 = vmatpush.bf16.msra.mxu0 %v2382
    %2599 = vmatmul.bf16.gmra.mxu0 %v2183
    %v2600 = vpop.f32.mrf.mxu0
    %v2601 = vadd.f32 %v2173, %v2600
    %v2602 = vpop.f32.mrf.mxu0
    %v2603 = vadd.f32 %v2175, %v2602
    %2604 = vdwg.mxu0
    %2605 = vmatpush.bf16.msra.mxu0 %v2442
    %2606 = vmatpush.bf16.msra.mxu0 %v2438
    %2607 = vmatpush.bf16.msra.mxu0 %v2434
    %2608 = vmatpush.bf16.msra.mxu0 %v2430
    %2609 = vmatpush.bf16.msra.mxu0 %v2426
    %2610 = vmatpush.bf16.msra.mxu0 %v2422
    %2611 = vmatpush.bf16.msra.mxu0 %v2418
    %2612 = vmatpush.bf16.msra.mxu0 %v2414
    %2613 = vmatmul.bf16.gmra.mxu0 %v2184
    %v2614 = vpop.f32.mrf.mxu0
    %v2615 = vadd.f32 %v2601, %v2614
    %v2616 = vpop.f32.mrf.mxu0
    %v2617 = vadd.f32 %v2603, %v2616
    %2618 = vdwg.mxu0
    %v2619 = vld [vmem:[%s5] sm:$0xf]
    %v2621 = vperm.slane %v2619, 0
    %v2622 = vperm.slane %v2619, 1
    %v2623 = vperm.slane %v2619, 2
    %v2624 = vperm.slane %v2619, 3
    %v2629 = vadd.f32 %v2531, %v2621
    %v2630 = vadd.f32 %v2559, %v2622
    %v2631 = vadd.f32 %v2587, %v2623
    %v2632 = vadd.f32 %v2615, %v2624
    %v2633 = vadd.f32 %v2533, %v2621
    %v2634 = vadd.f32 %v2561, %v2622
    %v2635 = vadd.f32 %v2589, %v2623
    %v2636 = vadd.f32 %v2617, %v2624
    %v2637 = vmax.f32 %v2629, 0.0
    %v2638 = vmax.f32 %v2630, 0.0
    %v2639 = vmax.f32 %v2631, 0.0
    %v2640 = vmax.f32 %v2632, 0.0
    %v2641 = vmax.f32 %v2633, 0.0
    %v2642 = vmax.f32 %v2634, 0.0
    %v2643 = vmax.f32 %v2635, 0.0
    %v2644 = vmax.f32 %v2636, 0.0
    %v2645 = vpack.c.bf16 %v2641, %v2637
    %v2646 = vpack.c.bf16 %v2642, %v2638
    %v2647 = vpack.c.bf16 %v2643, %v2639
    %v2648 = vpack.c.bf16 %v2644, %v2640
    %v2649 = vld [vmem:[#allocation20] sm:$0xf]
    %v2650 = vld [vmem:[#allocation20 + $0x4] sm:$0xf]
    %v2651 = vld [vmem:[#allocation20 + $0x8] sm:$0xf]
    %v2652 = vld [vmem:[#allocation20 + $0xc] sm:$0xf]
    %v2653 = vld [vmem:[#allocation20 + $0x10] sm:$0xf]
    %v2654 = vld [vmem:[#allocation20 + $0x14] sm:$0xf]
    %v2655 = vld [vmem:[#allocation20 + $0x18] sm:$0xf]
    %v2656 = vld [vmem:[#allocation20 + $0x1c] sm:$0xf]
    %v2657 = vld [vmem:[#allocation20 + $0x20] sm:$0xf]
    %v2658 = vld [vmem:[#allocation20 + $0x24] sm:$0xf]
    %v2659 = vld [vmem:[#allocation20 + $0x28] sm:$0xf]
    %v2660 = vld [vmem:[#allocation20 + $0x2c] sm:$0xf]
    %v2661 = vld [vmem:[#allocation20 + $0x30] sm:$0xf]
    %v2662 = vld [vmem:[#allocation20 + $0x34] sm:$0xf]
    %v2663 = vld [vmem:[#allocation20 + $0x38] sm:$0xf]
    %v2664 = vld [vmem:[#allocation20 + $0x3c] sm:$0xf]
    %v2665 = vld [vmem:[#allocation20 + $0x40] sm:$0xf]
    %v2666 = vld [vmem:[#allocation20 + $0x44] sm:$0xf]
    %v2667 = vld [vmem:[#allocation20 + $0x48] sm:$0xf]
    %v2668 = vld [vmem:[#allocation20 + $0x4c] sm:$0xf]
    %v2669 = vld [vmem:[#allocation20 + $0x50] sm:$0xf]
    %v2670 = vld [vmem:[#allocation20 + $0x54] sm:$0xf]
    %v2671 = vld [vmem:[#allocation20 + $0x58] sm:$0xf]
    %v2672 = vld [vmem:[#allocation20 + $0x5c] sm:$0xf]
    %v2673 = vld [vmem:[#allocation20 + $0x60] sm:$0xf]
    %v2674 = vld [vmem:[#allocation20 + $0x64] sm:$0xf]
    %v2675 = vld [vmem:[#allocation20 + $0x68] sm:$0xf]
    %v2676 = vld [vmem:[#allocation20 + $0x6c] sm:$0xf]
    %v2677 = vld [vmem:[#allocation20 + $0x70] sm:$0xf]
    %v2678 = vld [vmem:[#allocation20 + $0x74] sm:$0xf]
    %v2679 = vld [vmem:[#allocation20 + $0x78] sm:$0xf]
    %v2680 = vld [vmem:[#allocation20 + $0x7c] sm:$0xf]
    %v2681 = vld [vmem:[#allocation20 + $0x80] sm:$0xf]
    %v2682 = vld [vmem:[#allocation20 + $0x84] sm:$0xf]
    %v2683 = vld [vmem:[#allocation20 + $0x88] sm:$0xf]
    %v2684 = vld [vmem:[#allocation20 + $0x8c] sm:$0xf]
    %v2685 = vld [vmem:[#allocation20 + $0x90] sm:$0xf]
    %v2686 = vld [vmem:[#allocation20 + $0x94] sm:$0xf]
    %v2687 = vld [vmem:[#allocation20 + $0x98] sm:$0xf]
    %v2688 = vld [vmem:[#allocation20 + $0x9c] sm:$0xf]
    %v2689 = vld [vmem:[#allocation20 + $0xa0] sm:$0xf]
    %v2690 = vld [vmem:[#allocation20 + $0xa4] sm:$0xf]
    %v2691 = vld [vmem:[#allocation20 + $0xa8] sm:$0xf]
    %v2692 = vld [vmem:[#allocation20 + $0xac] sm:$0xf]
    %v2693 = vld [vmem:[#allocation20 + $0xb0] sm:$0xf]
    %v2694 = vld [vmem:[#allocation20 + $0xb4] sm:$0xf]
    %v2695 = vld [vmem:[#allocation20 + $0xb8] sm:$0xf]
    %v2696 = vld [vmem:[#allocation20 + $0xbc] sm:$0xf]
    %v2697 = vld [vmem:[#allocation20 + $0xc0] sm:$0xf]
    %v2698 = vld [vmem:[#allocation20 + $0xc4] sm:$0xf]
    %v2699 = vld [vmem:[#allocation20 + $0xc8] sm:$0xf]
    %v2700 = vld [vmem:[#allocation20 + $0xcc] sm:$0xf]
    %v2701 = vld [vmem:[#allocation20 + $0xd0] sm:$0xf]
    %v2702 = vld [vmem:[#allocation20 + $0xd4] sm:$0xf]
    %v2703 = vld [vmem:[#allocation20 + $0xd8] sm:$0xf]
    %v2704 = vld [vmem:[#allocation20 + $0xdc] sm:$0xf]
    %v2705 = vld [vmem:[#allocation20 + $0xe0] sm:$0xf]
    %v2706 = vld [vmem:[#allocation20 + $0xe4] sm:$0xf]
    %v2707 = vld [vmem:[#allocation20 + $0xe8] sm:$0xf]
    %v2708 = vld [vmem:[#allocation20 + $0xec] sm:$0xf]
    %v2709 = vld [vmem:[#allocation20 + $0xf0] sm:$0xf]
    %v2710 = vld [vmem:[#allocation20 + $0xf4] sm:$0xf]
    %v2711 = vld [vmem:[#allocation20 + $0xf8] sm:$0xf]
    %v2712 = vld [vmem:[#allocation20 + $0xfc] sm:$0xf]
    %v2777 = vunpack.c.l.b16 %v2649
    %v2778 = vunpack.c.l.b16 %v2650
    %v2779 = vunpack.c.l.b16 %v2651
    %v2780 = vunpack.c.l.b16 %v2652
    %v2781 = vunpack.c.l.b16 %v2653
    %v2782 = vunpack.c.l.b16 %v2654
    %v2783 = vunpack.c.l.b16 %v2655
    %v2784 = vunpack.c.l.b16 %v2656
    %v2785 = vunpack.c.l.b16 %v2657
    %v2786 = vunpack.c.l.b16 %v2658
    %v2787 = vunpack.c.l.b16 %v2659
    %v2788 = vunpack.c.l.b16 %v2660
    %v2789 = vunpack.c.l.b16 %v2661
    %v2790 = vunpack.c.l.b16 %v2662
    %v2791 = vunpack.c.l.b16 %v2663
    %v2792 = vunpack.c.l.b16 %v2664
    %v2793 = vunpack.c.l.b16 %v2665
    %v2794 = vunpack.c.l.b16 %v2666
    %v2795 = vunpack.c.l.b16 %v2667
    %v2796 = vunpack.c.l.b16 %v2668
    %v2797 = vunpack.c.l.b16 %v2669
    %v2798 = vunpack.c.l.b16 %v2670
    %v2799 = vunpack.c.l.b16 %v2671
    %v2800 = vunpack.c.l.b16 %v2672
    %v2801 = vunpack.c.l.b16 %v2673
    %v2802 = vunpack.c.l.b16 %v2674
    %v2803 = vunpack.c.l.b16 %v2675
    %v2804 = vunpack.c.l.b16 %v2676
    %v2805 = vunpack.c.l.b16 %v2677
    %v2806 = vunpack.c.l.b16 %v2678
    %v2807 = vunpack.c.l.b16 %v2679
    %v2808 = vunpack.c.l.b16 %v2680
    %v2809 = vunpack.c.l.b16 %v2681
    %v2810 = vunpack.c.l.b16 %v2682
    %v2811 = vunpack.c.l.b16 %v2683
    %v2812 = vunpack.c.l.b16 %v2684
    %v2813 = vunpack.c.l.b16 %v2685
    %v2814 = vunpack.c.l.b16 %v2686
    %v2815 = vunpack.c.l.b16 %v2687
    %v2816 = vunpack.c.l.b16 %v2688
    %v2817 = vunpack.c.l.b16 %v2689
    %v2818 = vunpack.c.l.b16 %v2690
    %v2819 = vunpack.c.l.b16 %v2691
    %v2820 = vunpack.c.l.b16 %v2692
    %v2821 = vunpack.c.l.b16 %v2693
    %v2822 = vunpack.c.l.b16 %v2694
    %v2823 = vunpack.c.l.b16 %v2695
    %v2824 = vunpack.c.l.b16 %v2696
    %v2825 = vunpack.c.l.b16 %v2697
    %v2826 = vunpack.c.l.b16 %v2698
    %v2827 = vunpack.c.l.b16 %v2699
    %v2828 = vunpack.c.l.b16 %v2700
    %v2829 = vunpack.c.l.b16 %v2701
    %v2830 = vunpack.c.l.b16 %v2702
    %v2831 = vunpack.c.l.b16 %v2703
    %v2832 = vunpack.c.l.b16 %v2704
    %v2833 = vunpack.c.l.b16 %v2705
    %v2834 = vunpack.c.l.b16 %v2706
    %v2835 = vunpack.c.l.b16 %v2707
    %v2836 = vunpack.c.l.b16 %v2708
    %v2837 = vunpack.c.l.b16 %v2709
    %v2838 = vunpack.c.l.b16 %v2710
    %v2839 = vunpack.c.l.b16 %v2711
    %v2840 = vunpack.c.l.b16 %v2712
    %v2841 = vpack.c.b16 %v2778, %v2777
    %v2842 = vpack.c.b16 %v2780, %v2779
    %v2843 = vpack.c.b16 %v2782, %v2781
    %v2844 = vpack.c.b16 %v2784, %v2783
    %v2845 = vpack.c.b16 %v2786, %v2785
    %v2846 = vpack.c.b16 %v2788, %v2787
    %v2847 = vpack.c.b16 %v2790, %v2789
    %v2848 = vpack.c.b16 %v2792, %v2791
    %v2849 = vpack.c.b16 %v2794, %v2793
    %v2850 = vpack.c.b16 %v2796, %v2795
    %v2851 = vpack.c.b16 %v2798, %v2797
    %v2852 = vpack.c.b16 %v2800, %v2799
    %v2853 = vpack.c.b16 %v2802, %v2801
    %v2854 = vpack.c.b16 %v2804, %v2803
    %v2855 = vpack.c.b16 %v2806, %v2805
    %v2856 = vpack.c.b16 %v2808, %v2807
    %v2857 = vpack.c.b16 %v2810, %v2809
    %v2858 = vpack.c.b16 %v2812, %v2811
    %v2859 = vpack.c.b16 %v2814, %v2813
    %v2860 = vpack.c.b16 %v2816, %v2815
    %v2861 = vpack.c.b16 %v2818, %v2817
    %v2862 = vpack.c.b16 %v2820, %v2819
    %v2863 = vpack.c.b16 %v2822, %v2821
    %v2864 = vpack.c.b16 %v2824, %v2823
    %v2865 = vpack.c.b16 %v2826, %v2825
    %v2866 = vpack.c.b16 %v2828, %v2827
    %v2867 = vpack.c.b16 %v2830, %v2829
    %v2868 = vpack.c.b16 %v2832, %v2831
    %v2869 = vpack.c.b16 %v2834, %v2833
    %v2870 = vpack.c.b16 %v2836, %v2835
    %v2871 = vpack.c.b16 %v2838, %v2837
    %v2872 = vpack.c.b16 %v2840, %v2839
    %2905 = vmatpush.bf16.msra.mxu0 %v2848
    %2906 = vmatpush.bf16.msra.mxu0 %v2847
    %2907 = vmatpush.bf16.msra.mxu0 %v2846
    %2908 = vmatpush.bf16.msra.mxu0 %v2845
    %2909 = vmatpush.bf16.msra.mxu0 %v2844
    %2910 = vmatpush.bf16.msra.mxu0 %v2843
    %2911 = vmatpush.bf16.msra.mxu0 %v2842
    %2912 = vmatpush.bf16.msra.mxu0 %v2841
    %2913 = vmatmul.bf16.gmra.mxu0 %v2645
    %v2914 = vpop.f32.mrf.mxu0
    %v2915 = vadd.f32 0.0, %v2914
    %v2916 = vpop.f32.mrf.mxu0
    %v2917 = vadd.f32 0.0, %v2916
    %2918 = vdwg.mxu0
    %2919 = vmatpush.bf16.msra.mxu0 %v2856
    %2920 = vmatpush.bf16.msra.mxu0 %v2855
    %2921 = vmatpush.bf16.msra.mxu0 %v2854
    %2922 = vmatpush.bf16.msra.mxu0 %v2853
    %2923 = vmatpush.bf16.msra.mxu0 %v2852
    %2924 = vmatpush.bf16.msra.mxu0 %v2851
    %2925 = vmatpush.bf16.msra.mxu0 %v2850
    %2926 = vmatpush.bf16.msra.mxu0 %v2849
    %2927 = vmatmul.bf16.gmra.mxu0 %v2646
    %v2928 = vpop.f32.mrf.mxu0
    %v2929 = vadd.f32 %v2915, %v2928
    %v2930 = vpop.f32.mrf.mxu0
    %v2931 = vadd.f32 %v2917, %v2930
    %2932 = vdwg.mxu0
    %2933 = vmatpush.bf16.msra.mxu0 %v2864
    %2934 = vmatpush.bf16.msra.mxu0 %v2863
    %2935 = vmatpush.bf16.msra.mxu0 %v2862
    %2936 = vmatpush.bf16.msra.mxu0 %v2861
    %2937 = vmatpush.bf16.msra.mxu0 %v2860
    %2938 = vmatpush.bf16.msra.mxu0 %v2859
    %2939 = vmatpush.bf16.msra.mxu0 %v2858
    %2940 = vmatpush.bf16.msra.mxu0 %v2857
    %2941 = vmatmul.bf16.gmra.mxu0 %v2647
    %v2942 = vpop.f32.mrf.mxu0
    %v2943 = vadd.f32 %v2929, %v2942
    %v2944 = vpop.f32.mrf.mxu0
    %v2945 = vadd.f32 %v2931, %v2944
    %2946 = vdwg.mxu0
    %2947 = vmatpush.bf16.msra.mxu0 %v2872
    %2948 = vmatpush.bf16.msra.mxu0 %v2871
    %2949 = vmatpush.bf16.msra.mxu0 %v2870
    %2950 = vmatpush.bf16.msra.mxu0 %v2869
    %2951 = vmatpush.bf16.msra.mxu0 %v2868
    %2952 = vmatpush.bf16.msra.mxu0 %v2867
    %2953 = vmatpush.bf16.msra.mxu0 %v2866
    %2954 = vmatpush.bf16.msra.mxu0 %v2865
    %2955 = vmatmul.bf16.gmra.mxu0 %v2648
    %v2956 = vpop.f32.mrf.mxu0
    %v2957 = vadd.f32 %v2943, %v2956
    %v2958 = vpop.f32.mrf.mxu0
    %v2959 = vadd.f32 %v2945, %v2958
    %2960 = vdwg.mxu0
    %v2961 = vadd.f32 %v1119, %v2957
    %v2962 = vadd.f32 %v1120, %v2959
    %v2963 = vld [vmem:[#allocation11] sm:$0xff]
    %v2964 = vld [vmem:[#allocation11 + $0x8] sm:$0xff]
    %v2965 = vld [vmem:[#allocation11 + $0x10] sm:$0xff]
    %v2966 = vld [vmem:[#allocation11 + $0x18] sm:$0xff]
    %v2967 = vld [vmem:[#allocation11 + $0x20] sm:$0xff]
    %v2968 = vld [vmem:[#allocation11 + $0x28] sm:$0xff]
    %v2969 = vld [vmem:[#allocation11 + $0x30] sm:$0xff]
    %v2970 = vld [vmem:[#allocation11 + $0x38] sm:$0xff]
    %v2971 = vld [vmem:[#allocation11 + $0x40] sm:$0xff]
    %v2972 = vld [vmem:[#allocation11 + $0x48] sm:$0xff]
    %v2973 = vld [vmem:[#allocation11 + $0x50] sm:$0xff]
    %v2974 = vld [vmem:[#allocation11 + $0x58] sm:$0xff]
    %v2975 = vld [vmem:[#allocation11 + $0x60] sm:$0xff]
    %v2976 = vld [vmem:[#allocation11 + $0x68] sm:$0xff]
    %v2977 = vld [vmem:[#allocation11 + $0x70] sm:$0xff]
    %v2978 = vld [vmem:[#allocation11 + $0x78] sm:$0xff]
    %v2979 = vld [vmem:[#allocation11 + $0x80] sm:$0xff]
    %v2980 = vld [vmem:[#allocation11 + $0x88] sm:$0xff]
    %v2981 = vld [vmem:[#allocation11 + $0x90] sm:$0xff]
    %v2982 = vld [vmem:[#allocation11 + $0x98] sm:$0xff]
    %v2983 = vld [vmem:[#allocation11 + $0xa0] sm:$0xff]
    %v2984 = vld [vmem:[#allocation11 + $0xa8] sm:$0xff]
    %v2985 = vld [vmem:[#allocation11 + $0xb0] sm:$0xff]
    %v2986 = vld [vmem:[#allocation11 + $0xb8] sm:$0xff]
    %v2987 = vld [vmem:[#allocation11 + $0xc0] sm:$0xff]
    %v2988 = vld [vmem:[#allocation11 + $0xc8] sm:$0xff]
    %v2989 = vld [vmem:[#allocation11 + $0xd0] sm:$0xff]
    %v2990 = vld [vmem:[#allocation11 + $0xd8] sm:$0xff]
    %v2991 = vld [vmem:[#allocation11 + $0xe0] sm:$0xff]
    %v2992 = vld [vmem:[#allocation11 + $0xe8] sm:$0xff]
    %v2993 = vld [vmem:[#allocation11 + $0xf0] sm:$0xff]
    %v2994 = vld [vmem:[#allocation11 + $0xf8] sm:$0xff]
    %v2995 = vld [vmem:[#allocation11 + $0x100] sm:$0xff]
    %v2996 = vld [vmem:[#allocation11 + $0x108] sm:$0xff]
    %v2997 = vld [vmem:[#allocation11 + $0x110] sm:$0xff]
    %v2998 = vld [vmem:[#allocation11 + $0x118] sm:$0xff]
    %v2999 = vld [vmem:[#allocation11 + $0x120] sm:$0xff]
    %v3000 = vld [vmem:[#allocation11 + $0x128] sm:$0xff]
    %v3001 = vld [vmem:[#allocation11 + $0x130] sm:$0xff]
    %v3002 = vld [vmem:[#allocation11 + $0x138] sm:$0xff]
    %v3003 = vld [vmem:[#allocation11 + $0x140] sm:$0xff]
    %v3004 = vld [vmem:[#allocation11 + $0x148] sm:$0xff]
    %v3005 = vld [vmem:[#allocation11 + $0x150] sm:$0xff]
    %v3006 = vld [vmem:[#allocation11 + $0x158] sm:$0xff]
    %v3007 = vld [vmem:[#allocation11 + $0x160] sm:$0xff]
    %v3008 = vld [vmem:[#allocation11 + $0x168] sm:$0xff]
    %v3009 = vld [vmem:[#allocation11 + $0x170] sm:$0xff]
    %v3010 = vld [vmem:[#allocation11 + $0x178] sm:$0xff]
    %v3011 = vld [vmem:[#allocation11 + $0x180] sm:$0xff]
    %v3012 = vld [vmem:[#allocation11 + $0x188] sm:$0xff]
    %v3013 = vld [vmem:[#allocation11 + $0x190] sm:$0xff]
    %v3014 = vld [vmem:[#allocation11 + $0x198] sm:$0xff]
    %v3015 = vld [vmem:[#allocation11 + $0x1a0] sm:$0xff]
    %v3016 = vld [vmem:[#allocation11 + $0x1a8] sm:$0xff]
    %v3017 = vld [vmem:[#allocation11 + $0x1b0] sm:$0xff]
    %v3018 = vld [vmem:[#allocation11 + $0x1b8] sm:$0xff]
    %v3019 = vld [vmem:[#allocation11 + $0x1c0] sm:$0xff]
    %v3020 = vld [vmem:[#allocation11 + $0x1c8] sm:$0xff]
    %v3021 = vld [vmem:[#allocation11 + $0x1d0] sm:$0xff]
    %v3022 = vld [vmem:[#allocation11 + $0x1d8] sm:$0xff]
    %v3023 = vld [vmem:[#allocation11 + $0x1e0] sm:$0xff]
    %v3024 = vld [vmem:[#allocation11 + $0x1e8] sm:$0xff]
    %v3025 = vld [vmem:[#allocation11 + $0x1f0] sm:$0xff]
    %v3026 = vld [vmem:[#allocation11 + $0x1f8] sm:$0xff]
    %v3027 = vld [vmem:[#allocation13] sm:$0xff]
    %v3028 = vld [vmem:[#allocation13 + $0x8] sm:$0xff]
    %v3029 = vld [vmem:[#allocation13 + $0x10] sm:$0xff]
    %v3030 = vld [vmem:[#allocation13 + $0x18] sm:$0xff]
    %v3031 = vld [vmem:[#allocation13 + $0x20] sm:$0xff]
    %v3032 = vld [vmem:[#allocation13 + $0x28] sm:$0xff]
    %v3033 = vld [vmem:[#allocation13 + $0x30] sm:$0xff]
    %v3034 = vld [vmem:[#allocation13 + $0x38] sm:$0xff]
    %v3035 = vld [vmem:[#allocation13 + $0x40] sm:$0xff]
    %v3036 = vld [vmem:[#allocation13 + $0x48] sm:$0xff]
    %v3037 = vld [vmem:[#allocation13 + $0x50] sm:$0xff]
    %v3038 = vld [vmem:[#allocation13 + $0x58] sm:$0xff]
    %v3039 = vld [vmem:[#allocation13 + $0x60] sm:$0xff]
    %v3040 = vld [vmem:[#allocation13 + $0x68] sm:$0xff]
    %v3041 = vld [vmem:[#allocation13 + $0x70] sm:$0xff]
    %v3042 = vld [vmem:[#allocation13 + $0x78] sm:$0xff]
    %v3043 = vld [vmem:[#allocation13 + $0x80] sm:$0xff]
    %v3044 = vld [vmem:[#allocation13 + $0x88] sm:$0xff]
    %v3045 = vld [vmem:[#allocation13 + $0x90] sm:$0xff]
    %v3046 = vld [vmem:[#allocation13 + $0x98] sm:$0xff]
    %v3047 = vld [vmem:[#allocation13 + $0xa0] sm:$0xff]
    %v3048 = vld [vmem:[#allocation13 + $0xa8] sm:$0xff]
    %v3049 = vld [vmem:[#allocation13 + $0xb0] sm:$0xff]
    %v3050 = vld [vmem:[#allocation13 + $0xb8] sm:$0xff]
    %v3051 = vld [vmem:[#allocation13 + $0xc0] sm:$0xff]
    %v3052 = vld [vmem:[#allocation13 + $0xc8] sm:$0xff]
    %v3053 = vld [vmem:[#allocation13 + $0xd0] sm:$0xff]
    %v3054 = vld [vmem:[#allocation13 + $0xd8] sm:$0xff]
    %v3055 = vld [vmem:[#allocation13 + $0xe0] sm:$0xff]
    %v3056 = vld [vmem:[#allocation13 + $0xe8] sm:$0xff]
    %v3057 = vld [vmem:[#allocation13 + $0xf0] sm:$0xff]
    %v3058 = vld [vmem:[#allocation13 + $0xf8] sm:$0xff]
    %v3059 = vld [vmem:[#allocation13 + $0x100] sm:$0xff]
    %v3060 = vld [vmem:[#allocation13 + $0x108] sm:$0xff]
    %v3061 = vld [vmem:[#allocation13 + $0x110] sm:$0xff]
    %v3062 = vld [vmem:[#allocation13 + $0x118] sm:$0xff]
    %v3063 = vld [vmem:[#allocation13 + $0x120] sm:$0xff]
    %v3064 = vld [vmem:[#allocation13 + $0x128] sm:$0xff]
    %v3065 = vld [vmem:[#allocation13 + $0x130] sm:$0xff]
    %v3066 = vld [vmem:[#allocation13 + $0x138] sm:$0xff]
    %v3067 = vld [vmem:[#allocation13 + $0x140] sm:$0xff]
    %v3068 = vld [vmem:[#allocation13 + $0x148] sm:$0xff]
    %v3069 = vld [vmem:[#allocation13 + $0x150] sm:$0xff]
    %v3070 = vld [vmem:[#allocation13 + $0x158] sm:$0xff]
    %v3071 = vld [vmem:[#allocation13 + $0x160] sm:$0xff]
    %v3072 = vld [vmem:[#allocation13 + $0x168] sm:$0xff]
    %v3073 = vld [vmem:[#allocation13 + $0x170] sm:$0xff]
    %v3074 = vld [vmem:[#allocation13 + $0x178] sm:$0xff]
    %v3075 = vld [vmem:[#allocation13 + $0x180] sm:$0xff]
    %v3076 = vld [vmem:[#allocation13 + $0x188] sm:$0xff]
    %v3077 = vld [vmem:[#allocation13 + $0x190] sm:$0xff]
    %v3078 = vld [vmem:[#allocation13 + $0x198] sm:$0xff]
    %v3079 = vld [vmem:[#allocation13 + $0x1a0] sm:$0xff]
    %v3080 = vld [vmem:[#allocation13 + $0x1a8] sm:$0xff]
    %v3081 = vld [vmem:[#allocation13 + $0x1b0] sm:$0xff]
    %v3082 = vld [vmem:[#allocation13 + $0x1b8] sm:$0xff]
    %v3083 = vld [vmem:[#allocation13 + $0x1c0] sm:$0xff]
    %v3084 = vld [vmem:[#allocation13 + $0x1c8] sm:$0xff]
    %v3085 = vld [vmem:[#allocation13 + $0x1d0] sm:$0xff]
    %v3086 = vld [vmem:[#allocation13 + $0x1d8] sm:$0xff]
    %v3087 = vld [vmem:[#allocation13 + $0x1e0] sm:$0xff]
    %v3088 = vld [vmem:[#allocation13 + $0x1e8] sm:$0xff]
    %v3089 = vld [vmem:[#allocation13 + $0x1f0] sm:$0xff]
    %v3090 = vld [vmem:[#allocation13 + $0x1f8] sm:$0xff]
    %v3091 = vld [vmem:[#allocation13 + $0x200] sm:$0xff]
    %v3092 = vld [vmem:[#allocation13 + $0x208] sm:$0xff]
    %v3093 = vld [vmem:[#allocation13 + $0x210] sm:$0xff]
    %v3094 = vld [vmem:[#allocation13 + $0x218] sm:$0xff]
    %v3095 = vld [vmem:[#allocation13 + $0x220] sm:$0xff]
    %v3096 = vld [vmem:[#allocation13 + $0x228] sm:$0xff]
    %v3097 = vld [vmem:[#allocation13 + $0x230] sm:$0xff]
    %v3098 = vld [vmem:[#allocation13 + $0x238] sm:$0xff]
    %v3099 = vld [vmem:[#allocation13 + $0x240] sm:$0xff]
    %v3100 = vld [vmem:[#allocation13 + $0x248] sm:$0xff]
    %v3101 = vld [vmem:[#allocation13 + $0x250] sm:$0xff]
    %v3102 = vld [vmem:[#allocation13 + $0x258] sm:$0xff]
    %v3103 = vld [vmem:[#allocation13 + $0x260] sm:$0xff]
    %v3104 = vld [vmem:[#allocation13 + $0x268] sm:$0xff]
    %v3105 = vld [vmem:[#allocation13 + $0x270] sm:$0xff]
    %v3106 = vld [vmem:[#allocation13 + $0x278] sm:$0xff]
    %v3107 = vld [vmem:[#allocation13 + $0x280] sm:$0xff]
    %v3108 = vld [vmem:[#allocation13 + $0x288] sm:$0xff]
    %v3109 = vld [vmem:[#allocation13 + $0x290] sm:$0xff]
    %v3110 = vld [vmem:[#allocation13 + $0x298] sm:$0xff]
    %v3111 = vld [vmem:[#allocation13 + $0x2a0] sm:$0xff]
    %v3112 = vld [vmem:[#allocation13 + $0x2a8] sm:$0xff]
    %v3113 = vld [vmem:[#allocation13 + $0x2b0] sm:$0xff]
    %v3114 = vld [vmem:[#allocation13 + $0x2b8] sm:$0xff]
    %v3115 = vld [vmem:[#allocation13 + $0x2c0] sm:$0xff]
    %v3116 = vld [vmem:[#allocation13 + $0x2c8] sm:$0xff]
    %v3117 = vld [vmem:[#allocation13 + $0x2d0] sm:$0xff]
    %v3118 = vld [vmem:[#allocation13 + $0x2d8] sm:$0xff]
    %v3119 = vld [vmem:[#allocation13 + $0x2e0] sm:$0xff]
    %v3120 = vld [vmem:[#allocation13 + $0x2e8] sm:$0xff]
    %v3121 = vld [vmem:[#allocation13 + $0x2f0] sm:$0xff]
    %v3122 = vld [vmem:[#allocation13 + $0x2f8] sm:$0xff]
    %v3123 = vld [vmem:[#allocation13 + $0x300] sm:$0xff]
    %v3124 = vld [vmem:[#allocation13 + $0x308] sm:$0xff]
    %v3125 = vld [vmem:[#allocation13 + $0x310] sm:$0xff]
    %v3126 = vld [vmem:[#allocation13 + $0x318] sm:$0xff]
    %v3127 = vld [vmem:[#allocation13 + $0x320] sm:$0xff]
    %v3128 = vld [vmem:[#allocation13 + $0x328] sm:$0xff]
    %v3129 = vld [vmem:[#allocation13 + $0x330] sm:$0xff]
    %v3130 = vld [vmem:[#allocation13 + $0x338] sm:$0xff]
    %v3131 = vld [vmem:[#allocation13 + $0x340] sm:$0xff]
    %v3132 = vld [vmem:[#allocation13 + $0x348] sm:$0xff]
    %v3133 = vld [vmem:[#allocation13 + $0x350] sm:$0xff]
    %v3134 = vld [vmem:[#allocation13 + $0x358] sm:$0xff]
    %v3135 = vld [vmem:[#allocation13 + $0x360] sm:$0xff]
    %v3136 = vld [vmem:[#allocation13 + $0x368] sm:$0xff]
    %v3137 = vld [vmem:[#allocation13 + $0x370] sm:$0xff]
    %v3138 = vld [vmem:[#allocation13 + $0x378] sm:$0xff]
    %v3139 = vld [vmem:[#allocation13 + $0x380] sm:$0xff]
    %v3140 = vld [vmem:[#allocation13 + $0x388] sm:$0xff]
    %v3141 = vld [vmem:[#allocation13 + $0x390] sm:$0xff]
    %v3142 = vld [vmem:[#allocation13 + $0x398] sm:$0xff]
    %v3143 = vld [vmem:[#allocation13 + $0x3a0] sm:$0xff]
    %v3144 = vld [vmem:[#allocation13 + $0x3a8] sm:$0xff]
    %v3145 = vld [vmem:[#allocation13 + $0x3b0] sm:$0xff]
    %v3146 = vld [vmem:[#allocation13 + $0x3b8] sm:$0xff]
    %v3147 = vld [vmem:[#allocation13 + $0x3c0] sm:$0xff]
    %v3148 = vld [vmem:[#allocation13 + $0x3c8] sm:$0xff]
    %v3149 = vld [vmem:[#allocation13 + $0x3d0] sm:$0xff]
    %v3150 = vld [vmem:[#allocation13 + $0x3d8] sm:$0xff]
    %v3151 = vld [vmem:[#allocation13 + $0x3e0] sm:$0xff]
    %v3152 = vld [vmem:[#allocation13 + $0x3e8] sm:$0xff]
    %v3153 = vld [vmem:[#allocation13 + $0x3f0] sm:$0xff]
    %v3154 = vld [vmem:[#allocation13 + $0x3f8] sm:$0xff]
    %v3283 = vunpack.c.l.b16 %v3027
    %v3284 = vunpack.c.h.b16 %v3027
    %v3285 = vunpack.c.l.b16 %v3028
    %v3286 = vunpack.c.h.b16 %v3028
    %v3287 = vunpack.c.l.b16 %v3029
    %v3288 = vunpack.c.h.b16 %v3029
    %v3289 = vunpack.c.l.b16 %v3030
    %v3290 = vunpack.c.h.b16 %v3030
    %v3291 = vunpack.c.l.b16 %v3031
    %v3292 = vunpack.c.h.b16 %v3031
    %v3293 = vunpack.c.l.b16 %v3032
    %v3294 = vunpack.c.h.b16 %v3032
    %v3295 = vunpack.c.l.b16 %v3033
    %v3296 = vunpack.c.h.b16 %v3033
    %v3297 = vunpack.c.l.b16 %v3034
    %v3298 = vunpack.c.h.b16 %v3034
    %v3299 = vunpack.c.l.b16 %v3035
    %v3300 = vunpack.c.h.b16 %v3035
    %v3301 = vunpack.c.l.b16 %v3036
    %v3302 = vunpack.c.h.b16 %v3036
    %v3303 = vunpack.c.l.b16 %v3037
    %v3304 = vunpack.c.h.b16 %v3037
    %v3305 = vunpack.c.l.b16 %v3038
    %v3306 = vunpack.c.h.b16 %v3038
    %v3307 = vunpack.c.l.b16 %v3039
    %v3308 = vunpack.c.h.b16 %v3039
    %v3309 = vunpack.c.l.b16 %v3040
    %v3310 = vunpack.c.h.b16 %v3040
    %v3311 = vunpack.c.l.b16 %v3041
    %v3312 = vunpack.c.h.b16 %v3041
    %v3313 = vunpack.c.l.b16 %v3042
    %v3314 = vunpack.c.h.b16 %v3042
    %v3315 = vunpack.c.l.b16 %v3043
    %v3316 = vunpack.c.h.b16 %v3043
    %v3317 = vunpack.c.l.b16 %v3044
    %v3318 = vunpack.c.h.b16 %v3044
    %v3319 = vunpack.c.l.b16 %v3045
    %v3320 = vunpack.c.h.b16 %v3045
    %v3321 = vunpack.c.l.b16 %v3046
    %v3322 = vunpack.c.h.b16 %v3046
    %v3323 = vunpack.c.l.b16 %v3047
    %v3324 = vunpack.c.h.b16 %v3047
    %v3325 = vunpack.c.l.b16 %v3048
    %v3326 = vunpack.c.h.b16 %v3048
    %v3327 = vunpack.c.l.b16 %v3049
    %v3328 = vunpack.c.h.b16 %v3049
    %v3329 = vunpack.c.l.b16 %v3050
    %v3330 = vunpack.c.h.b16 %v3050
    %v3331 = vunpack.c.l.b16 %v3051
    %v3332 = vunpack.c.h.b16 %v3051
    %v3333 = vunpack.c.l.b16 %v3052
    %v3334 = vunpack.c.h.b16 %v3052
    %v3335 = vunpack.c.l.b16 %v3053
    %v3336 = vunpack.c.h.b16 %v3053
    %v3337 = vunpack.c.l.b16 %v3054
    %v3338 = vunpack.c.h.b16 %v3054
    %v3339 = vunpack.c.l.b16 %v3055
    %v3340 = vunpack.c.h.b16 %v3055
    %v3341 = vunpack.c.l.b16 %v3056
    %v3342 = vunpack.c.h.b16 %v3056
    %v3343 = vunpack.c.l.b16 %v3057
    %v3344 = vunpack.c.h.b16 %v3057
    %v3345 = vunpack.c.l.b16 %v3058
    %v3346 = vunpack.c.h.b16 %v3058
    %v3347 = vunpack.c.l.b16 %v3059
    %v3348 = vunpack.c.h.b16 %v3059
    %v3349 = vunpack.c.l.b16 %v3060
    %v3350 = vunpack.c.h.b16 %v3060
    %v3351 = vunpack.c.l.b16 %v3061
    %v3352 = vunpack.c.h.b16 %v3061
    %v3353 = vunpack.c.l.b16 %v3062
    %v3354 = vunpack.c.h.b16 %v3062
    %v3355 = vunpack.c.l.b16 %v3063
    %v3356 = vunpack.c.h.b16 %v3063
    %v3357 = vunpack.c.l.b16 %v3064
    %v3358 = vunpack.c.h.b16 %v3064
    %v3359 = vunpack.c.l.b16 %v3065
    %v3360 = vunpack.c.h.b16 %v3065
    %v3361 = vunpack.c.l.b16 %v3066
    %v3362 = vunpack.c.h.b16 %v3066
    %v3363 = vunpack.c.l.b16 %v3067
    %v3364 = vunpack.c.h.b16 %v3067
    %v3365 = vunpack.c.l.b16 %v3068
    %v3366 = vunpack.c.h.b16 %v3068
    %v3367 = vunpack.c.l.b16 %v3069
    %v3368 = vunpack.c.h.b16 %v3069
    %v3369 = vunpack.c.l.b16 %v3070
    %v3370 = vunpack.c.h.b16 %v3070
    %v3371 = vunpack.c.l.b16 %v3071
    %v3372 = vunpack.c.h.b16 %v3071
    %v3373 = vunpack.c.l.b16 %v3072
    %v3374 = vunpack.c.h.b16 %v3072
    %v3375 = vunpack.c.l.b16 %v3073
    %v3376 = vunpack.c.h.b16 %v3073
    %v3377 = vunpack.c.l.b16 %v3074
    %v3378 = vunpack.c.h.b16 %v3074
    %v3379 = vunpack.c.l.b16 %v3075
    %v3380 = vunpack.c.h.b16 %v3075
    %v3381 = vunpack.c.l.b16 %v3076
    %v3382 = vunpack.c.h.b16 %v3076
    %v3383 = vunpack.c.l.b16 %v3077
    %v3384 = vunpack.c.h.b16 %v3077
    %v3385 = vunpack.c.l.b16 %v3078
    %v3386 = vunpack.c.h.b16 %v3078
    %v3387 = vunpack.c.l.b16 %v3079
    %v3388 = vunpack.c.h.b16 %v3079
    %v3389 = vunpack.c.l.b16 %v3080
    %v3390 = vunpack.c.h.b16 %v3080
    %v3391 = vunpack.c.l.b16 %v3081
    %v3392 = vunpack.c.h.b16 %v3081
    %v3393 = vunpack.c.l.b16 %v3082
    %v3394 = vunpack.c.h.b16 %v3082
    %v3395 = vunpack.c.l.b16 %v3083
    %v3396 = vunpack.c.h.b16 %v3083
    %v3397 = vunpack.c.l.b16 %v3084
    %v3398 = vunpack.c.h.b16 %v3084
    %v3399 = vunpack.c.l.b16 %v3085
    %v3400 = vunpack.c.h.b16 %v3085
    %v3401 = vunpack.c.l.b16 %v3086
    %v3402 = vunpack.c.h.b16 %v3086
    %v3403 = vunpack.c.l.b16 %v3087
    %v3404 = vunpack.c.h.b16 %v3087
    %v3405 = vunpack.c.l.b16 %v3088
    %v3406 = vunpack.c.h.b16 %v3088
    %v3407 = vunpack.c.l.b16 %v3089
    %v3408 = vunpack.c.h.b16 %v3089
    %v3409 = vunpack.c.l.b16 %v3090
    %v3410 = vunpack.c.h.b16 %v3090
    %v3411 = vunpack.c.l.b16 %v3091
    %v3412 = vunpack.c.h.b16 %v3091
    %v3413 = vunpack.c.l.b16 %v3092
    %v3414 = vunpack.c.h.b16 %v3092
    %v3415 = vunpack.c.l.b16 %v3093
    %v3416 = vunpack.c.h.b16 %v3093
    %v3417 = vunpack.c.l.b16 %v3094
    %v3418 = vunpack.c.h.b16 %v3094
    %v3419 = vunpack.c.l.b16 %v3095
    %v3420 = vunpack.c.h.b16 %v3095
    %v3421 = vunpack.c.l.b16 %v3096
    %v3422 = vunpack.c.h.b16 %v3096
    %v3423 = vunpack.c.l.b16 %v3097
    %v3424 = vunpack.c.h.b16 %v3097
    %v3425 = vunpack.c.l.b16 %v3098
    %v3426 = vunpack.c.h.b16 %v3098
    %v3427 = vunpack.c.l.b16 %v3099
    %v3428 = vunpack.c.h.b16 %v3099
    %v3429 = vunpack.c.l.b16 %v3100
    %v3430 = vunpack.c.h.b16 %v3100
    %v3431 = vunpack.c.l.b16 %v3101
    %v3432 = vunpack.c.h.b16 %v3101
    %v3433 = vunpack.c.l.b16 %v3102
    %v3434 = vunpack.c.h.b16 %v3102
    %v3435 = vunpack.c.l.b16 %v3103
    %v3436 = vunpack.c.h.b16 %v3103
    %v3437 = vunpack.c.l.b16 %v3104
    %v3438 = vunpack.c.h.b16 %v3104
    %v3439 = vunpack.c.l.b16 %v3105
    %v3440 = vunpack.c.h.b16 %v3105
    %v3441 = vunpack.c.l.b16 %v3106
    %v3442 = vunpack.c.h.b16 %v3106
    %v3443 = vunpack.c.l.b16 %v3107
    %v3444 = vunpack.c.h.b16 %v3107
    %v3445 = vunpack.c.l.b16 %v3108
    %v3446 = vunpack.c.h.b16 %v3108
    %v3447 = vunpack.c.l.b16 %v3109
    %v3448 = vunpack.c.h.b16 %v3109
    %v3449 = vunpack.c.l.b16 %v3110
    %v3450 = vunpack.c.h.b16 %v3110
    %v3451 = vunpack.c.l.b16 %v3111
    %v3452 = vunpack.c.h.b16 %v3111
    %v3453 = vunpack.c.l.b16 %v3112
    %v3454 = vunpack.c.h.b16 %v3112
    %v3455 = vunpack.c.l.b16 %v3113
    %v3456 = vunpack.c.h.b16 %v3113
    %v3457 = vunpack.c.l.b16 %v3114
    %v3458 = vunpack.c.h.b16 %v3114
    %v3459 = vunpack.c.l.b16 %v3115
    %v3460 = vunpack.c.h.b16 %v3115
    %v3461 = vunpack.c.l.b16 %v3116
    %v3462 = vunpack.c.h.b16 %v3116
    %v3463 = vunpack.c.l.b16 %v3117
    %v3464 = vunpack.c.h.b16 %v3117
    %v3465 = vunpack.c.l.b16 %v3118
    %v3466 = vunpack.c.h.b16 %v3118
    %v3467 = vunpack.c.l.b16 %v3119
    %v3468 = vunpack.c.h.b16 %v3119
    %v3469 = vunpack.c.l.b16 %v3120
    %v3470 = vunpack.c.h.b16 %v3120
    %v3471 = vunpack.c.l.b16 %v3121
    %v3472 = vunpack.c.h.b16 %v3121
    %v3473 = vunpack.c.l.b16 %v3122
    %v3474 = vunpack.c.h.b16 %v3122
    %v3475 = vunpack.c.l.b16 %v3123
    %v3476 = vunpack.c.h.b16 %v3123
    %v3477 = vunpack.c.l.b16 %v3124
    %v3478 = vunpack.c.h.b16 %v3124
    %v3479 = vunpack.c.l.b16 %v3125
    %v3480 = vunpack.c.h.b16 %v3125
    %v3481 = vunpack.c.l.b16 %v3126
    %v3482 = vunpack.c.h.b16 %v3126
    %v3483 = vunpack.c.l.b16 %v3127
    %v3484 = vunpack.c.h.b16 %v3127
    %v3485 = vunpack.c.l.b16 %v3128
    %v3486 = vunpack.c.h.b16 %v3128
    %v3487 = vunpack.c.l.b16 %v3129
    %v3488 = vunpack.c.h.b16 %v3129
    %v3489 = vunpack.c.l.b16 %v3130
    %v3490 = vunpack.c.h.b16 %v3130
    %v3491 = vunpack.c.l.b16 %v3131
    %v3492 = vunpack.c.h.b16 %v3131
    %v3493 = vunpack.c.l.b16 %v3132
    %v3494 = vunpack.c.h.b16 %v3132
    %v3495 = vunpack.c.l.b16 %v3133
    %v3496 = vunpack.c.h.b16 %v3133
    %v3497 = vunpack.c.l.b16 %v3134
    %v3498 = vunpack.c.h.b16 %v3134
    %v3499 = vunpack.c.l.b16 %v3135
    %v3500 = vunpack.c.h.b16 %v3135
    %v3501 = vunpack.c.l.b16 %v3136
    %v3502 = vunpack.c.h.b16 %v3136
    %v3503 = vunpack.c.l.b16 %v3137
    %v3504 = vunpack.c.h.b16 %v3137
    %v3505 = vunpack.c.l.b16 %v3138
    %v3506 = vunpack.c.h.b16 %v3138
    %v3507 = vunpack.c.l.b16 %v3139
    %v3508 = vunpack.c.h.b16 %v3139
    %v3509 = vunpack.c.l.b16 %v3140
    %v3510 = vunpack.c.h.b16 %v3140
    %v3511 = vunpack.c.l.b16 %v3141
    %v3512 = vunpack.c.h.b16 %v3141
    %v3513 = vunpack.c.l.b16 %v3142
    %v3514 = vunpack.c.h.b16 %v3142
    %v3515 = vunpack.c.l.b16 %v3143
    %v3516 = vunpack.c.h.b16 %v3143
    %v3517 = vunpack.c.l.b16 %v3144
    %v3518 = vunpack.c.h.b16 %v3144
    %v3519 = vunpack.c.l.b16 %v3145
    %v3520 = vunpack.c.h.b16 %v3145
    %v3521 = vunpack.c.l.b16 %v3146
    %v3522 = vunpack.c.h.b16 %v3146
    %v3523 = vunpack.c.l.b16 %v3147
    %v3524 = vunpack.c.h.b16 %v3147
    %v3525 = vunpack.c.l.b16 %v3148
    %v3526 = vunpack.c.h.b16 %v3148
    %v3527 = vunpack.c.l.b16 %v3149
    %v3528 = vunpack.c.h.b16 %v3149
    %v3529 = vunpack.c.l.b16 %v3150
    %v3530 = vunpack.c.h.b16 %v3150
    %v3531 = vunpack.c.l.b16 %v3151
    %v3532 = vunpack.c.h.b16 %v3151
    %v3533 = vunpack.c.l.b16 %v3152
    %v3534 = vunpack.c.h.b16 %v3152
    %v3535 = vunpack.c.l.b16 %v3153
    %v3536 = vunpack.c.h.b16 %v3153
    %v3537 = vunpack.c.l.b16 %v3154
    %v3538 = vunpack.c.h.b16 %v3154
    %v3539 = vpack.c.b16 %v3287, %v3283
    %v3540 = vpack.c.b16 %v3288, %v3284
    %v3541 = vpack.c.b16 %v3289, %v3285
    %v3542 = vpack.c.b16 %v3290, %v3286
    %v3543 = vpack.c.b16 %v3295, %v3291
    %v3544 = vpack.c.b16 %v3296, %v3292
    %v3545 = vpack.c.b16 %v3297, %v3293
    %v3546 = vpack.c.b16 %v3298, %v3294
    %v3547 = vpack.c.b16 %v3303, %v3299
    %v3548 = vpack.c.b16 %v3304, %v3300
    %v3549 = vpack.c.b16 %v3305, %v3301
    %v3550 = vpack.c.b16 %v3306, %v3302
    %v3551 = vpack.c.b16 %v3311, %v3307
    %v3552 = vpack.c.b16 %v3312, %v3308
    %v3553 = vpack.c.b16 %v3313, %v3309
    %v3554 = vpack.c.b16 %v3314, %v3310
    %v3555 = vpack.c.b16 %v3319, %v3315
    %v3556 = vpack.c.b16 %v3320, %v3316
    %v3557 = vpack.c.b16 %v3321, %v3317
    %v3558 = vpack.c.b16 %v3322, %v3318
    %v3559 = vpack.c.b16 %v3327, %v3323
    %v3560 = vpack.c.b16 %v3328, %v3324
    %v3561 = vpack.c.b16 %v3329, %v3325
    %v3562 = vpack.c.b16 %v3330, %v3326
    %v3563 = vpack.c.b16 %v3335, %v3331
    %v3564 = vpack.c.b16 %v3336, %v3332
    %v3565 = vpack.c.b16 %v3337, %v3333
    %v3566 = vpack.c.b16 %v3338, %v3334
    %v3567 = vpack.c.b16 %v3343, %v3339
    %v3568 = vpack.c.b16 %v3344, %v3340
    %v3569 = vpack.c.b16 %v3345, %v3341
    %v3570 = vpack.c.b16 %v3346, %v3342
    %v3571 = vpack.c.b16 %v3351, %v3347
    %v3572 = vpack.c.b16 %v3352, %v3348
    %v3573 = vpack.c.b16 %v3353, %v3349
    %v3574 = vpack.c.b16 %v3354, %v3350
    %v3575 = vpack.c.b16 %v3359, %v3355
    %v3576 = vpack.c.b16 %v3360, %v3356
    %v3577 = vpack.c.b16 %v3361, %v3357
    %v3578 = vpack.c.b16 %v3362, %v3358
    %v3579 = vpack.c.b16 %v3367, %v3363
    %v3580 = vpack.c.b16 %v3368, %v3364
    %v3581 = vpack.c.b16 %v3369, %v3365
    %v3582 = vpack.c.b16 %v3370, %v3366
    %v3583 = vpack.c.b16 %v3375, %v3371
    %v3584 = vpack.c.b16 %v3376, %v3372
    %v3585 = vpack.c.b16 %v3377, %v3373
    %v3586 = vpack.c.b16 %v3378, %v3374
    %v3587 = vpack.c.b16 %v3383, %v3379
    %v3588 = vpack.c.b16 %v3384, %v3380
    %v3589 = vpack.c.b16 %v3385, %v3381
    %v3590 = vpack.c.b16 %v3386, %v3382
    %v3591 = vpack.c.b16 %v3391, %v3387
    %v3592 = vpack.c.b16 %v3392, %v3388
    %v3593 = vpack.c.b16 %v3393, %v3389
    %v3594 = vpack.c.b16 %v3394, %v3390
    %v3595 = vpack.c.b16 %v3399, %v3395
    %v3596 = vpack.c.b16 %v3400, %v3396
    %v3597 = vpack.c.b16 %v3401, %v3397
    %v3598 = vpack.c.b16 %v3402, %v3398
    %v3599 = vpack.c.b16 %v3407, %v3403
    %v3600 = vpack.c.b16 %v3408, %v3404
    %v3601 = vpack.c.b16 %v3409, %v3405
    %v3602 = vpack.c.b16 %v3410, %v3406
    %v3603 = vpack.c.b16 %v3415, %v3411
    %v3604 = vpack.c.b16 %v3416, %v3412
    %v3605 = vpack.c.b16 %v3417, %v3413
    %v3606 = vpack.c.b16 %v3418, %v3414
    %v3607 = vpack.c.b16 %v3423, %v3419
    %v3608 = vpack.c.b16 %v3424, %v3420
    %v3609 = vpack.c.b16 %v3425, %v3421
    %v3610 = vpack.c.b16 %v3426, %v3422
    %v3611 = vpack.c.b16 %v3431, %v3427
    %v3612 = vpack.c.b16 %v3432, %v3428
    %v3613 = vpack.c.b16 %v3433, %v3429
    %v3614 = vpack.c.b16 %v3434, %v3430
    %v3615 = vpack.c.b16 %v3439, %v3435
    %v3616 = vpack.c.b16 %v3440, %v3436
    %v3617 = vpack.c.b16 %v3441, %v3437
    %v3618 = vpack.c.b16 %v3442, %v3438
    %v3619 = vpack.c.b16 %v3447, %v3443
    %v3620 = vpack.c.b16 %v3448, %v3444
    %v3621 = vpack.c.b16 %v3449, %v3445
    %v3622 = vpack.c.b16 %v3450, %v3446
    %v3623 = vpack.c.b16 %v3455, %v3451
    %v3624 = vpack.c.b16 %v3456, %v3452
    %v3625 = vpack.c.b16 %v3457, %v3453
    %v3626 = vpack.c.b16 %v3458, %v3454
    %v3627 = vpack.c.b16 %v3463, %v3459
    %v3628 = vpack.c.b16 %v3464, %v3460
    %v3629 = vpack.c.b16 %v3465, %v3461
    %v3630 = vpack.c.b16 %v3466, %v3462
    %v3631 = vpack.c.b16 %v3471, %v3467
    %v3632 = vpack.c.b16 %v3472, %v3468
    %v3633 = vpack.c.b16 %v3473, %v3469
    %v3634 = vpack.c.b16 %v3474, %v3470
    %v3635 = vpack.c.b16 %v3479, %v3475
    %v3636 = vpack.c.b16 %v3480, %v3476
    %v3637 = vpack.c.b16 %v3481, %v3477
    %v3638 = vpack.c.b16 %v3482, %v3478
    %v3639 = vpack.c.b16 %v3487, %v3483
    %v3640 = vpack.c.b16 %v3488, %v3484
    %v3641 = vpack.c.b16 %v3489, %v3485
    %v3642 = vpack.c.b16 %v3490, %v3486
    %v3643 = vpack.c.b16 %v3495, %v3491
    %v3644 = vpack.c.b16 %v3496, %v3492
    %v3645 = vpack.c.b16 %v3497, %v3493
    %v3646 = vpack.c.b16 %v3498, %v3494
    %v3647 = vpack.c.b16 %v3503, %v3499
    %v3648 = vpack.c.b16 %v3504, %v3500
    %v3649 = vpack.c.b16 %v3505, %v3501
    %v3650 = vpack.c.b16 %v3506, %v3502
    %v3651 = vpack.c.b16 %v3511, %v3507
    %v3652 = vpack.c.b16 %v3512, %v3508
    %v3653 = vpack.c.b16 %v3513, %v3509
    %v3654 = vpack.c.b16 %v3514, %v3510
    %v3655 = vpack.c.b16 %v3519, %v3515
    %v3656 = vpack.c.b16 %v3520, %v3516
    %v3657 = vpack.c.b16 %v3521, %v3517
    %v3658 = vpack.c.b16 %v3522, %v3518
    %v3659 = vpack.c.b16 %v3527, %v3523
    %v3660 = vpack.c.b16 %v3528, %v3524
    %v3661 = vpack.c.b16 %v3529, %v3525
    %v3662 = vpack.c.b16 %v3530, %v3526
    %v3663 = vpack.c.b16 %v3535, %v3531
    %v3664 = vpack.c.b16 %v3536, %v3532
    %v3665 = vpack.c.b16 %v3537, %v3533
    %v3666 = vpack.c.b16 %v3538, %v3534
    %3795 = vmatpush.bf16.msra.mxu0 %v3567
    %3796 = vmatpush.bf16.msra.mxu0 %v3563
    %3797 = vmatpush.bf16.msra.mxu0 %v3559
    %3798 = vmatpush.bf16.msra.mxu0 %v3555
    %3799 = vmatpush.bf16.msra.mxu0 %v3551
    %3800 = vmatpush.bf16.msra.mxu0 %v3547
    %3801 = vmatpush.bf16.msra.mxu0 %v3543
    %3802 = vmatpush.bf16.msra.mxu0 %v3539
    %3803 = vmatmul.bf16.gmra.mxu0 %v2645
    %v3804 = vpop.f32.mrf.mxu0
    %v3805 = vadd.f32 0.0, %v3804
    %v3806 = vpop.f32.mrf.mxu0
    %v3807 = vadd.f32 0.0, %v3806
    %3808 = vdwg.mxu0
    %3809 = vmatpush.bf16.msra.mxu0 %v3599
    %3810 = vmatpush.bf16.msra.mxu0 %v3595
    %3811 = vmatpush.bf16.msra.mxu0 %v3591
    %3812 = vmatpush.bf16.msra.mxu0 %v3587
    %3813 = vmatpush.bf16.msra.mxu0 %v3583
    %3814 = vmatpush.bf16.msra.mxu0 %v3579
    %3815 = vmatpush.bf16.msra.mxu0 %v3575
    %3816 = vmatpush.bf16.msra.mxu0 %v3571
    %3817 = vmatmul.bf16.gmra.mxu0 %v2646
    %v3818 = vpop.f32.mrf.mxu0
    %v3819 = vadd.f32 %v3805, %v3818
    %v3820 = vpop.f32.mrf.mxu0
    %v3821 = vadd.f32 %v3807, %v3820
    %3822 = vdwg.mxu0
    %3823 = vmatpush.bf16.msra.mxu0 %v3631
    %3824 = vmatpush.bf16.msra.mxu0 %v3627
    %3825 = vmatpush.bf16.msra.mxu0 %v3623
    %3826 = vmatpush.bf16.msra.mxu0 %v3619
    %3827 = vmatpush.bf16.msra.mxu0 %v3615
    %3828 = vmatpush.bf16.msra.mxu0 %v3611
    %3829 = vmatpush.bf16.msra.mxu0 %v3607
    %3830 = vmatpush.bf16.msra.mxu0 %v3603
    %3831 = vmatmul.bf16.gmra.mxu0 %v2647
    %v3832 = vpop.f32.mrf.mxu0
    %v3833 = vadd.f32 %v3819, %v3832
    %v3834 = vpop.f32.mrf.mxu0
    %v3835 = vadd.f32 %v3821, %v3834
    %3836 = vdwg.mxu0
    %3837 = vmatpush.bf16.msra.mxu0 %v3663
    %3838 = vmatpush.bf16.msra.mxu0 %v3659
    %3839 = vmatpush.bf16.msra.mxu0 %v3655
    %3840 = vmatpush.bf16.msra.mxu0 %v3651
    %3841 = vmatpush.bf16.msra.mxu0 %v3647
    %3842 = vmatpush.bf16.msra.mxu0 %v3643
    %3843 = vmatpush.bf16.msra.mxu0 %v3639
    %3844 = vmatpush.bf16.msra.mxu0 %v3635
    %3845 = vmatmul.bf16.gmra.mxu0 %v2648
    %v3846 = vpop.f32.mrf.mxu0
    %v3847 = vadd.f32 %v3833, %v3846
    %v3848 = vpop.f32.mrf.mxu0
    %v3849 = vadd.f32 %v3835, %v3848
    %3850 = vdwg.mxu0
    %3851 = vmatpush.bf16.msra.mxu0 %v3568
    %3852 = vmatpush.bf16.msra.mxu0 %v3564
    %3853 = vmatpush.bf16.msra.mxu0 %v3560
    %3854 = vmatpush.bf16.msra.mxu0 %v3556
    %3855 = vmatpush.bf16.msra.mxu0 %v3552
    %3856 = vmatpush.bf16.msra.mxu0 %v3548
    %3857 = vmatpush.bf16.msra.mxu0 %v3544
    %3858 = vmatpush.bf16.msra.mxu0 %v3540
    %3859 = vmatmul.bf16.gmra.mxu0 %v2645
    %v3860 = vpop.f32.mrf.mxu0
    %v3861 = vadd.f32 0.0, %v3860
    %v3862 = vpop.f32.mrf.mxu0
    %v3863 = vadd.f32 0.0, %v3862
    %3864 = vdwg.mxu0
    %3865 = vmatpush.bf16.msra.mxu0 %v3600
    %3866 = vmatpush.bf16.msra.mxu0 %v3596
    %3867 = vmatpush.bf16.msra.mxu0 %v3592
    %3868 = vmatpush.bf16.msra.mxu0 %v3588
    %3869 = vmatpush.bf16.msra.mxu0 %v3584
    %3870 = vmatpush.bf16.msra.mxu0 %v3580
    %3871 = vmatpush.bf16.msra.mxu0 %v3576
    %3872 = vmatpush.bf16.msra.mxu0 %v3572
    %3873 = vmatmul.bf16.gmra.mxu0 %v2646
    %v3874 = vpop.f32.mrf.mxu0
    %v3875 = vadd.f32 %v3861, %v3874
    %v3876 = vpop.f32.mrf.mxu0
    %v3877 = vadd.f32 %v3863, %v3876
    %3878 = vdwg.mxu0
    %3879 = vmatpush.bf16.msra.mxu0 %v3632
    %3880 = vmatpush.bf16.msra.mxu0 %v3628
    %3881 = vmatpush.bf16.msra.mxu0 %v3624
    %3882 = vmatpush.bf16.msra.mxu0 %v3620
    %3883 = vmatpush.bf16.msra.mxu0 %v3616
    %3884 = vmatpush.bf16.msra.mxu0 %v3612
    %3885 = vmatpush.bf16.msra.mxu0 %v3608
    %3886 = vmatpush.bf16.msra.mxu0 %v3604
    %3887 = vmatmul.bf16.gmra.mxu0 %v2647
    %v3888 = vpop.f32.mrf.mxu0
    %v3889 = vadd.f32 %v3875, %v3888
    %v3890 = vpop.f32.mrf.mxu0
    %v3891 = vadd.f32 %v3877, %v3890
    %3892 = vdwg.mxu0
    %3893 = vmatpush.bf16.msra.mxu0 %v3664
    %3894 = vmatpush.bf16.msra.mxu0 %v3660
    %3895 = vmatpush.bf16.msra.mxu0 %v3656
    %3896 = vmatpush.bf16.msra.mxu0 %v3652
    %3897 = vmatpush.bf16.msra.mxu0 %v3648
    %3898 = vmatpush.bf16.msra.mxu0 %v3644
    %3899 = vmatpush.bf16.msra.mxu0 %v3640
    %3900 = vmatpush.bf16.msra.mxu0 %v3636
    %3901 = vmatmul.bf16.gmra.mxu0 %v2648
    %v3902 = vpop.f32.mrf.mxu0
    %v3903 = vadd.f32 %v3889, %v3902
    %v3904 = vpop.f32.mrf.mxu0
    %v3905 = vadd.f32 %v3891, %v3904
    %3906 = vdwg.mxu0
    %3907 = vmatpush.bf16.msra.mxu0 %v3569
    %3908 = vmatpush.bf16.msra.mxu0 %v3565
    %3909 = vmatpush.bf16.msra.mxu0 %v3561
    %3910 = vmatpush.bf16.msra.mxu0 %v3557
    %3911 = vmatpush.bf16.msra.mxu0 %v3553
    %3912 = vmatpush.bf16.msra.mxu0 %v3549
    %3913 = vmatpush.bf16.msra.mxu0 %v3545
    %3914 = vmatpush.bf16.msra.mxu0 %v3541
    %3915 = vmatmul.bf16.gmra.mxu0 %v2645
    %v3916 = vpop.f32.mrf.mxu0
    %v3917 = vadd.f32 0.0, %v3916
    %v3918 = vpop.f32.mrf.mxu0
    %v3919 = vadd.f32 0.0, %v3918
    %3920 = vdwg.mxu0
    %3921 = vmatpush.bf16.msra.mxu0 %v3601
    %3922 = vmatpush.bf16.msra.mxu0 %v3597
    %3923 = vmatpush.bf16.msra.mxu0 %v3593
    %3924 = vmatpush.bf16.msra.mxu0 %v3589
    %3925 = vmatpush.bf16.msra.mxu0 %v3585
    %3926 = vmatpush.bf16.msra.mxu0 %v3581
    %3927 = vmatpush.bf16.msra.mxu0 %v3577
    %3928 = vmatpush.bf16.msra.mxu0 %v3573
    %3929 = vmatmul.bf16.gmra.mxu0 %v2646
    %v3930 = vpop.f32.mrf.mxu0
    %v3931 = vadd.f32 %v3917, %v3930
    %v3932 = vpop.f32.mrf.mxu0
    %v3933 = vadd.f32 %v3919, %v3932
    %3934 = vdwg.mxu0
    %3935 = vmatpush.bf16.msra.mxu0 %v3633
    %3936 = vmatpush.bf16.msra.mxu0 %v3629
    %3937 = vmatpush.bf16.msra.mxu0 %v3625
    %3938 = vmatpush.bf16.msra.mxu0 %v3621
    %3939 = vmatpush.bf16.msra.mxu0 %v3617
    %3940 = vmatpush.bf16.msra.mxu0 %v3613
    %3941 = vmatpush.bf16.msra.mxu0 %v3609
    %3942 = vmatpush.bf16.msra.mxu0 %v3605
    %3943 = vmatmul.bf16.gmra.mxu0 %v2647
    %v3944 = vpop.f32.mrf.mxu0
    %v3945 = vadd.f32 %v3931, %v3944
    %v3946 = vpop.f32.mrf.mxu0
    %v3947 = vadd.f32 %v3933, %v3946
    %3948 = vdwg.mxu0
    %3949 = vmatpush.bf16.msra.mxu0 %v3665
    %3950 = vmatpush.bf16.msra.mxu0 %v3661
    %3951 = vmatpush.bf16.msra.mxu0 %v3657
    %3952 = vmatpush.bf16.msra.mxu0 %v3653
    %3953 = vmatpush.bf16.msra.mxu0 %v3649
    %3954 = vmatpush.bf16.msra.mxu0 %v3645
    %3955 = vmatpush.bf16.msra.mxu0 %v3641
    %3956 = vmatpush.bf16.msra.mxu0 %v3637
    %3957 = vmatmul.bf16.gmra.mxu0 %v2648
    %v3958 = vpop.f32.mrf.mxu0
    %v3959 = vadd.f32 %v3945, %v3958
    %v3960 = vpop.f32.mrf.mxu0
    %v3961 = vadd.f32 %v3947, %v3960
    %3962 = vdwg.mxu0
    %3963 = vmatpush.bf16.msra.mxu0 %v3570
    %3964 = vmatpush.bf16.msra.mxu0 %v3566
    %3965 = vmatpush.bf16.msra.mxu0 %v3562
    %3966 = vmatpush.bf16.msra.mxu0 %v3558
    %3967 = vmatpush.bf16.msra.mxu0 %v3554
    %3968 = vmatpush.bf16.msra.mxu0 %v3550
    %3969 = vmatpush.bf16.msra.mxu0 %v3546
    %3970 = vmatpush.bf16.msra.mxu0 %v3542
    %3971 = vmatmul.bf16.gmra.mxu0 %v2645
    %v3972 = vpop.f32.mrf.mxu0
    %v3973 = vadd.f32 0.0, %v3972
    %v3974 = vpop.f32.mrf.mxu0
    %v3975 = vadd.f32 0.0, %v3974
    %3976 = vdwg.mxu0
    %3977 = vmatpush.bf16.msra.mxu0 %v3602
    %3978 = vmatpush.bf16.msra.mxu0 %v3598
    %3979 = vmatpush.bf16.msra.mxu0 %v3594
    %3980 = vmatpush.bf16.msra.mxu0 %v3590
    %3981 = vmatpush.bf16.msra.mxu0 %v3586
    %3982 = vmatpush.bf16.msra.mxu0 %v3582
    %3983 = vmatpush.bf16.msra.mxu0 %v3578
    %3984 = vmatpush.bf16.msra.mxu0 %v3574
    %3985 = vmatmul.bf16.gmra.mxu0 %v2646
    %v3986 = vpop.f32.mrf.mxu0
    %v3987 = vadd.f32 %v3973, %v3986
    %v3988 = vpop.f32.mrf.mxu0
    %v3989 = vadd.f32 %v3975, %v3988
    %3990 = vdwg.mxu0
    %3991 = vmatpush.bf16.msra.mxu0 %v3634
    %3992 = vmatpush.bf16.msra.mxu0 %v3630
    %3993 = vmatpush.bf16.msra.mxu0 %v3626
    %3994 = vmatpush.bf16.msra.mxu0 %v3622
    %3995 = vmatpush.bf16.msra.mxu0 %v3618
    %3996 = vmatpush.bf16.msra.mxu0 %v3614
    %3997 = vmatpush.bf16.msra.mxu0 %v3610
    %3998 = vmatpush.bf16.msra.mxu0 %v3606
    %3999 = vmatmul.bf16.gmra.mxu0 %v2647
    %v4000 = vpop.f32.mrf.mxu0
    %v4001 = vadd.f32 %v3987, %v4000
    %v4002 = vpop.f32.mrf.mxu0
    %v4003 = vadd.f32 %v3989, %v4002
    %4004 = vdwg.mxu0
    %4005 = vmatpush.bf16.msra.mxu0 %v3666
    %4006 = vmatpush.bf16.msra.mxu0 %v3662
    %4007 = vmatpush.bf16.msra.mxu0 %v3658
    %4008 = vmatpush.bf16.msra.mxu0 %v3654
    %4009 = vmatpush.bf16.msra.mxu0 %v3650
    %4010 = vmatpush.bf16.msra.mxu0 %v3646
    %4011 = vmatpush.bf16.msra.mxu0 %v3642
    %4012 = vmatpush.bf16.msra.mxu0 %v3638
    %4013 = vmatmul.bf16.gmra.mxu0 %v2648
    %v4014 = vpop.f32.mrf.mxu0
    %v4015 = vadd.f32 %v4001, %v4014
    %v4016 = vpop.f32.mrf.mxu0
    %v4017 = vadd.f32 %v4003, %v4016
    %4018 = vdwg.mxu0
    %v4083 = vunpack.c.l.b16 %v2963
    %v4084 = vunpack.c.h.b16 %v2963
    %v4085 = vunpack.c.l.b16 %v2964
    %v4086 = vunpack.c.h.b16 %v2964
    %v4087 = vunpack.c.l.b16 %v2965
    %v4088 = vunpack.c.h.b16 %v2965
    %v4089 = vunpack.c.l.b16 %v2966
    %v4090 = vunpack.c.h.b16 %v2966
    %v4091 = vunpack.c.l.b16 %v2967
    %v4092 = vunpack.c.h.b16 %v2967
    %v4093 = vunpack.c.l.b16 %v2968
    %v4094 = vunpack.c.h.b16 %v2968
    %v4095 = vunpack.c.l.b16 %v2969
    %v4096 = vunpack.c.h.b16 %v2969
    %v4097 = vunpack.c.l.b16 %v2970
    %v4098 = vunpack.c.h.b16 %v2970
    %v4099 = vunpack.c.l.b16 %v2971
    %v4100 = vunpack.c.h.b16 %v2971
    %v4101 = vunpack.c.l.b16 %v2972
    %v4102 = vunpack.c.h.b16 %v2972
    %v4103 = vunpack.c.l.b16 %v2973
    %v4104 = vunpack.c.h.b16 %v2973
    %v4105 = vunpack.c.l.b16 %v2974
    %v4106 = vunpack.c.h.b16 %v2974
    %v4107 = vunpack.c.l.b16 %v2975
    %v4108 = vunpack.c.h.b16 %v2975
    %v4109 = vunpack.c.l.b16 %v2976
    %v4110 = vunpack.c.h.b16 %v2976
    %v4111 = vunpack.c.l.b16 %v2977
    %v4112 = vunpack.c.h.b16 %v2977
    %v4113 = vunpack.c.l.b16 %v2978
    %v4114 = vunpack.c.h.b16 %v2978
    %v4115 = vunpack.c.l.b16 %v2979
    %v4116 = vunpack.c.h.b16 %v2979
    %v4117 = vunpack.c.l.b16 %v2980
    %v4118 = vunpack.c.h.b16 %v2980
    %v4119 = vunpack.c.l.b16 %v2981
    %v4120 = vunpack.c.h.b16 %v2981
    %v4121 = vunpack.c.l.b16 %v2982
    %v4122 = vunpack.c.h.b16 %v2982
    %v4123 = vunpack.c.l.b16 %v2983
    %v4124 = vunpack.c.h.b16 %v2983
    %v4125 = vunpack.c.l.b16 %v2984
    %v4126 = vunpack.c.h.b16 %v2984
    %v4127 = vunpack.c.l.b16 %v2985
    %v4128 = vunpack.c.h.b16 %v2985
    %v4129 = vunpack.c.l.b16 %v2986
    %v4130 = vunpack.c.h.b16 %v2986
    %v4131 = vunpack.c.l.b16 %v2987
    %v4132 = vunpack.c.h.b16 %v2987
    %v4133 = vunpack.c.l.b16 %v2988
    %v4134 = vunpack.c.h.b16 %v2988
    %v4135 = vunpack.c.l.b16 %v2989
    %v4136 = vunpack.c.h.b16 %v2989
    %v4137 = vunpack.c.l.b16 %v2990
    %v4138 = vunpack.c.h.b16 %v2990
    %v4139 = vunpack.c.l.b16 %v2991
    %v4140 = vunpack.c.h.b16 %v2991
    %v4141 = vunpack.c.l.b16 %v2992
    %v4142 = vunpack.c.h.b16 %v2992
    %v4143 = vunpack.c.l.b16 %v2993
    %v4144 = vunpack.c.h.b16 %v2993
    %v4145 = vunpack.c.l.b16 %v2994
    %v4146 = vunpack.c.h.b16 %v2994
    %v4147 = vunpack.c.l.b16 %v2995
    %v4148 = vunpack.c.h.b16 %v2995
    %v4149 = vunpack.c.l.b16 %v2996
    %v4150 = vunpack.c.h.b16 %v2996
    %v4151 = vunpack.c.l.b16 %v2997
    %v4152 = vunpack.c.h.b16 %v2997
    %v4153 = vunpack.c.l.b16 %v2998
    %v4154 = vunpack.c.h.b16 %v2998
    %v4155 = vunpack.c.l.b16 %v2999
    %v4156 = vunpack.c.h.b16 %v2999
    %v4157 = vunpack.c.l.b16 %v3000
    %v4158 = vunpack.c.h.b16 %v3000
    %v4159 = vunpack.c.l.b16 %v3001
    %v4160 = vunpack.c.h.b16 %v3001
    %v4161 = vunpack.c.l.b16 %v3002
    %v4162 = vunpack.c.h.b16 %v3002
    %v4163 = vunpack.c.l.b16 %v3003
    %v4164 = vunpack.c.h.b16 %v3003
    %v4165 = vunpack.c.l.b16 %v3004
    %v4166 = vunpack.c.h.b16 %v3004
    %v4167 = vunpack.c.l.b16 %v3005
    %v4168 = vunpack.c.h.b16 %v3005
    %v4169 = vunpack.c.l.b16 %v3006
    %v4170 = vunpack.c.h.b16 %v3006
    %v4171 = vunpack.c.l.b16 %v3007
    %v4172 = vunpack.c.h.b16 %v3007
    %v4173 = vunpack.c.l.b16 %v3008
    %v4174 = vunpack.c.h.b16 %v3008
    %v4175 = vunpack.c.l.b16 %v3009
    %v4176 = vunpack.c.h.b16 %v3009
    %v4177 = vunpack.c.l.b16 %v3010
    %v4178 = vunpack.c.h.b16 %v3010
    %v4179 = vunpack.c.l.b16 %v3011
    %v4180 = vunpack.c.h.b16 %v3011
    %v4181 = vunpack.c.l.b16 %v3012
    %v4182 = vunpack.c.h.b16 %v3012
    %v4183 = vunpack.c.l.b16 %v3013
    %v4184 = vunpack.c.h.b16 %v3013
    %v4185 = vunpack.c.l.b16 %v3014
    %v4186 = vunpack.c.h.b16 %v3014
    %v4187 = vunpack.c.l.b16 %v3015
    %v4188 = vunpack.c.h.b16 %v3015
    %v4189 = vunpack.c.l.b16 %v3016
    %v4190 = vunpack.c.h.b16 %v3016
    %v4191 = vunpack.c.l.b16 %v3017
    %v4192 = vunpack.c.h.b16 %v3017
    %v4193 = vunpack.c.l.b16 %v3018
    %v4194 = vunpack.c.h.b16 %v3018
    %v4195 = vunpack.c.l.b16 %v3019
    %v4196 = vunpack.c.h.b16 %v3019
    %v4197 = vunpack.c.l.b16 %v3020
    %v4198 = vunpack.c.h.b16 %v3020
    %v4199 = vunpack.c.l.b16 %v3021
    %v4200 = vunpack.c.h.b16 %v3021
    %v4201 = vunpack.c.l.b16 %v3022
    %v4202 = vunpack.c.h.b16 %v3022
    %v4203 = vunpack.c.l.b16 %v3023
    %v4204 = vunpack.c.h.b16 %v3023
    %v4205 = vunpack.c.l.b16 %v3024
    %v4206 = vunpack.c.h.b16 %v3024
    %v4207 = vunpack.c.l.b16 %v3025
    %v4208 = vunpack.c.h.b16 %v3025
    %v4209 = vunpack.c.l.b16 %v3026
    %v4210 = vunpack.c.h.b16 %v3026
    %v4211 = vpack.c.b16 %v4087, %v4083
    %v4212 = vpack.c.b16 %v4088, %v4084
    %v4213 = vpack.c.b16 %v4089, %v4085
    %v4214 = vpack.c.b16 %v4090, %v4086
    %v4215 = vpack.c.b16 %v4095, %v4091
    %v4216 = vpack.c.b16 %v4096, %v4092
    %v4217 = vpack.c.b16 %v4097, %v4093
    %v4218 = vpack.c.b16 %v4098, %v4094
    %v4219 = vpack.c.b16 %v4103, %v4099
    %v4220 = vpack.c.b16 %v4104, %v4100
    %v4221 = vpack.c.b16 %v4105, %v4101
    %v4222 = vpack.c.b16 %v4106, %v4102
    %v4223 = vpack.c.b16 %v4111, %v4107
    %v4224 = vpack.c.b16 %v4112, %v4108
    %v4225 = vpack.c.b16 %v4113, %v4109
    %v4226 = vpack.c.b16 %v4114, %v4110
    %v4227 = vpack.c.b16 %v4119, %v4115
    %v4228 = vpack.c.b16 %v4120, %v4116
    %v4229 = vpack.c.b16 %v4121, %v4117
    %v4230 = vpack.c.b16 %v4122, %v4118
    %v4231 = vpack.c.b16 %v4127, %v4123
    %v4232 = vpack.c.b16 %v4128, %v4124
    %v4233 = vpack.c.b16 %v4129, %v4125
    %v4234 = vpack.c.b16 %v4130, %v4126
    %v4235 = vpack.c.b16 %v4135, %v4131
    %v4236 = vpack.c.b16 %v4136, %v4132
    %v4237 = vpack.c.b16 %v4137, %v4133
    %v4238 = vpack.c.b16 %v4138, %v4134
    %v4239 = vpack.c.b16 %v4143, %v4139
    %v4240 = vpack.c.b16 %v4144, %v4140
    %v4241 = vpack.c.b16 %v4145, %v4141
    %v4242 = vpack.c.b16 %v4146, %v4142
    %v4243 = vpack.c.b16 %v4151, %v4147
    %v4244 = vpack.c.b16 %v4152, %v4148
    %v4245 = vpack.c.b16 %v4153, %v4149
    %v4246 = vpack.c.b16 %v4154, %v4150
    %v4247 = vpack.c.b16 %v4159, %v4155
    %v4248 = vpack.c.b16 %v4160, %v4156
    %v4249 = vpack.c.b16 %v4161, %v4157
    %v4250 = vpack.c.b16 %v4162, %v4158
    %v4251 = vpack.c.b16 %v4167, %v4163
    %v4252 = vpack.c.b16 %v4168, %v4164
    %v4253 = vpack.c.b16 %v4169, %v4165
    %v4254 = vpack.c.b16 %v4170, %v4166
    %v4255 = vpack.c.b16 %v4175, %v4171
    %v4256 = vpack.c.b16 %v4176, %v4172
    %v4257 = vpack.c.b16 %v4177, %v4173
    %v4258 = vpack.c.b16 %v4178, %v4174
    %v4259 = vpack.c.b16 %v4183, %v4179
    %v4260 = vpack.c.b16 %v4184, %v4180
    %v4261 = vpack.c.b16 %v4185, %v4181
    %v4262 = vpack.c.b16 %v4186, %v4182
    %v4263 = vpack.c.b16 %v4191, %v4187
    %v4264 = vpack.c.b16 %v4192, %v4188
    %v4265 = vpack.c.b16 %v4193, %v4189
    %v4266 = vpack.c.b16 %v4194, %v4190
    %v4267 = vpack.c.b16 %v4199, %v4195
    %v4268 = vpack.c.b16 %v4200, %v4196
    %v4269 = vpack.c.b16 %v4201, %v4197
    %v4270 = vpack.c.b16 %v4202, %v4198
    %v4271 = vpack.c.b16 %v4207, %v4203
    %v4272 = vpack.c.b16 %v4208, %v4204
    %v4273 = vpack.c.b16 %v4209, %v4205
    %v4274 = vpack.c.b16 %v4210, %v4206
    %4339 = vmatpush.bf16.msra.mxu0 %v4239
    %4340 = vmatpush.bf16.msra.mxu0 %v4235
    %4341 = vmatpush.bf16.msra.mxu0 %v4231
    %4342 = vmatpush.bf16.msra.mxu0 %v4227
    %4343 = vmatpush.bf16.msra.mxu0 %v4223
    %4344 = vmatpush.bf16.msra.mxu0 %v4219
    %4345 = vmatpush.bf16.msra.mxu0 %v4215
    %4346 = vmatpush.bf16.msra.mxu0 %v4211
    %4347 = vmatmul.bf16.gmra.mxu0 %v355
    %v4348 = vpop.f32.mrf.mxu0
    %v4349 = vadd.f32 %v3847, %v4348
    %v4350 = vpop.f32.mrf.mxu0
    %v4351 = vadd.f32 %v3849, %v4350
    %4352 = vdwg.mxu0
    %4353 = vmatpush.bf16.msra.mxu0 %v4271
    %4354 = vmatpush.bf16.msra.mxu0 %v4267
    %4355 = vmatpush.bf16.msra.mxu0 %v4263
    %4356 = vmatpush.bf16.msra.mxu0 %v4259
    %4357 = vmatpush.bf16.msra.mxu0 %v4255
    %4358 = vmatpush.bf16.msra.mxu0 %v4251
    %4359 = vmatpush.bf16.msra.mxu0 %v4247
    %4360 = vmatpush.bf16.msra.mxu0 %v4243
    %4361 = vmatmul.bf16.gmra.mxu0 %v356
    %v4362 = vpop.f32.mrf.mxu0
    %v4363 = vadd.f32 %v4349, %v4362
    %v4364 = vpop.f32.mrf.mxu0
    %v4365 = vadd.f32 %v4351, %v4364
    %4366 = vdwg.mxu0
    %4367 = vmatpush.bf16.msra.mxu0 %v4240
    %4368 = vmatpush.bf16.msra.mxu0 %v4236
    %4369 = vmatpush.bf16.msra.mxu0 %v4232
    %4370 = vmatpush.bf16.msra.mxu0 %v4228
    %4371 = vmatpush.bf16.msra.mxu0 %v4224
    %4372 = vmatpush.bf16.msra.mxu0 %v4220
    %4373 = vmatpush.bf16.msra.mxu0 %v4216
    %4374 = vmatpush.bf16.msra.mxu0 %v4212
    %4375 = vmatmul.bf16.gmra.mxu0 %v355
    %v4376 = vpop.f32.mrf.mxu0
    %v4377 = vadd.f32 %v3903, %v4376
    %v4378 = vpop.f32.mrf.mxu0
    %v4379 = vadd.f32 %v3905, %v4378
    %4380 = vdwg.mxu0
    %4381 = vmatpush.bf16.msra.mxu0 %v4272
    %4382 = vmatpush.bf16.msra.mxu0 %v4268
    %4383 = vmatpush.bf16.msra.mxu0 %v4264
    %4384 = vmatpush.bf16.msra.mxu0 %v4260
    %4385 = vmatpush.bf16.msra.mxu0 %v4256
    %4386 = vmatpush.bf16.msra.mxu0 %v4252
    %4387 = vmatpush.bf16.msra.mxu0 %v4248
    %4388 = vmatpush.bf16.msra.mxu0 %v4244
    %4389 = vmatmul.bf16.gmra.mxu0 %v356
    %v4390 = vpop.f32.mrf.mxu0
    %v4391 = vadd.f32 %v4377, %v4390
    %v4392 = vpop.f32.mrf.mxu0
    %v4393 = vadd.f32 %v4379, %v4392
    %4394 = vdwg.mxu0
    %4395 = vmatpush.bf16.msra.mxu0 %v4241
    %4396 = vmatpush.bf16.msra.mxu0 %v4237
    %4397 = vmatpush.bf16.msra.mxu0 %v4233
    %4398 = vmatpush.bf16.msra.mxu0 %v4229
    %4399 = vmatpush.bf16.msra.mxu0 %v4225
    %4400 = vmatpush.bf16.msra.mxu0 %v4221
    %4401 = vmatpush.bf16.msra.mxu0 %v4217
    %4402 = vmatpush.bf16.msra.mxu0 %v4213
    %4403 = vmatmul.bf16.gmra.mxu0 %v355
    %v4404 = vpop.f32.mrf.mxu0
    %v4405 = vadd.f32 %v3959, %v4404
    %v4406 = vpop.f32.mrf.mxu0
    %v4407 = vadd.f32 %v3961, %v4406
    %4408 = vdwg.mxu0
    %4409 = vmatpush.bf16.msra.mxu0 %v4273
    %4410 = vmatpush.bf16.msra.mxu0 %v4269
    %4411 = vmatpush.bf16.msra.mxu0 %v4265
    %4412 = vmatpush.bf16.msra.mxu0 %v4261
    %4413 = vmatpush.bf16.msra.mxu0 %v4257
    %4414 = vmatpush.bf16.msra.mxu0 %v4253
    %4415 = vmatpush.bf16.msra.mxu0 %v4249
    %4416 = vmatpush.bf16.msra.mxu0 %v4245
    %4417 = vmatmul.bf16.gmra.mxu0 %v356
    %v4418 = vpop.f32.mrf.mxu0
    %v4419 = vadd.f32 %v4405, %v4418
    %v4420 = vpop.f32.mrf.mxu0
    %v4421 = vadd.f32 %v4407, %v4420
    %4422 = vdwg.mxu0
    %4423 = vmatpush.bf16.msra.mxu0 %v4242
    %4424 = vmatpush.bf16.msra.mxu0 %v4238
    %4425 = vmatpush.bf16.msra.mxu0 %v4234
    %4426 = vmatpush.bf16.msra.mxu0 %v4230
    %4427 = vmatpush.bf16.msra.mxu0 %v4226
    %4428 = vmatpush.bf16.msra.mxu0 %v4222
    %4429 = vmatpush.bf16.msra.mxu0 %v4218
    %4430 = vmatpush.bf16.msra.mxu0 %v4214
    %4431 = vmatmul.bf16.gmra.mxu0 %v355
    %v4432 = vpop.f32.mrf.mxu0
    %v4433 = vadd.f32 %v4015, %v4432
    %v4434 = vpop.f32.mrf.mxu0
    %v4435 = vadd.f32 %v4017, %v4434
    %4436 = vdwg.mxu0
    %4437 = vmatpush.bf16.msra.mxu0 %v4274
    %4438 = vmatpush.bf16.msra.mxu0 %v4270
    %4439 = vmatpush.bf16.msra.mxu0 %v4266
    %4440 = vmatpush.bf16.msra.mxu0 %v4262
    %4441 = vmatpush.bf16.msra.mxu0 %v4258
    %4442 = vmatpush.bf16.msra.mxu0 %v4254
    %4443 = vmatpush.bf16.msra.mxu0 %v4250
    %4444 = vmatpush.bf16.msra.mxu0 %v4246
    %4445 = vmatmul.bf16.gmra.mxu0 %v356
    %v4446 = vpop.f32.mrf.mxu0
    %v4447 = vadd.f32 %v4433, %v4446
    %v4448 = vpop.f32.mrf.mxu0
    %v4449 = vadd.f32 %v4435, %v4448
    %4450 = vdwg.mxu0
    %v4451 = vld [vmem:[#allocation14] sm:$0xf]
    %v4453 = vperm.slane %v4451, 0
    %v4454 = vperm.slane %v4451, 1
    %v4455 = vperm.slane %v4451, 2
    %v4456 = vperm.slane %v4451, 3
    %v4461 = vadd.f32 %v4363, %v4453
    %v4462 = vadd.f32 %v4391, %v4454
    %v4463 = vadd.f32 %v4419, %v4455
    %v4464 = vadd.f32 %v4447, %v4456
    %v4465 = vadd.f32 %v4365, %v4453
    %v4466 = vadd.f32 %v4393, %v4454
    %v4467 = vadd.f32 %v4421, %v4455
    %v4468 = vadd.f32 %v4449, %v4456
    %v4469 = vmax.f32 %v4461, 0.0
    %v4470 = vmax.f32 %v4462, 0.0
    %v4471 = vmax.f32 %v4463, 0.0
    %v4472 = vmax.f32 %v4464, 0.0
    %v4473 = vmax.f32 %v4465, 0.0
    %v4474 = vmax.f32 %v4466, 0.0
    %v4475 = vmax.f32 %v4467, 0.0
    %v4476 = vmax.f32 %v4468, 0.0
    %v4477 = vpack.c.bf16 %v4473, %v4469
    %v4478 = vpack.c.bf16 %v4474, %v4470
    %v4479 = vpack.c.bf16 %v4475, %v4471
    %v4480 = vpack.c.bf16 %v4476, %v4472
    %v4481 = vld [vmem:[#allocation22] sm:$0xf]
    %v4482 = vld [vmem:[#allocation22 + $0x4] sm:$0xf]
    %v4483 = vld [vmem:[#allocation22 + $0x8] sm:$0xf]
    %v4484 = vld [vmem:[#allocation22 + $0xc] sm:$0xf]
    %v4485 = vld [vmem:[#allocation22 + $0x10] sm:$0xf]
    %v4486 = vld [vmem:[#allocation22 + $0x14] sm:$0xf]
    %v4487 = vld [vmem:[#allocation22 + $0x18] sm:$0xf]
    %v4488 = vld [vmem:[#allocation22 + $0x1c] sm:$0xf]
    %v4489 = vld [vmem:[#allocation22 + $0x20] sm:$0xf]
    %v4490 = vld [vmem:[#allocation22 + $0x24] sm:$0xf]
    %v4491 = vld [vmem:[#allocation22 + $0x28] sm:$0xf]
    %v4492 = vld [vmem:[#allocation22 + $0x2c] sm:$0xf]
    %v4493 = vld [vmem:[#allocation22 + $0x30] sm:$0xf]
    %v4494 = vld [vmem:[#allocation22 + $0x34] sm:$0xf]
    %v4495 = vld [vmem:[#allocation22 + $0x38] sm:$0xf]
    %v4496 = vld [vmem:[#allocation22 + $0x3c] sm:$0xf]
    %v4497 = vld [vmem:[#allocation22 + $0x40] sm:$0xf]
    %v4498 = vld [vmem:[#allocation22 + $0x44] sm:$0xf]
    %v4499 = vld [vmem:[#allocation22 + $0x48] sm:$0xf]
    %v4500 = vld [vmem:[#allocation22 + $0x4c] sm:$0xf]
    %v4501 = vld [vmem:[#allocation22 + $0x50] sm:$0xf]
    %v4502 = vld [vmem:[#allocation22 + $0x54] sm:$0xf]
    %v4503 = vld [vmem:[#allocation22 + $0x58] sm:$0xf]
    %v4504 = vld [vmem:[#allocation22 + $0x5c] sm:$0xf]
    %v4505 = vld [vmem:[#allocation22 + $0x60] sm:$0xf]
    %v4506 = vld [vmem:[#allocation22 + $0x64] sm:$0xf]
    %v4507 = vld [vmem:[#allocation22 + $0x68] sm:$0xf]
    %v4508 = vld [vmem:[#allocation22 + $0x6c] sm:$0xf]
    %v4509 = vld [vmem:[#allocation22 + $0x70] sm:$0xf]
    %v4510 = vld [vmem:[#allocation22 + $0x74] sm:$0xf]
    %v4511 = vld [vmem:[#allocation22 + $0x78] sm:$0xf]
    %v4512 = vld [vmem:[#allocation22 + $0x7c] sm:$0xf]
    %v4513 = vld [vmem:[#allocation22 + $0x80] sm:$0xf]
    %v4514 = vld [vmem:[#allocation22 + $0x84] sm:$0xf]
    %v4515 = vld [vmem:[#allocation22 + $0x88] sm:$0xf]
    %v4516 = vld [vmem:[#allocation22 + $0x8c] sm:$0xf]
    %v4517 = vld [vmem:[#allocation22 + $0x90] sm:$0xf]
    %v4518 = vld [vmem:[#allocation22 + $0x94] sm:$0xf]
    %v4519 = vld [vmem:[#allocation22 + $0x98] sm:$0xf]
    %v4520 = vld [vmem:[#allocation22 + $0x9c] sm:$0xf]
    %v4521 = vld [vmem:[#allocation22 + $0xa0] sm:$0xf]
    %v4522 = vld [vmem:[#allocation22 + $0xa4] sm:$0xf]
    %v4523 = vld [vmem:[#allocation22 + $0xa8] sm:$0xf]
    %v4524 = vld [vmem:[#allocation22 + $0xac] sm:$0xf]
    %v4525 = vld [vmem:[#allocation22 + $0xb0] sm:$0xf]
    %v4526 = vld [vmem:[#allocation22 + $0xb4] sm:$0xf]
    %v4527 = vld [vmem:[#allocation22 + $0xb8] sm:$0xf]
    %v4528 = vld [vmem:[#allocation22 + $0xbc] sm:$0xf]
    %v4529 = vld [vmem:[#allocation22 + $0xc0] sm:$0xf]
    %v4530 = vld [vmem:[#allocation22 + $0xc4] sm:$0xf]
    %v4531 = vld [vmem:[#allocation22 + $0xc8] sm:$0xf]
    %v4532 = vld [vmem:[#allocation22 + $0xcc] sm:$0xf]
    %v4533 = vld [vmem:[#allocation22 + $0xd0] sm:$0xf]
    %v4534 = vld [vmem:[#allocation22 + $0xd4] sm:$0xf]
    %v4535 = vld [vmem:[#allocation22 + $0xd8] sm:$0xf]
    %v4536 = vld [vmem:[#allocation22 + $0xdc] sm:$0xf]
    %v4537 = vld [vmem:[#allocation22 + $0xe0] sm:$0xf]
    %v4538 = vld [vmem:[#allocation22 + $0xe4] sm:$0xf]
    %v4539 = vld [vmem:[#allocation22 + $0xe8] sm:$0xf]
    %v4540 = vld [vmem:[#allocation22 + $0xec] sm:$0xf]
    %v4541 = vld [vmem:[#allocation22 + $0xf0] sm:$0xf]
    %v4542 = vld [vmem:[#allocation22 + $0xf4] sm:$0xf]
    %v4543 = vld [vmem:[#allocation22 + $0xf8] sm:$0xf]
    %v4544 = vld [vmem:[#allocation22 + $0xfc] sm:$0xf]
    %v4609 = vunpack.c.l.b16 %v4481
    %v4610 = vunpack.c.l.b16 %v4482
    %v4611 = vunpack.c.l.b16 %v4483
    %v4612 = vunpack.c.l.b16 %v4484
    %v4613 = vunpack.c.l.b16 %v4485
    %v4614 = vunpack.c.l.b16 %v4486
    %v4615 = vunpack.c.l.b16 %v4487
    %v4616 = vunpack.c.l.b16 %v4488
    %v4617 = vunpack.c.l.b16 %v4489
    %v4618 = vunpack.c.l.b16 %v4490
    %v4619 = vunpack.c.l.b16 %v4491
    %v4620 = vunpack.c.l.b16 %v4492
    %v4621 = vunpack.c.l.b16 %v4493
    %v4622 = vunpack.c.l.b16 %v4494
    %v4623 = vunpack.c.l.b16 %v4495
    %v4624 = vunpack.c.l.b16 %v4496
    %v4625 = vunpack.c.l.b16 %v4497
    %v4626 = vunpack.c.l.b16 %v4498
    %v4627 = vunpack.c.l.b16 %v4499
    %v4628 = vunpack.c.l.b16 %v4500
    %v4629 = vunpack.c.l.b16 %v4501
    %v4630 = vunpack.c.l.b16 %v4502
    %v4631 = vunpack.c.l.b16 %v4503
    %v4632 = vunpack.c.l.b16 %v4504
    %v4633 = vunpack.c.l.b16 %v4505
    %v4634 = vunpack.c.l.b16 %v4506
    %v4635 = vunpack.c.l.b16 %v4507
    %v4636 = vunpack.c.l.b16 %v4508
    %v4637 = vunpack.c.l.b16 %v4509
    %v4638 = vunpack.c.l.b16 %v4510
    %v4639 = vunpack.c.l.b16 %v4511
    %v4640 = vunpack.c.l.b16 %v4512
    %v4641 = vunpack.c.l.b16 %v4513
    %v4642 = vunpack.c.l.b16 %v4514
    %v4643 = vunpack.c.l.b16 %v4515
    %v4644 = vunpack.c.l.b16 %v4516
    %v4645 = vunpack.c.l.b16 %v4517
    %v4646 = vunpack.c.l.b16 %v4518
    %v4647 = vunpack.c.l.b16 %v4519
    %v4648 = vunpack.c.l.b16 %v4520
    %v4649 = vunpack.c.l.b16 %v4521
    %v4650 = vunpack.c.l.b16 %v4522
    %v4651 = vunpack.c.l.b16 %v4523
    %v4652 = vunpack.c.l.b16 %v4524
    %v4653 = vunpack.c.l.b16 %v4525
    %v4654 = vunpack.c.l.b16 %v4526
    %v4655 = vunpack.c.l.b16 %v4527
    %v4656 = vunpack.c.l.b16 %v4528
    %v4657 = vunpack.c.l.b16 %v4529
    %v4658 = vunpack.c.l.b16 %v4530
    %v4659 = vunpack.c.l.b16 %v4531
    %v4660 = vunpack.c.l.b16 %v4532
    %v4661 = vunpack.c.l.b16 %v4533
    %v4662 = vunpack.c.l.b16 %v4534
    %v4663 = vunpack.c.l.b16 %v4535
    %v4664 = vunpack.c.l.b16 %v4536
    %v4665 = vunpack.c.l.b16 %v4537
    %v4666 = vunpack.c.l.b16 %v4538
    %v4667 = vunpack.c.l.b16 %v4539
    %v4668 = vunpack.c.l.b16 %v4540
    %v4669 = vunpack.c.l.b16 %v4541
    %v4670 = vunpack.c.l.b16 %v4542
    %v4671 = vunpack.c.l.b16 %v4543
    %v4672 = vunpack.c.l.b16 %v4544
    %v4673 = vpack.c.b16 %v4610, %v4609
    %v4674 = vpack.c.b16 %v4612, %v4611
    %v4675 = vpack.c.b16 %v4614, %v4613
    %v4676 = vpack.c.b16 %v4616, %v4615
    %v4677 = vpack.c.b16 %v4618, %v4617
    %v4678 = vpack.c.b16 %v4620, %v4619
    %v4679 = vpack.c.b16 %v4622, %v4621
    %v4680 = vpack.c.b16 %v4624, %v4623
    %v4681 = vpack.c.b16 %v4626, %v4625
    %v4682 = vpack.c.b16 %v4628, %v4627
    %v4683 = vpack.c.b16 %v4630, %v4629
    %v4684 = vpack.c.b16 %v4632, %v4631
    %v4685 = vpack.c.b16 %v4634, %v4633
    %v4686 = vpack.c.b16 %v4636, %v4635
    %v4687 = vpack.c.b16 %v4638, %v4637
    %v4688 = vpack.c.b16 %v4640, %v4639
    %v4689 = vpack.c.b16 %v4642, %v4641
    %v4690 = vpack.c.b16 %v4644, %v4643
    %v4691 = vpack.c.b16 %v4646, %v4645
    %v4692 = vpack.c.b16 %v4648, %v4647
    %v4693 = vpack.c.b16 %v4650, %v4649
    %v4694 = vpack.c.b16 %v4652, %v4651
    %v4695 = vpack.c.b16 %v4654, %v4653
    %v4696 = vpack.c.b16 %v4656, %v4655
    %v4697 = vpack.c.b16 %v4658, %v4657
    %v4698 = vpack.c.b16 %v4660, %v4659
    %v4699 = vpack.c.b16 %v4662, %v4661
    %v4700 = vpack.c.b16 %v4664, %v4663
    %v4701 = vpack.c.b16 %v4666, %v4665
    %v4702 = vpack.c.b16 %v4668, %v4667
    %v4703 = vpack.c.b16 %v4670, %v4669
    %v4704 = vpack.c.b16 %v4672, %v4671
    %4737 = vmatpush.bf16.msra.mxu0 %v4680
    %4738 = vmatpush.bf16.msra.mxu0 %v4679
    %4739 = vmatpush.bf16.msra.mxu0 %v4678
    %4740 = vmatpush.bf16.msra.mxu0 %v4677
    %4741 = vmatpush.bf16.msra.mxu0 %v4676
    %4742 = vmatpush.bf16.msra.mxu0 %v4675
    %4743 = vmatpush.bf16.msra.mxu0 %v4674
    %4744 = vmatpush.bf16.msra.mxu0 %v4673
    %4745 = vmatmul.bf16.gmra.mxu0 %v4477
    %v4746 = vpop.f32.mrf.mxu0
    %v4747 = vadd.f32 0.0, %v4746
    %v4748 = vpop.f32.mrf.mxu0
    %v4749 = vadd.f32 0.0, %v4748
    %4750 = vdwg.mxu0
    %4751 = vmatpush.bf16.msra.mxu0 %v4688
    %4752 = vmatpush.bf16.msra.mxu0 %v4687
    %4753 = vmatpush.bf16.msra.mxu0 %v4686
    %4754 = vmatpush.bf16.msra.mxu0 %v4685
    %4755 = vmatpush.bf16.msra.mxu0 %v4684
    %4756 = vmatpush.bf16.msra.mxu0 %v4683
    %4757 = vmatpush.bf16.msra.mxu0 %v4682
    %4758 = vmatpush.bf16.msra.mxu0 %v4681
    %4759 = vmatmul.bf16.gmra.mxu0 %v4478
    %v4760 = vpop.f32.mrf.mxu0
    %v4761 = vadd.f32 %v4747, %v4760
    %v4762 = vpop.f32.mrf.mxu0
    %v4763 = vadd.f32 %v4749, %v4762
    %4764 = vdwg.mxu0
    %4765 = vmatpush.bf16.msra.mxu0 %v4696
    %4766 = vmatpush.bf16.msra.mxu0 %v4695
    %4767 = vmatpush.bf16.msra.mxu0 %v4694
    %4768 = vmatpush.bf16.msra.mxu0 %v4693
    %4769 = vmatpush.bf16.msra.mxu0 %v4692
    %4770 = vmatpush.bf16.msra.mxu0 %v4691
    %4771 = vmatpush.bf16.msra.mxu0 %v4690
    %4772 = vmatpush.bf16.msra.mxu0 %v4689
    %4773 = vmatmul.bf16.gmra.mxu0 %v4479
    %v4774 = vpop.f32.mrf.mxu0
    %v4775 = vadd.f32 %v4761, %v4774
    %v4776 = vpop.f32.mrf.mxu0
    %v4777 = vadd.f32 %v4763, %v4776
    %4778 = vdwg.mxu0
    %4779 = vmatpush.bf16.msra.mxu0 %v4704
    %4780 = vmatpush.bf16.msra.mxu0 %v4703
    %4781 = vmatpush.bf16.msra.mxu0 %v4702
    %4782 = vmatpush.bf16.msra.mxu0 %v4701
    %4783 = vmatpush.bf16.msra.mxu0 %v4700
    %4784 = vmatpush.bf16.msra.mxu0 %v4699
    %4785 = vmatpush.bf16.msra.mxu0 %v4698
    %4786 = vmatpush.bf16.msra.mxu0 %v4697
    %4787 = vmatmul.bf16.gmra.mxu0 %v4480
    %v4788 = vpop.f32.mrf.mxu0
    %v4789 = vadd.f32 %v4775, %v4788
    %v4790 = vpop.f32.mrf.mxu0
    %v4791 = vadd.f32 %v4777, %v4790
    %4792 = vdwg.mxu0
    %v4793 = vadd.f32 %v2961, %v4789
    %v4794 = vadd.f32 %v2962, %v4791
    %v4795 = vld [vmem:[#allocation16] sm:$0xff]
    %v4796 = vld [vmem:[#allocation16 + $0x8] sm:$0xff]
    %v4797 = vld [vmem:[#allocation16 + $0x10] sm:$0xff]
    %v4798 = vld [vmem:[#allocation16 + $0x18] sm:$0xff]
    %v4799 = vld [vmem:[#allocation16 + $0x20] sm:$0xff]
    %v4800 = vld [vmem:[#allocation16 + $0x28] sm:$0xff]
    %v4801 = vld [vmem:[#allocation16 + $0x30] sm:$0xff]
    %v4802 = vld [vmem:[#allocation16 + $0x38] sm:$0xff]
    %v4803 = vld [vmem:[#allocation16 + $0x40] sm:$0xff]
    %v4804 = vld [vmem:[#allocation16 + $0x48] sm:$0xff]
    %v4805 = vld [vmem:[#allocation16 + $0x50] sm:$0xff]
    %v4806 = vld [vmem:[#allocation16 + $0x58] sm:$0xff]
    %v4807 = vld [vmem:[#allocation16 + $0x60] sm:$0xff]
    %v4808 = vld [vmem:[#allocation16 + $0x68] sm:$0xff]
    %v4809 = vld [vmem:[#allocation16 + $0x70] sm:$0xff]
    %v4810 = vld [vmem:[#allocation16 + $0x78] sm:$0xff]
    %v4811 = vld [vmem:[#allocation16 + $0x80] sm:$0xff]
    %v4812 = vld [vmem:[#allocation16 + $0x88] sm:$0xff]
    %v4813 = vld [vmem:[#allocation16 + $0x90] sm:$0xff]
    %v4814 = vld [vmem:[#allocation16 + $0x98] sm:$0xff]
    %v4815 = vld [vmem:[#allocation16 + $0xa0] sm:$0xff]
    %v4816 = vld [vmem:[#allocation16 + $0xa8] sm:$0xff]
    %v4817 = vld [vmem:[#allocation16 + $0xb0] sm:$0xff]
    %v4818 = vld [vmem:[#allocation16 + $0xb8] sm:$0xff]
    %v4819 = vld [vmem:[#allocation16 + $0xc0] sm:$0xff]
    %v4820 = vld [vmem:[#allocation16 + $0xc8] sm:$0xff]
    %v4821 = vld [vmem:[#allocation16 + $0xd0] sm:$0xff]
    %v4822 = vld [vmem:[#allocation16 + $0xd8] sm:$0xff]
    %v4823 = vld [vmem:[#allocation16 + $0xe0] sm:$0xff]
    %v4824 = vld [vmem:[#allocation16 + $0xe8] sm:$0xff]
    %v4825 = vld [vmem:[#allocation16 + $0xf0] sm:$0xff]
    %v4826 = vld [vmem:[#allocation16 + $0xf8] sm:$0xff]
    %v4827 = vld [vmem:[#allocation16 + $0x100] sm:$0xff]
    %v4828 = vld [vmem:[#allocation16 + $0x108] sm:$0xff]
    %v4829 = vld [vmem:[#allocation16 + $0x110] sm:$0xff]
    %v4830 = vld [vmem:[#allocation16 + $0x118] sm:$0xff]
    %v4831 = vld [vmem:[#allocation16 + $0x120] sm:$0xff]
    %v4832 = vld [vmem:[#allocation16 + $0x128] sm:$0xff]
    %v4833 = vld [vmem:[#allocation16 + $0x130] sm:$0xff]
    %v4834 = vld [vmem:[#allocation16 + $0x138] sm:$0xff]
    %v4835 = vld [vmem:[#allocation16 + $0x140] sm:$0xff]
    %v4836 = vld [vmem:[#allocation16 + $0x148] sm:$0xff]
    %v4837 = vld [vmem:[#allocation16 + $0x150] sm:$0xff]
    %v4838 = vld [vmem:[#allocation16 + $0x158] sm:$0xff]
    %v4839 = vld [vmem:[#allocation16 + $0x160] sm:$0xff]
    %v4840 = vld [vmem:[#allocation16 + $0x168] sm:$0xff]
    %v4841 = vld [vmem:[#allocation16 + $0x170] sm:$0xff]
    %v4842 = vld [vmem:[#allocation16 + $0x178] sm:$0xff]
    %v4843 = vld [vmem:[#allocation16 + $0x180] sm:$0xff]
    %v4844 = vld [vmem:[#allocation16 + $0x188] sm:$0xff]
    %v4845 = vld [vmem:[#allocation16 + $0x190] sm:$0xff]
    %v4846 = vld [vmem:[#allocation16 + $0x198] sm:$0xff]
    %v4847 = vld [vmem:[#allocation16 + $0x1a0] sm:$0xff]
    %v4848 = vld [vmem:[#allocation16 + $0x1a8] sm:$0xff]
    %v4849 = vld [vmem:[#allocation16 + $0x1b0] sm:$0xff]
    %v4850 = vld [vmem:[#allocation16 + $0x1b8] sm:$0xff]
    %v4851 = vld [vmem:[#allocation16 + $0x1c0] sm:$0xff]
    %v4852 = vld [vmem:[#allocation16 + $0x1c8] sm:$0xff]
    %v4853 = vld [vmem:[#allocation16 + $0x1d0] sm:$0xff]
    %v4854 = vld [vmem:[#allocation16 + $0x1d8] sm:$0xff]
    %v4855 = vld [vmem:[#allocation16 + $0x1e0] sm:$0xff]
    %v4856 = vld [vmem:[#allocation16 + $0x1e8] sm:$0xff]
    %v4857 = vld [vmem:[#allocation16 + $0x1f0] sm:$0xff]
    %v4858 = vld [vmem:[#allocation16 + $0x1f8] sm:$0xff]
    %v4859 = vld [vmem:[#allocation17] sm:$0xff]
    %v4860 = vld [vmem:[#allocation17 + $0x8] sm:$0xff]
    %v4861 = vld [vmem:[#allocation17 + $0x10] sm:$0xff]
    %v4862 = vld [vmem:[#allocation17 + $0x18] sm:$0xff]
    %v4863 = vld [vmem:[#allocation17 + $0x20] sm:$0xff]
    %v4864 = vld [vmem:[#allocation17 + $0x28] sm:$0xff]
    %v4865 = vld [vmem:[#allocation17 + $0x30] sm:$0xff]
    %v4866 = vld [vmem:[#allocation17 + $0x38] sm:$0xff]
    %v4867 = vld [vmem:[#allocation17 + $0x40] sm:$0xff]
    %v4868 = vld [vmem:[#allocation17 + $0x48] sm:$0xff]
    %v4869 = vld [vmem:[#allocation17 + $0x50] sm:$0xff]
    %v4870 = vld [vmem:[#allocation17 + $0x58] sm:$0xff]
    %v4871 = vld [vmem:[#allocation17 + $0x60] sm:$0xff]
    %v4872 = vld [vmem:[#allocation17 + $0x68] sm:$0xff]
    %v4873 = vld [vmem:[#allocation17 + $0x70] sm:$0xff]
    %v4874 = vld [vmem:[#allocation17 + $0x78] sm:$0xff]
    %v4875 = vld [vmem:[#allocation17 + $0x80] sm:$0xff]
    %v4876 = vld [vmem:[#allocation17 + $0x88] sm:$0xff]
    %v4877 = vld [vmem:[#allocation17 + $0x90] sm:$0xff]
    %v4878 = vld [vmem:[#allocation17 + $0x98] sm:$0xff]
    %v4879 = vld [vmem:[#allocation17 + $0xa0] sm:$0xff]
    %v4880 = vld [vmem:[#allocation17 + $0xa8] sm:$0xff]
    %v4881 = vld [vmem:[#allocation17 + $0xb0] sm:$0xff]
    %v4882 = vld [vmem:[#allocation17 + $0xb8] sm:$0xff]
    %v4883 = vld [vmem:[#allocation17 + $0xc0] sm:$0xff]
    %v4884 = vld [vmem:[#allocation17 + $0xc8] sm:$0xff]
    %v4885 = vld [vmem:[#allocation17 + $0xd0] sm:$0xff]
    %v4886 = vld [vmem:[#allocation17 + $0xd8] sm:$0xff]
    %v4887 = vld [vmem:[#allocation17 + $0xe0] sm:$0xff]
    %v4888 = vld [vmem:[#allocation17 + $0xe8] sm:$0xff]
    %v4889 = vld [vmem:[#allocation17 + $0xf0] sm:$0xff]
    %v4890 = vld [vmem:[#allocation17 + $0xf8] sm:$0xff]
    %v4891 = vld [vmem:[#allocation17 + $0x100] sm:$0xff]
    %v4892 = vld [vmem:[#allocation17 + $0x108] sm:$0xff]
    %v4893 = vld [vmem:[#allocation17 + $0x110] sm:$0xff]
    %v4894 = vld [vmem:[#allocation17 + $0x118] sm:$0xff]
    %v4895 = vld [vmem:[#allocation17 + $0x120] sm:$0xff]
    %v4896 = vld [vmem:[#allocation17 + $0x128] sm:$0xff]
    %v4897 = vld [vmem:[#allocation17 + $0x130] sm:$0xff]
    %v4898 = vld [vmem:[#allocation17 + $0x138] sm:$0xff]
    %v4899 = vld [vmem:[#allocation17 + $0x140] sm:$0xff]
    %v4900 = vld [vmem:[#allocation17 + $0x148] sm:$0xff]
    %v4901 = vld [vmem:[#allocation17 + $0x150] sm:$0xff]
    %v4902 = vld [vmem:[#allocation17 + $0x158] sm:$0xff]
    %v4903 = vld [vmem:[#allocation17 + $0x160] sm:$0xff]
    %v4904 = vld [vmem:[#allocation17 + $0x168] sm:$0xff]
    %v4905 = vld [vmem:[#allocation17 + $0x170] sm:$0xff]
    %v4906 = vld [vmem:[#allocation17 + $0x178] sm:$0xff]
    %v4907 = vld [vmem:[#allocation17 + $0x180] sm:$0xff]
    %v4908 = vld [vmem:[#allocation17 + $0x188] sm:$0xff]
    %v4909 = vld [vmem:[#allocation17 + $0x190] sm:$0xff]
    %v4910 = vld [vmem:[#allocation17 + $0x198] sm:$0xff]
    %v4911 = vld [vmem:[#allocation17 + $0x1a0] sm:$0xff]
    %v4912 = vld [vmem:[#allocation17 + $0x1a8] sm:$0xff]
    %v4913 = vld [vmem:[#allocation17 + $0x1b0] sm:$0xff]
    %v4914 = vld [vmem:[#allocation17 + $0x1b8] sm:$0xff]
    %v4915 = vld [vmem:[#allocation17 + $0x1c0] sm:$0xff]
    %v4916 = vld [vmem:[#allocation17 + $0x1c8] sm:$0xff]
    %v4917 = vld [vmem:[#allocation17 + $0x1d0] sm:$0xff]
    %v4918 = vld [vmem:[#allocation17 + $0x1d8] sm:$0xff]
    %v4919 = vld [vmem:[#allocation17 + $0x1e0] sm:$0xff]
    %v4920 = vld [vmem:[#allocation17 + $0x1e8] sm:$0xff]
    %v4921 = vld [vmem:[#allocation17 + $0x1f0] sm:$0xff]
    %v4922 = vld [vmem:[#allocation17 + $0x1f8] sm:$0xff]
    %v4923 = vld [vmem:[#allocation17 + $0x200] sm:$0xff]
    %v4924 = vld [vmem:[#allocation17 + $0x208] sm:$0xff]
    %v4925 = vld [vmem:[#allocation17 + $0x210] sm:$0xff]
    %v4926 = vld [vmem:[#allocation17 + $0x218] sm:$0xff]
    %v4927 = vld [vmem:[#allocation17 + $0x220] sm:$0xff]
    %v4928 = vld [vmem:[#allocation17 + $0x228] sm:$0xff]
    %v4929 = vld [vmem:[#allocation17 + $0x230] sm:$0xff]
    %v4930 = vld [vmem:[#allocation17 + $0x238] sm:$0xff]
    %v4931 = vld [vmem:[#allocation17 + $0x240] sm:$0xff]
    %v4932 = vld [vmem:[#allocation17 + $0x248] sm:$0xff]
    %v4933 = vld [vmem:[#allocation17 + $0x250] sm:$0xff]
    %v4934 = vld [vmem:[#allocation17 + $0x258] sm:$0xff]
    %v4935 = vld [vmem:[#allocation17 + $0x260] sm:$0xff]
    %v4936 = vld [vmem:[#allocation17 + $0x268] sm:$0xff]
    %v4937 = vld [vmem:[#allocation17 + $0x270] sm:$0xff]
    %v4938 = vld [vmem:[#allocation17 + $0x278] sm:$0xff]
    %v4939 = vld [vmem:[#allocation17 + $0x280] sm:$0xff]
    %v4940 = vld [vmem:[#allocation17 + $0x288] sm:$0xff]
    %v4941 = vld [vmem:[#allocation17 + $0x290] sm:$0xff]
    %v4942 = vld [vmem:[#allocation17 + $0x298] sm:$0xff]
    %v4943 = vld [vmem:[#allocation17 + $0x2a0] sm:$0xff]
    %v4944 = vld [vmem:[#allocation17 + $0x2a8] sm:$0xff]
    %v4945 = vld [vmem:[#allocation17 + $0x2b0] sm:$0xff]
    %v4946 = vld [vmem:[#allocation17 + $0x2b8] sm:$0xff]
    %v4947 = vld [vmem:[#allocation17 + $0x2c0] sm:$0xff]
    %v4948 = vld [vmem:[#allocation17 + $0x2c8] sm:$0xff]
    %v4949 = vld [vmem:[#allocation17 + $0x2d0] sm:$0xff]
    %v4950 = vld [vmem:[#allocation17 + $0x2d8] sm:$0xff]
    %v4951 = vld [vmem:[#allocation17 + $0x2e0] sm:$0xff]
    %v4952 = vld [vmem:[#allocation17 + $0x2e8] sm:$0xff]
    %v4953 = vld [vmem:[#allocation17 + $0x2f0] sm:$0xff]
    %v4954 = vld [vmem:[#allocation17 + $0x2f8] sm:$0xff]
    %v4955 = vld [vmem:[#allocation17 + $0x300] sm:$0xff]
    %v4956 = vld [vmem:[#allocation17 + $0x308] sm:$0xff]
    %v4957 = vld [vmem:[#allocation17 + $0x310] sm:$0xff]
    %v4958 = vld [vmem:[#allocation17 + $0x318] sm:$0xff]
    %v4959 = vld [vmem:[#allocation17 + $0x320] sm:$0xff]
    %v4960 = vld [vmem:[#allocation17 + $0x328] sm:$0xff]
    %v4961 = vld [vmem:[#allocation17 + $0x330] sm:$0xff]
    %v4962 = vld [vmem:[#allocation17 + $0x338] sm:$0xff]
    %v4963 = vld [vmem:[#allocation17 + $0x340] sm:$0xff]
    %v4964 = vld [vmem:[#allocation17 + $0x348] sm:$0xff]
    %v4965 = vld [vmem:[#allocation17 + $0x350] sm:$0xff]
    %v4966 = vld [vmem:[#allocation17 + $0x358] sm:$0xff]
    %v4967 = vld [vmem:[#allocation17 + $0x360] sm:$0xff]
    %v4968 = vld [vmem:[#allocation17 + $0x368] sm:$0xff]
    %v4969 = vld [vmem:[#allocation17 + $0x370] sm:$0xff]
    %v4970 = vld [vmem:[#allocation17 + $0x378] sm:$0xff]
    %v4971 = vld [vmem:[#allocation17 + $0x380] sm:$0xff]
    %v4972 = vld [vmem:[#allocation17 + $0x388] sm:$0xff]
    %v4973 = vld [vmem:[#allocation17 + $0x390] sm:$0xff]
    %v4974 = vld [vmem:[#allocation17 + $0x398] sm:$0xff]
    %v4975 = vld [vmem:[#allocation17 + $0x3a0] sm:$0xff]
    %v4976 = vld [vmem:[#allocation17 + $0x3a8] sm:$0xff]
    %v4977 = vld [vmem:[#allocation17 + $0x3b0] sm:$0xff]
    %v4978 = vld [vmem:[#allocation17 + $0x3b8] sm:$0xff]
    %v4979 = vld [vmem:[#allocation17 + $0x3c0] sm:$0xff]
    %v4980 = vld [vmem:[#allocation17 + $0x3c8] sm:$0xff]
    %v4981 = vld [vmem:[#allocation17 + $0x3d0] sm:$0xff]
    %v4982 = vld [vmem:[#allocation17 + $0x3d8] sm:$0xff]
    %v4983 = vld [vmem:[#allocation17 + $0x3e0] sm:$0xff]
    %v4984 = vld [vmem:[#allocation17 + $0x3e8] sm:$0xff]
    %v4985 = vld [vmem:[#allocation17 + $0x3f0] sm:$0xff]
    %v4986 = vld [vmem:[#allocation17 + $0x3f8] sm:$0xff]
    %v5115 = vunpack.c.l.b16 %v4859
    %v5116 = vunpack.c.h.b16 %v4859
    %v5117 = vunpack.c.l.b16 %v4860
    %v5118 = vunpack.c.h.b16 %v4860
    %v5119 = vunpack.c.l.b16 %v4861
    %v5120 = vunpack.c.h.b16 %v4861
    %v5121 = vunpack.c.l.b16 %v4862
    %v5122 = vunpack.c.h.b16 %v4862
    %v5123 = vunpack.c.l.b16 %v4863
    %v5124 = vunpack.c.h.b16 %v4863
    %v5125 = vunpack.c.l.b16 %v4864
    %v5126 = vunpack.c.h.b16 %v4864
    %v5127 = vunpack.c.l.b16 %v4865
    %v5128 = vunpack.c.h.b16 %v4865
    %v5129 = vunpack.c.l.b16 %v4866
    %v5130 = vunpack.c.h.b16 %v4866
    %v5131 = vunpack.c.l.b16 %v4867
    %v5132 = vunpack.c.h.b16 %v4867
    %v5133 = vunpack.c.l.b16 %v4868
    %v5134 = vunpack.c.h.b16 %v4868
    %v5135 = vunpack.c.l.b16 %v4869
    %v5136 = vunpack.c.h.b16 %v4869
    %v5137 = vunpack.c.l.b16 %v4870
    %v5138 = vunpack.c.h.b16 %v4870
    %v5139 = vunpack.c.l.b16 %v4871
    %v5140 = vunpack.c.h.b16 %v4871
    %v5141 = vunpack.c.l.b16 %v4872
    %v5142 = vunpack.c.h.b16 %v4872
    %v5143 = vunpack.c.l.b16 %v4873
    %v5144 = vunpack.c.h.b16 %v4873
    %v5145 = vunpack.c.l.b16 %v4874
    %v5146 = vunpack.c.h.b16 %v4874
    %v5147 = vunpack.c.l.b16 %v4875
    %v5148 = vunpack.c.h.b16 %v4875
    %v5149 = vunpack.c.l.b16 %v4876
    %v5150 = vunpack.c.h.b16 %v4876
    %v5151 = vunpack.c.l.b16 %v4877
    %v5152 = vunpack.c.h.b16 %v4877
    %v5153 = vunpack.c.l.b16 %v4878
    %v5154 = vunpack.c.h.b16 %v4878
    %v5155 = vunpack.c.l.b16 %v4879
    %v5156 = vunpack.c.h.b16 %v4879
    %v5157 = vunpack.c.l.b16 %v4880
    %v5158 = vunpack.c.h.b16 %v4880
    %v5159 = vunpack.c.l.b16 %v4881
    %v5160 = vunpack.c.h.b16 %v4881
    %v5161 = vunpack.c.l.b16 %v4882
    %v5162 = vunpack.c.h.b16 %v4882
    %v5163 = vunpack.c.l.b16 %v4883
    %v5164 = vunpack.c.h.b16 %v4883
    %v5165 = vunpack.c.l.b16 %v4884
    %v5166 = vunpack.c.h.b16 %v4884
    %v5167 = vunpack.c.l.b16 %v4885
    %v5168 = vunpack.c.h.b16 %v4885
    %v5169 = vunpack.c.l.b16 %v4886
    %v5170 = vunpack.c.h.b16 %v4886
    %v5171 = vunpack.c.l.b16 %v4887
    %v5172 = vunpack.c.h.b16 %v4887
    %v5173 = vunpack.c.l.b16 %v4888
    %v5174 = vunpack.c.h.b16 %v4888
    %v5175 = vunpack.c.l.b16 %v4889
    %v5176 = vunpack.c.h.b16 %v4889
    %v5177 = vunpack.c.l.b16 %v4890
    %v5178 = vunpack.c.h.b16 %v4890
    %v5179 = vunpack.c.l.b16 %v4891
    %v5180 = vunpack.c.h.b16 %v4891
    %v5181 = vunpack.c.l.b16 %v4892
    %v5182 = vunpack.c.h.b16 %v4892
    %v5183 = vunpack.c.l.b16 %v4893
    %v5184 = vunpack.c.h.b16 %v4893
    %v5185 = vunpack.c.l.b16 %v4894
    %v5186 = vunpack.c.h.b16 %v4894
    %v5187 = vunpack.c.l.b16 %v4895
    %v5188 = vunpack.c.h.b16 %v4895
    %v5189 = vunpack.c.l.b16 %v4896
    %v5190 = vunpack.c.h.b16 %v4896
    %v5191 = vunpack.c.l.b16 %v4897
    %v5192 = vunpack.c.h.b16 %v4897
    %v5193 = vunpack.c.l.b16 %v4898
    %v5194 = vunpack.c.h.b16 %v4898
    %v5195 = vunpack.c.l.b16 %v4899
    %v5196 = vunpack.c.h.b16 %v4899
    %v5197 = vunpack.c.l.b16 %v4900
    %v5198 = vunpack.c.h.b16 %v4900
    %v5199 = vunpack.c.l.b16 %v4901
    %v5200 = vunpack.c.h.b16 %v4901
    %v5201 = vunpack.c.l.b16 %v4902
    %v5202 = vunpack.c.h.b16 %v4902
    %v5203 = vunpack.c.l.b16 %v4903
    %v5204 = vunpack.c.h.b16 %v4903
    %v5205 = vunpack.c.l.b16 %v4904
    %v5206 = vunpack.c.h.b16 %v4904
    %v5207 = vunpack.c.l.b16 %v4905
    %v5208 = vunpack.c.h.b16 %v4905
    %v5209 = vunpack.c.l.b16 %v4906
    %v5210 = vunpack.c.h.b16 %v4906
    %v5211 = vunpack.c.l.b16 %v4907
    %v5212 = vunpack.c.h.b16 %v4907
    %v5213 = vunpack.c.l.b16 %v4908
    %v5214 = vunpack.c.h.b16 %v4908
    %v5215 = vunpack.c.l.b16 %v4909
    %v5216 = vunpack.c.h.b16 %v4909
    %v5217 = vunpack.c.l.b16 %v4910
    %v5218 = vunpack.c.h.b16 %v4910
    %v5219 = vunpack.c.l.b16 %v4911
    %v5220 = vunpack.c.h.b16 %v4911
    %v5221 = vunpack.c.l.b16 %v4912
    %v5222 = vunpack.c.h.b16 %v4912
    %v5223 = vunpack.c.l.b16 %v4913
    %v5224 = vunpack.c.h.b16 %v4913
    %v5225 = vunpack.c.l.b16 %v4914
    %v5226 = vunpack.c.h.b16 %v4914
    %v5227 = vunpack.c.l.b16 %v4915
    %v5228 = vunpack.c.h.b16 %v4915
    %v5229 = vunpack.c.l.b16 %v4916
    %v5230 = vunpack.c.h.b16 %v4916
    %v5231 = vunpack.c.l.b16 %v4917
    %v5232 = vunpack.c.h.b16 %v4917
    %v5233 = vunpack.c.l.b16 %v4918
    %v5234 = vunpack.c.h.b16 %v4918
    %v5235 = vunpack.c.l.b16 %v4919
    %v5236 = vunpack.c.h.b16 %v4919
    %v5237 = vunpack.c.l.b16 %v4920
    %v5238 = vunpack.c.h.b16 %v4920
    %v5239 = vunpack.c.l.b16 %v4921
    %v5240 = vunpack.c.h.b16 %v4921
    %v5241 = vunpack.c.l.b16 %v4922
    %v5242 = vunpack.c.h.b16 %v4922
    %v5243 = vunpack.c.l.b16 %v4923
    %v5244 = vunpack.c.h.b16 %v4923
    %v5245 = vunpack.c.l.b16 %v4924
    %v5246 = vunpack.c.h.b16 %v4924
    %v5247 = vunpack.c.l.b16 %v4925
    %v5248 = vunpack.c.h.b16 %v4925
    %v5249 = vunpack.c.l.b16 %v4926
    %v5250 = vunpack.c.h.b16 %v4926
    %v5251 = vunpack.c.l.b16 %v4927
    %v5252 = vunpack.c.h.b16 %v4927
    %v5253 = vunpack.c.l.b16 %v4928
    %v5254 = vunpack.c.h.b16 %v4928
    %v5255 = vunpack.c.l.b16 %v4929
    %v5256 = vunpack.c.h.b16 %v4929
    %v5257 = vunpack.c.l.b16 %v4930
    %v5258 = vunpack.c.h.b16 %v4930
    %v5259 = vunpack.c.l.b16 %v4931
    %v5260 = vunpack.c.h.b16 %v4931
    %v5261 = vunpack.c.l.b16 %v4932
    %v5262 = vunpack.c.h.b16 %v4932
    %v5263 = vunpack.c.l.b16 %v4933
    %v5264 = vunpack.c.h.b16 %v4933
    %v5265 = vunpack.c.l.b16 %v4934
    %v5266 = vunpack.c.h.b16 %v4934
    %v5267 = vunpack.c.l.b16 %v4935
    %v5268 = vunpack.c.h.b16 %v4935
    %v5269 = vunpack.c.l.b16 %v4936
    %v5270 = vunpack.c.h.b16 %v4936
    %v5271 = vunpack.c.l.b16 %v4937
    %v5272 = vunpack.c.h.b16 %v4937
    %v5273 = vunpack.c.l.b16 %v4938
    %v5274 = vunpack.c.h.b16 %v4938
    %v5275 = vunpack.c.l.b16 %v4939
    %v5276 = vunpack.c.h.b16 %v4939
    %v5277 = vunpack.c.l.b16 %v4940
    %v5278 = vunpack.c.h.b16 %v4940
    %v5279 = vunpack.c.l.b16 %v4941
    %v5280 = vunpack.c.h.b16 %v4941
    %v5281 = vunpack.c.l.b16 %v4942
    %v5282 = vunpack.c.h.b16 %v4942
    %v5283 = vunpack.c.l.b16 %v4943
    %v5284 = vunpack.c.h.b16 %v4943
    %v5285 = vunpack.c.l.b16 %v4944
    %v5286 = vunpack.c.h.b16 %v4944
    %v5287 = vunpack.c.l.b16 %v4945
    %v5288 = vunpack.c.h.b16 %v4945
    %v5289 = vunpack.c.l.b16 %v4946
    %v5290 = vunpack.c.h.b16 %v4946
    %v5291 = vunpack.c.l.b16 %v4947
    %v5292 = vunpack.c.h.b16 %v4947
    %v5293 = vunpack.c.l.b16 %v4948
    %v5294 = vunpack.c.h.b16 %v4948
    %v5295 = vunpack.c.l.b16 %v4949
    %v5296 = vunpack.c.h.b16 %v4949
    %v5297 = vunpack.c.l.b16 %v4950
    %v5298 = vunpack.c.h.b16 %v4950
    %v5299 = vunpack.c.l.b16 %v4951
    %v5300 = vunpack.c.h.b16 %v4951
    %v5301 = vunpack.c.l.b16 %v4952
    %v5302 = vunpack.c.h.b16 %v4952
    %v5303 = vunpack.c.l.b16 %v4953
    %v5304 = vunpack.c.h.b16 %v4953
    %v5305 = vunpack.c.l.b16 %v4954
    %v5306 = vunpack.c.h.b16 %v4954
    %v5307 = vunpack.c.l.b16 %v4955
    %v5308 = vunpack.c.h.b16 %v4955
    %v5309 = vunpack.c.l.b16 %v4956
    %v5310 = vunpack.c.h.b16 %v4956
    %v5311 = vunpack.c.l.b16 %v4957
    %v5312 = vunpack.c.h.b16 %v4957
    %v5313 = vunpack.c.l.b16 %v4958
    %v5314 = vunpack.c.h.b16 %v4958
    %v5315 = vunpack.c.l.b16 %v4959
    %v5316 = vunpack.c.h.b16 %v4959
    %v5317 = vunpack.c.l.b16 %v4960
    %v5318 = vunpack.c.h.b16 %v4960
    %v5319 = vunpack.c.l.b16 %v4961
    %v5320 = vunpack.c.h.b16 %v4961
    %v5321 = vunpack.c.l.b16 %v4962
    %v5322 = vunpack.c.h.b16 %v4962
    %v5323 = vunpack.c.l.b16 %v4963
    %v5324 = vunpack.c.h.b16 %v4963
    %v5325 = vunpack.c.l.b16 %v4964
    %v5326 = vunpack.c.h.b16 %v4964
    %v5327 = vunpack.c.l.b16 %v4965
    %v5328 = vunpack.c.h.b16 %v4965
    %v5329 = vunpack.c.l.b16 %v4966
    %v5330 = vunpack.c.h.b16 %v4966
    %v5331 = vunpack.c.l.b16 %v4967
    %v5332 = vunpack.c.h.b16 %v4967
    %v5333 = vunpack.c.l.b16 %v4968
    %v5334 = vunpack.c.h.b16 %v4968
    %v5335 = vunpack.c.l.b16 %v4969
    %v5336 = vunpack.c.h.b16 %v4969
    %v5337 = vunpack.c.l.b16 %v4970
    %v5338 = vunpack.c.h.b16 %v4970
    %v5339 = vunpack.c.l.b16 %v4971
    %v5340 = vunpack.c.h.b16 %v4971
    %v5341 = vunpack.c.l.b16 %v4972
    %v5342 = vunpack.c.h.b16 %v4972
    %v5343 = vunpack.c.l.b16 %v4973
    %v5344 = vunpack.c.h.b16 %v4973
    %v5345 = vunpack.c.l.b16 %v4974
    %v5346 = vunpack.c.h.b16 %v4974
    %v5347 = vunpack.c.l.b16 %v4975
    %v5348 = vunpack.c.h.b16 %v4975
    %v5349 = vunpack.c.l.b16 %v4976
    %v5350 = vunpack.c.h.b16 %v4976
    %v5351 = vunpack.c.l.b16 %v4977
    %v5352 = vunpack.c.h.b16 %v4977
    %v5353 = vunpack.c.l.b16 %v4978
    %v5354 = vunpack.c.h.b16 %v4978
    %v5355 = vunpack.c.l.b16 %v4979
    %v5356 = vunpack.c.h.b16 %v4979
    %v5357 = vunpack.c.l.b16 %v4980
    %v5358 = vunpack.c.h.b16 %v4980
    %v5359 = vunpack.c.l.b16 %v4981
    %v5360 = vunpack.c.h.b16 %v4981
    %v5361 = vunpack.c.l.b16 %v4982
    %v5362 = vunpack.c.h.b16 %v4982
    %v5363 = vunpack.c.l.b16 %v4983
    %v5364 = vunpack.c.h.b16 %v4983
    %v5365 = vunpack.c.l.b16 %v4984
    %v5366 = vunpack.c.h.b16 %v4984
    %v5367 = vunpack.c.l.b16 %v4985
    %v5368 = vunpack.c.h.b16 %v4985
    %v5369 = vunpack.c.l.b16 %v4986
    %v5370 = vunpack.c.h.b16 %v4986
    %v5371 = vpack.c.b16 %v5119, %v5115
    %v5372 = vpack.c.b16 %v5120, %v5116
    %v5373 = vpack.c.b16 %v5121, %v5117
    %v5374 = vpack.c.b16 %v5122, %v5118
    %v5375 = vpack.c.b16 %v5127, %v5123
    %v5376 = vpack.c.b16 %v5128, %v5124
    %v5377 = vpack.c.b16 %v5129, %v5125
    %v5378 = vpack.c.b16 %v5130, %v5126
    %v5379 = vpack.c.b16 %v5135, %v5131
    %v5380 = vpack.c.b16 %v5136, %v5132
    %v5381 = vpack.c.b16 %v5137, %v5133
    %v5382 = vpack.c.b16 %v5138, %v5134
    %v5383 = vpack.c.b16 %v5143, %v5139
    %v5384 = vpack.c.b16 %v5144, %v5140
    %v5385 = vpack.c.b16 %v5145, %v5141
    %v5386 = vpack.c.b16 %v5146, %v5142
    %v5387 = vpack.c.b16 %v5151, %v5147
    %v5388 = vpack.c.b16 %v5152, %v5148
    %v5389 = vpack.c.b16 %v5153, %v5149
    %v5390 = vpack.c.b16 %v5154, %v5150
    %v5391 = vpack.c.b16 %v5159, %v5155
    %v5392 = vpack.c.b16 %v5160, %v5156
    %v5393 = vpack.c.b16 %v5161, %v5157
    %v5394 = vpack.c.b16 %v5162, %v5158
    %v5395 = vpack.c.b16 %v5167, %v5163
    %v5396 = vpack.c.b16 %v5168, %v5164
    %v5397 = vpack.c.b16 %v5169, %v5165
    %v5398 = vpack.c.b16 %v5170, %v5166
    %v5399 = vpack.c.b16 %v5175, %v5171
    %v5400 = vpack.c.b16 %v5176, %v5172
    %v5401 = vpack.c.b16 %v5177, %v5173
    %v5402 = vpack.c.b16 %v5178, %v5174
    %v5403 = vpack.c.b16 %v5183, %v5179
    %v5404 = vpack.c.b16 %v5184, %v5180
    %v5405 = vpack.c.b16 %v5185, %v5181
    %v5406 = vpack.c.b16 %v5186, %v5182
    %v5407 = vpack.c.b16 %v5191, %v5187
    %v5408 = vpack.c.b16 %v5192, %v5188
    %v5409 = vpack.c.b16 %v5193, %v5189
    %v5410 = vpack.c.b16 %v5194, %v5190
    %v5411 = vpack.c.b16 %v5199, %v5195
    %v5412 = vpack.c.b16 %v5200, %v5196
    %v5413 = vpack.c.b16 %v5201, %v5197
    %v5414 = vpack.c.b16 %v5202, %v5198
    %v5415 = vpack.c.b16 %v5207, %v5203
    %v5416 = vpack.c.b16 %v5208, %v5204
    %v5417 = vpack.c.b16 %v5209, %v5205
    %v5418 = vpack.c.b16 %v5210, %v5206
    %v5419 = vpack.c.b16 %v5215, %v5211
    %v5420 = vpack.c.b16 %v5216, %v5212
    %v5421 = vpack.c.b16 %v5217, %v5213
    %v5422 = vpack.c.b16 %v5218, %v5214
    %v5423 = vpack.c.b16 %v5223, %v5219
    %v5424 = vpack.c.b16 %v5224, %v5220
    %v5425 = vpack.c.b16 %v5225, %v5221
    %v5426 = vpack.c.b16 %v5226, %v5222
    %v5427 = vpack.c.b16 %v5231, %v5227
    %v5428 = vpack.c.b16 %v5232, %v5228
    %v5429 = vpack.c.b16 %v5233, %v5229
    %v5430 = vpack.c.b16 %v5234, %v5230
    %v5431 = vpack.c.b16 %v5239, %v5235
    %v5432 = vpack.c.b16 %v5240, %v5236
    %v5433 = vpack.c.b16 %v5241, %v5237
    %v5434 = vpack.c.b16 %v5242, %v5238
    %v5435 = vpack.c.b16 %v5247, %v5243
    %v5436 = vpack.c.b16 %v5248, %v5244
    %v5437 = vpack.c.b16 %v5249, %v5245
    %v5438 = vpack.c.b16 %v5250, %v5246
    %v5439 = vpack.c.b16 %v5255, %v5251
    %v5440 = vpack.c.b16 %v5256, %v5252
    %v5441 = vpack.c.b16 %v5257, %v5253
    %v5442 = vpack.c.b16 %v5258, %v5254
    %v5443 = vpack.c.b16 %v5263, %v5259
    %v5444 = vpack.c.b16 %v5264, %v5260
    %v5445 = vpack.c.b16 %v5265, %v5261
    %v5446 = vpack.c.b16 %v5266, %v5262
    %v5447 = vpack.c.b16 %v5271, %v5267
    %v5448 = vpack.c.b16 %v5272, %v5268
    %v5449 = vpack.c.b16 %v5273, %v5269
    %v5450 = vpack.c.b16 %v5274, %v5270
    %v5451 = vpack.c.b16 %v5279, %v5275
    %v5452 = vpack.c.b16 %v5280, %v5276
    %v5453 = vpack.c.b16 %v5281, %v5277
    %v5454 = vpack.c.b16 %v5282, %v5278
    %v5455 = vpack.c.b16 %v5287, %v5283
    %v5456 = vpack.c.b16 %v5288, %v5284
    %v5457 = vpack.c.b16 %v5289, %v5285
    %v5458 = vpack.c.b16 %v5290, %v5286
    %v5459 = vpack.c.b16 %v5295, %v5291
    %v5460 = vpack.c.b16 %v5296, %v5292
    %v5461 = vpack.c.b16 %v5297, %v5293
    %v5462 = vpack.c.b16 %v5298, %v5294
    %v5463 = vpack.c.b16 %v5303, %v5299
    %v5464 = vpack.c.b16 %v5304, %v5300
    %v5465 = vpack.c.b16 %v5305, %v5301
    %v5466 = vpack.c.b16 %v5306, %v5302
    %v5467 = vpack.c.b16 %v5311, %v5307
    %v5468 = vpack.c.b16 %v5312, %v5308
    %v5469 = vpack.c.b16 %v5313, %v5309
    %v5470 = vpack.c.b16 %v5314, %v5310
    %v5471 = vpack.c.b16 %v5319, %v5315
    %v5472 = vpack.c.b16 %v5320, %v5316
    %v5473 = vpack.c.b16 %v5321, %v5317
    %v5474 = vpack.c.b16 %v5322, %v5318
    %v5475 = vpack.c.b16 %v5327, %v5323
    %v5476 = vpack.c.b16 %v5328, %v5324
    %v5477 = vpack.c.b16 %v5329, %v5325
    %v5478 = vpack.c.b16 %v5330, %v5326
    %v5479 = vpack.c.b16 %v5335, %v5331
    %v5480 = vpack.c.b16 %v5336, %v5332
    %v5481 = vpack.c.b16 %v5337, %v5333
    %v5482 = vpack.c.b16 %v5338, %v5334
    %v5483 = vpack.c.b16 %v5343, %v5339
    %v5484 = vpack.c.b16 %v5344, %v5340
    %v5485 = vpack.c.b16 %v5345, %v5341
    %v5486 = vpack.c.b16 %v5346, %v5342
    %v5487 = vpack.c.b16 %v5351, %v5347
    %v5488 = vpack.c.b16 %v5352, %v5348
    %v5489 = vpack.c.b16 %v5353, %v5349
    %v5490 = vpack.c.b16 %v5354, %v5350
    %v5491 = vpack.c.b16 %v5359, %v5355
    %v5492 = vpack.c.b16 %v5360, %v5356
    %v5493 = vpack.c.b16 %v5361, %v5357
    %v5494 = vpack.c.b16 %v5362, %v5358
    %v5495 = vpack.c.b16 %v5367, %v5363
    %v5496 = vpack.c.b16 %v5368, %v5364
    %v5497 = vpack.c.b16 %v5369, %v5365
    %v5498 = vpack.c.b16 %v5370, %v5366
    %5627 = vmatpush.bf16.msra.mxu0 %v5399
    %5628 = vmatpush.bf16.msra.mxu0 %v5395
    %5629 = vmatpush.bf16.msra.mxu0 %v5391
    %5630 = vmatpush.bf16.msra.mxu0 %v5387
    %5631 = vmatpush.bf16.msra.mxu0 %v5383
    %5632 = vmatpush.bf16.msra.mxu0 %v5379
    %5633 = vmatpush.bf16.msra.mxu0 %v5375
    %5634 = vmatpush.bf16.msra.mxu0 %v5371
    %5635 = vmatmul.bf16.gmra.mxu0 %v4477
    %v5636 = vpop.f32.mrf.mxu0
    %v5637 = vadd.f32 0.0, %v5636
    %v5638 = vpop.f32.mrf.mxu0
    %v5639 = vadd.f32 0.0, %v5638
    %5640 = vdwg.mxu0
    %5641 = vmatpush.bf16.msra.mxu0 %v5431
    %5642 = vmatpush.bf16.msra.mxu0 %v5427
    %5643 = vmatpush.bf16.msra.mxu0 %v5423
    %5644 = vmatpush.bf16.msra.mxu0 %v5419
    %5645 = vmatpush.bf16.msra.mxu0 %v5415
    %5646 = vmatpush.bf16.msra.mxu0 %v5411
    %5647 = vmatpush.bf16.msra.mxu0 %v5407
    %5648 = vmatpush.bf16.msra.mxu0 %v5403
    %5649 = vmatmul.bf16.gmra.mxu0 %v4478
    %v5650 = vpop.f32.mrf.mxu0
    %v5651 = vadd.f32 %v5637, %v5650
    %v5652 = vpop.f32.mrf.mxu0
    %v5653 = vadd.f32 %v5639, %v5652
    %5654 = vdwg.mxu0
    %5655 = vmatpush.bf16.msra.mxu0 %v5463
    %5656 = vmatpush.bf16.msra.mxu0 %v5459
    %5657 = vmatpush.bf16.msra.mxu0 %v5455
    %5658 = vmatpush.bf16.msra.mxu0 %v5451
    %5659 = vmatpush.bf16.msra.mxu0 %v5447
    %5660 = vmatpush.bf16.msra.mxu0 %v5443
    %5661 = vmatpush.bf16.msra.mxu0 %v5439
    %5662 = vmatpush.bf16.msra.mxu0 %v5435
    %5663 = vmatmul.bf16.gmra.mxu0 %v4479
    %v5664 = vpop.f32.mrf.mxu0
    %v5665 = vadd.f32 %v5651, %v5664
    %v5666 = vpop.f32.mrf.mxu0
    %v5667 = vadd.f32 %v5653, %v5666
    %5668 = vdwg.mxu0
    %5669 = vmatpush.bf16.msra.mxu0 %v5495
    %5670 = vmatpush.bf16.msra.mxu0 %v5491
    %5671 = vmatpush.bf16.msra.mxu0 %v5487
    %5672 = vmatpush.bf16.msra.mxu0 %v5483
    %5673 = vmatpush.bf16.msra.mxu0 %v5479
    %5674 = vmatpush.bf16.msra.mxu0 %v5475
    %5675 = vmatpush.bf16.msra.mxu0 %v5471
    %5676 = vmatpush.bf16.msra.mxu0 %v5467
    %5677 = vmatmul.bf16.gmra.mxu0 %v4480
    %v5678 = vpop.f32.mrf.mxu0
    %v5679 = vadd.f32 %v5665, %v5678
    %v5680 = vpop.f32.mrf.mxu0
    %v5681 = vadd.f32 %v5667, %v5680
    %5682 = vdwg.mxu0
    %5683 = vmatpush.bf16.msra.mxu0 %v5400
    %5684 = vmatpush.bf16.msra.mxu0 %v5396
    %5685 = vmatpush.bf16.msra.mxu0 %v5392
    %5686 = vmatpush.bf16.msra.mxu0 %v5388
    %5687 = vmatpush.bf16.msra.mxu0 %v5384
    %5688 = vmatpush.bf16.msra.mxu0 %v5380
    %5689 = vmatpush.bf16.msra.mxu0 %v5376
    %5690 = vmatpush.bf16.msra.mxu0 %v5372
    %5691 = vmatmul.bf16.gmra.mxu0 %v4477
    %v5692 = vpop.f32.mrf.mxu0
    %v5693 = vadd.f32 0.0, %v5692
    %v5694 = vpop.f32.mrf.mxu0
    %v5695 = vadd.f32 0.0, %v5694
    %5696 = vdwg.mxu0
    %5697 = vmatpush.bf16.msra.mxu0 %v5432
    %5698 = vmatpush.bf16.msra.mxu0 %v5428
    %5699 = vmatpush.bf16.msra.mxu0 %v5424
    %5700 = vmatpush.bf16.msra.mxu0 %v5420
    %5701 = vmatpush.bf16.msra.mxu0 %v5416
    %5702 = vmatpush.bf16.msra.mxu0 %v5412
    %5703 = vmatpush.bf16.msra.mxu0 %v5408
    %5704 = vmatpush.bf16.msra.mxu0 %v5404
    %5705 = vmatmul.bf16.gmra.mxu0 %v4478
    %v5706 = vpop.f32.mrf.mxu0
    %v5707 = vadd.f32 %v5693, %v5706
    %v5708 = vpop.f32.mrf.mxu0
    %v5709 = vadd.f32 %v5695, %v5708
    %5710 = vdwg.mxu0
    %5711 = vmatpush.bf16.msra.mxu0 %v5464
    %5712 = vmatpush.bf16.msra.mxu0 %v5460
    %5713 = vmatpush.bf16.msra.mxu0 %v5456
    %5714 = vmatpush.bf16.msra.mxu0 %v5452
    %5715 = vmatpush.bf16.msra.mxu0 %v5448
    %5716 = vmatpush.bf16.msra.mxu0 %v5444
    %5717 = vmatpush.bf16.msra.mxu0 %v5440
    %5718 = vmatpush.bf16.msra.mxu0 %v5436
    %5719 = vmatmul.bf16.gmra.mxu0 %v4479
    %v5720 = vpop.f32.mrf.mxu0
    %v5721 = vadd.f32 %v5707, %v5720
    %v5722 = vpop.f32.mrf.mxu0
    %v5723 = vadd.f32 %v5709, %v5722
    %5724 = vdwg.mxu0
    %5725 = vmatpush.bf16.msra.mxu0 %v5496
    %5726 = vmatpush.bf16.msra.mxu0 %v5492
    %5727 = vmatpush.bf16.msra.mxu0 %v5488
    %5728 = vmatpush.bf16.msra.mxu0 %v5484
    %5729 = vmatpush.bf16.msra.mxu0 %v5480
    %5730 = vmatpush.bf16.msra.mxu0 %v5476
    %5731 = vmatpush.bf16.msra.mxu0 %v5472
    %5732 = vmatpush.bf16.msra.mxu0 %v5468
    %5733 = vmatmul.bf16.gmra.mxu0 %v4480
    %v5734 = vpop.f32.mrf.mxu0
    %v5735 = vadd.f32 %v5721, %v5734
    %v5736 = vpop.f32.mrf.mxu0
    %v5737 = vadd.f32 %v5723, %v5736
    %5738 = vdwg.mxu0
    %5739 = vmatpush.bf16.msra.mxu0 %v5401
    %5740 = vmatpush.bf16.msra.mxu0 %v5397
    %5741 = vmatpush.bf16.msra.mxu0 %v5393
    %5742 = vmatpush.bf16.msra.mxu0 %v5389
    %5743 = vmatpush.bf16.msra.mxu0 %v5385
    %5744 = vmatpush.bf16.msra.mxu0 %v5381
    %5745 = vmatpush.bf16.msra.mxu0 %v5377
    %5746 = vmatpush.bf16.msra.mxu0 %v5373
    %5747 = vmatmul.bf16.gmra.mxu0 %v4477
    %v5748 = vpop.f32.mrf.mxu0
    %v5749 = vadd.f32 0.0, %v5748
    %v5750 = vpop.f32.mrf.mxu0
    %v5751 = vadd.f32 0.0, %v5750
    %5752 = vdwg.mxu0
    %5753 = vmatpush.bf16.msra.mxu0 %v5433
    %5754 = vmatpush.bf16.msra.mxu0 %v5429
    %5755 = vmatpush.bf16.msra.mxu0 %v5425
    %5756 = vmatpush.bf16.msra.mxu0 %v5421
    %5757 = vmatpush.bf16.msra.mxu0 %v5417
    %5758 = vmatpush.bf16.msra.mxu0 %v5413
    %5759 = vmatpush.bf16.msra.mxu0 %v5409
    %5760 = vmatpush.bf16.msra.mxu0 %v5405
    %5761 = vmatmul.bf16.gmra.mxu0 %v4478
    %v5762 = vpop.f32.mrf.mxu0
    %v5763 = vadd.f32 %v5749, %v5762
    %v5764 = vpop.f32.mrf.mxu0
    %v5765 = vadd.f32 %v5751, %v5764
    %5766 = vdwg.mxu0
    %5767 = vmatpush.bf16.msra.mxu0 %v5465
    %5768 = vmatpush.bf16.msra.mxu0 %v5461
    %5769 = vmatpush.bf16.msra.mxu0 %v5457
    %5770 = vmatpush.bf16.msra.mxu0 %v5453
    %5771 = vmatpush.bf16.msra.mxu0 %v5449
    %5772 = vmatpush.bf16.msra.mxu0 %v5445
    %5773 = vmatpush.bf16.msra.mxu0 %v5441
    %5774 = vmatpush.bf16.msra.mxu0 %v5437
    %5775 = vmatmul.bf16.gmra.mxu0 %v4479
    %v5776 = vpop.f32.mrf.mxu0
    %v5777 = vadd.f32 %v5763, %v5776
    %v5778 = vpop.f32.mrf.mxu0
    %v5779 = vadd.f32 %v5765, %v5778
    %5780 = vdwg.mxu0
    %5781 = vmatpush.bf16.msra.mxu0 %v5497
    %5782 = vmatpush.bf16.msra.mxu0 %v5493
    %5783 = vmatpush.bf16.msra.mxu0 %v5489
    %5784 = vmatpush.bf16.msra.mxu0 %v5485
    %5785 = vmatpush.bf16.msra.mxu0 %v5481
    %5786 = vmatpush.bf16.msra.mxu0 %v5477
    %5787 = vmatpush.bf16.msra.mxu0 %v5473
    %5788 = vmatpush.bf16.msra.mxu0 %v5469
    %5789 = vmatmul.bf16.gmra.mxu0 %v4480
    %v5790 = vpop.f32.mrf.mxu0
    %v5791 = vadd.f32 %v5777, %v5790
    %v5792 = vpop.f32.mrf.mxu0
    %v5793 = vadd.f32 %v5779, %v5792
    %5794 = vdwg.mxu0
    %5795 = vmatpush.bf16.msra.mxu0 %v5402
    %5796 = vmatpush.bf16.msra.mxu0 %v5398
    %5797 = vmatpush.bf16.msra.mxu0 %v5394
    %5798 = vmatpush.bf16.msra.mxu0 %v5390
    %5799 = vmatpush.bf16.msra.mxu0 %v5386
    %5800 = vmatpush.bf16.msra.mxu0 %v5382
    %5801 = vmatpush.bf16.msra.mxu0 %v5378
    %5802 = vmatpush.bf16.msra.mxu0 %v5374
    %5803 = vmatmul.bf16.gmra.mxu0 %v4477
    %v5804 = vpop.f32.mrf.mxu0
    %v5805 = vadd.f32 0.0, %v5804
    %v5806 = vpop.f32.mrf.mxu0
    %v5807 = vadd.f32 0.0, %v5806
    %5808 = vdwg.mxu0
    %5809 = vmatpush.bf16.msra.mxu0 %v5434
    %5810 = vmatpush.bf16.msra.mxu0 %v5430
    %5811 = vmatpush.bf16.msra.mxu0 %v5426
    %5812 = vmatpush.bf16.msra.mxu0 %v5422
    %5813 = vmatpush.bf16.msra.mxu0 %v5418
    %5814 = vmatpush.bf16.msra.mxu0 %v5414
    %5815 = vmatpush.bf16.msra.mxu0 %v5410
    %5816 = vmatpush.bf16.msra.mxu0 %v5406
    %5817 = vmatmul.bf16.gmra.mxu0 %v4478
    %v5818 = vpop.f32.mrf.mxu0
    %v5819 = vadd.f32 %v5805, %v5818
    %v5820 = vpop.f32.mrf.mxu0
    %v5821 = vadd.f32 %v5807, %v5820
    %5822 = vdwg.mxu0
    %5823 = vmatpush.bf16.msra.mxu0 %v5466
    %5824 = vmatpush.bf16.msra.mxu0 %v5462
    %5825 = vmatpush.bf16.msra.mxu0 %v5458
    %5826 = vmatpush.bf16.msra.mxu0 %v5454
    %5827 = vmatpush.bf16.msra.mxu0 %v5450
    %5828 = vmatpush.bf16.msra.mxu0 %v5446
    %5829 = vmatpush.bf16.msra.mxu0 %v5442
    %5830 = vmatpush.bf16.msra.mxu0 %v5438
    %5831 = vmatmul.bf16.gmra.mxu0 %v4479
    %v5832 = vpop.f32.mrf.mxu0
    %v5833 = vadd.f32 %v5819, %v5832
    %v5834 = vpop.f32.mrf.mxu0
    %v5835 = vadd.f32 %v5821, %v5834
    %5836 = vdwg.mxu0
    %5837 = vmatpush.bf16.msra.mxu0 %v5498
    %5838 = vmatpush.bf16.msra.mxu0 %v5494
    %5839 = vmatpush.bf16.msra.mxu0 %v5490
    %5840 = vmatpush.bf16.msra.mxu0 %v5486
    %5841 = vmatpush.bf16.msra.mxu0 %v5482
    %5842 = vmatpush.bf16.msra.mxu0 %v5478
    %5843 = vmatpush.bf16.msra.mxu0 %v5474
    %5844 = vmatpush.bf16.msra.mxu0 %v5470
    %5845 = vmatmul.bf16.gmra.mxu0 %v4480
    %v5846 = vpop.f32.mrf.mxu0
    %v5847 = vadd.f32 %v5833, %v5846
    %v5848 = vpop.f32.mrf.mxu0
    %v5849 = vadd.f32 %v5835, %v5848
    %5850 = vdwg.mxu0
    %v5915 = vunpack.c.l.b16 %v4795
    %v5916 = vunpack.c.h.b16 %v4795
    %v5917 = vunpack.c.l.b16 %v4796
    %v5918 = vunpack.c.h.b16 %v4796
    %v5919 = vunpack.c.l.b16 %v4797
    %v5920 = vunpack.c.h.b16 %v4797
    %v5921 = vunpack.c.l.b16 %v4798
    %v5922 = vunpack.c.h.b16 %v4798
    %v5923 = vunpack.c.l.b16 %v4799
    %v5924 = vunpack.c.h.b16 %v4799
    %v5925 = vunpack.c.l.b16 %v4800
    %v5926 = vunpack.c.h.b16 %v4800
    %v5927 = vunpack.c.l.b16 %v4801
    %v5928 = vunpack.c.h.b16 %v4801
    %v5929 = vunpack.c.l.b16 %v4802
    %v5930 = vunpack.c.h.b16 %v4802
    %v5931 = vunpack.c.l.b16 %v4803
    %v5932 = vunpack.c.h.b16 %v4803
    %v5933 = vunpack.c.l.b16 %v4804
    %v5934 = vunpack.c.h.b16 %v4804
    %v5935 = vunpack.c.l.b16 %v4805
    %v5936 = vunpack.c.h.b16 %v4805
    %v5937 = vunpack.c.l.b16 %v4806
    %v5938 = vunpack.c.h.b16 %v4806
    %v5939 = vunpack.c.l.b16 %v4807
    %v5940 = vunpack.c.h.b16 %v4807
    %v5941 = vunpack.c.l.b16 %v4808
    %v5942 = vunpack.c.h.b16 %v4808
    %v5943 = vunpack.c.l.b16 %v4809
    %v5944 = vunpack.c.h.b16 %v4809
    %v5945 = vunpack.c.l.b16 %v4810
    %v5946 = vunpack.c.h.b16 %v4810
    %v5947 = vunpack.c.l.b16 %v4811
    %v5948 = vunpack.c.h.b16 %v4811
    %v5949 = vunpack.c.l.b16 %v4812
    %v5950 = vunpack.c.h.b16 %v4812
    %v5951 = vunpack.c.l.b16 %v4813
    %v5952 = vunpack.c.h.b16 %v4813
    %v5953 = vunpack.c.l.b16 %v4814
    %v5954 = vunpack.c.h.b16 %v4814
    %v5955 = vunpack.c.l.b16 %v4815
    %v5956 = vunpack.c.h.b16 %v4815
    %v5957 = vunpack.c.l.b16 %v4816
    %v5958 = vunpack.c.h.b16 %v4816
    %v5959 = vunpack.c.l.b16 %v4817
    %v5960 = vunpack.c.h.b16 %v4817
    %v5961 = vunpack.c.l.b16 %v4818
    %v5962 = vunpack.c.h.b16 %v4818
    %v5963 = vunpack.c.l.b16 %v4819
    %v5964 = vunpack.c.h.b16 %v4819
    %v5965 = vunpack.c.l.b16 %v4820
    %v5966 = vunpack.c.h.b16 %v4820
    %v5967 = vunpack.c.l.b16 %v4821
    %v5968 = vunpack.c.h.b16 %v4821
    %v5969 = vunpack.c.l.b16 %v4822
    %v5970 = vunpack.c.h.b16 %v4822
    %v5971 = vunpack.c.l.b16 %v4823
    %v5972 = vunpack.c.h.b16 %v4823
    %v5973 = vunpack.c.l.b16 %v4824
    %v5974 = vunpack.c.h.b16 %v4824
    %v5975 = vunpack.c.l.b16 %v4825
    %v5976 = vunpack.c.h.b16 %v4825
    %v5977 = vunpack.c.l.b16 %v4826
    %v5978 = vunpack.c.h.b16 %v4826
    %v5979 = vunpack.c.l.b16 %v4827
    %v5980 = vunpack.c.h.b16 %v4827
    %v5981 = vunpack.c.l.b16 %v4828
    %v5982 = vunpack.c.h.b16 %v4828
    %v5983 = vunpack.c.l.b16 %v4829
    %v5984 = vunpack.c.h.b16 %v4829
    %v5985 = vunpack.c.l.b16 %v4830
    %v5986 = vunpack.c.h.b16 %v4830
    %v5987 = vunpack.c.l.b16 %v4831
    %v5988 = vunpack.c.h.b16 %v4831
    %v5989 = vunpack.c.l.b16 %v4832
    %v5990 = vunpack.c.h.b16 %v4832
    %v5991 = vunpack.c.l.b16 %v4833
    %v5992 = vunpack.c.h.b16 %v4833
    %v5993 = vunpack.c.l.b16 %v4834
    %v5994 = vunpack.c.h.b16 %v4834
    %v5995 = vunpack.c.l.b16 %v4835
    %v5996 = vunpack.c.h.b16 %v4835
    %v5997 = vunpack.c.l.b16 %v4836
    %v5998 = vunpack.c.h.b16 %v4836
    %v5999 = vunpack.c.l.b16 %v4837
    %v6000 = vunpack.c.h.b16 %v4837
    %v6001 = vunpack.c.l.b16 %v4838
    %v6002 = vunpack.c.h.b16 %v4838
    %v6003 = vunpack.c.l.b16 %v4839
    %v6004 = vunpack.c.h.b16 %v4839
    %v6005 = vunpack.c.l.b16 %v4840
    %v6006 = vunpack.c.h.b16 %v4840
    %v6007 = vunpack.c.l.b16 %v4841
    %v6008 = vunpack.c.h.b16 %v4841
    %v6009 = vunpack.c.l.b16 %v4842
    %v6010 = vunpack.c.h.b16 %v4842
    %v6011 = vunpack.c.l.b16 %v4843
    %v6012 = vunpack.c.h.b16 %v4843
    %v6013 = vunpack.c.l.b16 %v4844
    %v6014 = vunpack.c.h.b16 %v4844
    %v6015 = vunpack.c.l.b16 %v4845
    %v6016 = vunpack.c.h.b16 %v4845
    %v6017 = vunpack.c.l.b16 %v4846
    %v6018 = vunpack.c.h.b16 %v4846
    %v6019 = vunpack.c.l.b16 %v4847
    %v6020 = vunpack.c.h.b16 %v4847
    %v6021 = vunpack.c.l.b16 %v4848
    %v6022 = vunpack.c.h.b16 %v4848
    %v6023 = vunpack.c.l.b16 %v4849
    %v6024 = vunpack.c.h.b16 %v4849
    %v6025 = vunpack.c.l.b16 %v4850
    %v6026 = vunpack.c.h.b16 %v4850
    %v6027 = vunpack.c.l.b16 %v4851
    %v6028 = vunpack.c.h.b16 %v4851
    %v6029 = vunpack.c.l.b16 %v4852
    %v6030 = vunpack.c.h.b16 %v4852
    %v6031 = vunpack.c.l.b16 %v4853
    %v6032 = vunpack.c.h.b16 %v4853
    %v6033 = vunpack.c.l.b16 %v4854
    %v6034 = vunpack.c.h.b16 %v4854
    %v6035 = vunpack.c.l.b16 %v4855
    %v6036 = vunpack.c.h.b16 %v4855
    %v6037 = vunpack.c.l.b16 %v4856
    %v6038 = vunpack.c.h.b16 %v4856
    %v6039 = vunpack.c.l.b16 %v4857
    %v6040 = vunpack.c.h.b16 %v4857
    %v6041 = vunpack.c.l.b16 %v4858
    %v6042 = vunpack.c.h.b16 %v4858
    %v6043 = vpack.c.b16 %v5919, %v5915
    %v6044 = vpack.c.b16 %v5920, %v5916
    %v6045 = vpack.c.b16 %v5921, %v5917
    %v6046 = vpack.c.b16 %v5922, %v5918
    %v6047 = vpack.c.b16 %v5927, %v5923
    %v6048 = vpack.c.b16 %v5928, %v5924
    %v6049 = vpack.c.b16 %v5929, %v5925
    %v6050 = vpack.c.b16 %v5930, %v5926
    %v6051 = vpack.c.b16 %v5935, %v5931
    %v6052 = vpack.c.b16 %v5936, %v5932
    %v6053 = vpack.c.b16 %v5937, %v5933
    %v6054 = vpack.c.b16 %v5938, %v5934
    %v6055 = vpack.c.b16 %v5943, %v5939
    %v6056 = vpack.c.b16 %v5944, %v5940
    %v6057 = vpack.c.b16 %v5945, %v5941
    %v6058 = vpack.c.b16 %v5946, %v5942
    %v6059 = vpack.c.b16 %v5951, %v5947
    %v6060 = vpack.c.b16 %v5952, %v5948
    %v6061 = vpack.c.b16 %v5953, %v5949
    %v6062 = vpack.c.b16 %v5954, %v5950
    %v6063 = vpack.c.b16 %v5959, %v5955
    %v6064 = vpack.c.b16 %v5960, %v5956
    %v6065 = vpack.c.b16 %v5961, %v5957
    %v6066 = vpack.c.b16 %v5962, %v5958
    %v6067 = vpack.c.b16 %v5967, %v5963
    %v6068 = vpack.c.b16 %v5968, %v5964
    %v6069 = vpack.c.b16 %v5969, %v5965
    %v6070 = vpack.c.b16 %v5970, %v5966
    %v6071 = vpack.c.b16 %v5975, %v5971
    %v6072 = vpack.c.b16 %v5976, %v5972
    %v6073 = vpack.c.b16 %v5977, %v5973
    %v6074 = vpack.c.b16 %v5978, %v5974
    %v6075 = vpack.c.b16 %v5983, %v5979
    %v6076 = vpack.c.b16 %v5984, %v5980
    %v6077 = vpack.c.b16 %v5985, %v5981
    %v6078 = vpack.c.b16 %v5986, %v5982
    %v6079 = vpack.c.b16 %v5991, %v5987
    %v6080 = vpack.c.b16 %v5992, %v5988
    %v6081 = vpack.c.b16 %v5993, %v5989
    %v6082 = vpack.c.b16 %v5994, %v5990
    %v6083 = vpack.c.b16 %v5999, %v5995
    %v6084 = vpack.c.b16 %v6000, %v5996
    %v6085 = vpack.c.b16 %v6001, %v5997
    %v6086 = vpack.c.b16 %v6002, %v5998
    %v6087 = vpack.c.b16 %v6007, %v6003
    %v6088 = vpack.c.b16 %v6008, %v6004
    %v6089 = vpack.c.b16 %v6009, %v6005
    %v6090 = vpack.c.b16 %v6010, %v6006
    %v6091 = vpack.c.b16 %v6015, %v6011
    %v6092 = vpack.c.b16 %v6016, %v6012
    %v6093 = vpack.c.b16 %v6017, %v6013
    %v6094 = vpack.c.b16 %v6018, %v6014
    %v6095 = vpack.c.b16 %v6023, %v6019
    %v6096 = vpack.c.b16 %v6024, %v6020
    %v6097 = vpack.c.b16 %v6025, %v6021
    %v6098 = vpack.c.b16 %v6026, %v6022
    %v6099 = vpack.c.b16 %v6031, %v6027
    %v6100 = vpack.c.b16 %v6032, %v6028
    %v6101 = vpack.c.b16 %v6033, %v6029
    %v6102 = vpack.c.b16 %v6034, %v6030
    %v6103 = vpack.c.b16 %v6039, %v6035
    %v6104 = vpack.c.b16 %v6040, %v6036
    %v6105 = vpack.c.b16 %v6041, %v6037
    %v6106 = vpack.c.b16 %v6042, %v6038
    %6171 = vmatpush.bf16.msra.mxu0 %v6071
    %6172 = vmatpush.bf16.msra.mxu0 %v6067
    %6173 = vmatpush.bf16.msra.mxu0 %v6063
    %6174 = vmatpush.bf16.msra.mxu0 %v6059
    %6175 = vmatpush.bf16.msra.mxu0 %v6055
    %6176 = vmatpush.bf16.msra.mxu0 %v6051
    %6177 = vmatpush.bf16.msra.mxu0 %v6047
    %6178 = vmatpush.bf16.msra.mxu0 %v6043
    %6179 = vmatmul.bf16.gmra.mxu0 %v2183
    %v6180 = vpop.f32.mrf.mxu0
    %v6181 = vadd.f32 %v5679, %v6180
    %v6182 = vpop.f32.mrf.mxu0
    %v6183 = vadd.f32 %v5681, %v6182
    %6184 = vdwg.mxu0
    %6185 = vmatpush.bf16.msra.mxu0 %v6103
    %6186 = vmatpush.bf16.msra.mxu0 %v6099
    %6187 = vmatpush.bf16.msra.mxu0 %v6095
    %6188 = vmatpush.bf16.msra.mxu0 %v6091
    %6189 = vmatpush.bf16.msra.mxu0 %v6087
    %6190 = vmatpush.bf16.msra.mxu0 %v6083
    %6191 = vmatpush.bf16.msra.mxu0 %v6079
    %6192 = vmatpush.bf16.msra.mxu0 %v6075
    %6193 = vmatmul.bf16.gmra.mxu0 %v2184
    %v6194 = vpop.f32.mrf.mxu0
    %v6195 = vadd.f32 %v6181, %v6194
    %v6196 = vpop.f32.mrf.mxu0
    %v6197 = vadd.f32 %v6183, %v6196
    %6198 = vdwg.mxu0
    %6199 = vmatpush.bf16.msra.mxu0 %v6072
    %6200 = vmatpush.bf16.msra.mxu0 %v6068
    %6201 = vmatpush.bf16.msra.mxu0 %v6064
    %6202 = vmatpush.bf16.msra.mxu0 %v6060
    %6203 = vmatpush.bf16.msra.mxu0 %v6056
    %6204 = vmatpush.bf16.msra.mxu0 %v6052
    %6205 = vmatpush.bf16.msra.mxu0 %v6048
    %6206 = vmatpush.bf16.msra.mxu0 %v6044
    %6207 = vmatmul.bf16.gmra.mxu0 %v2183
    %v6208 = vpop.f32.mrf.mxu0
    %v6209 = vadd.f32 %v5735, %v6208
    %v6210 = vpop.f32.mrf.mxu0
    %v6211 = vadd.f32 %v5737, %v6210
    %6212 = vdwg.mxu0
    %6213 = vmatpush.bf16.msra.mxu0 %v6104
    %6214 = vmatpush.bf16.msra.mxu0 %v6100
    %6215 = vmatpush.bf16.msra.mxu0 %v6096
    %6216 = vmatpush.bf16.msra.mxu0 %v6092
    %6217 = vmatpush.bf16.msra.mxu0 %v6088
    %6218 = vmatpush.bf16.msra.mxu0 %v6084
    %6219 = vmatpush.bf16.msra.mxu0 %v6080
    %6220 = vmatpush.bf16.msra.mxu0 %v6076
    %6221 = vmatmul.bf16.gmra.mxu0 %v2184
    %v6222 = vpop.f32.mrf.mxu0
    %v6223 = vadd.f32 %v6209, %v6222
    %v6224 = vpop.f32.mrf.mxu0
    %v6225 = vadd.f32 %v6211, %v6224
    %6226 = vdwg.mxu0
    %6227 = vmatpush.bf16.msra.mxu0 %v6073
    %6228 = vmatpush.bf16.msra.mxu0 %v6069
    %6229 = vmatpush.bf16.msra.mxu0 %v6065
    %6230 = vmatpush.bf16.msra.mxu0 %v6061
    %6231 = vmatpush.bf16.msra.mxu0 %v6057
    %6232 = vmatpush.bf16.msra.mxu0 %v6053
    %6233 = vmatpush.bf16.msra.mxu0 %v6049
    %6234 = vmatpush.bf16.msra.mxu0 %v6045
    %6235 = vmatmul.bf16.gmra.mxu0 %v2183
    %v6236 = vpop.f32.mrf.mxu0
    %v6237 = vadd.f32 %v5791, %v6236
    %v6238 = vpop.f32.mrf.mxu0
    %v6239 = vadd.f32 %v5793, %v6238
    %6240 = vdwg.mxu0
    %6241 = vmatpush.bf16.msra.mxu0 %v6105
    %6242 = vmatpush.bf16.msra.mxu0 %v6101
    %6243 = vmatpush.bf16.msra.mxu0 %v6097
    %6244 = vmatpush.bf16.msra.mxu0 %v6093
    %6245 = vmatpush.bf16.msra.mxu0 %v6089
    %6246 = vmatpush.bf16.msra.mxu0 %v6085
    %6247 = vmatpush.bf16.msra.mxu0 %v6081
    %6248 = vmatpush.bf16.msra.mxu0 %v6077
    %6249 = vmatmul.bf16.gmra.mxu0 %v2184
    %v6250 = vpop.f32.mrf.mxu0
    %v6251 = vadd.f32 %v6237, %v6250
    %v6252 = vpop.f32.mrf.mxu0
    %v6253 = vadd.f32 %v6239, %v6252
    %6254 = vdwg.mxu0
    %6255 = vmatpush.bf16.msra.mxu0 %v6074
    %6256 = vmatpush.bf16.msra.mxu0 %v6070
    %6257 = vmatpush.bf16.msra.mxu0 %v6066
    %6258 = vmatpush.bf16.msra.mxu0 %v6062
    %6259 = vmatpush.bf16.msra.mxu0 %v6058
    %6260 = vmatpush.bf16.msra.mxu0 %v6054
    %6261 = vmatpush.bf16.msra.mxu0 %v6050
    %6262 = vmatpush.bf16.msra.mxu0 %v6046
    %6263 = vmatmul.bf16.gmra.mxu0 %v2183
    %v6264 = vpop.f32.mrf.mxu0
    %v6265 = vadd.f32 %v5847, %v6264
    %v6266 = vpop.f32.mrf.mxu0
    %v6267 = vadd.f32 %v5849, %v6266
    %6268 = vdwg.mxu0
    %6269 = vmatpush.bf16.msra.mxu0 %v6106
    %6270 = vmatpush.bf16.msra.mxu0 %v6102
    %6271 = vmatpush.bf16.msra.mxu0 %v6098
    %6272 = vmatpush.bf16.msra.mxu0 %v6094
    %6273 = vmatpush.bf16.msra.mxu0 %v6090
    %6274 = vmatpush.bf16.msra.mxu0 %v6086
    %6275 = vmatpush.bf16.msra.mxu0 %v6082
    %6276 = vmatpush.bf16.msra.mxu0 %v6078
    %6277 = vmatmul.bf16.gmra.mxu0 %v2184
    %v6278 = vpop.f32.mrf.mxu0
    %v6279 = vadd.f32 %v6265, %v6278
    %v6280 = vpop.f32.mrf.mxu0
    %v6281 = vadd.f32 %v6267, %v6280
    %6282 = vdwg.mxu0
    %v6283 = vld [vmem:[%s11] sm:$0xf]
    %v6285 = vperm.slane %v6283, 0
    %v6286 = vperm.slane %v6283, 1
    %v6287 = vperm.slane %v6283, 2
    %v6288 = vperm.slane %v6283, 3
    %v6293 = vadd.f32 %v6195, %v6285
    %v6294 = vadd.f32 %v6223, %v6286
    %v6295 = vadd.f32 %v6251, %v6287
    %v6296 = vadd.f32 %v6279, %v6288
    %v6297 = vadd.f32 %v6197, %v6285
    %v6298 = vadd.f32 %v6225, %v6286
    %v6299 = vadd.f32 %v6253, %v6287
    %v6300 = vadd.f32 %v6281, %v6288
    %v6301 = vmax.f32 %v6293, 0.0
    %v6302 = vmax.f32 %v6294, 0.0
    %v6303 = vmax.f32 %v6295, 0.0
    %v6304 = vmax.f32 %v6296, 0.0
    %v6305 = vmax.f32 %v6297, 0.0
    %v6306 = vmax.f32 %v6298, 0.0
    %v6307 = vmax.f32 %v6299, 0.0
    %v6308 = vmax.f32 %v6300, 0.0
    %v6309 = vpack.c.bf16 %v6305, %v6301
    %v6310 = vpack.c.bf16 %v6306, %v6302
    %v6311 = vpack.c.bf16 %v6307, %v6303
    %v6312 = vpack.c.bf16 %v6308, %v6304
    %v6313 = vld [vmem:[#allocation23] sm:$0xf]
    %v6314 = vld [vmem:[#allocation23 + $0x4] sm:$0xf]
    %v6315 = vld [vmem:[#allocation23 + $0x8] sm:$0xf]
    %v6316 = vld [vmem:[#allocation23 + $0xc] sm:$0xf]
    %v6317 = vld [vmem:[#allocation23 + $0x10] sm:$0xf]
    %v6318 = vld [vmem:[#allocation23 + $0x14] sm:$0xf]
    %v6319 = vld [vmem:[#allocation23 + $0x18] sm:$0xf]
    %v6320 = vld [vmem:[#allocation23 + $0x1c] sm:$0xf]
    %v6321 = vld [vmem:[#allocation23 + $0x20] sm:$0xf]
    %v6322 = vld [vmem:[#allocation23 + $0x24] sm:$0xf]
    %v6323 = vld [vmem:[#allocation23 + $0x28] sm:$0xf]
    %v6324 = vld [vmem:[#allocation23 + $0x2c] sm:$0xf]
    %v6325 = vld [vmem:[#allocation23 + $0x30] sm:$0xf]
    %v6326 = vld [vmem:[#allocation23 + $0x34] sm:$0xf]
    %v6327 = vld [vmem:[#allocation23 + $0x38] sm:$0xf]
    %v6328 = vld [vmem:[#allocation23 + $0x3c] sm:$0xf]
    %v6329 = vld [vmem:[#allocation23 + $0x40] sm:$0xf]
    %v6330 = vld [vmem:[#allocation23 + $0x44] sm:$0xf]
    %v6331 = vld [vmem:[#allocation23 + $0x48] sm:$0xf]
    %v6332 = vld [vmem:[#allocation23 + $0x4c] sm:$0xf]
    %v6333 = vld [vmem:[#allocation23 + $0x50] sm:$0xf]
    %v6334 = vld [vmem:[#allocation23 + $0x54] sm:$0xf]
    %v6335 = vld [vmem:[#allocation23 + $0x58] sm:$0xf]
    %v6336 = vld [vmem:[#allocation23 + $0x5c] sm:$0xf]
    %v6337 = vld [vmem:[#allocation23 + $0x60] sm:$0xf]
    %v6338 = vld [vmem:[#allocation23 + $0x64] sm:$0xf]
    %v6339 = vld [vmem:[#allocation23 + $0x68] sm:$0xf]
    %v6340 = vld [vmem:[#allocation23 + $0x6c] sm:$0xf]
    %v6341 = vld [vmem:[#allocation23 + $0x70] sm:$0xf]
    %v6342 = vld [vmem:[#allocation23 + $0x74] sm:$0xf]
    %v6343 = vld [vmem:[#allocation23 + $0x78] sm:$0xf]
    %v6344 = vld [vmem:[#allocation23 + $0x7c] sm:$0xf]
    %v6345 = vld [vmem:[#allocation23 + $0x80] sm:$0xf]
    %v6346 = vld [vmem:[#allocation23 + $0x84] sm:$0xf]
    %v6347 = vld [vmem:[#allocation23 + $0x88] sm:$0xf]
    %v6348 = vld [vmem:[#allocation23 + $0x8c] sm:$0xf]
    %v6349 = vld [vmem:[#allocation23 + $0x90] sm:$0xf]
    %v6350 = vld [vmem:[#allocation23 + $0x94] sm:$0xf]
    %v6351 = vld [vmem:[#allocation23 + $0x98] sm:$0xf]
    %v6352 = vld [vmem:[#allocation23 + $0x9c] sm:$0xf]
    %v6353 = vld [vmem:[#allocation23 + $0xa0] sm:$0xf]
    %v6354 = vld [vmem:[#allocation23 + $0xa4] sm:$0xf]
    %v6355 = vld [vmem:[#allocation23 + $0xa8] sm:$0xf]
    %v6356 = vld [vmem:[#allocation23 + $0xac] sm:$0xf]
    %v6357 = vld [vmem:[#allocation23 + $0xb0] sm:$0xf]
    %v6358 = vld [vmem:[#allocation23 + $0xb4] sm:$0xf]
    %v6359 = vld [vmem:[#allocation23 + $0xb8] sm:$0xf]
    %v6360 = vld [vmem:[#allocation23 + $0xbc] sm:$0xf]
    %v6361 = vld [vmem:[#allocation23 + $0xc0] sm:$0xf]
    %v6362 = vld [vmem:[#allocation23 + $0xc4] sm:$0xf]
    %v6363 = vld [vmem:[#allocation23 + $0xc8] sm:$0xf]
    %v6364 = vld [vmem:[#allocation23 + $0xcc] sm:$0xf]
    %v6365 = vld [vmem:[#allocation23 + $0xd0] sm:$0xf]
    %v6366 = vld [vmem:[#allocation23 + $0xd4] sm:$0xf]
    %v6367 = vld [vmem:[#allocation23 + $0xd8] sm:$0xf]
    %v6368 = vld [vmem:[#allocation23 + $0xdc] sm:$0xf]
    %v6369 = vld [vmem:[#allocation23 + $0xe0] sm:$0xf]
    %v6370 = vld [vmem:[#allocation23 + $0xe4] sm:$0xf]
    %v6371 = vld [vmem:[#allocation23 + $0xe8] sm:$0xf]
    %v6372 = vld [vmem:[#allocation23 + $0xec] sm:$0xf]
    %v6373 = vld [vmem:[#allocation23 + $0xf0] sm:$0xf]
    %v6374 = vld [vmem:[#allocation23 + $0xf4] sm:$0xf]
    %v6375 = vld [vmem:[#allocation23 + $0xf8] sm:$0xf]
    %v6376 = vld [vmem:[#allocation23 + $0xfc] sm:$0xf]
    %v6441 = vunpack.c.l.b16 %v6313
    %v6442 = vunpack.c.l.b16 %v6314
    %v6443 = vunpack.c.l.b16 %v6315
    %v6444 = vunpack.c.l.b16 %v6316
    %v6445 = vunpack.c.l.b16 %v6317
    %v6446 = vunpack.c.l.b16 %v6318
    %v6447 = vunpack.c.l.b16 %v6319
    %v6448 = vunpack.c.l.b16 %v6320
    %v6449 = vunpack.c.l.b16 %v6321
    %v6450 = vunpack.c.l.b16 %v6322
    %v6451 = vunpack.c.l.b16 %v6323
    %v6452 = vunpack.c.l.b16 %v6324
    %v6453 = vunpack.c.l.b16 %v6325
    %v6454 = vunpack.c.l.b16 %v6326
    %v6455 = vunpack.c.l.b16 %v6327
    %v6456 = vunpack.c.l.b16 %v6328
    %v6457 = vunpack.c.l.b16 %v6329
    %v6458 = vunpack.c.l.b16 %v6330
    %v6459 = vunpack.c.l.b16 %v6331
    %v6460 = vunpack.c.l.b16 %v6332
    %v6461 = vunpack.c.l.b16 %v6333
    %v6462 = vunpack.c.l.b16 %v6334
    %v6463 = vunpack.c.l.b16 %v6335
    %v6464 = vunpack.c.l.b16 %v6336
    %v6465 = vunpack.c.l.b16 %v6337
    %v6466 = vunpack.c.l.b16 %v6338
    %v6467 = vunpack.c.l.b16 %v6339
    %v6468 = vunpack.c.l.b16 %v6340
    %v6469 = vunpack.c.l.b16 %v6341
    %v6470 = vunpack.c.l.b16 %v6342
    %v6471 = vunpack.c.l.b16 %v6343
    %v6472 = vunpack.c.l.b16 %v6344
    %v6473 = vunpack.c.l.b16 %v6345
    %v6474 = vunpack.c.l.b16 %v6346
    %v6475 = vunpack.c.l.b16 %v6347
    %v6476 = vunpack.c.l.b16 %v6348
    %v6477 = vunpack.c.l.b16 %v6349
    %v6478 = vunpack.c.l.b16 %v6350
    %v6479 = vunpack.c.l.b16 %v6351
    %v6480 = vunpack.c.l.b16 %v6352
    %v6481 = vunpack.c.l.b16 %v6353
    %v6482 = vunpack.c.l.b16 %v6354
    %v6483 = vunpack.c.l.b16 %v6355
    %v6484 = vunpack.c.l.b16 %v6356
    %v6485 = vunpack.c.l.b16 %v6357
    %v6486 = vunpack.c.l.b16 %v6358
    %v6487 = vunpack.c.l.b16 %v6359
    %v6488 = vunpack.c.l.b16 %v6360
    %v6489 = vunpack.c.l.b16 %v6361
    %v6490 = vunpack.c.l.b16 %v6362
    %v6491 = vunpack.c.l.b16 %v6363
    %v6492 = vunpack.c.l.b16 %v6364
    %v6493 = vunpack.c.l.b16 %v6365
    %v6494 = vunpack.c.l.b16 %v6366
    %v6495 = vunpack.c.l.b16 %v6367
    %v6496 = vunpack.c.l.b16 %v6368
    %v6497 = vunpack.c.l.b16 %v6369
    %v6498 = vunpack.c.l.b16 %v6370
    %v6499 = vunpack.c.l.b16 %v6371
    %v6500 = vunpack.c.l.b16 %v6372
    %v6501 = vunpack.c.l.b16 %v6373
    %v6502 = vunpack.c.l.b16 %v6374
    %v6503 = vunpack.c.l.b16 %v6375
    %v6504 = vunpack.c.l.b16 %v6376
    %v6505 = vpack.c.b16 %v6442, %v6441
    %v6506 = vpack.c.b16 %v6444, %v6443
    %v6507 = vpack.c.b16 %v6446, %v6445
    %v6508 = vpack.c.b16 %v6448, %v6447
    %v6509 = vpack.c.b16 %v6450, %v6449
    %v6510 = vpack.c.b16 %v6452, %v6451
    %v6511 = vpack.c.b16 %v6454, %v6453
    %v6512 = vpack.c.b16 %v6456, %v6455
    %v6513 = vpack.c.b16 %v6458, %v6457
    %v6514 = vpack.c.b16 %v6460, %v6459
    %v6515 = vpack.c.b16 %v6462, %v6461
    %v6516 = vpack.c.b16 %v6464, %v6463
    %v6517 = vpack.c.b16 %v6466, %v6465
    %v6518 = vpack.c.b16 %v6468, %v6467
    %v6519 = vpack.c.b16 %v6470, %v6469
    %v6520 = vpack.c.b16 %v6472, %v6471
    %v6521 = vpack.c.b16 %v6474, %v6473
    %v6522 = vpack.c.b16 %v6476, %v6475
    %v6523 = vpack.c.b16 %v6478, %v6477
    %v6524 = vpack.c.b16 %v6480, %v6479
    %v6525 = vpack.c.b16 %v6482, %v6481
    %v6526 = vpack.c.b16 %v6484, %v6483
    %v6527 = vpack.c.b16 %v6486, %v6485
    %v6528 = vpack.c.b16 %v6488, %v6487
    %v6529 = vpack.c.b16 %v6490, %v6489
    %v6530 = vpack.c.b16 %v6492, %v6491
    %v6531 = vpack.c.b16 %v6494, %v6493
    %v6532 = vpack.c.b16 %v6496, %v6495
    %v6533 = vpack.c.b16 %v6498, %v6497
    %v6534 = vpack.c.b16 %v6500, %v6499
    %v6535 = vpack.c.b16 %v6502, %v6501
    %v6536 = vpack.c.b16 %v6504, %v6503
    %6569 = vmatpush.bf16.msra.mxu0 %v6512
    %6570 = vmatpush.bf16.msra.mxu0 %v6511
    %6571 = vmatpush.bf16.msra.mxu0 %v6510
    %6572 = vmatpush.bf16.msra.mxu0 %v6509
    %6573 = vmatpush.bf16.msra.mxu0 %v6508
    %6574 = vmatpush.bf16.msra.mxu0 %v6507
    %6575 = vmatpush.bf16.msra.mxu0 %v6506
    %6576 = vmatpush.bf16.msra.mxu0 %v6505
    %6577 = vmatmul.bf16.gmra.mxu0 %v6309
    %v6578 = vpop.f32.mrf.mxu0
    %v6579 = vadd.f32 0.0, %v6578
    %v6580 = vpop.f32.mrf.mxu0
    %v6581 = vadd.f32 0.0, %v6580
    %6582 = vdwg.mxu0
    %6583 = vmatpush.bf16.msra.mxu0 %v6520
    %6584 = vmatpush.bf16.msra.mxu0 %v6519
    %6585 = vmatpush.bf16.msra.mxu0 %v6518
    %6586 = vmatpush.bf16.msra.mxu0 %v6517
    %6587 = vmatpush.bf16.msra.mxu0 %v6516
    %6588 = vmatpush.bf16.msra.mxu0 %v6515
    %6589 = vmatpush.bf16.msra.mxu0 %v6514
    %6590 = vmatpush.bf16.msra.mxu0 %v6513
    %6591 = vmatmul.bf16.gmra.mxu0 %v6310
    %v6592 = vpop.f32.mrf.mxu0
    %v6593 = vadd.f32 %v6579, %v6592
    %v6594 = vpop.f32.mrf.mxu0
    %v6595 = vadd.f32 %v6581, %v6594
    %6596 = vdwg.mxu0
    %6597 = vmatpush.bf16.msra.mxu0 %v6528
    %6598 = vmatpush.bf16.msra.mxu0 %v6527
    %6599 = vmatpush.bf16.msra.mxu0 %v6526
    %6600 = vmatpush.bf16.msra.mxu0 %v6525
    %6601 = vmatpush.bf16.msra.mxu0 %v6524
    %6602 = vmatpush.bf16.msra.mxu0 %v6523
    %6603 = vmatpush.bf16.msra.mxu0 %v6522
    %6604 = vmatpush.bf16.msra.mxu0 %v6521
    %6605 = vmatmul.bf16.gmra.mxu0 %v6311
    %v6606 = vpop.f32.mrf.mxu0
    %v6607 = vadd.f32 %v6593, %v6606
    %v6608 = vpop.f32.mrf.mxu0
    %v6609 = vadd.f32 %v6595, %v6608
    %6610 = vdwg.mxu0
    %6611 = vmatpush.bf16.msra.mxu0 %v6536
    %6612 = vmatpush.bf16.msra.mxu0 %v6535
    %6613 = vmatpush.bf16.msra.mxu0 %v6534
    %6614 = vmatpush.bf16.msra.mxu0 %v6533
    %6615 = vmatpush.bf16.msra.mxu0 %v6532
    %6616 = vmatpush.bf16.msra.mxu0 %v6531
    %6617 = vmatpush.bf16.msra.mxu0 %v6530
    %6618 = vmatpush.bf16.msra.mxu0 %v6529
    %6619 = vmatmul.bf16.gmra.mxu0 %v6312
    %v6620 = vpop.f32.mrf.mxu0
    %v6621 = vadd.f32 %v6607, %v6620
    %v6622 = vpop.f32.mrf.mxu0
    %v6623 = vadd.f32 %v6609, %v6622
    %6624 = vdwg.mxu0
    %v6625 = vadd.f32 %v4793, %v6621
    %v6626 = vadd.f32 %v4794, %v6623
    %6627 = vst [vmem:[#allocation25] sm:$0xff] %v6625
    %6628 = vst [vmem:[#allocation25 + $0x8] sm:$0xff] %v6626
    // Predicated region
    $region126: #{tpu_custom_call.1} parent=1 // pred_check
      _
    $region127: #{tpu_custom_call.1} parent=1 // pred_check_branch
      %6630 = sbr.rel (0) target = $region129
    $region128: #{tpu_custom_call.1} parent=1 // pred_region
      %6632 = vsyncadd [#allocation4], 0
      %s6633 = sshll.u32 [#allocation25], 4
      %s6634 = int_to_ptr.vmem [resolvable:$true] %s6633
      %s6635 = sshll.u32 %s17, 4
      %s6636 = int_to_ptr.hbm [resolvable:$true] %s6635
      %6641 = dma.vmem_to_hbm [thread:$0]  %s6634, 256, %s6636, [#allocation4], 128, 128, 8
    $region129: #{tpu_custom_call.1} parent=1 // pred_fallthru
      _
    // Predicated region
    $region130: #{tpu_custom_call.1} parent=1 // pred_check
      _
    $region131: #{tpu_custom_call.1} parent=1 // pred_check_branch
      %6643 = sbr.rel (0) target = $region133
    $region132: #{tpu_custom_call.1} parent=1 // pred_region
      %6645 = dma.done [#allocation4], 256
    $region133: #{tpu_custom_call.1} parent=1 // pred_fallthru
      _
    %6646 = vsyncpa [#allocation3], 1
    %6647 = vsyncpa [#allocation6], 1
    %6648 = vsyncpa [#allocation9], 1
    %6649 = vsyncpa [#allocation12], 1
    %6650 = vsyncpa [#allocation15], 1
    %6651 = vsyncpa [#allocation18], 1
    %6652 = vsyncpa [#allocation21], 1
    %6653 = vsyncpa [#allocation24], 1
    %6654 = vsyncpa [#allocation4], 1

</llo_original>
